<compile_context>
chip_gen: v7x
topology: tpu7x:2x2x1
jax: 0.10.0
libtpu: 0.0.40
codegen_flags: <defaults>
</compile_context>

<pallas_src>
import functools

import numpy as np
import jax
import jax.numpy as jnp
from jax import lax
from jax.experimental import pallas as pl

# ----- small synthetic CLIP hyper-parameters -----
IMG_SIZE = 16
PATCH = 8
IMG_CH = 3
VIS_WIDTH = 32
TXT_WIDTH = 32
EMBED_DIM = 32
HEADS = 2
LAYERS = 2
N_CLS = 4
N_CTX = 2
SEQ_T = 8                          # 1 prefix token + N_CTX ctx tokens + 5 suffix tokens
N_PATCH = (IMG_SIZE // PATCH) ** 2
SEQ_V = N_PATCH + 1                # class token + patches
ROWS_T = N_CLS * SEQ_T


# ----------------------------- in-kernel helpers -----------------------------

def _ln_rows(x, g, b):
    """Row-wise layernorm, single-pass statistics: x (rows, W), g/b (1, W)."""
    mu = jnp.mean(x, axis=-1, keepdims=True)
    ms = jnp.mean(x * x, axis=-1, keepdims=True)
    var = ms - mu * mu
    return (x - mu) * lax.rsqrt(var + 1e-5) * g + b


def _encoder_layer(x, attn_bias, ln1_g, ln1_b, qkv_w, qkv_b, out_w, out_b,
                   ln2_g, ln2_b, mlp_w1, mlp_b1, mlp_w2, mlp_b2, *, heads):
    """One pre-norm CLIP residual attention block on values held in VMEM/vregs.

    NOTE: the 1/sqrt(head_dim) attention scale is pre-folded into the Q columns of qkv_w
    (see init_params), so no per-score multiply is needed here.
    """
    width = x.shape[-1]
    dh = width // heads

    h = _ln_rows(x, ln1_g, ln1_b)
    qkv = jnp.dot(h, qkv_w, preferred_element_type=jnp.float32) + qkv_b     # (rows, 3W)

    outs = []
    for hd in range(heads):
        c0 = hd * dh
        q = qkv[:, c0:c0 + dh]
        k = qkv[:, width + c0:width + c0 + dh]
        v = qkv[:, 2 * width + c0:2 * width + c0 + dh]
        s = lax.dot_general(q, k, (((1,), (1,)), ((), ())),
                            preferred_element_type=jnp.float32) + attn_bias
        s = s - jnp.max(s, axis=-1, keepdims=True)
        p = jnp.exp(s)
        # approx reciprocal (EUP) -> ~1e-4 rel. error vs exact softmax; use approx=False
        # if bit-level parity with the PyTorch reference is required.
        p = p * pl.reciprocal(jnp.sum(p, axis=-1, keepdims=True), approx=True)
        outs.append(jnp.dot(p, v, preferred_element_type=jnp.float32))      # (rows, dh)

    o_cat = jnp.concatenate(outs, axis=-1)                                  # (rows, W)
    x = x + jnp.dot(o_cat, out_w, preferred_element_type=jnp.float32) + out_b

    h2 = _ln_rows(x, ln2_g, ln2_b)
    m = jnp.dot(h2, mlp_w1, preferred_element_type=jnp.float32) + mlp_b1
    m = m * jax.nn.sigmoid(1.702 * m)                                       # CLIP QuickGELU
    return x + jnp.dot(m, mlp_w2, preferred_element_type=jnp.float32) + mlp_b2


def _run_tower(x, attn_bias, vecs_ref, qkv_w_ref, qkv_b_ref, out_w_ref,
               mlp_w1_ref, mlp_b1_ref, mlp_w2_ref, *, heads):
    """Unrolled transformer tower; per-layer weights indexed statically from stacked refs."""
    layers = vecs_ref.shape[0]
    for l in range(layers):
        vecs = vecs_ref[l]          # (6, W) packed: [ln1_g, ln1_b, out_b, ln2_g, ln2_b, mlp_b2]
        x = _encoder_layer(
            x, attn_bias,
            vecs[0:1], vecs[1:2],                    # ln1 gamma / beta
            qkv_w_ref[l], qkv_b_ref[l],
            out_w_ref[l], vecs[2:3],                 # attn out proj weight / bias
            vecs[3:4], vecs[4:5],                    # ln2 gamma / beta
            mlp_w1_ref[l], mlp_b1_ref[l], mlp_w2_ref[l], vecs[5:6],
            heads=heads)
    return x


# ----------------------------- single fused kernel -----------------------------

def _custom_clip_kernel(
        # --- text tower ---
        prompts_ref, posrep_t_ref, txt_pos_ref, eot_ref, bias_t_ref,
        t_vecs_ref, t_qkv_w_ref, t_qkv_b_ref, t_out_w_ref,
        t_mlp_w1_ref, t_mlp_b1_ref, t_mlp_w2_ref,
        lnf_g_ref, lnf_b_ref, txt_proj_ref,
        # --- vision tower ---
        patches_ref, conv1_w_ref, place_ref, tokmat_ref, vis_tok_ref, bias_v_ref,
        lnpre_g_ref, lnpre_b_ref,
        v_vecs_ref, v_qkv_w_ref, v_qkv_b_ref, v_out_w_ref,
        v_mlp_w1_ref, v_mlp_b1_ref, v_mlp_w2_ref,
        sel_cls_ref, lnpost_g_ref, lnpost_b_ref, vis_proj_ref,
        # --- logit scale ---
        logit_scale_ref,
        # --- output ---
        logits_ref,
        *, heads):
    # ---------------- text tower ----------------
    x_t = prompts_ref[...] + jnp.dot(posrep_t_ref[...], txt_pos_ref[...],
                                     preferred_element_type=jnp.float32)
    x_t = _run_tower(x_t, bias_t_ref[...],
                     t_vecs_ref, t_qkv_w_ref, t_qkv_b_ref, t_out_w_ref,
                     t_mlp_w1_ref, t_mlp_b1_ref, t_mlp_w2_ref, heads=heads)

    # EOT gather: one-hot selector built from iotas (ln_final commutes with the row gather
    # since it is row-wise), then ln_final + text projection.
    rows_t = x_t.shape[0]
    n_cls = eot_ref.shape[0]
    seq_t = posrep_t_ref.shape[1]
    ci = lax.broadcasted_iota(jnp.int32, (n_cls, rows_t), 0)
    ri = lax.broadcasted_iota(jnp.int32, (n_cls, rows_t), 1)
    sel_eot = (ri == ci * seq_t + eot_ref[...]).astype(jnp.float32)          # (n_cls, rows_t)
    x_eot = jnp.dot(sel_eot, x_t, preferred_element_type=jnp.float32)        # (n_cls, W)
    txt_feat = jnp.dot(_ln_rows(x_eot, lnf_g_ref[...], lnf_b_ref[...]),
                       txt_proj_ref[...], preferred_element_type=jnp.float32)

    # ---------------- vision tower ----------------
    # conv1 (stride = patch) as a matmul; constant selector matmuls place patch rows into the
    # token sequence and add [positional embedding everywhere + class embedding at cls rows].
    pe = jnp.dot(patches_ref[...], conv1_w_ref[...],
                 preferred_element_type=jnp.float32)                         # (B*NP, W)
    x_v = (jnp.dot(place_ref[...], pe, preferred_element_type=jnp.float32)
           + jnp.dot(tokmat_ref[...], vis_tok_ref[...],
                     preferred_element_type=jnp.float32))                    # (B*SEQ_V, W)
    x_v = _ln_rows(x_v, lnpre_g_ref[...], lnpre_b_ref[...])
    x_v = _run_tower(x_v, bias_v_ref[...],
                     v_vecs_ref, v_qkv_w_ref, v_qkv_b_ref, v_out_w_ref,
                     v_mlp_w1_ref, v_mlp_b1_ref, v_mlp_w2_ref, heads=heads)
    cls_rows = jnp.dot(sel_cls_ref[...], x_v, preferred_element_type=jnp.float32)   # (B, W)
    img_feat = jnp.dot(_ln_rows(cls_rows, lnpost_g_ref[...], lnpost_b_ref[...]),
                       vis_proj_ref[...], preferred_element_type=jnp.float32)       # (B, E)

    # ---------------- fused L2-normalize + exp(logit_scale) * img @ txt.T ----------------
    img_n = img_feat * lax.rsqrt(jnp.sum(img_feat * img_feat, axis=-1, keepdims=True))
    txt_n = txt_feat * lax.rsqrt(jnp.sum(txt_feat * txt_feat, axis=-1, keepdims=True))
    sim = lax.dot_general(img_n, txt_n, (((1,), (1,)), ((), ())),
                          preferred_element_type=jnp.float32)                # (B, n_cls)
    logits_ref[...] = jnp.exp(logit_scale_ref[...]) * sim


# ----------------------------- host-side constants (built once, numpy) -----------------------------

@functools.lru_cache(maxsize=None)
def _constants(batch):
    rows_v = batch * SEQ_V
    # patch placement: token row b*SEQ_V + 1 + p  <-  patch-embedding row b*N_PATCH + p
    place = np.zeros((rows_v, batch * N_PATCH), np.float32)
    # token-embedding selector against vis_tok = [pos_emb rows ; class_embedding row]
    tokmat = np.zeros((rows_v, SEQ_V + 1), np.float32)
    # CLS-token gather
    sel_cls = np.zeros((batch, rows_v), np.float32)
    for r in range(rows_v):
        b, p = divmod(r, SEQ_V)
        tokmat[r, p] = 1.0
        if p == 0:
            tokmat[r, SEQ_V] = 1.0          # class embedding added at cls rows
            sel_cls[b, r] = 1.0
        else:
            place[r, b * N_PATCH + (p - 1)] = 1.0
    # vision attention bias: block-diagonal (attend only within the same image)
    rv = np.arange(rows_v)
    bias_v = np.where((rv[:, None] // SEQ_V) == (rv[None, :] // SEQ_V),
                      0.0, -1e9).astype(np.float32)
    # text attention bias: causal within each prompt, blocked across prompts
    rt = np.arange(ROWS_T)
    same = (rt[:, None] // SEQ_T) == (rt[None, :] // SEQ_T)
    bias_t = np.where(same & (rt[None, :] <= rt[:, None]), 0.0, -1e9).astype(np.float32)
    # positional-embedding replicator for the text tower
    posrep_t = np.zeros((ROWS_T, SEQ_T), np.float32)
    posrep_t[np.arange(ROWS_T), np.arange(ROWS_T) % SEQ_T] = 1.0
    return dict(place=place, tokmat=tokmat, sel_cls=sel_cls,
                bias_v=bias_v, bias_t=bias_t, posrep_t=posrep_t)


# ----------------------------- forward -----------------------------

def custom_clip_forward(params, image, tokenized_prompts):
    """CustomCLIP.forward(image) -> logits (B, n_cls), one fused pallas_call."""
    B = image.shape[0]
    c = _constants(B)

    # ---- VLPromptLearner.forward(): cat([prefix, ctx, suffix], dim=1) ----
    ctx = jnp.broadcast_to(params['ctx'][None], (N_CLS, N_CTX, TXT_WIDTH))
    prompts = jnp.concatenate([params['token_prefix'], ctx, params['token_suffix']],
                              axis=1).reshape(ROWS_T, TXT_WIDTH)

    # EOT token position (argmax over token ids, as in the reference)
    eot = jnp.argmax(tokenized_prompts, axis=-1).astype(jnp.int32).reshape(N_CLS, 1)

    # ---- patch extraction: NCHW -> (B*N_PATCH, C*P*P) so conv1 becomes a matmul ----
    gh = gw = IMG_SIZE // PATCH
    patches = image.reshape(B, IMG_CH, gh, PATCH, gw, PATCH)
    patches = patches.transpose(0, 2, 4, 1, 3, 5).reshape(B * gh * gw, IMG_CH * PATCH * PATCH)

    # stacked [positional ; class] embedding rows, selected by the constant tokmat matrix
    vis_tok = jnp.concatenate([params['vis_pos_emb'], params['class_embedding']], axis=0)

    logit_scale = params['logit_scale'].reshape(1, 1)

    tb, vb = params['txt_blocks'], params['vis_blocks']
    args = (
        # text
        prompts, c['posrep_t'], params['txt_pos_emb'], eot, c['bias_t'],
        tb['vecs'], tb['qkv_w'], tb['qkv_b'], tb['out_w'],
        tb['mlp_w1'], tb['mlp_b1'], tb['mlp_w2'],
        params['ln_final_g'], params['ln_final_b'], params['text_projection'],
        # vision
        patches, params['conv1_w'], c['place'], c['tokmat'], vis_tok, c['bias_v'],
        params['ln_pre_g'], params['ln_pre_b'],
        vb['vecs'], vb['qkv_w'], vb['qkv_b'], vb['out_w'],
        vb['mlp_w1'], vb['mlp_b1'], vb['mlp_w2'],
        c['sel_cls'], params['ln_post_g'], params['ln_post_b'], params['vis_proj'],
        # scale
        logit_scale,
    )
    return pl.pallas_call(
        functools.partial(_custom_clip_kernel, heads=HEADS),
        out_shape=jax.ShapeDtypeStruct((B, N_CLS), jnp.float32),
    )(*args)


# ----------------------------- deterministic parameter init -----------------------------

def init_params(key):
    kit = iter(jax.random.split(key, 32))

    def nrm(shape, std=0.02):
        return std * jax.random.normal(next(kit), shape, dtype=jnp.float32)

    def tower(width, layers, heads):
        dh = width // heads
        qkv_w = nrm((layers, width, 3 * width))
        # fold the 1/sqrt(head_dim) attention scale into the Q columns once, at init
        qkv_w = qkv_w.at[:, :, :width].multiply(1.0 / float(dh) ** 0.5)
        # pack the six small (1, W) per-layer vectors into one (layers, 6, W) array:
        # rows = [ln1_g, ln1_b, out_b, ln2_g, ln2_b, mlp_b2]
        vecs = jnp.stack([jnp.ones((layers, width)), jnp.zeros((layers, width)),
                          jnp.zeros((layers, width)), jnp.ones((layers, width)),
                          jnp.zeros((layers, width)), jnp.zeros((layers, width))],
                         axis=1).astype(jnp.float32)
        return dict(
            vecs=vecs,
            qkv_w=qkv_w,
            qkv_b=jnp.zeros((layers, 1, 3 * width), jnp.float32),
            out_w=nrm((layers, width, width)),
            mlp_w1=nrm((layers, width, 4 * width)),
            mlp_b1=jnp.zeros((layers, 1, 4 * width), jnp.float32),
            mlp_w2=nrm((layers, 4 * width, width)),
        )

    return dict(
        # vision tower
        conv1_w=nrm((IMG_CH * PATCH * PATCH, VIS_WIDTH)),            # conv1 weight as matmul
        class_embedding=nrm((1, VIS_WIDTH)),
        vis_pos_emb=nrm((SEQ_V, VIS_WIDTH)),
        ln_pre_g=jnp.ones((1, VIS_WIDTH), jnp.float32),
        ln_pre_b=jnp.zeros((1, VIS_WIDTH), jnp.float32),
        vis_blocks=tower(VIS_WIDTH, LAYERS, HEADS),
        ln_post_g=jnp.ones((1, VIS_WIDTH), jnp.float32),
        ln_post_b=jnp.zeros((1, VIS_WIDTH), jnp.float32),
        vis_proj=nrm((VIS_WIDTH, EMBED_DIM)),
        # text tower
        txt_pos_emb=nrm((SEQ_T, TXT_WIDTH)),
        txt_blocks=tower(TXT_WIDTH, LAYERS, HEADS),
        ln_final_g=jnp.ones((1, TXT_WIDTH), jnp.float32),
        ln_final_b=jnp.zeros((1, TXT_WIDTH), jnp.float32),
        text_projection=nrm((TXT_WIDTH, EMBED_DIM)),
        # VLPromptLearner (ctx parameter + frozen token-embedding buffers; synthetic)
        ctx=nrm((N_CTX, TXT_WIDTH)),
        token_prefix=nrm((N_CLS, 1, TXT_WIDTH)),
        token_suffix=nrm((N_CLS, SEQ_T - 1 - N_CTX, TXT_WIDTH)),
        logit_scale=jnp.array(jnp.log(1.0 / 0.07), jnp.float32),
    )


# ----------------------------- main -----------------------------

if __name__ == "__main__":
    key = jax.random.PRNGKey(0)
    pkey, ikey = jax.random.split(key)
    params = init_params(pkey)

    # image input, NCHW like PyTorch: (batch=2, channels=3, 16, 16)
    image = jax.random.normal(ikey, (2, IMG_CH, IMG_SIZE, IMG_SIZE), dtype=jnp.float32)

    # synthetic tokenized prompts: SOT at pos 0, EOT (largest id, found via argmax) at varying pos
    tok = jnp.full((N_CLS, SEQ_T), 5, jnp.int32)
    tok = tok.at[:, 0].set(49406)
    eot_pos = jnp.array([4, 5, 6, 7], jnp.int32)
    tok = tok.at[jnp.arange(N_CLS), eot_pos].set(49407)

    logits = jax.jit(custom_clip_forward)(params, image, tok)
    logits = jax.block_until_ready(logits)
    assert logits.shape == (2, N_CLS), logits.shape
    assert bool(jnp.all(jnp.isfinite(logits)))
    print("KERNEL_OK")
</pallas_src>

<mosaic_0001>
module attributes {stable_mosaic.version = 11 : i64} {
  func.func @_custom_clip_kernel(%arg0: memref<32x32xf32, #tpu.memory_space<vmem>>, %arg1: memref<32x8xf32, #tpu.memory_space<vmem>>, %arg2: memref<8x32xf32, #tpu.memory_space<vmem>>, %arg3: memref<4x1xi32, #tpu.memory_space<vmem>>, %arg4: memref<32x32xf32, #tpu.memory_space<vmem>>, %arg5: memref<2x6x32xf32, #tpu.memory_space<vmem>>, %arg6: memref<2x32x96xf32, #tpu.memory_space<vmem>>, %arg7: memref<2x1x96xf32, #tpu.memory_space<vmem>>, %arg8: memref<2x32x32xf32, #tpu.memory_space<vmem>>, %arg9: memref<2x32x128xf32, #tpu.memory_space<vmem>>, %arg10: memref<2x1x128xf32, #tpu.memory_space<vmem>>, %arg11: memref<2x128x32xf32, #tpu.memory_space<vmem>>, %arg12: memref<1x32xf32, #tpu.memory_space<vmem>>, %arg13: memref<1x32xf32, #tpu.memory_space<vmem>>, %arg14: memref<32x32xf32, #tpu.memory_space<vmem>>, %arg15: memref<8x192xf32, #tpu.memory_space<vmem>>, %arg16: memref<192x32xf32, #tpu.memory_space<vmem>>, %arg17: memref<10x8xf32, #tpu.memory_space<vmem>>, %arg18: memref<10x6xf32, #tpu.memory_space<vmem>>, %arg19: memref<6x32xf32, #tpu.memory_space<vmem>>, %arg20: memref<10x10xf32, #tpu.memory_space<vmem>>, %arg21: memref<1x32xf32, #tpu.memory_space<vmem>>, %arg22: memref<1x32xf32, #tpu.memory_space<vmem>>, %arg23: memref<2x6x32xf32, #tpu.memory_space<vmem>>, %arg24: memref<2x32x96xf32, #tpu.memory_space<vmem>>, %arg25: memref<2x1x96xf32, #tpu.memory_space<vmem>>, %arg26: memref<2x32x32xf32, #tpu.memory_space<vmem>>, %arg27: memref<2x32x128xf32, #tpu.memory_space<vmem>>, %arg28: memref<2x1x128xf32, #tpu.memory_space<vmem>>, %arg29: memref<2x128x32xf32, #tpu.memory_space<vmem>>, %arg30: memref<2x10xf32, #tpu.memory_space<vmem>>, %arg31: memref<1x32xf32, #tpu.memory_space<vmem>>, %arg32: memref<1x32xf32, #tpu.memory_space<vmem>>, %arg33: memref<32x32xf32, #tpu.memory_space<vmem>>, %arg34: memref<1x1xf32, #tpu.memory_space<vmem>>, %arg35: memref<2x4xf32, #tpu.memory_space<vmem>>) attributes {dimension_semantics = [], scalar_prefetch = 0 : i64, scratch_operands = 0 : i64, tpu.core_type = #tpu.core_type<tc>} {
    %c0 = arith.constant 0 : index
    %c0_0 = arith.constant 0 : index
    %0 = vector.load %arg0[%c0, %c0_0] : memref<32x32xf32, #tpu.memory_space<vmem>>, vector<32x32xf32>
    %c0_1 = arith.constant 0 : index
    %c0_2 = arith.constant 0 : index
    %1 = vector.load %arg1[%c0_1, %c0_2] : memref<32x8xf32, #tpu.memory_space<vmem>>, vector<32x8xf32>
    %c0_3 = arith.constant 0 : index
    %c0_4 = arith.constant 0 : index
    %2 = vector.load %arg2[%c0_3, %c0_4] : memref<8x32xf32, #tpu.memory_space<vmem>>, vector<8x32xf32>
    %cst = arith.constant dense<0.000000e+00> : vector<32x32xf32>
    %3 = tpu.matmul %1, %2, %cst {dimension_numbers = #tpu.dot_dimension_numbers<[1], [0], [0], [1], [0, 0, 1, 1], [], []>} : vector<32x8xf32>, vector<8x32xf32>, vector<32x32xf32> -> vector<32x32xf32>
    %4 = arith.addf %0, %3 : vector<32x32xf32>
    %c0_5 = arith.constant 0 : index
    %c0_6 = arith.constant 0 : index
    %5 = vector.load %arg4[%c0_5, %c0_6] : memref<32x32xf32, #tpu.memory_space<vmem>>, vector<32x32xf32>
    %c0_7 = arith.constant 0 : index
    %c0_8 = arith.constant 0 : index
    %c0_9 = arith.constant 0 : index
    %6 = vector.load %arg5[%c0_7, %c0_8, %c0_9] : memref<2x6x32xf32, #tpu.memory_space<vmem>>, vector<1x6x32xf32>
    %7 = vector.shape_cast %6 : vector<1x6x32xf32> to vector<6x32xf32>
    %8 = vector.extract_strided_slice %7 {offsets = [0, 0], sizes = [1, 32], strides = [1, 1]} : vector<6x32xf32> to vector<1x32xf32>
    %9 = vector.extract_strided_slice %7 {offsets = [1, 0], sizes = [1, 32], strides = [1, 1]} : vector<6x32xf32> to vector<1x32xf32>
    %c0_10 = arith.constant 0 : index
    %c0_11 = arith.constant 0 : index
    %c0_12 = arith.constant 0 : index
    %10 = vector.load %arg6[%c0_10, %c0_11, %c0_12] : memref<2x32x96xf32, #tpu.memory_space<vmem>>, vector<1x32x96xf32>
    %11 = vector.shape_cast %10 : vector<1x32x96xf32> to vector<32x96xf32>
    %c0_13 = arith.constant 0 : index
    %c0_14 = arith.constant 0 : index
    %c0_15 = arith.constant 0 : index
    %12 = vector.load %arg7[%c0_13, %c0_14, %c0_15] : memref<2x1x96xf32, #tpu.memory_space<vmem>>, vector<1x1x96xf32>
    %13 = vector.shape_cast %12 : vector<1x1x96xf32> to vector<1x96xf32>
    %c0_16 = arith.constant 0 : index
    %c0_17 = arith.constant 0 : index
    %c0_18 = arith.constant 0 : index
    %14 = vector.load %arg8[%c0_16, %c0_17, %c0_18] : memref<2x32x32xf32, #tpu.memory_space<vmem>>, vector<1x32x32xf32>
    %15 = vector.shape_cast %14 : vector<1x32x32xf32> to vector<32x32xf32>
    %16 = vector.extract_strided_slice %7 {offsets = [2, 0], sizes = [1, 32], strides = [1, 1]} : vector<6x32xf32> to vector<1x32xf32>
    %17 = vector.extract_strided_slice %7 {offsets = [3, 0], sizes = [1, 32], strides = [1, 1]} : vector<6x32xf32> to vector<1x32xf32>
    %18 = vector.extract_strided_slice %7 {offsets = [4, 0], sizes = [1, 32], strides = [1, 1]} : vector<6x32xf32> to vector<1x32xf32>
    %c0_19 = arith.constant 0 : index
    %c0_20 = arith.constant 0 : index
    %c0_21 = arith.constant 0 : index
    %19 = vector.load %arg9[%c0_19, %c0_20, %c0_21] : memref<2x32x128xf32, #tpu.memory_space<vmem>>, vector<1x32x128xf32>
    %20 = vector.shape_cast %19 : vector<1x32x128xf32> to vector<32x128xf32>
    %c0_22 = arith.constant 0 : index
    %c0_23 = arith.constant 0 : index
    %c0_24 = arith.constant 0 : index
    %21 = vector.load %arg10[%c0_22, %c0_23, %c0_24] : memref<2x1x128xf32, #tpu.memory_space<vmem>>, vector<1x1x128xf32>
    %22 = vector.shape_cast %21 : vector<1x1x128xf32> to vector<1x128xf32>
    %c0_25 = arith.constant 0 : index
    %c0_26 = arith.constant 0 : index
    %c0_27 = arith.constant 0 : index
    %23 = vector.load %arg11[%c0_25, %c0_26, %c0_27] : memref<2x128x32xf32, #tpu.memory_space<vmem>>, vector<1x128x32xf32>
    %24 = vector.shape_cast %23 : vector<1x128x32xf32> to vector<128x32xf32>
    %25 = vector.extract_strided_slice %7 {offsets = [5, 0], sizes = [1, 32], strides = [1, 1]} : vector<6x32xf32> to vector<1x32xf32>
    %cst_28 = arith.constant dense<0.000000e+00> : vector<32xf32>
    %26 = vector.multi_reduction <add>, %4, %cst_28 [1] : vector<32x32xf32> to vector<32xf32>
    %27 = vector.shape_cast %26 : vector<32xf32> to vector<32x1xf32>
    %cst_29 = arith.constant 3.200000e+01 : f32
    %28 = vector.broadcast %cst_29 : f32 to vector<32x1xf32>
    %29 = arith.divf %27, %28 : vector<32x1xf32>
    %30 = arith.mulf %4, %4 : vector<32x32xf32>
    %cst_30 = arith.constant dense<0.000000e+00> : vector<32xf32>
    %31 = vector.multi_reduction <add>, %30, %cst_30 [1] : vector<32x32xf32> to vector<32xf32>
    %32 = vector.shape_cast %31 : vector<32xf32> to vector<32x1xf32>
    %cst_31 = arith.constant 3.200000e+01 : f32
    %33 = vector.broadcast %cst_31 : f32 to vector<32x1xf32>
    %34 = arith.divf %32, %33 : vector<32x1xf32>
    %35 = arith.mulf %29, %29 : vector<32x1xf32>
    %36 = arith.subf %34, %35 : vector<32x1xf32>
    %37 = vector.broadcast %29 : vector<32x1xf32> to vector<32x32xf32>
    %38 = arith.subf %4, %37 : vector<32x32xf32>
    %cst_32 = arith.constant 9.99999974E-6 : f32
    %39 = vector.broadcast %cst_32 : f32 to vector<32x1xf32>
    %40 = arith.addf %36, %39 : vector<32x1xf32>
    %41 = math.rsqrt %40 : vector<32x1xf32>
    %42 = vector.broadcast %41 : vector<32x1xf32> to vector<32x32xf32>
    %43 = arith.mulf %38, %42 : vector<32x32xf32>
    %44 = vector.broadcast %8 : vector<1x32xf32> to vector<32x32xf32>
    %45 = arith.mulf %43, %44 : vector<32x32xf32>
    %46 = vector.broadcast %9 : vector<1x32xf32> to vector<32x32xf32>
    %47 = arith.addf %45, %46 : vector<32x32xf32>
    %cst_33 = arith.constant dense<0.000000e+00> : vector<32x96xf32>
    %48 = tpu.matmul %47, %11, %cst_33 {dimension_numbers = #tpu.dot_dimension_numbers<[1], [0], [0], [1], [0, 0, 1, 1], [], []>} : vector<32x32xf32>, vector<32x96xf32>, vector<32x96xf32> -> vector<32x96xf32>
    %49 = vector.broadcast %13 : vector<1x96xf32> to vector<32x96xf32>
    %50 = arith.addf %48, %49 : vector<32x96xf32>
    %51 = vector.extract_strided_slice %50 {offsets = [0, 0], sizes = [32, 16], strides = [1, 1]} : vector<32x96xf32> to vector<32x16xf32>
    %52 = vector.extract_strided_slice %50 {offsets = [0, 32], sizes = [32, 16], strides = [1, 1]} : vector<32x96xf32> to vector<32x16xf32>
    %53 = vector.extract_strided_slice %50 {offsets = [0, 64], sizes = [32, 16], strides = [1, 1]} : vector<32x96xf32> to vector<32x16xf32>
    %cst_34 = arith.constant dense<0.000000e+00> : vector<32x32xf32>
    %54 = tpu.matmul %51, %52, %cst_34 {dimension_numbers = #tpu.dot_dimension_numbers<[1], [1], [0], [0], [0, 0, 1, 0], [], []>} : vector<32x16xf32>, vector<32x16xf32>, vector<32x32xf32> -> vector<32x32xf32>
    %55 = arith.addf %54, %5 : vector<32x32xf32>
    %cst_35 = arith.constant dense<0xFF800000> : vector<32xf32>
    %56 = vector.multi_reduction <maximumf>, %55, %cst_35 [1] : vector<32x32xf32> to vector<32xf32>
    %57 = vector.shape_cast %56 : vector<32xf32> to vector<32x1xf32>
    %58 = vector.broadcast %57 : vector<32x1xf32> to vector<32x32xf32>
    %59 = arith.subf %55, %58 : vector<32x32xf32>
    %60 = math.exp %59 : vector<32x32xf32>
    %cst_36 = arith.constant dense<0.000000e+00> : vector<32xf32>
    %61 = vector.multi_reduction <add>, %60, %cst_36 [1] : vector<32x32xf32> to vector<32xf32>
    %62 = vector.shape_cast %61 : vector<32xf32> to vector<32x1xf32>
    %63 = tpu.reciprocal %62 {approx = true} : vector<32x1xf32> -> vector<32x1xf32>
    %64 = vector.broadcast %63 : vector<32x1xf32> to vector<32x32xf32>
    %65 = arith.mulf %60, %64 : vector<32x32xf32>
    %cst_37 = arith.constant dense<0.000000e+00> : vector<32x16xf32>
    %66 = tpu.matmul %65, %53, %cst_37 {dimension_numbers = #tpu.dot_dimension_numbers<[1], [0], [0], [1], [0, 0, 1, 1], [], []>} : vector<32x32xf32>, vector<32x16xf32>, vector<32x16xf32> -> vector<32x16xf32>
    %67 = vector.extract_strided_slice %50 {offsets = [0, 16], sizes = [32, 16], strides = [1, 1]} : vector<32x96xf32> to vector<32x16xf32>
    %68 = vector.extract_strided_slice %50 {offsets = [0, 48], sizes = [32, 16], strides = [1, 1]} : vector<32x96xf32> to vector<32x16xf32>
    %69 = vector.extract_strided_slice %50 {offsets = [0, 80], sizes = [32, 16], strides = [1, 1]} : vector<32x96xf32> to vector<32x16xf32>
    %cst_38 = arith.constant dense<0.000000e+00> : vector<32x32xf32>
    %70 = tpu.matmul %67, %68, %cst_38 {dimension_numbers = #tpu.dot_dimension_numbers<[1], [1], [0], [0], [0, 0, 1, 0], [], []>} : vector<32x16xf32>, vector<32x16xf32>, vector<32x32xf32> -> vector<32x32xf32>
    %71 = arith.addf %70, %5 : vector<32x32xf32>
    %cst_39 = arith.constant dense<0xFF800000> : vector<32xf32>
    %72 = vector.multi_reduction <maximumf>, %71, %cst_39 [1] : vector<32x32xf32> to vector<32xf32>
    %73 = vector.shape_cast %72 : vector<32xf32> to vector<32x1xf32>
    %74 = vector.broadcast %73 : vector<32x1xf32> to vector<32x32xf32>
    %75 = arith.subf %71, %74 : vector<32x32xf32>
    %76 = math.exp %75 : vector<32x32xf32>
    %cst_40 = arith.constant dense<0.000000e+00> : vector<32xf32>
    %77 = vector.multi_reduction <add>, %76, %cst_40 [1] : vector<32x32xf32> to vector<32xf32>
    %78 = vector.shape_cast %77 : vector<32xf32> to vector<32x1xf32>
    %79 = tpu.reciprocal %78 {approx = true} : vector<32x1xf32> -> vector<32x1xf32>
    %80 = vector.broadcast %79 : vector<32x1xf32> to vector<32x32xf32>
    %81 = arith.mulf %76, %80 : vector<32x32xf32>
    %cst_41 = arith.constant dense<0.000000e+00> : vector<32x16xf32>
    %82 = tpu.matmul %81, %69, %cst_41 {dimension_numbers = #tpu.dot_dimension_numbers<[1], [0], [0], [1], [0, 0, 1, 1], [], []>} : vector<32x32xf32>, vector<32x16xf32>, vector<32x16xf32> -> vector<32x16xf32>
    %83 = tpu.concatenate %66, %82 in 1 : vector<32x16xf32>, vector<32x16xf32> -> vector<32x32xf32>
    %cst_42 = arith.constant dense<0.000000e+00> : vector<32x32xf32>
    %84 = tpu.matmul %83, %15, %cst_42 {dimension_numbers = #tpu.dot_dimension_numbers<[1], [0], [0], [1], [0, 0, 1, 1], [], []>} : vector<32x32xf32>, vector<32x32xf32>, vector<32x32xf32> -> vector<32x32xf32>
    %85 = arith.addf %4, %84 : vector<32x32xf32>
    %86 = vector.broadcast %16 : vector<1x32xf32> to vector<32x32xf32>
    %87 = arith.addf %85, %86 : vector<32x32xf32>
    %cst_43 = arith.constant dense<0.000000e+00> : vector<32xf32>
    %88 = vector.multi_reduction <add>, %87, %cst_43 [1] : vector<32x32xf32> to vector<32xf32>
    %89 = vector.shape_cast %88 : vector<32xf32> to vector<32x1xf32>
    %cst_44 = arith.constant 3.200000e+01 : f32
    %90 = vector.broadcast %cst_44 : f32 to vector<32x1xf32>
    %91 = arith.divf %89, %90 : vector<32x1xf32>
    %92 = arith.mulf %87, %87 : vector<32x32xf32>
    %cst_45 = arith.constant dense<0.000000e+00> : vector<32xf32>
    %93 = vector.multi_reduction <add>, %92, %cst_45 [1] : vector<32x32xf32> to vector<32xf32>
    %94 = vector.shape_cast %93 : vector<32xf32> to vector<32x1xf32>
    %cst_46 = arith.constant 3.200000e+01 : f32
    %95 = vector.broadcast %cst_46 : f32 to vector<32x1xf32>
    %96 = arith.divf %94, %95 : vector<32x1xf32>
    %97 = arith.mulf %91, %91 : vector<32x1xf32>
    %98 = arith.subf %96, %97 : vector<32x1xf32>
    %99 = vector.broadcast %91 : vector<32x1xf32> to vector<32x32xf32>
    %100 = arith.subf %87, %99 : vector<32x32xf32>
    %cst_47 = arith.constant 9.99999974E-6 : f32
    %101 = vector.broadcast %cst_47 : f32 to vector<32x1xf32>
    %102 = arith.addf %98, %101 : vector<32x1xf32>
    %103 = math.rsqrt %102 : vector<32x1xf32>
    %104 = vector.broadcast %103 : vector<32x1xf32> to vector<32x32xf32>
    %105 = arith.mulf %100, %104 : vector<32x32xf32>
    %106 = vector.broadcast %17 : vector<1x32xf32> to vector<32x32xf32>
    %107 = arith.mulf %105, %106 : vector<32x32xf32>
    %108 = vector.broadcast %18 : vector<1x32xf32> to vector<32x32xf32>
    %109 = arith.addf %107, %108 : vector<32x32xf32>
    %cst_48 = arith.constant dense<0.000000e+00> : vector<32x128xf32>
    %110 = tpu.matmul %109, %20, %cst_48 {dimension_numbers = #tpu.dot_dimension_numbers<[1], [0], [0], [1], [0, 0, 1, 1], [], []>} : vector<32x32xf32>, vector<32x128xf32>, vector<32x128xf32> -> vector<32x128xf32>
    %111 = vector.broadcast %22 : vector<1x128xf32> to vector<32x128xf32>
    %112 = arith.addf %110, %111 : vector<32x128xf32>
    %cst_49 = arith.constant 1.702000e+00 : f32
    %113 = vector.broadcast %cst_49 : f32 to vector<32x128xf32>
    %114 = arith.mulf %113, %112 : vector<32x128xf32>
    %115 = arith.negf %114 : vector<32x128xf32>
    %116 = math.exp %115 : vector<32x128xf32>
    %cst_50 = arith.constant 1.000000e+00 : f32
    %117 = vector.broadcast %cst_50 : f32 to vector<32x128xf32>
    %118 = arith.addf %117, %116 : vector<32x128xf32>
    %119 = arith.divf %117, %118 : vector<32x128xf32>
    %120 = arith.mulf %112, %119 : vector<32x128xf32>
    %cst_51 = arith.constant dense<0.000000e+00> : vector<32x32xf32>
    %121 = tpu.matmul %120, %24, %cst_51 {dimension_numbers = #tpu.dot_dimension_numbers<[1], [0], [0], [1], [0, 0, 1, 1], [], []>} : vector<32x128xf32>, vector<128x32xf32>, vector<32x32xf32> -> vector<32x32xf32>
    %122 = arith.addf %87, %121 : vector<32x32xf32>
    %123 = vector.broadcast %25 : vector<1x32xf32> to vector<32x32xf32>
    %124 = arith.addf %122, %123 : vector<32x32xf32>
    %c1 = arith.constant 1 : index
    %c0_52 = arith.constant 0 : index
    %c0_53 = arith.constant 0 : index
    %125 = vector.load %arg5[%c1, %c0_52, %c0_53] : memref<2x6x32xf32, #tpu.memory_space<vmem>>, vector<1x6x32xf32>
    %126 = vector.shape_cast %125 : vector<1x6x32xf32> to vector<6x32xf32>
    %127 = vector.extract_strided_slice %126 {offsets = [0, 0], sizes = [1, 32], strides = [1, 1]} : vector<6x32xf32> to vector<1x32xf32>
    %128 = vector.extract_strided_slice %126 {offsets = [1, 0], sizes = [1, 32], strides = [1, 1]} : vector<6x32xf32> to vector<1x32xf32>
    %c1_54 = arith.constant 1 : index
    %c0_55 = arith.constant 0 : index
    %c0_56 = arith.constant 0 : index
    %129 = vector.load %arg6[%c1_54, %c0_55, %c0_56] : memref<2x32x96xf32, #tpu.memory_space<vmem>>, vector<1x32x96xf32>
    %130 = vector.shape_cast %129 : vector<1x32x96xf32> to vector<32x96xf32>
    %c1_57 = arith.constant 1 : index
    %c0_58 = arith.constant 0 : index
    %c0_59 = arith.constant 0 : index
    %131 = vector.load %arg7[%c1_57, %c0_58, %c0_59] : memref<2x1x96xf32, #tpu.memory_space<vmem>>, vector<1x1x96xf32>
    %132 = vector.shape_cast %131 : vector<1x1x96xf32> to vector<1x96xf32>
    %c1_60 = arith.constant 1 : index
    %c0_61 = arith.constant 0 : index
    %c0_62 = arith.constant 0 : index
    %133 = vector.load %arg8[%c1_60, %c0_61, %c0_62] : memref<2x32x32xf32, #tpu.memory_space<vmem>>, vector<1x32x32xf32>
    %134 = vector.shape_cast %133 : vector<1x32x32xf32> to vector<32x32xf32>
    %135 = vector.extract_strided_slice %126 {offsets = [2, 0], sizes = [1, 32], strides = [1, 1]} : vector<6x32xf32> to vector<1x32xf32>
    %136 = vector.extract_strided_slice %126 {offsets = [3, 0], sizes = [1, 32], strides = [1, 1]} : vector<6x32xf32> to vector<1x32xf32>
    %137 = vector.extract_strided_slice %126 {offsets = [4, 0], sizes = [1, 32], strides = [1, 1]} : vector<6x32xf32> to vector<1x32xf32>
    %c1_63 = arith.constant 1 : index
    %c0_64 = arith.constant 0 : index
    %c0_65 = arith.constant 0 : index
    %138 = vector.load %arg9[%c1_63, %c0_64, %c0_65] : memref<2x32x128xf32, #tpu.memory_space<vmem>>, vector<1x32x128xf32>
    %139 = vector.shape_cast %138 : vector<1x32x128xf32> to vector<32x128xf32>
    %c1_66 = arith.constant 1 : index
    %c0_67 = arith.constant 0 : index
    %c0_68 = arith.constant 0 : index
    %140 = vector.load %arg10[%c1_66, %c0_67, %c0_68] : memref<2x1x128xf32, #tpu.memory_space<vmem>>, vector<1x1x128xf32>
    %141 = vector.shape_cast %140 : vector<1x1x128xf32> to vector<1x128xf32>
    %c1_69 = arith.constant 1 : index
    %c0_70 = arith.constant 0 : index
    %c0_71 = arith.constant 0 : index
    %142 = vector.load %arg11[%c1_69, %c0_70, %c0_71] : memref<2x128x32xf32, #tpu.memory_space<vmem>>, vector<1x128x32xf32>
    %143 = vector.shape_cast %142 : vector<1x128x32xf32> to vector<128x32xf32>
    %144 = vector.extract_strided_slice %126 {offsets = [5, 0], sizes = [1, 32], strides = [1, 1]} : vector<6x32xf32> to vector<1x32xf32>
    %cst_72 = arith.constant dense<0.000000e+00> : vector<32xf32>
    %145 = vector.multi_reduction <add>, %124, %cst_72 [1] : vector<32x32xf32> to vector<32xf32>
    %146 = vector.shape_cast %145 : vector<32xf32> to vector<32x1xf32>
    %cst_73 = arith.constant 3.200000e+01 : f32
    %147 = vector.broadcast %cst_73 : f32 to vector<32x1xf32>
    %148 = arith.divf %146, %147 : vector<32x1xf32>
    %149 = arith.mulf %124, %124 : vector<32x32xf32>
    %cst_74 = arith.constant dense<0.000000e+00> : vector<32xf32>
    %150 = vector.multi_reduction <add>, %149, %cst_74 [1] : vector<32x32xf32> to vector<32xf32>
    %151 = vector.shape_cast %150 : vector<32xf32> to vector<32x1xf32>
    %cst_75 = arith.constant 3.200000e+01 : f32
    %152 = vector.broadcast %cst_75 : f32 to vector<32x1xf32>
    %153 = arith.divf %151, %152 : vector<32x1xf32>
    %154 = arith.mulf %148, %148 : vector<32x1xf32>
    %155 = arith.subf %153, %154 : vector<32x1xf32>
    %156 = vector.broadcast %148 : vector<32x1xf32> to vector<32x32xf32>
    %157 = arith.subf %124, %156 : vector<32x32xf32>
    %cst_76 = arith.constant 9.99999974E-6 : f32
    %158 = vector.broadcast %cst_76 : f32 to vector<32x1xf32>
    %159 = arith.addf %155, %158 : vector<32x1xf32>
    %160 = math.rsqrt %159 : vector<32x1xf32>
    %161 = vector.broadcast %160 : vector<32x1xf32> to vector<32x32xf32>
    %162 = arith.mulf %157, %161 : vector<32x32xf32>
    %163 = vector.broadcast %127 : vector<1x32xf32> to vector<32x32xf32>
    %164 = arith.mulf %162, %163 : vector<32x32xf32>
    %165 = vector.broadcast %128 : vector<1x32xf32> to vector<32x32xf32>
    %166 = arith.addf %164, %165 : vector<32x32xf32>
    %cst_77 = arith.constant dense<0.000000e+00> : vector<32x96xf32>
    %167 = tpu.matmul %166, %130, %cst_77 {dimension_numbers = #tpu.dot_dimension_numbers<[1], [0], [0], [1], [0, 0, 1, 1], [], []>} : vector<32x32xf32>, vector<32x96xf32>, vector<32x96xf32> -> vector<32x96xf32>
    %168 = vector.broadcast %132 : vector<1x96xf32> to vector<32x96xf32>
    %169 = arith.addf %167, %168 : vector<32x96xf32>
    %170 = vector.extract_strided_slice %169 {offsets = [0, 0], sizes = [32, 16], strides = [1, 1]} : vector<32x96xf32> to vector<32x16xf32>
    %171 = vector.extract_strided_slice %169 {offsets = [0, 32], sizes = [32, 16], strides = [1, 1]} : vector<32x96xf32> to vector<32x16xf32>
    %172 = vector.extract_strided_slice %169 {offsets = [0, 64], sizes = [32, 16], strides = [1, 1]} : vector<32x96xf32> to vector<32x16xf32>
    %cst_78 = arith.constant dense<0.000000e+00> : vector<32x32xf32>
    %173 = tpu.matmul %170, %171, %cst_78 {dimension_numbers = #tpu.dot_dimension_numbers<[1], [1], [0], [0], [0, 0, 1, 0], [], []>} : vector<32x16xf32>, vector<32x16xf32>, vector<32x32xf32> -> vector<32x32xf32>
    %174 = arith.addf %173, %5 : vector<32x32xf32>
    %cst_79 = arith.constant dense<0xFF800000> : vector<32xf32>
    %175 = vector.multi_reduction <maximumf>, %174, %cst_79 [1] : vector<32x32xf32> to vector<32xf32>
    %176 = vector.shape_cast %175 : vector<32xf32> to vector<32x1xf32>
    %177 = vector.broadcast %176 : vector<32x1xf32> to vector<32x32xf32>
    %178 = arith.subf %174, %177 : vector<32x32xf32>
    %179 = math.exp %178 : vector<32x32xf32>
    %cst_80 = arith.constant dense<0.000000e+00> : vector<32xf32>
    %180 = vector.multi_reduction <add>, %179, %cst_80 [1] : vector<32x32xf32> to vector<32xf32>
    %181 = vector.shape_cast %180 : vector<32xf32> to vector<32x1xf32>
    %182 = tpu.reciprocal %181 {approx = true} : vector<32x1xf32> -> vector<32x1xf32>
    %183 = vector.broadcast %182 : vector<32x1xf32> to vector<32x32xf32>
    %184 = arith.mulf %179, %183 : vector<32x32xf32>
    %cst_81 = arith.constant dense<0.000000e+00> : vector<32x16xf32>
    %185 = tpu.matmul %184, %172, %cst_81 {dimension_numbers = #tpu.dot_dimension_numbers<[1], [0], [0], [1], [0, 0, 1, 1], [], []>} : vector<32x32xf32>, vector<32x16xf32>, vector<32x16xf32> -> vector<32x16xf32>
    %186 = vector.extract_strided_slice %169 {offsets = [0, 16], sizes = [32, 16], strides = [1, 1]} : vector<32x96xf32> to vector<32x16xf32>
    %187 = vector.extract_strided_slice %169 {offsets = [0, 48], sizes = [32, 16], strides = [1, 1]} : vector<32x96xf32> to vector<32x16xf32>
    %188 = vector.extract_strided_slice %169 {offsets = [0, 80], sizes = [32, 16], strides = [1, 1]} : vector<32x96xf32> to vector<32x16xf32>
    %cst_82 = arith.constant dense<0.000000e+00> : vector<32x32xf32>
    %189 = tpu.matmul %186, %187, %cst_82 {dimension_numbers = #tpu.dot_dimension_numbers<[1], [1], [0], [0], [0, 0, 1, 0], [], []>} : vector<32x16xf32>, vector<32x16xf32>, vector<32x32xf32> -> vector<32x32xf32>
    %190 = arith.addf %189, %5 : vector<32x32xf32>
    %cst_83 = arith.constant dense<0xFF800000> : vector<32xf32>
    %191 = vector.multi_reduction <maximumf>, %190, %cst_83 [1] : vector<32x32xf32> to vector<32xf32>
    %192 = vector.shape_cast %191 : vector<32xf32> to vector<32x1xf32>
    %193 = vector.broadcast %192 : vector<32x1xf32> to vector<32x32xf32>
    %194 = arith.subf %190, %193 : vector<32x32xf32>
    %195 = math.exp %194 : vector<32x32xf32>
    %cst_84 = arith.constant dense<0.000000e+00> : vector<32xf32>
    %196 = vector.multi_reduction <add>, %195, %cst_84 [1] : vector<32x32xf32> to vector<32xf32>
    %197 = vector.shape_cast %196 : vector<32xf32> to vector<32x1xf32>
    %198 = tpu.reciprocal %197 {approx = true} : vector<32x1xf32> -> vector<32x1xf32>
    %199 = vector.broadcast %198 : vector<32x1xf32> to vector<32x32xf32>
    %200 = arith.mulf %195, %199 : vector<32x32xf32>
    %cst_85 = arith.constant dense<0.000000e+00> : vector<32x16xf32>
    %201 = tpu.matmul %200, %188, %cst_85 {dimension_numbers = #tpu.dot_dimension_numbers<[1], [0], [0], [1], [0, 0, 1, 1], [], []>} : vector<32x32xf32>, vector<32x16xf32>, vector<32x16xf32> -> vector<32x16xf32>
    %202 = tpu.concatenate %185, %201 in 1 : vector<32x16xf32>, vector<32x16xf32> -> vector<32x32xf32>
    %cst_86 = arith.constant dense<0.000000e+00> : vector<32x32xf32>
    %203 = tpu.matmul %202, %134, %cst_86 {dimension_numbers = #tpu.dot_dimension_numbers<[1], [0], [0], [1], [0, 0, 1, 1], [], []>} : vector<32x32xf32>, vector<32x32xf32>, vector<32x32xf32> -> vector<32x32xf32>
    %204 = arith.addf %124, %203 : vector<32x32xf32>
    %205 = vector.broadcast %135 : vector<1x32xf32> to vector<32x32xf32>
    %206 = arith.addf %204, %205 : vector<32x32xf32>
    %cst_87 = arith.constant dense<0.000000e+00> : vector<32xf32>
    %207 = vector.multi_reduction <add>, %206, %cst_87 [1] : vector<32x32xf32> to vector<32xf32>
    %208 = vector.shape_cast %207 : vector<32xf32> to vector<32x1xf32>
    %cst_88 = arith.constant 3.200000e+01 : f32
    %209 = vector.broadcast %cst_88 : f32 to vector<32x1xf32>
    %210 = arith.divf %208, %209 : vector<32x1xf32>
    %211 = arith.mulf %206, %206 : vector<32x32xf32>
    %cst_89 = arith.constant dense<0.000000e+00> : vector<32xf32>
    %212 = vector.multi_reduction <add>, %211, %cst_89 [1] : vector<32x32xf32> to vector<32xf32>
    %213 = vector.shape_cast %212 : vector<32xf32> to vector<32x1xf32>
    %cst_90 = arith.constant 3.200000e+01 : f32
    %214 = vector.broadcast %cst_90 : f32 to vector<32x1xf32>
    %215 = arith.divf %213, %214 : vector<32x1xf32>
    %216 = arith.mulf %210, %210 : vector<32x1xf32>
    %217 = arith.subf %215, %216 : vector<32x1xf32>
    %218 = vector.broadcast %210 : vector<32x1xf32> to vector<32x32xf32>
    %219 = arith.subf %206, %218 : vector<32x32xf32>
    %cst_91 = arith.constant 9.99999974E-6 : f32
    %220 = vector.broadcast %cst_91 : f32 to vector<32x1xf32>
    %221 = arith.addf %217, %220 : vector<32x1xf32>
    %222 = math.rsqrt %221 : vector<32x1xf32>
    %223 = vector.broadcast %222 : vector<32x1xf32> to vector<32x32xf32>
    %224 = arith.mulf %219, %223 : vector<32x32xf32>
    %225 = vector.broadcast %136 : vector<1x32xf32> to vector<32x32xf32>
    %226 = arith.mulf %224, %225 : vector<32x32xf32>
    %227 = vector.broadcast %137 : vector<1x32xf32> to vector<32x32xf32>
    %228 = arith.addf %226, %227 : vector<32x32xf32>
    %cst_92 = arith.constant dense<0.000000e+00> : vector<32x128xf32>
    %229 = tpu.matmul %228, %139, %cst_92 {dimension_numbers = #tpu.dot_dimension_numbers<[1], [0], [0], [1], [0, 0, 1, 1], [], []>} : vector<32x32xf32>, vector<32x128xf32>, vector<32x128xf32> -> vector<32x128xf32>
    %230 = vector.broadcast %141 : vector<1x128xf32> to vector<32x128xf32>
    %231 = arith.addf %229, %230 : vector<32x128xf32>
    %cst_93 = arith.constant 1.702000e+00 : f32
    %232 = vector.broadcast %cst_93 : f32 to vector<32x128xf32>
    %233 = arith.mulf %232, %231 : vector<32x128xf32>
    %234 = arith.negf %233 : vector<32x128xf32>
    %235 = math.exp %234 : vector<32x128xf32>
    %cst_94 = arith.constant 1.000000e+00 : f32
    %236 = vector.broadcast %cst_94 : f32 to vector<32x128xf32>
    %237 = arith.addf %236, %235 : vector<32x128xf32>
    %238 = arith.divf %236, %237 : vector<32x128xf32>
    %239 = arith.mulf %231, %238 : vector<32x128xf32>
    %cst_95 = arith.constant dense<0.000000e+00> : vector<32x32xf32>
    %240 = tpu.matmul %239, %143, %cst_95 {dimension_numbers = #tpu.dot_dimension_numbers<[1], [0], [0], [1], [0, 0, 1, 1], [], []>} : vector<32x128xf32>, vector<128x32xf32>, vector<32x32xf32> -> vector<32x32xf32>
    %241 = arith.addf %206, %240 : vector<32x32xf32>
    %242 = vector.broadcast %144 : vector<1x32xf32> to vector<32x32xf32>
    %243 = arith.addf %241, %242 : vector<32x32xf32>
    %244 = tpu.iota {dimensions = array<i32: 0>} : vector<4x32xi32>
    %245 = tpu.iota {dimensions = array<i32: 1>} : vector<4x32xi32>
    %c8_i32 = arith.constant 8 : i32
    %246 = vector.broadcast %c8_i32 : i32 to vector<4x32xi32>
    %247 = arith.muli %244, %246 : vector<4x32xi32>
    %c0_96 = arith.constant 0 : index
    %c0_97 = arith.constant 0 : index
    %248 = vector.load %arg3[%c0_96, %c0_97] : memref<4x1xi32, #tpu.memory_space<vmem>>, vector<4x1xi32>
    %249 = vector.broadcast %248 : vector<4x1xi32> to vector<4x32xi32>
    %250 = arith.addi %247, %249 : vector<4x32xi32>
    %251 = arith.cmpi eq, %245, %250 : vector<4x32xi32>
    %252 = arith.extui %251 : vector<4x32xi1> to vector<4x32xi32>
    %253 = arith.sitofp %252 : vector<4x32xi32> to vector<4x32xf32>
    %cst_98 = arith.constant dense<0.000000e+00> : vector<4x32xf32>
    %254 = tpu.matmul %253, %243, %cst_98 {dimension_numbers = #tpu.dot_dimension_numbers<[1], [0], [0], [1], [0, 0, 1, 1], [], []>} : vector<4x32xf32>, vector<32x32xf32>, vector<4x32xf32> -> vector<4x32xf32>
    %c0_99 = arith.constant 0 : index
    %c0_100 = arith.constant 0 : index
    %255 = vector.load %arg12[%c0_99, %c0_100] : memref<1x32xf32, #tpu.memory_space<vmem>>, vector<1x32xf32>
    %c0_101 = arith.constant 0 : index
    %c0_102 = arith.constant 0 : index
    %256 = vector.load %arg13[%c0_101, %c0_102] : memref<1x32xf32, #tpu.memory_space<vmem>>, vector<1x32xf32>
    %cst_103 = arith.constant dense<0.000000e+00> : vector<4xf32>
    %257 = vector.multi_reduction <add>, %254, %cst_103 [1] : vector<4x32xf32> to vector<4xf32>
    %258 = vector.shape_cast %257 : vector<4xf32> to vector<4x1xf32>
    %cst_104 = arith.constant 3.200000e+01 : f32
    %259 = vector.broadcast %cst_104 : f32 to vector<4x1xf32>
    %260 = arith.divf %258, %259 : vector<4x1xf32>
    %261 = arith.mulf %254, %254 : vector<4x32xf32>
    %cst_105 = arith.constant dense<0.000000e+00> : vector<4xf32>
    %262 = vector.multi_reduction <add>, %261, %cst_105 [1] : vector<4x32xf32> to vector<4xf32>
    %263 = vector.shape_cast %262 : vector<4xf32> to vector<4x1xf32>
    %cst_106 = arith.constant 3.200000e+01 : f32
    %264 = vector.broadcast %cst_106 : f32 to vector<4x1xf32>
    %265 = arith.divf %263, %264 : vector<4x1xf32>
    %266 = arith.mulf %260, %260 : vector<4x1xf32>
    %267 = arith.subf %265, %266 : vector<4x1xf32>
    %268 = vector.broadcast %260 : vector<4x1xf32> to vector<4x32xf32>
    %269 = arith.subf %254, %268 : vector<4x32xf32>
    %cst_107 = arith.constant 9.99999974E-6 : f32
    %270 = vector.broadcast %cst_107 : f32 to vector<4x1xf32>
    %271 = arith.addf %267, %270 : vector<4x1xf32>
    %272 = math.rsqrt %271 : vector<4x1xf32>
    %273 = vector.broadcast %272 : vector<4x1xf32> to vector<4x32xf32>
    %274 = arith.mulf %269, %273 : vector<4x32xf32>
    %275 = vector.broadcast %255 : vector<1x32xf32> to vector<4x32xf32>
    %276 = arith.mulf %274, %275 : vector<4x32xf32>
    %277 = vector.broadcast %256 : vector<1x32xf32> to vector<4x32xf32>
    %278 = arith.addf %276, %277 : vector<4x32xf32>
    %c0_108 = arith.constant 0 : index
    %c0_109 = arith.constant 0 : index
    %279 = vector.load %arg14[%c0_108, %c0_109] : memref<32x32xf32, #tpu.memory_space<vmem>>, vector<32x32xf32>
    %cst_110 = arith.constant dense<0.000000e+00> : vector<4x32xf32>
    %280 = tpu.matmul %278, %279, %cst_110 {dimension_numbers = #tpu.dot_dimension_numbers<[1], [0], [0], [1], [0, 0, 1, 1], [], []>} : vector<4x32xf32>, vector<32x32xf32>, vector<4x32xf32> -> vector<4x32xf32>
    %c0_111 = arith.constant 0 : index
    %c0_112 = arith.constant 0 : index
    %281 = vector.load %arg15[%c0_111, %c0_112] : memref<8x192xf32, #tpu.memory_space<vmem>>, vector<8x192xf32>
    %c0_113 = arith.constant 0 : index
    %c0_114 = arith.constant 0 : index
    %282 = vector.load %arg16[%c0_113, %c0_114] : memref<192x32xf32, #tpu.memory_space<vmem>>, vector<192x32xf32>
    %cst_115 = arith.constant dense<0.000000e+00> : vector<8x32xf32>
    %283 = tpu.matmul %281, %282, %cst_115 {dimension_numbers = #tpu.dot_dimension_numbers<[1], [0], [0], [1], [0, 0, 1, 1], [], []>} : vector<8x192xf32>, vector<192x32xf32>, vector<8x32xf32> -> vector<8x32xf32>
    %c0_116 = arith.constant 0 : index
    %c0_117 = arith.constant 0 : index
    %284 = vector.load %arg17[%c0_116, %c0_117] : memref<10x8xf32, #tpu.memory_space<vmem>>, vector<10x8xf32>
    %cst_118 = arith.constant dense<0.000000e+00> : vector<10x32xf32>
    %285 = tpu.matmul %284, %283, %cst_118 {dimension_numbers = #tpu.dot_dimension_numbers<[1], [0], [0], [1], [0, 0, 1, 1], [], []>} : vector<10x8xf32>, vector<8x32xf32>, vector<10x32xf32> -> vector<10x32xf32>
    %c0_119 = arith.constant 0 : index
    %c0_120 = arith.constant 0 : index
    %286 = vector.load %arg18[%c0_119, %c0_120] : memref<10x6xf32, #tpu.memory_space<vmem>>, vector<10x6xf32>
    %c0_121 = arith.constant 0 : index
    %c0_122 = arith.constant 0 : index
    %287 = vector.load %arg19[%c0_121, %c0_122] : memref<6x32xf32, #tpu.memory_space<vmem>>, vector<6x32xf32>
    %cst_123 = arith.constant dense<0.000000e+00> : vector<10x32xf32>
    %288 = tpu.matmul %286, %287, %cst_123 {dimension_numbers = #tpu.dot_dimension_numbers<[1], [0], [0], [1], [0, 0, 1, 1], [], []>} : vector<10x6xf32>, vector<6x32xf32>, vector<10x32xf32> -> vector<10x32xf32>
    %289 = arith.addf %285, %288 : vector<10x32xf32>
    %c0_124 = arith.constant 0 : index
    %c0_125 = arith.constant 0 : index
    %290 = vector.load %arg21[%c0_124, %c0_125] : memref<1x32xf32, #tpu.memory_space<vmem>>, vector<1x32xf32>
    %c0_126 = arith.constant 0 : index
    %c0_127 = arith.constant 0 : index
    %291 = vector.load %arg22[%c0_126, %c0_127] : memref<1x32xf32, #tpu.memory_space<vmem>>, vector<1x32xf32>
    %cst_128 = arith.constant dense<0.000000e+00> : vector<10xf32>
    %292 = vector.multi_reduction <add>, %289, %cst_128 [1] : vector<10x32xf32> to vector<10xf32>
    %293 = vector.shape_cast %292 : vector<10xf32> to vector<10x1xf32>
    %cst_129 = arith.constant 3.200000e+01 : f32
    %294 = vector.broadcast %cst_129 : f32 to vector<10x1xf32>
    %295 = arith.divf %293, %294 : vector<10x1xf32>
    %296 = arith.mulf %289, %289 : vector<10x32xf32>
    %cst_130 = arith.constant dense<0.000000e+00> : vector<10xf32>
    %297 = vector.multi_reduction <add>, %296, %cst_130 [1] : vector<10x32xf32> to vector<10xf32>
    %298 = vector.shape_cast %297 : vector<10xf32> to vector<10x1xf32>
    %cst_131 = arith.constant 3.200000e+01 : f32
    %299 = vector.broadcast %cst_131 : f32 to vector<10x1xf32>
    %300 = arith.divf %298, %299 : vector<10x1xf32>
    %301 = arith.mulf %295, %295 : vector<10x1xf32>
    %302 = arith.subf %300, %301 : vector<10x1xf32>
    %303 = vector.broadcast %295 : vector<10x1xf32> to vector<10x32xf32>
    %304 = arith.subf %289, %303 : vector<10x32xf32>
    %cst_132 = arith.constant 9.99999974E-6 : f32
    %305 = vector.broadcast %cst_132 : f32 to vector<10x1xf32>
    %306 = arith.addf %302, %305 : vector<10x1xf32>
    %307 = math.rsqrt %306 : vector<10x1xf32>
    %308 = vector.broadcast %307 : vector<10x1xf32> to vector<10x32xf32>
    %309 = arith.mulf %304, %308 : vector<10x32xf32>
    %310 = vector.broadcast %290 : vector<1x32xf32> to vector<10x32xf32>
    %311 = arith.mulf %309, %310 : vector<10x32xf32>
    %312 = vector.broadcast %291 : vector<1x32xf32> to vector<10x32xf32>
    %313 = arith.addf %311, %312 : vector<10x32xf32>
    %c0_133 = arith.constant 0 : index
    %c0_134 = arith.constant 0 : index
    %314 = vector.load %arg20[%c0_133, %c0_134] : memref<10x10xf32, #tpu.memory_space<vmem>>, vector<10x10xf32>
    %c0_135 = arith.constant 0 : index
    %c0_136 = arith.constant 0 : index
    %c0_137 = arith.constant 0 : index
    %315 = vector.load %arg23[%c0_135, %c0_136, %c0_137] : memref<2x6x32xf32, #tpu.memory_space<vmem>>, vector<1x6x32xf32>
    %316 = vector.shape_cast %315 : vector<1x6x32xf32> to vector<6x32xf32>
    %317 = vector.extract_strided_slice %316 {offsets = [0, 0], sizes = [1, 32], strides = [1, 1]} : vector<6x32xf32> to vector<1x32xf32>
    %318 = vector.extract_strided_slice %316 {offsets = [1, 0], sizes = [1, 32], strides = [1, 1]} : vector<6x32xf32> to vector<1x32xf32>
    %c0_138 = arith.constant 0 : index
    %c0_139 = arith.constant 0 : index
    %c0_140 = arith.constant 0 : index
    %319 = vector.load %arg24[%c0_138, %c0_139, %c0_140] : memref<2x32x96xf32, #tpu.memory_space<vmem>>, vector<1x32x96xf32>
    %320 = vector.shape_cast %319 : vector<1x32x96xf32> to vector<32x96xf32>
    %c0_141 = arith.constant 0 : index
    %c0_142 = arith.constant 0 : index
    %c0_143 = arith.constant 0 : index
    %321 = vector.load %arg25[%c0_141, %c0_142, %c0_143] : memref<2x1x96xf32, #tpu.memory_space<vmem>>, vector<1x1x96xf32>
    %322 = vector.shape_cast %321 : vector<1x1x96xf32> to vector<1x96xf32>
    %c0_144 = arith.constant 0 : index
    %c0_145 = arith.constant 0 : index
    %c0_146 = arith.constant 0 : index
    %323 = vector.load %arg26[%c0_144, %c0_145, %c0_146] : memref<2x32x32xf32, #tpu.memory_space<vmem>>, vector<1x32x32xf32>
    %324 = vector.shape_cast %323 : vector<1x32x32xf32> to vector<32x32xf32>
    %325 = vector.extract_strided_slice %316 {offsets = [2, 0], sizes = [1, 32], strides = [1, 1]} : vector<6x32xf32> to vector<1x32xf32>
    %326 = vector.extract_strided_slice %316 {offsets = [3, 0], sizes = [1, 32], strides = [1, 1]} : vector<6x32xf32> to vector<1x32xf32>
    %327 = vector.extract_strided_slice %316 {offsets = [4, 0], sizes = [1, 32], strides = [1, 1]} : vector<6x32xf32> to vector<1x32xf32>
    %c0_147 = arith.constant 0 : index
    %c0_148 = arith.constant 0 : index
    %c0_149 = arith.constant 0 : index
    %328 = vector.load %arg27[%c0_147, %c0_148, %c0_149] : memref<2x32x128xf32, #tpu.memory_space<vmem>>, vector<1x32x128xf32>
    %329 = vector.shape_cast %328 : vector<1x32x128xf32> to vector<32x128xf32>
    %c0_150 = arith.constant 0 : index
    %c0_151 = arith.constant 0 : index
    %c0_152 = arith.constant 0 : index
    %330 = vector.load %arg28[%c0_150, %c0_151, %c0_152] : memref<2x1x128xf32, #tpu.memory_space<vmem>>, vector<1x1x128xf32>
    %331 = vector.shape_cast %330 : vector<1x1x128xf32> to vector<1x128xf32>
    %c0_153 = arith.constant 0 : index
    %c0_154 = arith.constant 0 : index
    %c0_155 = arith.constant 0 : index
    %332 = vector.load %arg29[%c0_153, %c0_154, %c0_155] : memref<2x128x32xf32, #tpu.memory_space<vmem>>, vector<1x128x32xf32>
    %333 = vector.shape_cast %332 : vector<1x128x32xf32> to vector<128x32xf32>
    %334 = vector.extract_strided_slice %316 {offsets = [5, 0], sizes = [1, 32], strides = [1, 1]} : vector<6x32xf32> to vector<1x32xf32>
    %cst_156 = arith.constant dense<0.000000e+00> : vector<10xf32>
    %335 = vector.multi_reduction <add>, %313, %cst_156 [1] : vector<10x32xf32> to vector<10xf32>
    %336 = vector.shape_cast %335 : vector<10xf32> to vector<10x1xf32>
    %cst_157 = arith.constant 3.200000e+01 : f32
    %337 = vector.broadcast %cst_157 : f32 to vector<10x1xf32>
    %338 = arith.divf %336, %337 : vector<10x1xf32>
    %339 = arith.mulf %313, %313 : vector<10x32xf32>
    %cst_158 = arith.constant dense<0.000000e+00> : vector<10xf32>
    %340 = vector.multi_reduction <add>, %339, %cst_158 [1] : vector<10x32xf32> to vector<10xf32>
    %341 = vector.shape_cast %340 : vector<10xf32> to vector<10x1xf32>
    %cst_159 = arith.constant 3.200000e+01 : f32
    %342 = vector.broadcast %cst_159 : f32 to vector<10x1xf32>
    %343 = arith.divf %341, %342 : vector<10x1xf32>
    %344 = arith.mulf %338, %338 : vector<10x1xf32>
    %345 = arith.subf %343, %344 : vector<10x1xf32>
    %346 = vector.broadcast %338 : vector<10x1xf32> to vector<10x32xf32>
    %347 = arith.subf %313, %346 : vector<10x32xf32>
    %cst_160 = arith.constant 9.99999974E-6 : f32
    %348 = vector.broadcast %cst_160 : f32 to vector<10x1xf32>
    %349 = arith.addf %345, %348 : vector<10x1xf32>
    %350 = math.rsqrt %349 : vector<10x1xf32>
    %351 = vector.broadcast %350 : vector<10x1xf32> to vector<10x32xf32>
    %352 = arith.mulf %347, %351 : vector<10x32xf32>
    %353 = vector.broadcast %317 : vector<1x32xf32> to vector<10x32xf32>
    %354 = arith.mulf %352, %353 : vector<10x32xf32>
    %355 = vector.broadcast %318 : vector<1x32xf32> to vector<10x32xf32>
    %356 = arith.addf %354, %355 : vector<10x32xf32>
    %cst_161 = arith.constant dense<0.000000e+00> : vector<10x96xf32>
    %357 = tpu.matmul %356, %320, %cst_161 {dimension_numbers = #tpu.dot_dimension_numbers<[1], [0], [0], [1], [0, 0, 1, 1], [], []>} : vector<10x32xf32>, vector<32x96xf32>, vector<10x96xf32> -> vector<10x96xf32>
    %358 = vector.broadcast %322 : vector<1x96xf32> to vector<10x96xf32>
    %359 = arith.addf %357, %358 : vector<10x96xf32>
    %360 = vector.extract_strided_slice %359 {offsets = [0, 0], sizes = [10, 16], strides = [1, 1]} : vector<10x96xf32> to vector<10x16xf32>
    %361 = vector.extract_strided_slice %359 {offsets = [0, 32], sizes = [10, 16], strides = [1, 1]} : vector<10x96xf32> to vector<10x16xf32>
    %362 = vector.extract_strided_slice %359 {offsets = [0, 64], sizes = [10, 16], strides = [1, 1]} : vector<10x96xf32> to vector<10x16xf32>
    %cst_162 = arith.constant dense<0.000000e+00> : vector<10x10xf32>
    %363 = tpu.matmul %360, %361, %cst_162 {dimension_numbers = #tpu.dot_dimension_numbers<[1], [1], [0], [0], [0, 0, 1, 0], [], []>} : vector<10x16xf32>, vector<10x16xf32>, vector<10x10xf32> -> vector<10x10xf32>
    %364 = arith.addf %363, %314 : vector<10x10xf32>
    %cst_163 = arith.constant dense<0xFF800000> : vector<10xf32>
    %365 = vector.multi_reduction <maximumf>, %364, %cst_163 [1] : vector<10x10xf32> to vector<10xf32>
    %366 = vector.shape_cast %365 : vector<10xf32> to vector<10x1xf32>
    %367 = vector.broadcast %366 : vector<10x1xf32> to vector<10x10xf32>
    %368 = arith.subf %364, %367 : vector<10x10xf32>
    %369 = math.exp %368 : vector<10x10xf32>
    %cst_164 = arith.constant dense<0.000000e+00> : vector<10xf32>
    %370 = vector.multi_reduction <add>, %369, %cst_164 [1] : vector<10x10xf32> to vector<10xf32>
    %371 = vector.shape_cast %370 : vector<10xf32> to vector<10x1xf32>
    %372 = tpu.reciprocal %371 {approx = true} : vector<10x1xf32> -> vector<10x1xf32>
    %373 = vector.broadcast %372 : vector<10x1xf32> to vector<10x10xf32>
    %374 = arith.mulf %369, %373 : vector<10x10xf32>
    %cst_165 = arith.constant dense<0.000000e+00> : vector<10x16xf32>
    %375 = tpu.matmul %374, %362, %cst_165 {dimension_numbers = #tpu.dot_dimension_numbers<[1], [0], [0], [1], [0, 0, 1, 1], [], []>} : vector<10x10xf32>, vector<10x16xf32>, vector<10x16xf32> -> vector<10x16xf32>
    %376 = vector.extract_strided_slice %359 {offsets = [0, 16], sizes = [10, 16], strides = [1, 1]} : vector<10x96xf32> to vector<10x16xf32>
    %377 = vector.extract_strided_slice %359 {offsets = [0, 48], sizes = [10, 16], strides = [1, 1]} : vector<10x96xf32> to vector<10x16xf32>
    %378 = vector.extract_strided_slice %359 {offsets = [0, 80], sizes = [10, 16], strides = [1, 1]} : vector<10x96xf32> to vector<10x16xf32>
    %cst_166 = arith.constant dense<0.000000e+00> : vector<10x10xf32>
    %379 = tpu.matmul %376, %377, %cst_166 {dimension_numbers = #tpu.dot_dimension_numbers<[1], [1], [0], [0], [0, 0, 1, 0], [], []>} : vector<10x16xf32>, vector<10x16xf32>, vector<10x10xf32> -> vector<10x10xf32>
    %380 = arith.addf %379, %314 : vector<10x10xf32>
    %cst_167 = arith.constant dense<0xFF800000> : vector<10xf32>
    %381 = vector.multi_reduction <maximumf>, %380, %cst_167 [1] : vector<10x10xf32> to vector<10xf32>
    %382 = vector.shape_cast %381 : vector<10xf32> to vector<10x1xf32>
    %383 = vector.broadcast %382 : vector<10x1xf32> to vector<10x10xf32>
    %384 = arith.subf %380, %383 : vector<10x10xf32>
    %385 = math.exp %384 : vector<10x10xf32>
    %cst_168 = arith.constant dense<0.000000e+00> : vector<10xf32>
    %386 = vector.multi_reduction <add>, %385, %cst_168 [1] : vector<10x10xf32> to vector<10xf32>
    %387 = vector.shape_cast %386 : vector<10xf32> to vector<10x1xf32>
    %388 = tpu.reciprocal %387 {approx = true} : vector<10x1xf32> -> vector<10x1xf32>
    %389 = vector.broadcast %388 : vector<10x1xf32> to vector<10x10xf32>
    %390 = arith.mulf %385, %389 : vector<10x10xf32>
    %cst_169 = arith.constant dense<0.000000e+00> : vector<10x16xf32>
    %391 = tpu.matmul %390, %378, %cst_169 {dimension_numbers = #tpu.dot_dimension_numbers<[1], [0], [0], [1], [0, 0, 1, 1], [], []>} : vector<10x10xf32>, vector<10x16xf32>, vector<10x16xf32> -> vector<10x16xf32>
    %392 = tpu.concatenate %375, %391 in 1 : vector<10x16xf32>, vector<10x16xf32> -> vector<10x32xf32>
    %cst_170 = arith.constant dense<0.000000e+00> : vector<10x32xf32>
    %393 = tpu.matmul %392, %324, %cst_170 {dimension_numbers = #tpu.dot_dimension_numbers<[1], [0], [0], [1], [0, 0, 1, 1], [], []>} : vector<10x32xf32>, vector<32x32xf32>, vector<10x32xf32> -> vector<10x32xf32>
    %394 = arith.addf %313, %393 : vector<10x32xf32>
    %395 = vector.broadcast %325 : vector<1x32xf32> to vector<10x32xf32>
    %396 = arith.addf %394, %395 : vector<10x32xf32>
    %cst_171 = arith.constant dense<0.000000e+00> : vector<10xf32>
    %397 = vector.multi_reduction <add>, %396, %cst_171 [1] : vector<10x32xf32> to vector<10xf32>
    %398 = vector.shape_cast %397 : vector<10xf32> to vector<10x1xf32>
    %cst_172 = arith.constant 3.200000e+01 : f32
    %399 = vector.broadcast %cst_172 : f32 to vector<10x1xf32>
    %400 = arith.divf %398, %399 : vector<10x1xf32>
    %401 = arith.mulf %396, %396 : vector<10x32xf32>
    %cst_173 = arith.constant dense<0.000000e+00> : vector<10xf32>
    %402 = vector.multi_reduction <add>, %401, %cst_173 [1] : vector<10x32xf32> to vector<10xf32>
    %403 = vector.shape_cast %402 : vector<10xf32> to vector<10x1xf32>
    %cst_174 = arith.constant 3.200000e+01 : f32
    %404 = vector.broadcast %cst_174 : f32 to vector<10x1xf32>
    %405 = arith.divf %403, %404 : vector<10x1xf32>
    %406 = arith.mulf %400, %400 : vector<10x1xf32>
    %407 = arith.subf %405, %406 : vector<10x1xf32>
    %408 = vector.broadcast %400 : vector<10x1xf32> to vector<10x32xf32>
    %409 = arith.subf %396, %408 : vector<10x32xf32>
    %cst_175 = arith.constant 9.99999974E-6 : f32
    %410 = vector.broadcast %cst_175 : f32 to vector<10x1xf32>
    %411 = arith.addf %407, %410 : vector<10x1xf32>
    %412 = math.rsqrt %411 : vector<10x1xf32>
    %413 = vector.broadcast %412 : vector<10x1xf32> to vector<10x32xf32>
    %414 = arith.mulf %409, %413 : vector<10x32xf32>
    %415 = vector.broadcast %326 : vector<1x32xf32> to vector<10x32xf32>
    %416 = arith.mulf %414, %415 : vector<10x32xf32>
    %417 = vector.broadcast %327 : vector<1x32xf32> to vector<10x32xf32>
    %418 = arith.addf %416, %417 : vector<10x32xf32>
    %cst_176 = arith.constant dense<0.000000e+00> : vector<10x128xf32>
    %419 = tpu.matmul %418, %329, %cst_176 {dimension_numbers = #tpu.dot_dimension_numbers<[1], [0], [0], [1], [0, 0, 1, 1], [], []>} : vector<10x32xf32>, vector<32x128xf32>, vector<10x128xf32> -> vector<10x128xf32>
    %420 = vector.broadcast %331 : vector<1x128xf32> to vector<10x128xf32>
    %421 = arith.addf %419, %420 : vector<10x128xf32>
    %cst_177 = arith.constant 1.702000e+00 : f32
    %422 = vector.broadcast %cst_177 : f32 to vector<10x128xf32>
    %423 = arith.mulf %422, %421 : vector<10x128xf32>
    %424 = arith.negf %423 : vector<10x128xf32>
    %425 = math.exp %424 : vector<10x128xf32>
    %cst_178 = arith.constant 1.000000e+00 : f32
    %426 = vector.broadcast %cst_178 : f32 to vector<10x128xf32>
    %427 = arith.addf %426, %425 : vector<10x128xf32>
    %428 = arith.divf %426, %427 : vector<10x128xf32>
    %429 = arith.mulf %421, %428 : vector<10x128xf32>
    %cst_179 = arith.constant dense<0.000000e+00> : vector<10x32xf32>
    %430 = tpu.matmul %429, %333, %cst_179 {dimension_numbers = #tpu.dot_dimension_numbers<[1], [0], [0], [1], [0, 0, 1, 1], [], []>} : vector<10x128xf32>, vector<128x32xf32>, vector<10x32xf32> -> vector<10x32xf32>
    %431 = arith.addf %396, %430 : vector<10x32xf32>
    %432 = vector.broadcast %334 : vector<1x32xf32> to vector<10x32xf32>
    %433 = arith.addf %431, %432 : vector<10x32xf32>
    %c1_180 = arith.constant 1 : index
    %c0_181 = arith.constant 0 : index
    %c0_182 = arith.constant 0 : index
    %434 = vector.load %arg23[%c1_180, %c0_181, %c0_182] : memref<2x6x32xf32, #tpu.memory_space<vmem>>, vector<1x6x32xf32>
    %435 = vector.shape_cast %434 : vector<1x6x32xf32> to vector<6x32xf32>
    %436 = vector.extract_strided_slice %435 {offsets = [0, 0], sizes = [1, 32], strides = [1, 1]} : vector<6x32xf32> to vector<1x32xf32>
    %437 = vector.extract_strided_slice %435 {offsets = [1, 0], sizes = [1, 32], strides = [1, 1]} : vector<6x32xf32> to vector<1x32xf32>
    %c1_183 = arith.constant 1 : index
    %c0_184 = arith.constant 0 : index
    %c0_185 = arith.constant 0 : index
    %438 = vector.load %arg24[%c1_183, %c0_184, %c0_185] : memref<2x32x96xf32, #tpu.memory_space<vmem>>, vector<1x32x96xf32>
    %439 = vector.shape_cast %438 : vector<1x32x96xf32> to vector<32x96xf32>
    %c1_186 = arith.constant 1 : index
    %c0_187 = arith.constant 0 : index
    %c0_188 = arith.constant 0 : index
    %440 = vector.load %arg25[%c1_186, %c0_187, %c0_188] : memref<2x1x96xf32, #tpu.memory_space<vmem>>, vector<1x1x96xf32>
    %441 = vector.shape_cast %440 : vector<1x1x96xf32> to vector<1x96xf32>
    %c1_189 = arith.constant 1 : index
    %c0_190 = arith.constant 0 : index
    %c0_191 = arith.constant 0 : index
    %442 = vector.load %arg26[%c1_189, %c0_190, %c0_191] : memref<2x32x32xf32, #tpu.memory_space<vmem>>, vector<1x32x32xf32>
    %443 = vector.shape_cast %442 : vector<1x32x32xf32> to vector<32x32xf32>
    %444 = vector.extract_strided_slice %435 {offsets = [2, 0], sizes = [1, 32], strides = [1, 1]} : vector<6x32xf32> to vector<1x32xf32>
    %445 = vector.extract_strided_slice %435 {offsets = [3, 0], sizes = [1, 32], strides = [1, 1]} : vector<6x32xf32> to vector<1x32xf32>
    %446 = vector.extract_strided_slice %435 {offsets = [4, 0], sizes = [1, 32], strides = [1, 1]} : vector<6x32xf32> to vector<1x32xf32>
    %c1_192 = arith.constant 1 : index
    %c0_193 = arith.constant 0 : index
    %c0_194 = arith.constant 0 : index
    %447 = vector.load %arg27[%c1_192, %c0_193, %c0_194] : memref<2x32x128xf32, #tpu.memory_space<vmem>>, vector<1x32x128xf32>
    %448 = vector.shape_cast %447 : vector<1x32x128xf32> to vector<32x128xf32>
    %c1_195 = arith.constant 1 : index
    %c0_196 = arith.constant 0 : index
    %c0_197 = arith.constant 0 : index
    %449 = vector.load %arg28[%c1_195, %c0_196, %c0_197] : memref<2x1x128xf32, #tpu.memory_space<vmem>>, vector<1x1x128xf32>
    %450 = vector.shape_cast %449 : vector<1x1x128xf32> to vector<1x128xf32>
    %c1_198 = arith.constant 1 : index
    %c0_199 = arith.constant 0 : index
    %c0_200 = arith.constant 0 : index
    %451 = vector.load %arg29[%c1_198, %c0_199, %c0_200] : memref<2x128x32xf32, #tpu.memory_space<vmem>>, vector<1x128x32xf32>
    %452 = vector.shape_cast %451 : vector<1x128x32xf32> to vector<128x32xf32>
    %453 = vector.extract_strided_slice %435 {offsets = [5, 0], sizes = [1, 32], strides = [1, 1]} : vector<6x32xf32> to vector<1x32xf32>
    %cst_201 = arith.constant dense<0.000000e+00> : vector<10xf32>
    %454 = vector.multi_reduction <add>, %433, %cst_201 [1] : vector<10x32xf32> to vector<10xf32>
    %455 = vector.shape_cast %454 : vector<10xf32> to vector<10x1xf32>
    %cst_202 = arith.constant 3.200000e+01 : f32
    %456 = vector.broadcast %cst_202 : f32 to vector<10x1xf32>
    %457 = arith.divf %455, %456 : vector<10x1xf32>
    %458 = arith.mulf %433, %433 : vector<10x32xf32>
    %cst_203 = arith.constant dense<0.000000e+00> : vector<10xf32>
    %459 = vector.multi_reduction <add>, %458, %cst_203 [1] : vector<10x32xf32> to vector<10xf32>
    %460 = vector.shape_cast %459 : vector<10xf32> to vector<10x1xf32>
    %cst_204 = arith.constant 3.200000e+01 : f32
    %461 = vector.broadcast %cst_204 : f32 to vector<10x1xf32>
    %462 = arith.divf %460, %461 : vector<10x1xf32>
    %463 = arith.mulf %457, %457 : vector<10x1xf32>
    %464 = arith.subf %462, %463 : vector<10x1xf32>
    %465 = vector.broadcast %457 : vector<10x1xf32> to vector<10x32xf32>
    %466 = arith.subf %433, %465 : vector<10x32xf32>
    %cst_205 = arith.constant 9.99999974E-6 : f32
    %467 = vector.broadcast %cst_205 : f32 to vector<10x1xf32>
    %468 = arith.addf %464, %467 : vector<10x1xf32>
    %469 = math.rsqrt %468 : vector<10x1xf32>
    %470 = vector.broadcast %469 : vector<10x1xf32> to vector<10x32xf32>
    %471 = arith.mulf %466, %470 : vector<10x32xf32>
    %472 = vector.broadcast %436 : vector<1x32xf32> to vector<10x32xf32>
    %473 = arith.mulf %471, %472 : vector<10x32xf32>
    %474 = vector.broadcast %437 : vector<1x32xf32> to vector<10x32xf32>
    %475 = arith.addf %473, %474 : vector<10x32xf32>
    %cst_206 = arith.constant dense<0.000000e+00> : vector<10x96xf32>
    %476 = tpu.matmul %475, %439, %cst_206 {dimension_numbers = #tpu.dot_dimension_numbers<[1], [0], [0], [1], [0, 0, 1, 1], [], []>} : vector<10x32xf32>, vector<32x96xf32>, vector<10x96xf32> -> vector<10x96xf32>
    %477 = vector.broadcast %441 : vector<1x96xf32> to vector<10x96xf32>
    %478 = arith.addf %476, %477 : vector<10x96xf32>
    %479 = vector.extract_strided_slice %478 {offsets = [0, 0], sizes = [10, 16], strides = [1, 1]} : vector<10x96xf32> to vector<10x16xf32>
    %480 = vector.extract_strided_slice %478 {offsets = [0, 32], sizes = [10, 16], strides = [1, 1]} : vector<10x96xf32> to vector<10x16xf32>
    %481 = vector.extract_strided_slice %478 {offsets = [0, 64], sizes = [10, 16], strides = [1, 1]} : vector<10x96xf32> to vector<10x16xf32>
    %cst_207 = arith.constant dense<0.000000e+00> : vector<10x10xf32>
    %482 = tpu.matmul %479, %480, %cst_207 {dimension_numbers = #tpu.dot_dimension_numbers<[1], [1], [0], [0], [0, 0, 1, 0], [], []>} : vector<10x16xf32>, vector<10x16xf32>, vector<10x10xf32> -> vector<10x10xf32>
    %483 = arith.addf %482, %314 : vector<10x10xf32>
    %cst_208 = arith.constant dense<0xFF800000> : vector<10xf32>
    %484 = vector.multi_reduction <maximumf>, %483, %cst_208 [1] : vector<10x10xf32> to vector<10xf32>
    %485 = vector.shape_cast %484 : vector<10xf32> to vector<10x1xf32>
    %486 = vector.broadcast %485 : vector<10x1xf32> to vector<10x10xf32>
    %487 = arith.subf %483, %486 : vector<10x10xf32>
    %488 = math.exp %487 : vector<10x10xf32>
    %cst_209 = arith.constant dense<0.000000e+00> : vector<10xf32>
    %489 = vector.multi_reduction <add>, %488, %cst_209 [1] : vector<10x10xf32> to vector<10xf32>
    %490 = vector.shape_cast %489 : vector<10xf32> to vector<10x1xf32>
    %491 = tpu.reciprocal %490 {approx = true} : vector<10x1xf32> -> vector<10x1xf32>
    %492 = vector.broadcast %491 : vector<10x1xf32> to vector<10x10xf32>
    %493 = arith.mulf %488, %492 : vector<10x10xf32>
    %cst_210 = arith.constant dense<0.000000e+00> : vector<10x16xf32>
    %494 = tpu.matmul %493, %481, %cst_210 {dimension_numbers = #tpu.dot_dimension_numbers<[1], [0], [0], [1], [0, 0, 1, 1], [], []>} : vector<10x10xf32>, vector<10x16xf32>, vector<10x16xf32> -> vector<10x16xf32>
    %495 = vector.extract_strided_slice %478 {offsets = [0, 16], sizes = [10, 16], strides = [1, 1]} : vector<10x96xf32> to vector<10x16xf32>
    %496 = vector.extract_strided_slice %478 {offsets = [0, 48], sizes = [10, 16], strides = [1, 1]} : vector<10x96xf32> to vector<10x16xf32>
    %497 = vector.extract_strided_slice %478 {offsets = [0, 80], sizes = [10, 16], strides = [1, 1]} : vector<10x96xf32> to vector<10x16xf32>
    %cst_211 = arith.constant dense<0.000000e+00> : vector<10x10xf32>
    %498 = tpu.matmul %495, %496, %cst_211 {dimension_numbers = #tpu.dot_dimension_numbers<[1], [1], [0], [0], [0, 0, 1, 0], [], []>} : vector<10x16xf32>, vector<10x16xf32>, vector<10x10xf32> -> vector<10x10xf32>
    %499 = arith.addf %498, %314 : vector<10x10xf32>
    %cst_212 = arith.constant dense<0xFF800000> : vector<10xf32>
    %500 = vector.multi_reduction <maximumf>, %499, %cst_212 [1] : vector<10x10xf32> to vector<10xf32>
    %501 = vector.shape_cast %500 : vector<10xf32> to vector<10x1xf32>
    %502 = vector.broadcast %501 : vector<10x1xf32> to vector<10x10xf32>
    %503 = arith.subf %499, %502 : vector<10x10xf32>
    %504 = math.exp %503 : vector<10x10xf32>
    %cst_213 = arith.constant dense<0.000000e+00> : vector<10xf32>
    %505 = vector.multi_reduction <add>, %504, %cst_213 [1] : vector<10x10xf32> to vector<10xf32>
    %506 = vector.shape_cast %505 : vector<10xf32> to vector<10x1xf32>
    %507 = tpu.reciprocal %506 {approx = true} : vector<10x1xf32> -> vector<10x1xf32>
    %508 = vector.broadcast %507 : vector<10x1xf32> to vector<10x10xf32>
    %509 = arith.mulf %504, %508 : vector<10x10xf32>
    %cst_214 = arith.constant dense<0.000000e+00> : vector<10x16xf32>
    %510 = tpu.matmul %509, %497, %cst_214 {dimension_numbers = #tpu.dot_dimension_numbers<[1], [0], [0], [1], [0, 0, 1, 1], [], []>} : vector<10x10xf32>, vector<10x16xf32>, vector<10x16xf32> -> vector<10x16xf32>
    %511 = tpu.concatenate %494, %510 in 1 : vector<10x16xf32>, vector<10x16xf32> -> vector<10x32xf32>
    %cst_215 = arith.constant dense<0.000000e+00> : vector<10x32xf32>
    %512 = tpu.matmul %511, %443, %cst_215 {dimension_numbers = #tpu.dot_dimension_numbers<[1], [0], [0], [1], [0, 0, 1, 1], [], []>} : vector<10x32xf32>, vector<32x32xf32>, vector<10x32xf32> -> vector<10x32xf32>
    %513 = arith.addf %433, %512 : vector<10x32xf32>
    %514 = vector.broadcast %444 : vector<1x32xf32> to vector<10x32xf32>
    %515 = arith.addf %513, %514 : vector<10x32xf32>
    %cst_216 = arith.constant dense<0.000000e+00> : vector<10xf32>
    %516 = vector.multi_reduction <add>, %515, %cst_216 [1] : vector<10x32xf32> to vector<10xf32>
    %517 = vector.shape_cast %516 : vector<10xf32> to vector<10x1xf32>
    %cst_217 = arith.constant 3.200000e+01 : f32
    %518 = vector.broadcast %cst_217 : f32 to vector<10x1xf32>
    %519 = arith.divf %517, %518 : vector<10x1xf32>
    %520 = arith.mulf %515, %515 : vector<10x32xf32>
    %cst_218 = arith.constant dense<0.000000e+00> : vector<10xf32>
    %521 = vector.multi_reduction <add>, %520, %cst_218 [1] : vector<10x32xf32> to vector<10xf32>
    %522 = vector.shape_cast %521 : vector<10xf32> to vector<10x1xf32>
    %cst_219 = arith.constant 3.200000e+01 : f32
    %523 = vector.broadcast %cst_219 : f32 to vector<10x1xf32>
    %524 = arith.divf %522, %523 : vector<10x1xf32>
    %525 = arith.mulf %519, %519 : vector<10x1xf32>
    %526 = arith.subf %524, %525 : vector<10x1xf32>
    %527 = vector.broadcast %519 : vector<10x1xf32> to vector<10x32xf32>
    %528 = arith.subf %515, %527 : vector<10x32xf32>
    %cst_220 = arith.constant 9.99999974E-6 : f32
    %529 = vector.broadcast %cst_220 : f32 to vector<10x1xf32>
    %530 = arith.addf %526, %529 : vector<10x1xf32>
    %531 = math.rsqrt %530 : vector<10x1xf32>
    %532 = vector.broadcast %531 : vector<10x1xf32> to vector<10x32xf32>
    %533 = arith.mulf %528, %532 : vector<10x32xf32>
    %534 = vector.broadcast %445 : vector<1x32xf32> to vector<10x32xf32>
    %535 = arith.mulf %533, %534 : vector<10x32xf32>
    %536 = vector.broadcast %446 : vector<1x32xf32> to vector<10x32xf32>
    %537 = arith.addf %535, %536 : vector<10x32xf32>
    %cst_221 = arith.constant dense<0.000000e+00> : vector<10x128xf32>
    %538 = tpu.matmul %537, %448, %cst_221 {dimension_numbers = #tpu.dot_dimension_numbers<[1], [0], [0], [1], [0, 0, 1, 1], [], []>} : vector<10x32xf32>, vector<32x128xf32>, vector<10x128xf32> -> vector<10x128xf32>
    %539 = vector.broadcast %450 : vector<1x128xf32> to vector<10x128xf32>
    %540 = arith.addf %538, %539 : vector<10x128xf32>
    %cst_222 = arith.constant 1.702000e+00 : f32
    %541 = vector.broadcast %cst_222 : f32 to vector<10x128xf32>
    %542 = arith.mulf %541, %540 : vector<10x128xf32>
    %543 = arith.negf %542 : vector<10x128xf32>
    %544 = math.exp %543 : vector<10x128xf32>
    %cst_223 = arith.constant 1.000000e+00 : f32
    %545 = vector.broadcast %cst_223 : f32 to vector<10x128xf32>
    %546 = arith.addf %545, %544 : vector<10x128xf32>
    %547 = arith.divf %545, %546 : vector<10x128xf32>
    %548 = arith.mulf %540, %547 : vector<10x128xf32>
    %cst_224 = arith.constant dense<0.000000e+00> : vector<10x32xf32>
    %549 = tpu.matmul %548, %452, %cst_224 {dimension_numbers = #tpu.dot_dimension_numbers<[1], [0], [0], [1], [0, 0, 1, 1], [], []>} : vector<10x128xf32>, vector<128x32xf32>, vector<10x32xf32> -> vector<10x32xf32>
    %550 = arith.addf %515, %549 : vector<10x32xf32>
    %551 = vector.broadcast %453 : vector<1x32xf32> to vector<10x32xf32>
    %552 = arith.addf %550, %551 : vector<10x32xf32>
    %c0_225 = arith.constant 0 : index
    %c0_226 = arith.constant 0 : index
    %553 = vector.load %arg30[%c0_225, %c0_226] : memref<2x10xf32, #tpu.memory_space<vmem>>, vector<2x10xf32>
    %cst_227 = arith.constant dense<0.000000e+00> : vector<2x32xf32>
    %554 = tpu.matmul %553, %552, %cst_227 {dimension_numbers = #tpu.dot_dimension_numbers<[1], [0], [0], [1], [0, 0, 1, 1], [], []>} : vector<2x10xf32>, vector<10x32xf32>, vector<2x32xf32> -> vector<2x32xf32>
    %c0_228 = arith.constant 0 : index
    %c0_229 = arith.constant 0 : index
    %555 = vector.load %arg31[%c0_228, %c0_229] : memref<1x32xf32, #tpu.memory_space<vmem>>, vector<1x32xf32>
    %c0_230 = arith.constant 0 : index
    %c0_231 = arith.constant 0 : index
    %556 = vector.load %arg32[%c0_230, %c0_231] : memref<1x32xf32, #tpu.memory_space<vmem>>, vector<1x32xf32>
    %cst_232 = arith.constant dense<0.000000e+00> : vector<2xf32>
    %557 = vector.multi_reduction <add>, %554, %cst_232 [1] : vector<2x32xf32> to vector<2xf32>
    %558 = vector.shape_cast %557 : vector<2xf32> to vector<2x1xf32>
    %cst_233 = arith.constant 3.200000e+01 : f32
    %559 = vector.broadcast %cst_233 : f32 to vector<2x1xf32>
    %560 = arith.divf %558, %559 : vector<2x1xf32>
    %561 = arith.mulf %554, %554 : vector<2x32xf32>
    %cst_234 = arith.constant dense<0.000000e+00> : vector<2xf32>
    %562 = vector.multi_reduction <add>, %561, %cst_234 [1] : vector<2x32xf32> to vector<2xf32>
    %563 = vector.shape_cast %562 : vector<2xf32> to vector<2x1xf32>
    %cst_235 = arith.constant 3.200000e+01 : f32
    %564 = vector.broadcast %cst_235 : f32 to vector<2x1xf32>
    %565 = arith.divf %563, %564 : vector<2x1xf32>
    %566 = arith.mulf %560, %560 : vector<2x1xf32>
    %567 = arith.subf %565, %566 : vector<2x1xf32>
    %568 = vector.broadcast %560 : vector<2x1xf32> to vector<2x32xf32>
    %569 = arith.subf %554, %568 : vector<2x32xf32>
    %cst_236 = arith.constant 9.99999974E-6 : f32
    %570 = vector.broadcast %cst_236 : f32 to vector<2x1xf32>
    %571 = arith.addf %567, %570 : vector<2x1xf32>
    %572 = math.rsqrt %571 : vector<2x1xf32>
    %573 = vector.broadcast %572 : vector<2x1xf32> to vector<2x32xf32>
    %574 = arith.mulf %569, %573 : vector<2x32xf32>
    %575 = vector.broadcast %555 : vector<1x32xf32> to vector<2x32xf32>
    %576 = arith.mulf %574, %575 : vector<2x32xf32>
    %577 = vector.broadcast %556 : vector<1x32xf32> to vector<2x32xf32>
    %578 = arith.addf %576, %577 : vector<2x32xf32>
    %c0_237 = arith.constant 0 : index
    %c0_238 = arith.constant 0 : index
    %579 = vector.load %arg33[%c0_237, %c0_238] : memref<32x32xf32, #tpu.memory_space<vmem>>, vector<32x32xf32>
    %cst_239 = arith.constant dense<0.000000e+00> : vector<2x32xf32>
    %580 = tpu.matmul %578, %579, %cst_239 {dimension_numbers = #tpu.dot_dimension_numbers<[1], [0], [0], [1], [0, 0, 1, 1], [], []>} : vector<2x32xf32>, vector<32x32xf32>, vector<2x32xf32> -> vector<2x32xf32>
    %581 = arith.mulf %580, %580 : vector<2x32xf32>
    %cst_240 = arith.constant dense<0.000000e+00> : vector<2xf32>
    %582 = vector.multi_reduction <add>, %581, %cst_240 [1] : vector<2x32xf32> to vector<2xf32>
    %583 = vector.shape_cast %582 : vector<2xf32> to vector<2x1xf32>
    %584 = math.rsqrt %583 : vector<2x1xf32>
    %585 = vector.broadcast %584 : vector<2x1xf32> to vector<2x32xf32>
    %586 = arith.mulf %580, %585 : vector<2x32xf32>
    %587 = arith.mulf %280, %280 : vector<4x32xf32>
    %cst_241 = arith.constant dense<0.000000e+00> : vector<4xf32>
    %588 = vector.multi_reduction <add>, %587, %cst_241 [1] : vector<4x32xf32> to vector<4xf32>
    %589 = vector.shape_cast %588 : vector<4xf32> to vector<4x1xf32>
    %590 = math.rsqrt %589 : vector<4x1xf32>
    %591 = vector.broadcast %590 : vector<4x1xf32> to vector<4x32xf32>
    %592 = arith.mulf %280, %591 : vector<4x32xf32>
    %cst_242 = arith.constant dense<0.000000e+00> : vector<2x4xf32>
    %593 = tpu.matmul %586, %592, %cst_242 {dimension_numbers = #tpu.dot_dimension_numbers<[1], [1], [0], [0], [0, 0, 1, 0], [], []>} : vector<2x32xf32>, vector<4x32xf32>, vector<2x4xf32> -> vector<2x4xf32>
    %c0_243 = arith.constant 0 : index
    %c0_244 = arith.constant 0 : index
    %594 = vector.load %arg34[%c0_243, %c0_244] : memref<1x1xf32, #tpu.memory_space<vmem>>, vector<1x1xf32>
    %595 = math.exp %594 : vector<1x1xf32>
    %596 = vector.broadcast %595 : vector<1x1xf32> to vector<2x4xf32>
    %597 = arith.mulf %596, %593 : vector<2x4xf32>
    %c0_245 = arith.constant 0 : index
    %c0_246 = arith.constant 0 : index
    %598 = vector.load %arg35[%c0_245, %c0_246] : memref<2x4xf32, #tpu.memory_space<vmem>>, vector<2x4xf32>
    tpu.vector_store %arg35[%c0_245, %c0_246], %597 {strides = array<i32>} : memref<2x4xf32, #tpu.memory_space<vmem>>, vector<2x4xf32>,
    return
  }
}

</mosaic_0001>

<llo_original>
// kernel: custom_clip_forward.1
$region0: #{custom_clip_forward.1}
  #allocation0 [shape = 'u32[]', space=smem, size = 0x4, offset = 0x4, fixed_abs, tag = 'smem constant byte address 0x4 - core index']
  #allocation1 [shape = 'u32[144,128]{1,0:T(1,128)}', space=vmem, size = 0x12000, scoped, tag = 'internal scratch']
  #allocation2 [shape = 'f32[1,1]{1,0:T(1,128)S(1)}', space=vmem, size = 0x200, scoped, tag = 'scoped memory for custom_clip_forward.1']
  %s0 = inlined_call_operand.smem [shape: u32[36], index: -1, kind: input, shape index: {}]
  %s1 = sld [smem:[%s0]]
  %s2 = scalar_lea.smem %s0, 1
  %s3 = sld [smem:[%s2]]
  %s4 = scalar_lea.smem %s0, 2
  %s5 = sld [smem:[%s4]]
  %s6 = scalar_lea.smem %s0, 3
  %s7 = sld [smem:[%s6]]
  %s8 = scalar_lea.smem %s0, 4
  %s9 = sld [smem:[%s8]]
  %s10 = scalar_lea.smem %s0, 5
  %s11 = sld [smem:[%s10]]
  %s12 = scalar_lea.smem %s0, 6
  %s13 = sld [smem:[%s12]]
  %s14 = scalar_lea.smem %s0, 7
  %s15 = sld [smem:[%s14]]
  %s16 = scalar_lea.smem %s0, 8
  %s17 = sld [smem:[%s16]]
  %s18 = scalar_lea.smem %s0, 9
  %s19 = sld [smem:[%s18]]
  %s20 = scalar_lea.smem %s0, 10
  %s21 = sld [smem:[%s20]]
  %s22 = scalar_lea.smem %s0, 11
  %s23 = sld [smem:[%s22]]
  %s24 = scalar_lea.smem %s0, 12
  %s25 = sld [smem:[%s24]]
  %s26 = scalar_lea.smem %s0, 13
  %s27 = sld [smem:[%s26]]
  %s28 = scalar_lea.smem %s0, 14
  %s29 = sld [smem:[%s28]]
  %s30 = scalar_lea.smem %s0, 15
  %s31 = sld [smem:[%s30]]
  %s32 = scalar_lea.smem %s0, 16
  %s33 = sld [smem:[%s32]]
  %s34 = scalar_lea.smem %s0, 17
  %s35 = sld [smem:[%s34]]
  %s36 = scalar_lea.smem %s0, 18
  %s37 = sld [smem:[%s36]]
  %s38 = scalar_lea.smem %s0, 19
  %s39 = sld [smem:[%s38]]
  %s40 = scalar_lea.smem %s0, 20
  %s41 = sld [smem:[%s40]]
  %s42 = scalar_lea.smem %s0, 21
  %s43 = sld [smem:[%s42]]
  %s44 = scalar_lea.smem %s0, 22
  %s45 = sld [smem:[%s44]]
  %s46 = scalar_lea.smem %s0, 23
  %s47 = sld [smem:[%s46]]
  %s48 = scalar_lea.smem %s0, 24
  %s49 = sld [smem:[%s48]]
  %s50 = scalar_lea.smem %s0, 25
  %s51 = sld [smem:[%s50]]
  %s52 = scalar_lea.smem %s0, 26
  %s53 = sld [smem:[%s52]]
  %s54 = scalar_lea.smem %s0, 27
  %s55 = sld [smem:[%s54]]
  %s56 = scalar_lea.smem %s0, 28
  %s57 = sld [smem:[%s56]]
  %s58 = scalar_lea.smem %s0, 29
  %s59 = sld [smem:[%s58]]
  %s60 = scalar_lea.smem %s0, 30
  %s61 = sld [smem:[%s60]]
  %s62 = scalar_lea.smem %s0, 31
  %s63 = sld [smem:[%s62]]
  %s64 = scalar_lea.smem %s0, 32
  %s65 = sld [smem:[%s64]]
  %s66 = scalar_lea.smem %s0, 33
  %s67 = sld [smem:[%s66]]
  %s68 = scalar_lea.smem %s0, 34
  %s69 = sld [smem:[%s68]]
  %s70 = scalar_lea.smem %s0, 35
  %s71 = sld [smem:[%s70]]
  %s72 = sld [smem:[#allocation0]]
  $region150: #{custom_clip_forward.1} parent=0
    _
  %s74 = ssub.s32 1, %s72
  %s75 = scalar_select 0, %s74, %s72
  %v76 = vstv %s69
  %77 = vst [vmem:[#allocation2] sm:$0x1] %v76
  $region1: #{custom_clip_forward.1} parent=0
    #allocation3 [shape = 'u8[1024]{0}', space=vmem, size = 0x400, scoped, tag = 'output window, operand 0, single buffered']
    #allocation4 [shape = 's32[1]{0}', space=sflag, size = 0x4, scoped, tag = 'scoped memory for custom_clip_forward.1']
    %78 = vsyncpa [#allocation4], 0
    // Predicated region
    $region2: #{custom_clip_forward.1} parent=1 // pred_check
      _
    $region3: #{custom_clip_forward.1} parent=1 // pred_check_branch
      %80 = sbr.rel (0) target = $region5
    $region4: #{custom_clip_forward.1} parent=1 // pred_region
      _
    $region5: #{custom_clip_forward.1} parent=1 // pred_fallthru
      _
    // Predicated region
    $region6: #{custom_clip_forward.1} parent=1 // pred_check
      _
    $region7: #{custom_clip_forward.1} parent=1 // pred_check_branch
      %82 = sbr.rel (0) target = $region9
    $region8: #{custom_clip_forward.1} parent=1 // pred_region
      _
    $region9: #{custom_clip_forward.1} parent=1 // pred_fallthru
      _
    // Predicated region
    $region10: #{custom_clip_forward.1} parent=1 // pred_check
      _
    $region11: #{custom_clip_forward.1} parent=1 // pred_check_branch
      %84 = sbr.rel (0) target = $region13
    $region12: #{custom_clip_forward.1} parent=1 // pred_region
      _
    $region13: #{custom_clip_forward.1} parent=1 // pred_fallthru
      _
    // Predicated region
    $region14: #{custom_clip_forward.1} parent=1 // pred_check
      _
    $region15: #{custom_clip_forward.1} parent=1 // pred_check_branch
      %86 = sbr.rel (0) target = $region17
    $region16: #{custom_clip_forward.1} parent=1 // pred_region
      _
    $region17: #{custom_clip_forward.1} parent=1 // pred_fallthru
      _
    // Predicated region
    $region18: #{custom_clip_forward.1} parent=1 // pred_check
      _
    $region19: #{custom_clip_forward.1} parent=1 // pred_check_branch
      %88 = sbr.rel (0) target = $region21
    $region20: #{custom_clip_forward.1} parent=1 // pred_region
      _
    $region21: #{custom_clip_forward.1} parent=1 // pred_fallthru
      _
    // Predicated region
    $region22: #{custom_clip_forward.1} parent=1 // pred_check
      _
    $region23: #{custom_clip_forward.1} parent=1 // pred_check_branch
      %90 = sbr.rel (0) target = $region25
    $region24: #{custom_clip_forward.1} parent=1 // pred_region
      _
    $region25: #{custom_clip_forward.1} parent=1 // pred_fallthru
      _
    // Predicated region
    $region26: #{custom_clip_forward.1} parent=1 // pred_check
      _
    $region27: #{custom_clip_forward.1} parent=1 // pred_check_branch
      %92 = sbr.rel (0) target = $region29
    $region28: #{custom_clip_forward.1} parent=1 // pred_region
      _
    $region29: #{custom_clip_forward.1} parent=1 // pred_fallthru
      _
    // Predicated region
    $region30: #{custom_clip_forward.1} parent=1 // pred_check
      _
    $region31: #{custom_clip_forward.1} parent=1 // pred_check_branch
      %94 = sbr.rel (0) target = $region33
    $region32: #{custom_clip_forward.1} parent=1 // pred_region
      _
    $region33: #{custom_clip_forward.1} parent=1 // pred_fallthru
      _
    // Predicated region
    $region34: #{custom_clip_forward.1} parent=1 // pred_check
      _
    $region35: #{custom_clip_forward.1} parent=1 // pred_check_branch
      %96 = sbr.rel (0) target = $region37
    $region36: #{custom_clip_forward.1} parent=1 // pred_region
      _
    $region37: #{custom_clip_forward.1} parent=1 // pred_fallthru
      _
    // Predicated region
    $region38: #{custom_clip_forward.1} parent=1 // pred_check
      _
    $region39: #{custom_clip_forward.1} parent=1 // pred_check_branch
      %98 = sbr.rel (0) target = $region41
    $region40: #{custom_clip_forward.1} parent=1 // pred_region
      _
    $region41: #{custom_clip_forward.1} parent=1 // pred_fallthru
      _
    // Predicated region
    $region42: #{custom_clip_forward.1} parent=1 // pred_check
      _
    $region43: #{custom_clip_forward.1} parent=1 // pred_check_branch
      %100 = sbr.rel (0) target = $region45
    $region44: #{custom_clip_forward.1} parent=1 // pred_region
      _
    $region45: #{custom_clip_forward.1} parent=1 // pred_fallthru
      _
    // Predicated region
    $region46: #{custom_clip_forward.1} parent=1 // pred_check
      _
    $region47: #{custom_clip_forward.1} parent=1 // pred_check_branch
      %102 = sbr.rel (0) target = $region49
    $region48: #{custom_clip_forward.1} parent=1 // pred_region
      _
    $region49: #{custom_clip_forward.1} parent=1 // pred_fallthru
      _
    // Predicated region
    $region50: #{custom_clip_forward.1} parent=1 // pred_check
      _
    $region51: #{custom_clip_forward.1} parent=1 // pred_check_branch
      %104 = sbr.rel (0) target = $region53
    $region52: #{custom_clip_forward.1} parent=1 // pred_region
      _
    $region53: #{custom_clip_forward.1} parent=1 // pred_fallthru
      _
    // Predicated region
    $region54: #{custom_clip_forward.1} parent=1 // pred_check
      _
    $region55: #{custom_clip_forward.1} parent=1 // pred_check_branch
      %106 = sbr.rel (0) target = $region57
    $region56: #{custom_clip_forward.1} parent=1 // pred_region
      _
    $region57: #{custom_clip_forward.1} parent=1 // pred_fallthru
      _
    // Predicated region
    $region58: #{custom_clip_forward.1} parent=1 // pred_check
      _
    $region59: #{custom_clip_forward.1} parent=1 // pred_check_branch
      %108 = sbr.rel (0) target = $region61
    $region60: #{custom_clip_forward.1} parent=1 // pred_region
      _
    $region61: #{custom_clip_forward.1} parent=1 // pred_fallthru
      _
    // Predicated region
    $region62: #{custom_clip_forward.1} parent=1 // pred_check
      _
    $region63: #{custom_clip_forward.1} parent=1 // pred_check_branch
      %110 = sbr.rel (0) target = $region65
    $region64: #{custom_clip_forward.1} parent=1 // pred_region
      _
    $region65: #{custom_clip_forward.1} parent=1 // pred_fallthru
      _
    // Predicated region
    $region66: #{custom_clip_forward.1} parent=1 // pred_check
      _
    $region67: #{custom_clip_forward.1} parent=1 // pred_check_branch
      %112 = sbr.rel (0) target = $region69
    $region68: #{custom_clip_forward.1} parent=1 // pred_region
      _
    $region69: #{custom_clip_forward.1} parent=1 // pred_fallthru
      _
    // Predicated region
    $region70: #{custom_clip_forward.1} parent=1 // pred_check
      _
    $region71: #{custom_clip_forward.1} parent=1 // pred_check_branch
      %114 = sbr.rel (0) target = $region73
    $region72: #{custom_clip_forward.1} parent=1 // pred_region
      _
    $region73: #{custom_clip_forward.1} parent=1 // pred_fallthru
      _
    // Predicated region
    $region74: #{custom_clip_forward.1} parent=1 // pred_check
      _
    $region75: #{custom_clip_forward.1} parent=1 // pred_check_branch
      %116 = sbr.rel (0) target = $region77
    $region76: #{custom_clip_forward.1} parent=1 // pred_region
      _
    $region77: #{custom_clip_forward.1} parent=1 // pred_fallthru
      _
    // Predicated region
    $region78: #{custom_clip_forward.1} parent=1 // pred_check
      _
    $region79: #{custom_clip_forward.1} parent=1 // pred_check_branch
      %118 = sbr.rel (0) target = $region81
    $region80: #{custom_clip_forward.1} parent=1 // pred_region
      _
    $region81: #{custom_clip_forward.1} parent=1 // pred_fallthru
      _
    // Predicated region
    $region82: #{custom_clip_forward.1} parent=1 // pred_check
      _
    $region83: #{custom_clip_forward.1} parent=1 // pred_check_branch
      %120 = sbr.rel (0) target = $region85
    $region84: #{custom_clip_forward.1} parent=1 // pred_region
      _
    $region85: #{custom_clip_forward.1} parent=1 // pred_fallthru
      _
    // Predicated region
    $region86: #{custom_clip_forward.1} parent=1 // pred_check
      _
    $region87: #{custom_clip_forward.1} parent=1 // pred_check_branch
      %122 = sbr.rel (0) target = $region89
    $region88: #{custom_clip_forward.1} parent=1 // pred_region
      _
    $region89: #{custom_clip_forward.1} parent=1 // pred_fallthru
      _
    // Predicated region
    $region90: #{custom_clip_forward.1} parent=1 // pred_check
      _
    $region91: #{custom_clip_forward.1} parent=1 // pred_check_branch
      %124 = sbr.rel (0) target = $region93
    $region92: #{custom_clip_forward.1} parent=1 // pred_region
      _
    $region93: #{custom_clip_forward.1} parent=1 // pred_fallthru
      _
    // Predicated region
    $region94: #{custom_clip_forward.1} parent=1 // pred_check
      _
    $region95: #{custom_clip_forward.1} parent=1 // pred_check_branch
      %126 = sbr.rel (0) target = $region97
    $region96: #{custom_clip_forward.1} parent=1 // pred_region
      _
    $region97: #{custom_clip_forward.1} parent=1 // pred_fallthru
      _
    // Predicated region
    $region98: #{custom_clip_forward.1} parent=1 // pred_check
      _
    $region99: #{custom_clip_forward.1} parent=1 // pred_check_branch
      %128 = sbr.rel (0) target = $region101
    $region100: #{custom_clip_forward.1} parent=1 // pred_region
      _
    $region101: #{custom_clip_forward.1} parent=1 // pred_fallthru
      _
    // Predicated region
    $region102: #{custom_clip_forward.1} parent=1 // pred_check
      _
    $region103: #{custom_clip_forward.1} parent=1 // pred_check_branch
      %130 = sbr.rel (0) target = $region105
    $region104: #{custom_clip_forward.1} parent=1 // pred_region
      _
    $region105: #{custom_clip_forward.1} parent=1 // pred_fallthru
      _
    // Predicated region
    $region106: #{custom_clip_forward.1} parent=1 // pred_check
      _
    $region107: #{custom_clip_forward.1} parent=1 // pred_check_branch
      %132 = sbr.rel (0) target = $region109
    $region108: #{custom_clip_forward.1} parent=1 // pred_region
      _
    $region109: #{custom_clip_forward.1} parent=1 // pred_fallthru
      _
    // Predicated region
    $region110: #{custom_clip_forward.1} parent=1 // pred_check
      _
    $region111: #{custom_clip_forward.1} parent=1 // pred_check_branch
      %134 = sbr.rel (0) target = $region113
    $region112: #{custom_clip_forward.1} parent=1 // pred_region
      _
    $region113: #{custom_clip_forward.1} parent=1 // pred_fallthru
      _
    // Predicated region
    $region114: #{custom_clip_forward.1} parent=1 // pred_check
      _
    $region115: #{custom_clip_forward.1} parent=1 // pred_check_branch
      %136 = sbr.rel (0) target = $region117
    $region116: #{custom_clip_forward.1} parent=1 // pred_region
      _
    $region117: #{custom_clip_forward.1} parent=1 // pred_fallthru
      _
    // Predicated region
    $region118: #{custom_clip_forward.1} parent=1 // pred_check
      _
    $region119: #{custom_clip_forward.1} parent=1 // pred_check_branch
      %138 = sbr.rel (0) target = $region121
    $region120: #{custom_clip_forward.1} parent=1 // pred_region
      _
    $region121: #{custom_clip_forward.1} parent=1 // pred_fallthru
      _
    // Predicated region
    $region122: #{custom_clip_forward.1} parent=1 // pred_check
      _
    $region123: #{custom_clip_forward.1} parent=1 // pred_check_branch
      %140 = sbr.rel (0) target = $region125
    $region124: #{custom_clip_forward.1} parent=1 // pred_region
      _
    $region125: #{custom_clip_forward.1} parent=1 // pred_fallthru
      _
    // Predicated region
    $region126: #{custom_clip_forward.1} parent=1 // pred_check
      _
    $region127: #{custom_clip_forward.1} parent=1 // pred_check_branch
      %142 = sbr.rel (0) target = $region129
    $region128: #{custom_clip_forward.1} parent=1 // pred_region
      _
    $region129: #{custom_clip_forward.1} parent=1 // pred_fallthru
      _
    // Predicated region
    $region130: #{custom_clip_forward.1} parent=1 // pred_check
      _
    $region131: #{custom_clip_forward.1} parent=1 // pred_check_branch
      %144 = sbr.rel (0) target = $region133
    $region132: #{custom_clip_forward.1} parent=1 // pred_region
      _
    $region133: #{custom_clip_forward.1} parent=1 // pred_fallthru
      _
    // Predicated region
    $region134: #{custom_clip_forward.1} parent=1 // pred_check
      _
    $region135: #{custom_clip_forward.1} parent=1 // pred_check_branch
      %146 = sbr.rel (0) target = $region137
    $region136: #{custom_clip_forward.1} parent=1 // pred_region
      _
    $region137: #{custom_clip_forward.1} parent=1 // pred_fallthru
      _
    // Predicated region
    $region138: #{custom_clip_forward.1} parent=1 // pred_check
      _
    $region139: #{custom_clip_forward.1} parent=1 // pred_check_branch
      %148 = sbr.rel (0) target = $region141
    $region140: #{custom_clip_forward.1} parent=1 // pred_region
      _
    $region141: #{custom_clip_forward.1} parent=1 // pred_fallthru
      _
    %v149 = vld [vmem:[%s1] sm:$0xff]
    %v150 = vld [vmem:[%s1 + $0x8] sm:$0xff]
    %v151 = vld [vmem:[%s1 + $0x10] sm:$0xff]
    %v152 = vld [vmem:[%s1 + $0x18] sm:$0xff]
    %v153 = vld [vmem:[%s3] sm:$0xff]
    %v154 = vld [vmem:[%s3 + $0x8] sm:$0xff]
    %v155 = vld [vmem:[%s3 + $0x10] sm:$0xff]
    %v156 = vld [vmem:[%s3 + $0x18] sm:$0xff]
    %v157 = vld [vmem:[%s5] sm:$0xff]
    %vm158 = vcmask 64512
    %v160 = vsel %vm158, %v153, 0
    %v163 = vsel %vm158, %v154, 0
    %v166 = vsel %vm158, %v155, 0
    %v169 = vsel %vm158, %v156, 0
    %171 = vmatprep.subr.mxu0 0.0
    %172 = vmatpush1.msra.mxu0 %v157
    %173 = vmatprep.subr.mxu0 0.0
    %174 = vmatpush1.msra.mxu0 0.0
    %175 = vmatprep.subr.mxu0 0.0
    %176 = vmatpush1.msra.mxu0 0.0
    %177 = vmatprep.subr.mxu0 0.0
    %178 = vmatpush1.msra.mxu0 0.0
    %179 = vmatprep.subr.mxu0 0.0
    %180 = vmatpush1.msra.mxu0 0.0
    %181 = vmatprep.subr.mxu0 0.0
    %182 = vmatpush1.msra.mxu0 0.0
    %183 = vmatprep.subr.mxu0 0.0
    %184 = vmatpush1.msra.mxu0 0.0
    %185 = vmatprep.subr.mxu0 0.0
    %186 = vmatpush1.msra.mxu0 0.0
    %187 = vmatprep.subr.mxu0 0.0
    %188 = vmatpush1.msra.mxu0 0.0
    %189 = vmatprep.subr.mxu0 0.0
    %190 = vmatpush1.msra.mxu0 0.0
    %191 = vmatprep.subr.mxu0 0.0
    %192 = vmatpush1.msra.mxu0 0.0
    %193 = vmatprep.subr.mxu0 0.0
    %194 = vmatpush1.msra.mxu0 0.0
    %195 = vmatprep.subr.mxu0 0.0
    %196 = vmatpush1.msra.mxu0 0.0
    %197 = vmatprep.subr.mxu0 0.0
    %198 = vmatpush1.msra.mxu0 0.0
    %199 = vmatprep.subr.mxu0 0.0
    %200 = vmatpush1.msra.mxu0 0.0
    %201 = vmatprep.subr.mxu0 0.0
    %202 = vmatpush1.msra.mxu0 0.0
    %203 = vmatprep.subr.mxu0 0.0
    %204 = vmatpush1.msra.mxu0 0.0
    %205 = vmatprep.subr.mxu0 0.0
    %206 = vmatpush1.msra.mxu0 0.0
    %207 = vmatprep.subr.mxu0 0.0
    %208 = vmatpush1.msra.mxu0 0.0
    %209 = vmatprep.subr.mxu0 0.0
    %210 = vmatpush1.msra.mxu0 0.0
    %211 = vmatprep.subr.mxu0 0.0
    %212 = vmatpush1.msra.mxu0 0.0
    %213 = vmatprep.subr.mxu0 0.0
    %214 = vmatpush1.msra.mxu0 0.0
    %215 = vmatprep.subr.mxu0 0.0
    %216 = vmatpush1.msra.mxu0 0.0
    %217 = vmatprep.subr.mxu0 0.0
    %218 = vmatpush1.msra.mxu0 0.0
    %219 = vmatprep.subr.mxu0 0.0
    %220 = vmatpush1.msra.mxu0 0.0
    %221 = vmatprep.subr.mxu0 0.0
    %222 = vmatpush1.msra.mxu0 0.0
    %223 = vmatprep.subr.mxu0 0.0
    %224 = vmatpush1.msra.mxu0 0.0
    %225 = vmatprep.subr.mxu0 0.0
    %226 = vmatpush1.msra.mxu0 0.0
    %227 = vmatprep.subr.mxu0 0.0
    %228 = vmatpush1.msra.mxu0 0.0
    %229 = vmatprep.subr.mxu0 0.0
    %230 = vmatpush1.msra.mxu0 0.0
    %231 = vmatprep.subr.mxu0 0.0
    %232 = vmatpush1.msra.mxu0 0.0
    %233 = vmatprep.subr.mxu0 0.0
    %234 = vmatpush1.msra.mxu0 0.0
    %235 = vmatprep.mubr.f32.mxu0 0.0
    %236 = vmatmul.mubr.f32.gmra.mrb[0].mxu0 %v160
    %v237 = vpop.f32.mrb[0].mxu0
    %v238 = vadd.f32 0.0, %v237
    %v239 = vpop.f32.mrb[0].mxu0
    %240 = vmatprep.mubr.f32.mxu0 0.0
    %241 = vmatmul.mubr.f32.gmra.mrb[0].mxu0 %v163
    %v242 = vpop.f32.mrb[0].mxu0
    %v243 = vadd.f32 0.0, %v242
    %v244 = vpop.f32.mrb[0].mxu0
    %245 = vmatprep.mubr.f32.mxu0 0.0
    %246 = vmatmul.mubr.f32.gmra.mrb[0].mxu0 %v166
    %v247 = vpop.f32.mrb[0].mxu0
    %v248 = vadd.f32 0.0, %v247
    %v249 = vpop.f32.mrb[0].mxu0
    %250 = vmatprep.mubr.f32.mxu0 0.0
    %251 = vmatmul.mubr.f32.gmra.mrb[0].mxu0 %v169
    %v252 = vpop.f32.mrb[0].mxu0
    %v253 = vadd.f32 0.0, %v252
    %v254 = vpop.f32.mrb[0].mxu0
    %255 = vdwg.mxu0
    %v256 = vadd.f32 %v149, %v238
    %v257 = vadd.f32 %v150, %v243
    %v258 = vadd.f32 %v151, %v248
    %v259 = vadd.f32 %v152, %v253
    %v260 = vld [vmem:[%s9] sm:$0xff]
    %v261 = vld [vmem:[%s9 + $0x8] sm:$0xff]
    %v262 = vld [vmem:[%s9 + $0x10] sm:$0xff]
    %v263 = vld [vmem:[%s9 + $0x18] sm:$0xff]
    %v264 = vld [vmem:[%s11] sm:$0x3f]
    %v265 = vld [vmem:[%s13] sm:$0xff]
    %v266 = vld [vmem:[%s13 + $0x8] sm:$0xff]
    %v267 = vld [vmem:[%s13 + $0x10] sm:$0xff]
    %v268 = vld [vmem:[%s13 + $0x18] sm:$0xff]
    %v269 = vld [vmem:[%s15] sm:$0x1]
    %v270 = vld [vmem:[%s17] sm:$0xff]
    %v271 = vld [vmem:[%s17 + $0x8] sm:$0xff]
    %v272 = vld [vmem:[%s17 + $0x10] sm:$0xff]
    %v273 = vld [vmem:[%s17 + $0x18] sm:$0xff]
    %v274 = vld [vmem:[%s19] sm:$0xff]
    %v275 = vld [vmem:[%s19 + $0x8] sm:$0xff]
    %v276 = vld [vmem:[%s19 + $0x10] sm:$0xff]
    %v277 = vld [vmem:[%s19 + $0x18] sm:$0xff]
    %v278 = vld [vmem:[%s21] sm:$0x1]
    %v279 = vld [vmem:[%s23] sm:$0xff]
    %v280 = vld [vmem:[%s23 + $0x8] sm:$0xff]
    %v281 = vld [vmem:[%s23 + $0x10] sm:$0xff]
    %v282 = vld [vmem:[%s23 + $0x18] sm:$0xff]
    %v283 = vld [vmem:[%s23 + $0x20] sm:$0xff]
    %v284 = vld [vmem:[%s23 + $0x28] sm:$0xff]
    %v285 = vld [vmem:[%s23 + $0x30] sm:$0xff]
    %v286 = vld [vmem:[%s23 + $0x38] sm:$0xff]
    %v287 = vld [vmem:[%s23 + $0x40] sm:$0xff]
    %v288 = vld [vmem:[%s23 + $0x48] sm:$0xff]
    %v289 = vld [vmem:[%s23 + $0x50] sm:$0xff]
    %v290 = vld [vmem:[%s23 + $0x58] sm:$0xff]
    %v291 = vld [vmem:[%s23 + $0x60] sm:$0xff]
    %v292 = vld [vmem:[%s23 + $0x68] sm:$0xff]
    %v293 = vld [vmem:[%s23 + $0x70] sm:$0xff]
    %v294 = vld [vmem:[%s23 + $0x78] sm:$0xff]
    %vm295 = vcmask 261120
    %v296 = vsel %vm295, %v256, 0.0
    %297 = vadd.xlane.f32.xlu0 %v296
    %v298 = vpop.xlane.xlu0 %297
    %v299 = vsel %vm295, %v257, 0.0
    %300 = vadd.xlane.f32.xlu0 %v299
    %v301 = vpop.xlane.xlu0 %300
    %v302 = vsel %vm295, %v258, 0.0
    %303 = vadd.xlane.f32.xlu0 %v302
    %v304 = vpop.xlane.xlu0 %303
    %v305 = vsel %vm295, %v259, 0.0
    %306 = vadd.xlane.f32.xlu0 %v305
    %v307 = vpop.xlane.xlu0 %306
    %v308 = vrcp.pop 32.0
    %v309 = vmul.f32 %v298, %v308
    %v310 = vmul.f32 %v301, %v308
    %v311 = vmul.f32 %v304, %v308
    %v312 = vmul.f32 %v307, %v308
    %v313 = vmul.f32 %v256, %v256
    %v314 = vmul.f32 %v257, %v257
    %v315 = vmul.f32 %v258, %v258
    %v316 = vmul.f32 %v259, %v259
    %v317 = vsel %vm295, %v313, 0.0
    %318 = vadd.xlane.f32.xlu0 %v317
    %v319 = vpop.xlane.xlu0 %318
    %v320 = vsel %vm295, %v314, 0.0
    %321 = vadd.xlane.f32.xlu0 %v320
    %v322 = vpop.xlane.xlu0 %321
    %v323 = vsel %vm295, %v315, 0.0
    %324 = vadd.xlane.f32.xlu0 %v323
    %v325 = vpop.xlane.xlu0 %324
    %v326 = vsel %vm295, %v316, 0.0
    %327 = vadd.xlane.f32.xlu0 %v326
    %v328 = vpop.xlane.xlu0 %327
    %v329 = vmul.f32 %v319, %v308
    %v330 = vmul.f32 %v322, %v308
    %v331 = vmul.f32 %v325, %v308
    %v332 = vmul.f32 %v328, %v308
    %v333 = vmul.f32 %v309, %v309
    %v334 = vmul.f32 %v310, %v310
    %v335 = vmul.f32 %v311, %v311
    %v336 = vmul.f32 %v312, %v312
    %v337 = vsub.f32 %v329, %v333
    %v338 = vsub.f32 %v330, %v334
    %v339 = vsub.f32 %v331, %v335
    %v340 = vsub.f32 %v332, %v336
    %v341 = vsub.f32 %v256, %v309
    %v342 = vsub.f32 %v257, %v310
    %v343 = vsub.f32 %v258, %v311
    %v344 = vsub.f32 %v259, %v312
    %v345 = vadd.f32 %v337, 1e-05
    %v346 = vadd.f32 %v338, 1e-05
    %v347 = vadd.f32 %v339, 1e-05
    %v348 = vadd.f32 %v340, 1e-05
    %v349 = vrsqrt.pop %v345
    %v350 = vrsqrt.pop %v346
    %v351 = vrsqrt.pop %v347
    %v352 = vrsqrt.pop %v348
    %v353 = vmul.f32 %v341, %v349
    %v354 = vmul.f32 %v342, %v350
    %v355 = vmul.f32 %v343, %v351
    %v356 = vmul.f32 %v344, %v352
    %v357 = vlaneseq
    %v358 = vshrl.u32 %v357, 7
    %v359 = vsub.s32 0, %v358
    %v360 = vrot.slane %v264, %v359
    %v361 = vmul.f32 %v353, %v360
    %v362 = vmul.f32 %v354, %v360
    %v363 = vmul.f32 %v355, %v360
    %v364 = vmul.f32 %v356, %v360
    %v365 = vlaneseq
    %v366 = vshrl.u32 %v365, 7
    %v367 = vsub.s32 1, %v366
    %v368 = vrot.slane %v264, %v367
    %v369 = vadd.f32 %v361, %v368
    %v370 = vadd.f32 %v362, %v368
    %v371 = vadd.f32 %v363, %v368
    %v372 = vadd.f32 %v364, %v368
    %v374 = vlaneseq
    %v375 = vshrl.u32 %v374, 7
    %v376 = vsub.s32 0, %v375
    %v377 = vrot.slane %v269, %v376
    %v380 = vsel %vm295, %v369, 0
    %v383 = vsel %vm295, %v370, 0
    %v386 = vsel %vm295, %v371, 0
    %v389 = vsel %vm295, %v372, 0
    %391 = vmatprep.subr.mxu0 0.0
    %392 = vmatpush1.msra.mxu0 %v265
    %393 = vmatprep.subr.mxu0 0.0
    %394 = vmatpush1.msra.mxu0 %v266
    %395 = vmatprep.subr.mxu0 0.0
    %396 = vmatpush1.msra.mxu0 %v267
    %397 = vmatprep.subr.mxu0 0.0
    %398 = vmatpush1.msra.mxu0 %v268
    %399 = vmatprep.subr.mxu0 0.0
    %400 = vmatpush1.msra.mxu0 0.0
    %401 = vmatprep.subr.mxu0 0.0
    %402 = vmatpush1.msra.mxu0 0.0
    %403 = vmatprep.subr.mxu0 0.0
    %404 = vmatpush1.msra.mxu0 0.0
    %405 = vmatprep.subr.mxu0 0.0
    %406 = vmatpush1.msra.mxu0 0.0
    %407 = vmatprep.subr.mxu0 0.0
    %408 = vmatpush1.msra.mxu0 0.0
    %409 = vmatprep.subr.mxu0 0.0
    %410 = vmatpush1.msra.mxu0 0.0
    %411 = vmatprep.subr.mxu0 0.0
    %412 = vmatpush1.msra.mxu0 0.0
    %413 = vmatprep.subr.mxu0 0.0
    %414 = vmatpush1.msra.mxu0 0.0
    %415 = vmatprep.subr.mxu0 0.0
    %416 = vmatpush1.msra.mxu0 0.0
    %417 = vmatprep.subr.mxu0 0.0
    %418 = vmatpush1.msra.mxu0 0.0
    %419 = vmatprep.subr.mxu0 0.0
    %420 = vmatpush1.msra.mxu0 0.0
    %421 = vmatprep.subr.mxu0 0.0
    %422 = vmatpush1.msra.mxu0 0.0
    %423 = vmatprep.subr.mxu0 0.0
    %424 = vmatpush1.msra.mxu0 0.0
    %425 = vmatprep.subr.mxu0 0.0
    %426 = vmatpush1.msra.mxu0 0.0
    %427 = vmatprep.subr.mxu0 0.0
    %428 = vmatpush1.msra.mxu0 0.0
    %429 = vmatprep.subr.mxu0 0.0
    %430 = vmatpush1.msra.mxu0 0.0
    %431 = vmatprep.subr.mxu0 0.0
    %432 = vmatpush1.msra.mxu0 0.0
    %433 = vmatprep.subr.mxu0 0.0
    %434 = vmatpush1.msra.mxu0 0.0
    %435 = vmatprep.subr.mxu0 0.0
    %436 = vmatpush1.msra.mxu0 0.0
    %437 = vmatprep.subr.mxu0 0.0
    %438 = vmatpush1.msra.mxu0 0.0
    %439 = vmatprep.subr.mxu0 0.0
    %440 = vmatpush1.msra.mxu0 0.0
    %441 = vmatprep.subr.mxu0 0.0
    %442 = vmatpush1.msra.mxu0 0.0
    %443 = vmatprep.subr.mxu0 0.0
    %444 = vmatpush1.msra.mxu0 0.0
    %445 = vmatprep.subr.mxu0 0.0
    %446 = vmatpush1.msra.mxu0 0.0
    %447 = vmatprep.subr.mxu0 0.0
    %448 = vmatpush1.msra.mxu0 0.0
    %449 = vmatprep.subr.mxu0 0.0
    %450 = vmatpush1.msra.mxu0 0.0
    %451 = vmatprep.subr.mxu0 0.0
    %452 = vmatpush1.msra.mxu0 0.0
    %453 = vmatprep.subr.mxu0 0.0
    %454 = vmatpush1.msra.mxu0 0.0
    %455 = vmatprep.mubr.f32.mxu0 0.0
    %456 = vmatmul.mubr.f32.gmra.mrb[0].mxu0 %v380
    %v457 = vpop.f32.mrb[0].mxu0
    %v458 = vadd.f32 %v377, %v457
    %v459 = vpop.f32.mrb[0].mxu0
    %460 = vmatprep.mubr.f32.mxu0 0.0
    %461 = vmatmul.mubr.f32.gmra.mrb[0].mxu0 %v383
    %v462 = vpop.f32.mrb[0].mxu0
    %v463 = vadd.f32 %v377, %v462
    %v464 = vpop.f32.mrb[0].mxu0
    %465 = vmatprep.mubr.f32.mxu0 0.0
    %466 = vmatmul.mubr.f32.gmra.mrb[0].mxu0 %v386
    %v467 = vpop.f32.mrb[0].mxu0
    %v468 = vadd.f32 %v377, %v467
    %v469 = vpop.f32.mrb[0].mxu0
    %470 = vmatprep.mubr.f32.mxu0 0.0
    %471 = vmatmul.mubr.f32.gmra.mrb[0].mxu0 %v389
    %v472 = vpop.f32.mrb[0].mxu0
    %v473 = vadd.f32 %v377, %v472
    %v474 = vpop.f32.mrb[0].mxu0
    %475 = vdwg.mxu0
    %480 = vrot.lane.b32.xlu0 %v458, 96
    %v481 = vpop.permute.xlu0 %480
    %482 = vrot.lane.b32.xlu0 %v463, 96
    %v483 = vpop.permute.xlu0 %482
    %484 = vrot.lane.b32.xlu0 %v468, 96
    %v485 = vpop.permute.xlu0 %484
    %486 = vrot.lane.b32.xlu0 %v473, 96
    %v487 = vpop.permute.xlu0 %486
    %vm488 = vcmask 130048
    %v489 = vsel %vm488, %v458, 0
    %v491 = vsel %vm488, %v463, 0
    %v493 = vsel %vm488, %v468, 0
    %v495 = vsel %vm488, %v473, 0
    %v497 = vsel %vm488, %v481, 0
    %v499 = vsel %vm488, %v483, 0
    %v501 = vsel %vm488, %v485, 0
    %v503 = vsel %vm488, %v487, 0
    %505 = vmatprep.subr.mxu0 0.0
    %506 = vmatpush1.xpose.msra.mxu0 %v497
    %507 = vmatprep.subr.mxu0 0.0
    %508 = vmatpush1.xpose.msra.mxu0 %v499
    %509 = vmatprep.subr.mxu0 0.0
    %510 = vmatpush1.xpose.msra.mxu0 %v501
    %511 = vmatprep.subr.mxu0 0.0
    %512 = vmatpush1.xpose.msra.mxu0 %v503
    %513 = vmatprep.subr.mxu0 0.0
    %514 = vmatpush1.xpose.msra.mxu0 0.0
    %515 = vmatprep.subr.mxu0 0.0
    %516 = vmatpush1.xpose.msra.mxu0 0.0
    %517 = vmatprep.subr.mxu0 0.0
    %518 = vmatpush1.xpose.msra.mxu0 0.0
    %519 = vmatprep.subr.mxu0 0.0
    %520 = vmatpush1.xpose.msra.mxu0 0.0
    %521 = vmatprep.subr.mxu0 0.0
    %522 = vmatpush1.xpose.msra.mxu0 0.0
    %523 = vmatprep.subr.mxu0 0.0
    %524 = vmatpush1.xpose.msra.mxu0 0.0
    %525 = vmatprep.subr.mxu0 0.0
    %526 = vmatpush1.xpose.msra.mxu0 0.0
    %527 = vmatprep.subr.mxu0 0.0
    %528 = vmatpush1.xpose.msra.mxu0 0.0
    %529 = vmatprep.subr.mxu0 0.0
    %530 = vmatpush1.xpose.msra.mxu0 0.0
    %531 = vmatprep.subr.mxu0 0.0
    %532 = vmatpush1.xpose.msra.mxu0 0.0
    %533 = vmatprep.subr.mxu0 0.0
    %534 = vmatpush1.xpose.msra.mxu0 0.0
    %535 = vmatprep.subr.mxu0 0.0
    %536 = vmatpush1.xpose.msra.mxu0 0.0
    %537 = vmatprep.subr.mxu0 0.0
    %538 = vmatpush1.xpose.msra.mxu0 0.0
    %539 = vmatprep.subr.mxu0 0.0
    %540 = vmatpush1.xpose.msra.mxu0 0.0
    %541 = vmatprep.subr.mxu0 0.0
    %542 = vmatpush1.xpose.msra.mxu0 0.0
    %543 = vmatprep.subr.mxu0 0.0
    %544 = vmatpush1.xpose.msra.mxu0 0.0
    %545 = vmatprep.subr.mxu0 0.0
    %546 = vmatpush1.xpose.msra.mxu0 0.0
    %547 = vmatprep.subr.mxu0 0.0
    %548 = vmatpush1.xpose.msra.mxu0 0.0
    %549 = vmatprep.subr.mxu0 0.0
    %550 = vmatpush1.xpose.msra.mxu0 0.0
    %551 = vmatprep.subr.mxu0 0.0
    %552 = vmatpush1.xpose.msra.mxu0 0.0
    %553 = vmatprep.subr.mxu0 0.0
    %554 = vmatpush1.xpose.msra.mxu0 0.0
    %555 = vmatprep.subr.mxu0 0.0
    %556 = vmatpush1.xpose.msra.mxu0 0.0
    %557 = vmatprep.subr.mxu0 0.0
    %558 = vmatpush1.xpose.msra.mxu0 0.0
    %559 = vmatprep.subr.mxu0 0.0
    %560 = vmatpush1.xpose.msra.mxu0 0.0
    %561 = vmatprep.subr.mxu0 0.0
    %562 = vmatpush1.xpose.msra.mxu0 0.0
    %563 = vmatprep.subr.mxu0 0.0
    %564 = vmatpush1.xpose.msra.mxu0 0.0
    %565 = vmatprep.subr.mxu0 0.0
    %566 = vmatpush1.xpose.msra.mxu0 0.0
    %567 = vmatprep.subr.mxu0 0.0
    %568 = vmatpush1.xpose.msra.mxu0 0.0
    %569 = vmatprep.mubr.f32.mxu0 0.0
    %570 = vmatmul.mubr.f32.gmra.mrb[0].mxu0 %v489
    %v571 = vpop.f32.mrb[0].mxu0
    %v572 = vadd.f32 %v260, %v571
    %v573 = vpop.f32.mrb[0].mxu0
    %574 = vmatprep.mubr.f32.mxu0 0.0
    %575 = vmatmul.mubr.f32.gmra.mrb[0].mxu0 %v491
    %v576 = vpop.f32.mrb[0].mxu0
    %v577 = vadd.f32 %v261, %v576
    %v578 = vpop.f32.mrb[0].mxu0
    %579 = vmatprep.mubr.f32.mxu0 0.0
    %580 = vmatmul.mubr.f32.gmra.mrb[0].mxu0 %v493
    %v581 = vpop.f32.mrb[0].mxu0
    %v582 = vadd.f32 %v262, %v581
    %v583 = vpop.f32.mrb[0].mxu0
    %584 = vmatprep.mubr.f32.mxu0 0.0
    %585 = vmatmul.mubr.f32.gmra.mrb[0].mxu0 %v495
    %v586 = vpop.f32.mrb[0].mxu0
    %v587 = vadd.f32 %v263, %v586
    %v588 = vpop.f32.mrb[0].mxu0
    %589 = vdwg.mxu0
    %v590 = vsel %vm295, %v572, -inf
    %591 = vmax.xlane.f32.xlu0 %v590
    %v592 = vpop.xlane.xlu0 %591
    %v593 = vsel %vm295, %v577, -inf
    %594 = vmax.xlane.f32.xlu0 %v593
    %v595 = vpop.xlane.xlu0 %594
    %v596 = vsel %vm295, %v582, -inf
    %597 = vmax.xlane.f32.xlu0 %v596
    %v598 = vpop.xlane.xlu0 %597
    %v599 = vsel %vm295, %v587, -inf
    %600 = vmax.xlane.f32.xlu0 %v599
    %v601 = vpop.xlane.xlu0 %600
    %v602 = vsub.f32 %v572, %v592
    %v603 = vsub.f32 %v577, %v595
    %v604 = vsub.f32 %v582, %v598
    %v605 = vsub.f32 %v587, %v601
    %v606 = vmul.f32 %v602, 1.442695
    %v607 = vpow.pop %v606
    %v608 = vmul.f32 %v603, 1.442695
    %v609 = vpow.pop %v608
    %v610 = vmul.f32 %v604, 1.442695
    %v611 = vpow.pop %v610
    %v612 = vmul.f32 %v605, 1.442695
    %v613 = vpow.pop %v612
    %v614 = vsel %vm295, %v607, 0.0
    %615 = vadd.xlane.f32.xlu0 %v614
    %v616 = vpop.xlane.xlu0 %615
    %v617 = vsel %vm295, %v609, 0.0
    %618 = vadd.xlane.f32.xlu0 %v617
    %v619 = vpop.xlane.xlu0 %618
    %v620 = vsel %vm295, %v611, 0.0
    %621 = vadd.xlane.f32.xlu0 %v620
    %v622 = vpop.xlane.xlu0 %621
    %v623 = vsel %vm295, %v613, 0.0
    %624 = vadd.xlane.f32.xlu0 %v623
    %v625 = vpop.xlane.xlu0 %624
    %v626 = vrcp.pop %v616
    %v627 = vrcp.pop %v619
    %v628 = vrcp.pop %v622
    %v629 = vrcp.pop %v625
    %v630 = vmul.f32 %v607, %v626
    %v631 = vmul.f32 %v609, %v627
    %v632 = vmul.f32 %v611, %v628
    %v633 = vmul.f32 %v613, %v629
    %634 = vrot.lane.b32.xlu0 %v458, 64
    %v635 = vpop.permute.xlu0 %634
    %636 = vrot.lane.b32.xlu0 %v463, 64
    %v637 = vpop.permute.xlu0 %636
    %638 = vrot.lane.b32.xlu0 %v468, 64
    %v639 = vpop.permute.xlu0 %638
    %640 = vrot.lane.b32.xlu0 %v473, 64
    %v641 = vpop.permute.xlu0 %640
    %v647 = vsel %vm295, %v630, 0
    %v650 = vsel %vm295, %v631, 0
    %v653 = vsel %vm295, %v632, 0
    %v656 = vsel %vm295, %v633, 0
    %658 = vmatprep.subr.mxu0 0.0
    %659 = vmatpush1.msra.mxu0 %v635
    %660 = vmatprep.subr.mxu0 0.0
    %661 = vmatpush1.msra.mxu0 %v637
    %662 = vmatprep.subr.mxu0 0.0
    %663 = vmatpush1.msra.mxu0 %v639
    %664 = vmatprep.subr.mxu0 0.0
    %665 = vmatpush1.msra.mxu0 %v641
    %666 = vmatprep.subr.mxu0 0.0
    %667 = vmatpush1.msra.mxu0 0.0
    %668 = vmatprep.subr.mxu0 0.0
    %669 = vmatpush1.msra.mxu0 0.0
    %670 = vmatprep.subr.mxu0 0.0
    %671 = vmatpush1.msra.mxu0 0.0
    %672 = vmatprep.subr.mxu0 0.0
    %673 = vmatpush1.msra.mxu0 0.0
    %674 = vmatprep.subr.mxu0 0.0
    %675 = vmatpush1.msra.mxu0 0.0
    %676 = vmatprep.subr.mxu0 0.0
    %677 = vmatpush1.msra.mxu0 0.0
    %678 = vmatprep.subr.mxu0 0.0
    %679 = vmatpush1.msra.mxu0 0.0
    %680 = vmatprep.subr.mxu0 0.0
    %681 = vmatpush1.msra.mxu0 0.0
    %682 = vmatprep.subr.mxu0 0.0
    %683 = vmatpush1.msra.mxu0 0.0
    %684 = vmatprep.subr.mxu0 0.0
    %685 = vmatpush1.msra.mxu0 0.0
    %686 = vmatprep.subr.mxu0 0.0
    %687 = vmatpush1.msra.mxu0 0.0
    %688 = vmatprep.subr.mxu0 0.0
    %689 = vmatpush1.msra.mxu0 0.0
    %690 = vmatprep.subr.mxu0 0.0
    %691 = vmatpush1.msra.mxu0 0.0
    %692 = vmatprep.subr.mxu0 0.0
    %693 = vmatpush1.msra.mxu0 0.0
    %694 = vmatprep.subr.mxu0 0.0
    %695 = vmatpush1.msra.mxu0 0.0
    %696 = vmatprep.subr.mxu0 0.0
    %697 = vmatpush1.msra.mxu0 0.0
    %698 = vmatprep.subr.mxu0 0.0
    %699 = vmatpush1.msra.mxu0 0.0
    %700 = vmatprep.subr.mxu0 0.0
    %701 = vmatpush1.msra.mxu0 0.0
    %702 = vmatprep.subr.mxu0 0.0
    %703 = vmatpush1.msra.mxu0 0.0
    %704 = vmatprep.subr.mxu0 0.0
    %705 = vmatpush1.msra.mxu0 0.0
    %706 = vmatprep.subr.mxu0 0.0
    %707 = vmatpush1.msra.mxu0 0.0
    %708 = vmatprep.subr.mxu0 0.0
    %709 = vmatpush1.msra.mxu0 0.0
    %710 = vmatprep.subr.mxu0 0.0
    %711 = vmatpush1.msra.mxu0 0.0
    %712 = vmatprep.subr.mxu0 0.0
    %713 = vmatpush1.msra.mxu0 0.0
    %714 = vmatprep.subr.mxu0 0.0
    %715 = vmatpush1.msra.mxu0 0.0
    %716 = vmatprep.subr.mxu0 0.0
    %717 = vmatpush1.msra.mxu0 0.0
    %718 = vmatprep.subr.mxu0 0.0
    %719 = vmatpush1.msra.mxu0 0.0
    %720 = vmatprep.subr.mxu0 0.0
    %721 = vmatpush1.msra.mxu0 0.0
    %722 = vmatprep.mubr.f32.mxu0 0.0
    %723 = vmatmul.mubr.f32.gmra.mrb[0].mxu0 %v647
    %v724 = vpop.f32.mrb[0].mxu0
    %v725 = vadd.f32 0.0, %v724
    %v726 = vpop.f32.mrb[0].mxu0
    %727 = vmatprep.mubr.f32.mxu0 0.0
    %728 = vmatmul.mubr.f32.gmra.mrb[0].mxu0 %v650
    %v729 = vpop.f32.mrb[0].mxu0
    %v730 = vadd.f32 0.0, %v729
    %v731 = vpop.f32.mrb[0].mxu0
    %732 = vmatprep.mubr.f32.mxu0 0.0
    %733 = vmatmul.mubr.f32.gmra.mrb[0].mxu0 %v653
    %v734 = vpop.f32.mrb[0].mxu0
    %v735 = vadd.f32 0.0, %v734
    %v736 = vpop.f32.mrb[0].mxu0
    %737 = vmatprep.mubr.f32.mxu0 0.0
    %738 = vmatmul.mubr.f32.gmra.mrb[0].mxu0 %v656
    %v739 = vpop.f32.mrb[0].mxu0
    %v740 = vadd.f32 0.0, %v739
    %v741 = vpop.f32.mrb[0].mxu0
    %742 = vdwg.mxu0
    %743 = vrot.lane.b32.xlu0 %v458, 112
    %v744 = vpop.permute.xlu0 %743
    %745 = vrot.lane.b32.xlu0 %v463, 112
    %v746 = vpop.permute.xlu0 %745
    %747 = vrot.lane.b32.xlu0 %v468, 112
    %v748 = vpop.permute.xlu0 %747
    %749 = vrot.lane.b32.xlu0 %v473, 112
    %v750 = vpop.permute.xlu0 %749
    %751 = vrot.lane.b32.xlu0 %v458, 80
    %v752 = vpop.permute.xlu0 %751
    %753 = vrot.lane.b32.xlu0 %v463, 80
    %v754 = vpop.permute.xlu0 %753
    %755 = vrot.lane.b32.xlu0 %v468, 80
    %v756 = vpop.permute.xlu0 %755
    %757 = vrot.lane.b32.xlu0 %v473, 80
    %v758 = vpop.permute.xlu0 %757
    %v759 = vsel %vm488, %v744, 0
    %v761 = vsel %vm488, %v746, 0
    %v763 = vsel %vm488, %v748, 0
    %v765 = vsel %vm488, %v750, 0
    %v767 = vsel %vm488, %v752, 0
    %v769 = vsel %vm488, %v754, 0
    %v771 = vsel %vm488, %v756, 0
    %v773 = vsel %vm488, %v758, 0
    %775 = vmatprep.subr.mxu0 0.0
    %776 = vmatpush1.xpose.msra.mxu0 %v767
    %777 = vmatprep.subr.mxu0 0.0
    %778 = vmatpush1.xpose.msra.mxu0 %v769
    %779 = vmatprep.subr.mxu0 0.0
    %780 = vmatpush1.xpose.msra.mxu0 %v771
    %781 = vmatprep.subr.mxu0 0.0
    %782 = vmatpush1.xpose.msra.mxu0 %v773
    %783 = vmatprep.subr.mxu0 0.0
    %784 = vmatpush1.xpose.msra.mxu0 0.0
    %785 = vmatprep.subr.mxu0 0.0
    %786 = vmatpush1.xpose.msra.mxu0 0.0
    %787 = vmatprep.subr.mxu0 0.0
    %788 = vmatpush1.xpose.msra.mxu0 0.0
    %789 = vmatprep.subr.mxu0 0.0
    %790 = vmatpush1.xpose.msra.mxu0 0.0
    %791 = vmatprep.subr.mxu0 0.0
    %792 = vmatpush1.xpose.msra.mxu0 0.0
    %793 = vmatprep.subr.mxu0 0.0
    %794 = vmatpush1.xpose.msra.mxu0 0.0
    %795 = vmatprep.subr.mxu0 0.0
    %796 = vmatpush1.xpose.msra.mxu0 0.0
    %797 = vmatprep.subr.mxu0 0.0
    %798 = vmatpush1.xpose.msra.mxu0 0.0
    %799 = vmatprep.subr.mxu0 0.0
    %800 = vmatpush1.xpose.msra.mxu0 0.0
    %801 = vmatprep.subr.mxu0 0.0
    %802 = vmatpush1.xpose.msra.mxu0 0.0
    %803 = vmatprep.subr.mxu0 0.0
    %804 = vmatpush1.xpose.msra.mxu0 0.0
    %805 = vmatprep.subr.mxu0 0.0
    %806 = vmatpush1.xpose.msra.mxu0 0.0
    %807 = vmatprep.subr.mxu0 0.0
    %808 = vmatpush1.xpose.msra.mxu0 0.0
    %809 = vmatprep.subr.mxu0 0.0
    %810 = vmatpush1.xpose.msra.mxu0 0.0
    %811 = vmatprep.subr.mxu0 0.0
    %812 = vmatpush1.xpose.msra.mxu0 0.0
    %813 = vmatprep.subr.mxu0 0.0
    %814 = vmatpush1.xpose.msra.mxu0 0.0
    %815 = vmatprep.subr.mxu0 0.0
    %816 = vmatpush1.xpose.msra.mxu0 0.0
    %817 = vmatprep.subr.mxu0 0.0
    %818 = vmatpush1.xpose.msra.mxu0 0.0
    %819 = vmatprep.subr.mxu0 0.0
    %820 = vmatpush1.xpose.msra.mxu0 0.0
    %821 = vmatprep.subr.mxu0 0.0
    %822 = vmatpush1.xpose.msra.mxu0 0.0
    %823 = vmatprep.subr.mxu0 0.0
    %824 = vmatpush1.xpose.msra.mxu0 0.0
    %825 = vmatprep.subr.mxu0 0.0
    %826 = vmatpush1.xpose.msra.mxu0 0.0
    %827 = vmatprep.subr.mxu0 0.0
    %828 = vmatpush1.xpose.msra.mxu0 0.0
    %829 = vmatprep.subr.mxu0 0.0
    %830 = vmatpush1.xpose.msra.mxu0 0.0
    %831 = vmatprep.subr.mxu0 0.0
    %832 = vmatpush1.xpose.msra.mxu0 0.0
    %833 = vmatprep.subr.mxu0 0.0
    %834 = vmatpush1.xpose.msra.mxu0 0.0
    %835 = vmatprep.subr.mxu0 0.0
    %836 = vmatpush1.xpose.msra.mxu0 0.0
    %837 = vmatprep.subr.mxu0 0.0
    %838 = vmatpush1.xpose.msra.mxu0 0.0
    %839 = vmatprep.mubr.f32.mxu0 0.0
    %840 = vmatmul.mubr.f32.gmra.mrb[0].mxu0 %v759
    %v841 = vpop.f32.mrb[0].mxu0
    %v842 = vadd.f32 %v260, %v841
    %v843 = vpop.f32.mrb[0].mxu0
    %844 = vmatprep.mubr.f32.mxu0 0.0
    %845 = vmatmul.mubr.f32.gmra.mrb[0].mxu0 %v761
    %v846 = vpop.f32.mrb[0].mxu0
    %v847 = vadd.f32 %v261, %v846
    %v848 = vpop.f32.mrb[0].mxu0
    %849 = vmatprep.mubr.f32.mxu0 0.0
    %850 = vmatmul.mubr.f32.gmra.mrb[0].mxu0 %v763
    %v851 = vpop.f32.mrb[0].mxu0
    %v852 = vadd.f32 %v262, %v851
    %v853 = vpop.f32.mrb[0].mxu0
    %854 = vmatprep.mubr.f32.mxu0 0.0
    %855 = vmatmul.mubr.f32.gmra.mrb[0].mxu0 %v765
    %v856 = vpop.f32.mrb[0].mxu0
    %v857 = vadd.f32 %v263, %v856
    %v858 = vpop.f32.mrb[0].mxu0
    %859 = vdwg.mxu0
    %v860 = vsel %vm295, %v842, -inf
    %861 = vmax.xlane.f32.xlu0 %v860
    %v862 = vpop.xlane.xlu0 %861
    %v863 = vsel %vm295, %v847, -inf
    %864 = vmax.xlane.f32.xlu0 %v863
    %v865 = vpop.xlane.xlu0 %864
    %v866 = vsel %vm295, %v852, -inf
    %867 = vmax.xlane.f32.xlu0 %v866
    %v868 = vpop.xlane.xlu0 %867
    %v869 = vsel %vm295, %v857, -inf
    %870 = vmax.xlane.f32.xlu0 %v869
    %v871 = vpop.xlane.xlu0 %870
    %v872 = vsub.f32 %v842, %v862
    %v873 = vsub.f32 %v847, %v865
    %v874 = vsub.f32 %v852, %v868
    %v875 = vsub.f32 %v857, %v871
    %v876 = vmul.f32 %v872, 1.442695
    %v877 = vpow.pop %v876
    %v878 = vmul.f32 %v873, 1.442695
    %v879 = vpow.pop %v878
    %v880 = vmul.f32 %v874, 1.442695
    %v881 = vpow.pop %v880
    %v882 = vmul.f32 %v875, 1.442695
    %v883 = vpow.pop %v882
    %v884 = vsel %vm295, %v877, 0.0
    %885 = vadd.xlane.f32.xlu0 %v884
    %v886 = vpop.xlane.xlu0 %885
    %v887 = vsel %vm295, %v879, 0.0
    %888 = vadd.xlane.f32.xlu0 %v887
    %v889 = vpop.xlane.xlu0 %888
    %v890 = vsel %vm295, %v881, 0.0
    %891 = vadd.xlane.f32.xlu0 %v890
    %v892 = vpop.xlane.xlu0 %891
    %v893 = vsel %vm295, %v883, 0.0
    %894 = vadd.xlane.f32.xlu0 %v893
    %v895 = vpop.xlane.xlu0 %894
    %v896 = vrcp.pop %v886
    %v897 = vrcp.pop %v889
    %v898 = vrcp.pop %v892
    %v899 = vrcp.pop %v895
    %v900 = vmul.f32 %v877, %v896
    %v901 = vmul.f32 %v879, %v897
    %v902 = vmul.f32 %v881, %v898
    %v903 = vmul.f32 %v883, %v899
    %904 = vrot.lane.b32.xlu0 %v458, 48
    %v905 = vpop.permute.xlu0 %904
    %906 = vrot.lane.b32.xlu0 %v463, 48
    %v907 = vpop.permute.xlu0 %906
    %908 = vrot.lane.b32.xlu0 %v468, 48
    %v909 = vpop.permute.xlu0 %908
    %910 = vrot.lane.b32.xlu0 %v473, 48
    %v911 = vpop.permute.xlu0 %910
    %v917 = vsel %vm295, %v900, 0
    %v920 = vsel %vm295, %v901, 0
    %v923 = vsel %vm295, %v902, 0
    %v926 = vsel %vm295, %v903, 0
    %928 = vmatprep.subr.mxu0 0.0
    %929 = vmatpush1.msra.mxu0 %v905
    %930 = vmatprep.subr.mxu0 0.0
    %931 = vmatpush1.msra.mxu0 %v907
    %932 = vmatprep.subr.mxu0 0.0
    %933 = vmatpush1.msra.mxu0 %v909
    %934 = vmatprep.subr.mxu0 0.0
    %935 = vmatpush1.msra.mxu0 %v911
    %936 = vmatprep.subr.mxu0 0.0
    %937 = vmatpush1.msra.mxu0 0.0
    %938 = vmatprep.subr.mxu0 0.0
    %939 = vmatpush1.msra.mxu0 0.0
    %940 = vmatprep.subr.mxu0 0.0
    %941 = vmatpush1.msra.mxu0 0.0
    %942 = vmatprep.subr.mxu0 0.0
    %943 = vmatpush1.msra.mxu0 0.0
    %944 = vmatprep.subr.mxu0 0.0
    %945 = vmatpush1.msra.mxu0 0.0
    %946 = vmatprep.subr.mxu0 0.0
    %947 = vmatpush1.msra.mxu0 0.0
    %948 = vmatprep.subr.mxu0 0.0
    %949 = vmatpush1.msra.mxu0 0.0
    %950 = vmatprep.subr.mxu0 0.0
    %951 = vmatpush1.msra.mxu0 0.0
    %952 = vmatprep.subr.mxu0 0.0
    %953 = vmatpush1.msra.mxu0 0.0
    %954 = vmatprep.subr.mxu0 0.0
    %955 = vmatpush1.msra.mxu0 0.0
    %956 = vmatprep.subr.mxu0 0.0
    %957 = vmatpush1.msra.mxu0 0.0
    %958 = vmatprep.subr.mxu0 0.0
    %959 = vmatpush1.msra.mxu0 0.0
    %960 = vmatprep.subr.mxu0 0.0
    %961 = vmatpush1.msra.mxu0 0.0
    %962 = vmatprep.subr.mxu0 0.0
    %963 = vmatpush1.msra.mxu0 0.0
    %964 = vmatprep.subr.mxu0 0.0
    %965 = vmatpush1.msra.mxu0 0.0
    %966 = vmatprep.subr.mxu0 0.0
    %967 = vmatpush1.msra.mxu0 0.0
    %968 = vmatprep.subr.mxu0 0.0
    %969 = vmatpush1.msra.mxu0 0.0
    %970 = vmatprep.subr.mxu0 0.0
    %971 = vmatpush1.msra.mxu0 0.0
    %972 = vmatprep.subr.mxu0 0.0
    %973 = vmatpush1.msra.mxu0 0.0
    %974 = vmatprep.subr.mxu0 0.0
    %975 = vmatpush1.msra.mxu0 0.0
    %976 = vmatprep.subr.mxu0 0.0
    %977 = vmatpush1.msra.mxu0 0.0
    %978 = vmatprep.subr.mxu0 0.0
    %979 = vmatpush1.msra.mxu0 0.0
    %980 = vmatprep.subr.mxu0 0.0
    %981 = vmatpush1.msra.mxu0 0.0
    %982 = vmatprep.subr.mxu0 0.0
    %983 = vmatpush1.msra.mxu0 0.0
    %984 = vmatprep.subr.mxu0 0.0
    %985 = vmatpush1.msra.mxu0 0.0
    %986 = vmatprep.subr.mxu0 0.0
    %987 = vmatpush1.msra.mxu0 0.0
    %988 = vmatprep.subr.mxu0 0.0
    %989 = vmatpush1.msra.mxu0 0.0
    %990 = vmatprep.subr.mxu0 0.0
    %991 = vmatpush1.msra.mxu0 0.0
    %992 = vmatprep.mubr.f32.mxu0 0.0
    %993 = vmatmul.mubr.f32.gmra.mrb[0].mxu0 %v917
    %v994 = vpop.f32.mrb[0].mxu0
    %v995 = vadd.f32 0.0, %v994
    %v996 = vpop.f32.mrb[0].mxu0
    %997 = vmatprep.mubr.f32.mxu0 0.0
    %998 = vmatmul.mubr.f32.gmra.mrb[0].mxu0 %v920
    %v999 = vpop.f32.mrb[0].mxu0
    %v1000 = vadd.f32 0.0, %v999
    %v1001 = vpop.f32.mrb[0].mxu0
    %1002 = vmatprep.mubr.f32.mxu0 0.0
    %1003 = vmatmul.mubr.f32.gmra.mrb[0].mxu0 %v923
    %v1004 = vpop.f32.mrb[0].mxu0
    %v1005 = vadd.f32 0.0, %v1004
    %v1006 = vpop.f32.mrb[0].mxu0
    %1007 = vmatprep.mubr.f32.mxu0 0.0
    %1008 = vmatmul.mubr.f32.gmra.mrb[0].mxu0 %v926
    %v1009 = vpop.f32.mrb[0].mxu0
    %v1010 = vadd.f32 0.0, %v1009
    %v1011 = vpop.f32.mrb[0].mxu0
    %1012 = vdwg.mxu0
    %1017 = vrot.lane.b32.xlu0 %v995, 16
    %v1018 = vpop.permute.xlu0 %1017
    %1019 = vrot.lane.b32.xlu0 %v1000, 16
    %v1020 = vpop.permute.xlu0 %1019
    %1021 = vrot.lane.b32.xlu0 %v1005, 16
    %v1022 = vpop.permute.xlu0 %1021
    %1023 = vrot.lane.b32.xlu0 %v1010, 16
    %v1024 = vpop.permute.xlu0 %1023
    %v1029 = vsel %vm488, %v725, %v1018
    %v1030 = vsel %vm488, %v730, %v1020
    %v1031 = vsel %vm488, %v735, %v1022
    %v1032 = vsel %vm488, %v740, %v1024
    %v1034 = vsel %vm295, %v1029, 0
    %v1037 = vsel %vm295, %v1030, 0
    %v1040 = vsel %vm295, %v1031, 0
    %v1043 = vsel %vm295, %v1032, 0
    %1045 = vmatprep.subr.mxu0 0.0
    %1046 = vmatpush1.msra.mxu0 %v270
    %1047 = vmatprep.subr.mxu0 0.0
    %1048 = vmatpush1.msra.mxu0 %v271
    %1049 = vmatprep.subr.mxu0 0.0
    %1050 = vmatpush1.msra.mxu0 %v272
    %1051 = vmatprep.subr.mxu0 0.0
    %1052 = vmatpush1.msra.mxu0 %v273
    %1053 = vmatprep.subr.mxu0 0.0
    %1054 = vmatpush1.msra.mxu0 0.0
    %1055 = vmatprep.subr.mxu0 0.0
    %1056 = vmatpush1.msra.mxu0 0.0
    %1057 = vmatprep.subr.mxu0 0.0
    %1058 = vmatpush1.msra.mxu0 0.0
    %1059 = vmatprep.subr.mxu0 0.0
    %1060 = vmatpush1.msra.mxu0 0.0
    %1061 = vmatprep.subr.mxu0 0.0
    %1062 = vmatpush1.msra.mxu0 0.0
    %1063 = vmatprep.subr.mxu0 0.0
    %1064 = vmatpush1.msra.mxu0 0.0
    %1065 = vmatprep.subr.mxu0 0.0
    %1066 = vmatpush1.msra.mxu0 0.0
    %1067 = vmatprep.subr.mxu0 0.0
    %1068 = vmatpush1.msra.mxu0 0.0
    %1069 = vmatprep.subr.mxu0 0.0
    %1070 = vmatpush1.msra.mxu0 0.0
    %1071 = vmatprep.subr.mxu0 0.0
    %1072 = vmatpush1.msra.mxu0 0.0
    %1073 = vmatprep.subr.mxu0 0.0
    %1074 = vmatpush1.msra.mxu0 0.0
    %1075 = vmatprep.subr.mxu0 0.0
    %1076 = vmatpush1.msra.mxu0 0.0
    %1077 = vmatprep.subr.mxu0 0.0
    %1078 = vmatpush1.msra.mxu0 0.0
    %1079 = vmatprep.subr.mxu0 0.0
    %1080 = vmatpush1.msra.mxu0 0.0
    %1081 = vmatprep.subr.mxu0 0.0
    %1082 = vmatpush1.msra.mxu0 0.0
    %1083 = vmatprep.subr.mxu0 0.0
    %1084 = vmatpush1.msra.mxu0 0.0
    %1085 = vmatprep.subr.mxu0 0.0
    %1086 = vmatpush1.msra.mxu0 0.0
    %1087 = vmatprep.subr.mxu0 0.0
    %1088 = vmatpush1.msra.mxu0 0.0
    %1089 = vmatprep.subr.mxu0 0.0
    %1090 = vmatpush1.msra.mxu0 0.0
    %1091 = vmatprep.subr.mxu0 0.0
    %1092 = vmatpush1.msra.mxu0 0.0
    %1093 = vmatprep.subr.mxu0 0.0
    %1094 = vmatpush1.msra.mxu0 0.0
    %1095 = vmatprep.subr.mxu0 0.0
    %1096 = vmatpush1.msra.mxu0 0.0
    %1097 = vmatprep.subr.mxu0 0.0
    %1098 = vmatpush1.msra.mxu0 0.0
    %1099 = vmatprep.subr.mxu0 0.0
    %1100 = vmatpush1.msra.mxu0 0.0
    %1101 = vmatprep.subr.mxu0 0.0
    %1102 = vmatpush1.msra.mxu0 0.0
    %1103 = vmatprep.subr.mxu0 0.0
    %1104 = vmatpush1.msra.mxu0 0.0
    %1105 = vmatprep.subr.mxu0 0.0
    %1106 = vmatpush1.msra.mxu0 0.0
    %1107 = vmatprep.subr.mxu0 0.0
    %1108 = vmatpush1.msra.mxu0 0.0
    %1109 = vmatprep.mubr.f32.mxu0 0.0
    %1110 = vmatmul.mubr.f32.gmra.mrb[0].mxu0 %v1034
    %v1111 = vpop.f32.mrb[0].mxu0
    %v1112 = vadd.f32 0.0, %v1111
    %v1113 = vpop.f32.mrb[0].mxu0
    %1114 = vmatprep.mubr.f32.mxu0 0.0
    %1115 = vmatmul.mubr.f32.gmra.mrb[0].mxu0 %v1037
    %v1116 = vpop.f32.mrb[0].mxu0
    %v1117 = vadd.f32 0.0, %v1116
    %v1118 = vpop.f32.mrb[0].mxu0
    %1119 = vmatprep.mubr.f32.mxu0 0.0
    %1120 = vmatmul.mubr.f32.gmra.mrb[0].mxu0 %v1040
    %v1121 = vpop.f32.mrb[0].mxu0
    %v1122 = vadd.f32 0.0, %v1121
    %v1123 = vpop.f32.mrb[0].mxu0
    %1124 = vmatprep.mubr.f32.mxu0 0.0
    %1125 = vmatmul.mubr.f32.gmra.mrb[0].mxu0 %v1043
    %v1126 = vpop.f32.mrb[0].mxu0
    %v1127 = vadd.f32 0.0, %v1126
    %v1128 = vpop.f32.mrb[0].mxu0
    %1129 = vdwg.mxu0
    %v1130 = vadd.f32 %v256, %v1112
    %v1131 = vadd.f32 %v257, %v1117
    %v1132 = vadd.f32 %v258, %v1122
    %v1133 = vadd.f32 %v259, %v1127
    %v1134 = vlaneseq
    %v1135 = vshrl.u32 %v1134, 7
    %v1136 = vsub.s32 2, %v1135
    %v1137 = vrot.slane %v264, %v1136
    %v1138 = vadd.f32 %v1130, %v1137
    %v1139 = vadd.f32 %v1131, %v1137
    %v1140 = vadd.f32 %v1132, %v1137
    %v1141 = vadd.f32 %v1133, %v1137
    %v1142 = vsel %vm295, %v1138, 0.0
    %1143 = vadd.xlane.f32.xlu0 %v1142
    %v1144 = vpop.xlane.xlu0 %1143
    %v1145 = vsel %vm295, %v1139, 0.0
    %1146 = vadd.xlane.f32.xlu0 %v1145
    %v1147 = vpop.xlane.xlu0 %1146
    %v1148 = vsel %vm295, %v1140, 0.0
    %1149 = vadd.xlane.f32.xlu0 %v1148
    %v1150 = vpop.xlane.xlu0 %1149
    %v1151 = vsel %vm295, %v1141, 0.0
    %1152 = vadd.xlane.f32.xlu0 %v1151
    %v1153 = vpop.xlane.xlu0 %1152
    %v1154 = vmul.f32 %v1144, %v308
    %v1155 = vmul.f32 %v1147, %v308
    %v1156 = vmul.f32 %v1150, %v308
    %v1157 = vmul.f32 %v1153, %v308
    %v1158 = vmul.f32 %v1138, %v1138
    %v1159 = vmul.f32 %v1139, %v1139
    %v1160 = vmul.f32 %v1140, %v1140
    %v1161 = vmul.f32 %v1141, %v1141
    %v1162 = vsel %vm295, %v1158, 0.0
    %1163 = vadd.xlane.f32.xlu0 %v1162
    %v1164 = vpop.xlane.xlu0 %1163
    %v1165 = vsel %vm295, %v1159, 0.0
    %1166 = vadd.xlane.f32.xlu0 %v1165
    %v1167 = vpop.xlane.xlu0 %1166
    %v1168 = vsel %vm295, %v1160, 0.0
    %1169 = vadd.xlane.f32.xlu0 %v1168
    %v1170 = vpop.xlane.xlu0 %1169
    %v1171 = vsel %vm295, %v1161, 0.0
    %1172 = vadd.xlane.f32.xlu0 %v1171
    %v1173 = vpop.xlane.xlu0 %1172
    %v1174 = vmul.f32 %v1164, %v308
    %v1175 = vmul.f32 %v1167, %v308
    %v1176 = vmul.f32 %v1170, %v308
    %v1177 = vmul.f32 %v1173, %v308
    %v1178 = vmul.f32 %v1154, %v1154
    %v1179 = vmul.f32 %v1155, %v1155
    %v1180 = vmul.f32 %v1156, %v1156
    %v1181 = vmul.f32 %v1157, %v1157
    %v1182 = vsub.f32 %v1174, %v1178
    %v1183 = vsub.f32 %v1175, %v1179
    %v1184 = vsub.f32 %v1176, %v1180
    %v1185 = vsub.f32 %v1177, %v1181
    %v1186 = vsub.f32 %v1138, %v1154
    %v1187 = vsub.f32 %v1139, %v1155
    %v1188 = vsub.f32 %v1140, %v1156
    %v1189 = vsub.f32 %v1141, %v1157
    %v1190 = vadd.f32 %v1182, 1e-05
    %v1191 = vadd.f32 %v1183, 1e-05
    %v1192 = vadd.f32 %v1184, 1e-05
    %v1193 = vadd.f32 %v1185, 1e-05
    %v1194 = vrsqrt.pop %v1190
    %v1195 = vrsqrt.pop %v1191
    %v1196 = vrsqrt.pop %v1192
    %v1197 = vrsqrt.pop %v1193
    %v1198 = vmul.f32 %v1186, %v1194
    %v1199 = vmul.f32 %v1187, %v1195
    %v1200 = vmul.f32 %v1188, %v1196
    %v1201 = vmul.f32 %v1189, %v1197
    %v1202 = vlaneseq
    %v1203 = vshrl.u32 %v1202, 7
    %v1204 = vsub.s32 3, %v1203
    %v1205 = vrot.slane %v264, %v1204
    %v1206 = vmul.f32 %v1198, %v1205
    %v1207 = vmul.f32 %v1199, %v1205
    %v1208 = vmul.f32 %v1200, %v1205
    %v1209 = vmul.f32 %v1201, %v1205
    %v1210 = vlaneseq
    %v1211 = vshrl.u32 %v1210, 7
    %v1212 = vsub.s32 4, %v1211
    %v1213 = vrot.slane %v264, %v1212
    %v1214 = vadd.f32 %v1206, %v1213
    %v1215 = vadd.f32 %v1207, %v1213
    %v1216 = vadd.f32 %v1208, %v1213
    %v1217 = vadd.f32 %v1209, %v1213
    %v1219 = vlaneseq
    %v1220 = vshrl.u32 %v1219, 7
    %v1221 = vsub.s32 0, %v1220
    %v1222 = vrot.slane %v278, %v1221
    %v1225 = vsel %vm295, %v1214, 0
    %v1228 = vsel %vm295, %v1215, 0
    %v1231 = vsel %vm295, %v1216, 0
    %v1234 = vsel %vm295, %v1217, 0
    %1236 = vmatprep.subr.mxu0 0.0
    %1237 = vmatpush1.msra.mxu0 %v274
    %1238 = vmatprep.subr.mxu0 0.0
    %1239 = vmatpush1.msra.mxu0 %v275
    %1240 = vmatprep.subr.mxu0 0.0
    %1241 = vmatpush1.msra.mxu0 %v276
    %1242 = vmatprep.subr.mxu0 0.0
    %1243 = vmatpush1.msra.mxu0 %v277
    %1244 = vmatprep.subr.mxu0 0.0
    %1245 = vmatpush1.msra.mxu0 0.0
    %1246 = vmatprep.subr.mxu0 0.0
    %1247 = vmatpush1.msra.mxu0 0.0
    %1248 = vmatprep.subr.mxu0 0.0
    %1249 = vmatpush1.msra.mxu0 0.0
    %1250 = vmatprep.subr.mxu0 0.0
    %1251 = vmatpush1.msra.mxu0 0.0
    %1252 = vmatprep.subr.mxu0 0.0
    %1253 = vmatpush1.msra.mxu0 0.0
    %1254 = vmatprep.subr.mxu0 0.0
    %1255 = vmatpush1.msra.mxu0 0.0
    %1256 = vmatprep.subr.mxu0 0.0
    %1257 = vmatpush1.msra.mxu0 0.0
    %1258 = vmatprep.subr.mxu0 0.0
    %1259 = vmatpush1.msra.mxu0 0.0
    %1260 = vmatprep.subr.mxu0 0.0
    %1261 = vmatpush1.msra.mxu0 0.0
    %1262 = vmatprep.subr.mxu0 0.0
    %1263 = vmatpush1.msra.mxu0 0.0
    %1264 = vmatprep.subr.mxu0 0.0
    %1265 = vmatpush1.msra.mxu0 0.0
    %1266 = vmatprep.subr.mxu0 0.0
    %1267 = vmatpush1.msra.mxu0 0.0
    %1268 = vmatprep.subr.mxu0 0.0
    %1269 = vmatpush1.msra.mxu0 0.0
    %1270 = vmatprep.subr.mxu0 0.0
    %1271 = vmatpush1.msra.mxu0 0.0
    %1272 = vmatprep.subr.mxu0 0.0
    %1273 = vmatpush1.msra.mxu0 0.0
    %1274 = vmatprep.subr.mxu0 0.0
    %1275 = vmatpush1.msra.mxu0 0.0
    %1276 = vmatprep.subr.mxu0 0.0
    %1277 = vmatpush1.msra.mxu0 0.0
    %1278 = vmatprep.subr.mxu0 0.0
    %1279 = vmatpush1.msra.mxu0 0.0
    %1280 = vmatprep.subr.mxu0 0.0
    %1281 = vmatpush1.msra.mxu0 0.0
    %1282 = vmatprep.subr.mxu0 0.0
    %1283 = vmatpush1.msra.mxu0 0.0
    %1284 = vmatprep.subr.mxu0 0.0
    %1285 = vmatpush1.msra.mxu0 0.0
    %1286 = vmatprep.subr.mxu0 0.0
    %1287 = vmatpush1.msra.mxu0 0.0
    %1288 = vmatprep.subr.mxu0 0.0
    %1289 = vmatpush1.msra.mxu0 0.0
    %1290 = vmatprep.subr.mxu0 0.0
    %1291 = vmatpush1.msra.mxu0 0.0
    %1292 = vmatprep.subr.mxu0 0.0
    %1293 = vmatpush1.msra.mxu0 0.0
    %1294 = vmatprep.subr.mxu0 0.0
    %1295 = vmatpush1.msra.mxu0 0.0
    %1296 = vmatprep.subr.mxu0 0.0
    %1297 = vmatpush1.msra.mxu0 0.0
    %1298 = vmatprep.subr.mxu0 0.0
    %1299 = vmatpush1.msra.mxu0 0.0
    %1300 = vmatprep.mubr.f32.mxu0 0.0
    %1301 = vmatmul.mubr.f32.gmra.mrb[0].mxu0 %v1225
    %v1302 = vpop.f32.mrb[0].mxu0
    %v1303 = vadd.f32 %v1222, %v1302
    %v1304 = vpop.f32.mrb[0].mxu0
    %1305 = vmatprep.mubr.f32.mxu0 0.0
    %1306 = vmatmul.mubr.f32.gmra.mrb[0].mxu0 %v1228
    %v1307 = vpop.f32.mrb[0].mxu0
    %v1308 = vadd.f32 %v1222, %v1307
    %v1309 = vpop.f32.mrb[0].mxu0
    %1310 = vmatprep.mubr.f32.mxu0 0.0
    %1311 = vmatmul.mubr.f32.gmra.mrb[0].mxu0 %v1231
    %v1312 = vpop.f32.mrb[0].mxu0
    %v1313 = vadd.f32 %v1222, %v1312
    %v1314 = vpop.f32.mrb[0].mxu0
    %1315 = vmatprep.mubr.f32.mxu0 0.0
    %1316 = vmatmul.mubr.f32.gmra.mrb[0].mxu0 %v1234
    %v1317 = vpop.f32.mrb[0].mxu0
    %v1318 = vadd.f32 %v1222, %v1317
    %v1319 = vpop.f32.mrb[0].mxu0
    %1320 = vdwg.mxu0
    %v1321 = vmul.f32 %v1303, 1.702
    %v1322 = vmul.f32 %v1308, 1.702
    %v1323 = vmul.f32 %v1313, 1.702
    %v1324 = vmul.f32 %v1318, 1.702
    %v1325 = vxor.u32 %v1321, 2147483648
    %v1326 = vxor.u32 %v1322, 2147483648
    %v1327 = vxor.u32 %v1323, 2147483648
    %v1328 = vxor.u32 %v1324, 2147483648
    %v1329 = vmul.f32 %v1325, 1.442695
    %v1330 = vpow.pop %v1329
    %v1331 = vmul.f32 %v1326, 1.442695
    %v1332 = vpow.pop %v1331
    %v1333 = vmul.f32 %v1327, 1.442695
    %v1334 = vpow.pop %v1333
    %v1335 = vmul.f32 %v1328, 1.442695
    %v1336 = vpow.pop %v1335
    %v1337 = vadd.f32 %v1330, 1.0
    %v1338 = vadd.f32 %v1332, 1.0
    %v1339 = vadd.f32 %v1334, 1.0
    %v1340 = vadd.f32 %v1336, 1.0
    %v1341 = vrcp.pop %v1337
    %v1342 = vmul.f32 1.0, %v1341
    %v1343 = vrcp.pop %v1338
    %v1344 = vmul.f32 1.0, %v1343
    %v1345 = vrcp.pop %v1339
    %v1346 = vmul.f32 1.0, %v1345
    %v1347 = vrcp.pop %v1340
    %v1348 = vmul.f32 1.0, %v1347
    %v1349 = vmul.f32 %v1303, %v1342
    %v1350 = vmul.f32 %v1308, %v1344
    %v1351 = vmul.f32 %v1313, %v1346
    %v1352 = vmul.f32 %v1318, %v1348
    %1353 = vmatprep.subr.mxu0 0.0
    %1354 = vmatpush1.msra.mxu0 %v279
    %1355 = vmatprep.subr.mxu0 0.0
    %1356 = vmatpush1.msra.mxu0 %v280
    %1357 = vmatprep.subr.mxu0 0.0
    %1358 = vmatpush1.msra.mxu0 %v281
    %1359 = vmatprep.subr.mxu0 0.0
    %1360 = vmatpush1.msra.mxu0 %v282
    %1361 = vmatprep.subr.mxu0 0.0
    %1362 = vmatpush1.msra.mxu0 %v283
    %1363 = vmatprep.subr.mxu0 0.0
    %1364 = vmatpush1.msra.mxu0 %v284
    %1365 = vmatprep.subr.mxu0 0.0
    %1366 = vmatpush1.msra.mxu0 %v285
    %1367 = vmatprep.subr.mxu0 0.0
    %1368 = vmatpush1.msra.mxu0 %v286
    %1369 = vmatprep.subr.mxu0 0.0
    %1370 = vmatpush1.msra.mxu0 %v287
    %1371 = vmatprep.subr.mxu0 0.0
    %1372 = vmatpush1.msra.mxu0 %v288
    %1373 = vmatprep.subr.mxu0 0.0
    %1374 = vmatpush1.msra.mxu0 %v289
    %1375 = vmatprep.subr.mxu0 0.0
    %1376 = vmatpush1.msra.mxu0 %v290
    %1377 = vmatprep.subr.mxu0 0.0
    %1378 = vmatpush1.msra.mxu0 %v291
    %1379 = vmatprep.subr.mxu0 0.0
    %1380 = vmatpush1.msra.mxu0 %v292
    %1381 = vmatprep.subr.mxu0 0.0
    %1382 = vmatpush1.msra.mxu0 %v293
    %1383 = vmatprep.subr.mxu0 0.0
    %1384 = vmatpush1.msra.mxu0 %v294
    %1385 = vmatprep.subr.mxu0 0.0
    %1386 = vmatpush1.msra.mxu0 0.0
    %1387 = vmatprep.subr.mxu0 0.0
    %1388 = vmatpush1.msra.mxu0 0.0
    %1389 = vmatprep.subr.mxu0 0.0
    %1390 = vmatpush1.msra.mxu0 0.0
    %1391 = vmatprep.subr.mxu0 0.0
    %1392 = vmatpush1.msra.mxu0 0.0
    %1393 = vmatprep.subr.mxu0 0.0
    %1394 = vmatpush1.msra.mxu0 0.0
    %1395 = vmatprep.subr.mxu0 0.0
    %1396 = vmatpush1.msra.mxu0 0.0
    %1397 = vmatprep.subr.mxu0 0.0
    %1398 = vmatpush1.msra.mxu0 0.0
    %1399 = vmatprep.subr.mxu0 0.0
    %1400 = vmatpush1.msra.mxu0 0.0
    %1401 = vmatprep.subr.mxu0 0.0
    %1402 = vmatpush1.msra.mxu0 0.0
    %1403 = vmatprep.subr.mxu0 0.0
    %1404 = vmatpush1.msra.mxu0 0.0
    %1405 = vmatprep.subr.mxu0 0.0
    %1406 = vmatpush1.msra.mxu0 0.0
    %1407 = vmatprep.subr.mxu0 0.0
    %1408 = vmatpush1.msra.mxu0 0.0
    %1409 = vmatprep.subr.mxu0 0.0
    %1410 = vmatpush1.msra.mxu0 0.0
    %1411 = vmatprep.subr.mxu0 0.0
    %1412 = vmatpush1.msra.mxu0 0.0
    %1413 = vmatprep.subr.mxu0 0.0
    %1414 = vmatpush1.msra.mxu0 0.0
    %1415 = vmatprep.subr.mxu0 0.0
    %1416 = vmatpush1.msra.mxu0 0.0
    %1417 = vmatprep.mubr.f32.mxu0 0.0
    %1418 = vmatmul.mubr.f32.gmra.mrb[0].mxu0 %v1349
    %v1419 = vpop.f32.mrb[0].mxu0
    %v1420 = vadd.f32 0.0, %v1419
    %v1421 = vpop.f32.mrb[0].mxu0
    %1422 = vmatprep.mubr.f32.mxu0 0.0
    %1423 = vmatmul.mubr.f32.gmra.mrb[0].mxu0 %v1350
    %v1424 = vpop.f32.mrb[0].mxu0
    %v1425 = vadd.f32 0.0, %v1424
    %v1426 = vpop.f32.mrb[0].mxu0
    %1427 = vmatprep.mubr.f32.mxu0 0.0
    %1428 = vmatmul.mubr.f32.gmra.mrb[0].mxu0 %v1351
    %v1429 = vpop.f32.mrb[0].mxu0
    %v1430 = vadd.f32 0.0, %v1429
    %v1431 = vpop.f32.mrb[0].mxu0
    %1432 = vmatprep.mubr.f32.mxu0 0.0
    %1433 = vmatmul.mubr.f32.gmra.mrb[0].mxu0 %v1352
    %v1434 = vpop.f32.mrb[0].mxu0
    %v1435 = vadd.f32 0.0, %v1434
    %v1436 = vpop.f32.mrb[0].mxu0
    %1437 = vdwg.mxu0
    %v1438 = vadd.f32 %v1138, %v1420
    %v1439 = vadd.f32 %v1139, %v1425
    %v1440 = vadd.f32 %v1140, %v1430
    %v1441 = vadd.f32 %v1141, %v1435
    %v1442 = vlaneseq
    %v1443 = vshrl.u32 %v1442, 7
    %v1444 = vsub.s32 5, %v1443
    %v1445 = vrot.slane %v264, %v1444
    %v1446 = vadd.f32 %v1438, %v1445
    %v1447 = vadd.f32 %v1439, %v1445
    %v1448 = vadd.f32 %v1440, %v1445
    %v1449 = vadd.f32 %v1441, %v1445
    %s1450 = scalar_lea.vmem %s11, 8
    %v1451 = vld [vmem:[%s1450] sm:$0x3f]
    %s1452 = scalar_lea.vmem %s13, 32
    %v1453 = vld [vmem:[%s1452] sm:$0xff]
    %v1454 = vld [vmem:[%s1452 + $0x8] sm:$0xff]
    %v1455 = vld [vmem:[%s1452 + $0x10] sm:$0xff]
    %v1456 = vld [vmem:[%s1452 + $0x18] sm:$0xff]
    %s1457 = scalar_lea.vmem %s15, 1
    %v1458 = vld [vmem:[%s1457] sm:$0x1]
    %s1459 = scalar_lea.vmem %s17, 32
    %v1460 = vld [vmem:[%s1459] sm:$0xff]
    %v1461 = vld [vmem:[%s1459 + $0x8] sm:$0xff]
    %v1462 = vld [vmem:[%s1459 + $0x10] sm:$0xff]
    %v1463 = vld [vmem:[%s1459 + $0x18] sm:$0xff]
    %s1464 = scalar_lea.vmem %s19, 32
    %v1465 = vld [vmem:[%s1464] sm:$0xff]
    %v1466 = vld [vmem:[%s1464 + $0x8] sm:$0xff]
    %v1467 = vld [vmem:[%s1464 + $0x10] sm:$0xff]
    %v1468 = vld [vmem:[%s1464 + $0x18] sm:$0xff]
    %s1469 = scalar_lea.vmem %s21, 1
    %v1470 = vld [vmem:[%s1469] sm:$0x1]
    %s1471 = scalar_lea.vmem %s23, 128
    %v1472 = vld [vmem:[%s1471] sm:$0xff]
    %v1473 = vld [vmem:[%s1471 + $0x8] sm:$0xff]
    %v1474 = vld [vmem:[%s1471 + $0x10] sm:$0xff]
    %v1475 = vld [vmem:[%s1471 + $0x18] sm:$0xff]
    %v1476 = vld [vmem:[%s1471 + $0x20] sm:$0xff]
    %v1477 = vld [vmem:[%s1471 + $0x28] sm:$0xff]
    %v1478 = vld [vmem:[%s1471 + $0x30] sm:$0xff]
    %v1479 = vld [vmem:[%s1471 + $0x38] sm:$0xff]
    %v1480 = vld [vmem:[%s1471 + $0x40] sm:$0xff]
    %v1481 = vld [vmem:[%s1471 + $0x48] sm:$0xff]
    %v1482 = vld [vmem:[%s1471 + $0x50] sm:$0xff]
    %v1483 = vld [vmem:[%s1471 + $0x58] sm:$0xff]
    %v1484 = vld [vmem:[%s1471 + $0x60] sm:$0xff]
    %v1485 = vld [vmem:[%s1471 + $0x68] sm:$0xff]
    %v1486 = vld [vmem:[%s1471 + $0x70] sm:$0xff]
    %v1487 = vld [vmem:[%s1471 + $0x78] sm:$0xff]
    %v1488 = vsel %vm295, %v1446, 0.0
    %1489 = vadd.xlane.f32.xlu0 %v1488
    %v1490 = vpop.xlane.xlu0 %1489
    %v1491 = vsel %vm295, %v1447, 0.0
    %1492 = vadd.xlane.f32.xlu0 %v1491
    %v1493 = vpop.xlane.xlu0 %1492
    %v1494 = vsel %vm295, %v1448, 0.0
    %1495 = vadd.xlane.f32.xlu0 %v1494
    %v1496 = vpop.xlane.xlu0 %1495
    %v1497 = vsel %vm295, %v1449, 0.0
    %1498 = vadd.xlane.f32.xlu0 %v1497
    %v1499 = vpop.xlane.xlu0 %1498
    %v1500 = vmul.f32 %v1490, %v308
    %v1501 = vmul.f32 %v1493, %v308
    %v1502 = vmul.f32 %v1496, %v308
    %v1503 = vmul.f32 %v1499, %v308
    %v1504 = vmul.f32 %v1446, %v1446
    %v1505 = vmul.f32 %v1447, %v1447
    %v1506 = vmul.f32 %v1448, %v1448
    %v1507 = vmul.f32 %v1449, %v1449
    %v1508 = vsel %vm295, %v1504, 0.0
    %1509 = vadd.xlane.f32.xlu0 %v1508
    %v1510 = vpop.xlane.xlu0 %1509
    %v1511 = vsel %vm295, %v1505, 0.0
    %1512 = vadd.xlane.f32.xlu0 %v1511
    %v1513 = vpop.xlane.xlu0 %1512
    %v1514 = vsel %vm295, %v1506, 0.0
    %1515 = vadd.xlane.f32.xlu0 %v1514
    %v1516 = vpop.xlane.xlu0 %1515
    %v1517 = vsel %vm295, %v1507, 0.0
    %1518 = vadd.xlane.f32.xlu0 %v1517
    %v1519 = vpop.xlane.xlu0 %1518
    %v1520 = vmul.f32 %v1510, %v308
    %v1521 = vmul.f32 %v1513, %v308
    %v1522 = vmul.f32 %v1516, %v308
    %v1523 = vmul.f32 %v1519, %v308
    %v1524 = vmul.f32 %v1500, %v1500
    %v1525 = vmul.f32 %v1501, %v1501
    %v1526 = vmul.f32 %v1502, %v1502
    %v1527 = vmul.f32 %v1503, %v1503
    %v1528 = vsub.f32 %v1520, %v1524
    %v1529 = vsub.f32 %v1521, %v1525
    %v1530 = vsub.f32 %v1522, %v1526
    %v1531 = vsub.f32 %v1523, %v1527
    %v1532 = vsub.f32 %v1446, %v1500
    %v1533 = vsub.f32 %v1447, %v1501
    %v1534 = vsub.f32 %v1448, %v1502
    %v1535 = vsub.f32 %v1449, %v1503
    %v1536 = vadd.f32 %v1528, 1e-05
    %v1537 = vadd.f32 %v1529, 1e-05
    %v1538 = vadd.f32 %v1530, 1e-05
    %v1539 = vadd.f32 %v1531, 1e-05
    %v1540 = vrsqrt.pop %v1536
    %v1541 = vrsqrt.pop %v1537
    %v1542 = vrsqrt.pop %v1538
    %v1543 = vrsqrt.pop %v1539
    %v1544 = vmul.f32 %v1532, %v1540
    %v1545 = vmul.f32 %v1533, %v1541
    %v1546 = vmul.f32 %v1534, %v1542
    %v1547 = vmul.f32 %v1535, %v1543
    %v1548 = vlaneseq
    %v1549 = vshrl.u32 %v1548, 7
    %v1550 = vsub.s32 0, %v1549
    %v1551 = vrot.slane %v1451, %v1550
    %v1552 = vmul.f32 %v1544, %v1551
    %v1553 = vmul.f32 %v1545, %v1551
    %v1554 = vmul.f32 %v1546, %v1551
    %v1555 = vmul.f32 %v1547, %v1551
    %v1556 = vlaneseq
    %v1557 = vshrl.u32 %v1556, 7
    %v1558 = vsub.s32 1, %v1557
    %v1559 = vrot.slane %v1451, %v1558
    %v1560 = vadd.f32 %v1552, %v1559
    %v1561 = vadd.f32 %v1553, %v1559
    %v1562 = vadd.f32 %v1554, %v1559
    %v1563 = vadd.f32 %v1555, %v1559
    %v1565 = vlaneseq
    %v1566 = vshrl.u32 %v1565, 7
    %v1567 = vsub.s32 0, %v1566
    %v1568 = vrot.slane %v1458, %v1567
    %v1571 = vsel %vm295, %v1560, 0
    %v1574 = vsel %vm295, %v1561, 0
    %v1577 = vsel %vm295, %v1562, 0
    %v1580 = vsel %vm295, %v1563, 0
    %1582 = vmatprep.subr.mxu0 0.0
    %1583 = vmatpush1.msra.mxu0 %v1453
    %1584 = vmatprep.subr.mxu0 0.0
    %1585 = vmatpush1.msra.mxu0 %v1454
    %1586 = vmatprep.subr.mxu0 0.0
    %1587 = vmatpush1.msra.mxu0 %v1455
    %1588 = vmatprep.subr.mxu0 0.0
    %1589 = vmatpush1.msra.mxu0 %v1456
    %1590 = vmatprep.subr.mxu0 0.0
    %1591 = vmatpush1.msra.mxu0 0.0
    %1592 = vmatprep.subr.mxu0 0.0
    %1593 = vmatpush1.msra.mxu0 0.0
    %1594 = vmatprep.subr.mxu0 0.0
    %1595 = vmatpush1.msra.mxu0 0.0
    %1596 = vmatprep.subr.mxu0 0.0
    %1597 = vmatpush1.msra.mxu0 0.0
    %1598 = vmatprep.subr.mxu0 0.0
    %1599 = vmatpush1.msra.mxu0 0.0
    %1600 = vmatprep.subr.mxu0 0.0
    %1601 = vmatpush1.msra.mxu0 0.0
    %1602 = vmatprep.subr.mxu0 0.0
    %1603 = vmatpush1.msra.mxu0 0.0
    %1604 = vmatprep.subr.mxu0 0.0
    %1605 = vmatpush1.msra.mxu0 0.0
    %1606 = vmatprep.subr.mxu0 0.0
    %1607 = vmatpush1.msra.mxu0 0.0
    %1608 = vmatprep.subr.mxu0 0.0
    %1609 = vmatpush1.msra.mxu0 0.0
    %1610 = vmatprep.subr.mxu0 0.0
    %1611 = vmatpush1.msra.mxu0 0.0
    %1612 = vmatprep.subr.mxu0 0.0
    %1613 = vmatpush1.msra.mxu0 0.0
    %1614 = vmatprep.subr.mxu0 0.0
    %1615 = vmatpush1.msra.mxu0 0.0
    %1616 = vmatprep.subr.mxu0 0.0
    %1617 = vmatpush1.msra.mxu0 0.0
    %1618 = vmatprep.subr.mxu0 0.0
    %1619 = vmatpush1.msra.mxu0 0.0
    %1620 = vmatprep.subr.mxu0 0.0
    %1621 = vmatpush1.msra.mxu0 0.0
    %1622 = vmatprep.subr.mxu0 0.0
    %1623 = vmatpush1.msra.mxu0 0.0
    %1624 = vmatprep.subr.mxu0 0.0
    %1625 = vmatpush1.msra.mxu0 0.0
    %1626 = vmatprep.subr.mxu0 0.0
    %1627 = vmatpush1.msra.mxu0 0.0
    %1628 = vmatprep.subr.mxu0 0.0
    %1629 = vmatpush1.msra.mxu0 0.0
    %1630 = vmatprep.subr.mxu0 0.0
    %1631 = vmatpush1.msra.mxu0 0.0
    %1632 = vmatprep.subr.mxu0 0.0
    %1633 = vmatpush1.msra.mxu0 0.0
    %1634 = vmatprep.subr.mxu0 0.0
    %1635 = vmatpush1.msra.mxu0 0.0
    %1636 = vmatprep.subr.mxu0 0.0
    %1637 = vmatpush1.msra.mxu0 0.0
    %1638 = vmatprep.subr.mxu0 0.0
    %1639 = vmatpush1.msra.mxu0 0.0
    %1640 = vmatprep.subr.mxu0 0.0
    %1641 = vmatpush1.msra.mxu0 0.0
    %1642 = vmatprep.subr.mxu0 0.0
    %1643 = vmatpush1.msra.mxu0 0.0
    %1644 = vmatprep.subr.mxu0 0.0
    %1645 = vmatpush1.msra.mxu0 0.0
    %1646 = vmatprep.mubr.f32.mxu0 0.0
    %1647 = vmatmul.mubr.f32.gmra.mrb[0].mxu0 %v1571
    %v1648 = vpop.f32.mrb[0].mxu0
    %v1649 = vadd.f32 %v1568, %v1648
    %v1650 = vpop.f32.mrb[0].mxu0
    %1651 = vmatprep.mubr.f32.mxu0 0.0
    %1652 = vmatmul.mubr.f32.gmra.mrb[0].mxu0 %v1574
    %v1653 = vpop.f32.mrb[0].mxu0
    %v1654 = vadd.f32 %v1568, %v1653
    %v1655 = vpop.f32.mrb[0].mxu0
    %1656 = vmatprep.mubr.f32.mxu0 0.0
    %1657 = vmatmul.mubr.f32.gmra.mrb[0].mxu0 %v1577
    %v1658 = vpop.f32.mrb[0].mxu0
    %v1659 = vadd.f32 %v1568, %v1658
    %v1660 = vpop.f32.mrb[0].mxu0
    %1661 = vmatprep.mubr.f32.mxu0 0.0
    %1662 = vmatmul.mubr.f32.gmra.mrb[0].mxu0 %v1580
    %v1663 = vpop.f32.mrb[0].mxu0
    %v1664 = vadd.f32 %v1568, %v1663
    %v1665 = vpop.f32.mrb[0].mxu0
    %1666 = vdwg.mxu0
    %1671 = vrot.lane.b32.xlu0 %v1649, 96
    %v1672 = vpop.permute.xlu0 %1671
    %1673 = vrot.lane.b32.xlu0 %v1654, 96
    %v1674 = vpop.permute.xlu0 %1673
    %1675 = vrot.lane.b32.xlu0 %v1659, 96
    %v1676 = vpop.permute.xlu0 %1675
    %1677 = vrot.lane.b32.xlu0 %v1664, 96
    %v1678 = vpop.permute.xlu0 %1677
    %v1679 = vsel %vm488, %v1649, 0
    %v1681 = vsel %vm488, %v1654, 0
    %v1683 = vsel %vm488, %v1659, 0
    %v1685 = vsel %vm488, %v1664, 0
    %v1687 = vsel %vm488, %v1672, 0
    %v1689 = vsel %vm488, %v1674, 0
    %v1691 = vsel %vm488, %v1676, 0
    %v1693 = vsel %vm488, %v1678, 0
    %1695 = vmatprep.subr.mxu0 0.0
    %1696 = vmatpush1.xpose.msra.mxu0 %v1687
    %1697 = vmatprep.subr.mxu0 0.0
    %1698 = vmatpush1.xpose.msra.mxu0 %v1689
    %1699 = vmatprep.subr.mxu0 0.0
    %1700 = vmatpush1.xpose.msra.mxu0 %v1691
    %1701 = vmatprep.subr.mxu0 0.0
    %1702 = vmatpush1.xpose.msra.mxu0 %v1693
    %1703 = vmatprep.subr.mxu0 0.0
    %1704 = vmatpush1.xpose.msra.mxu0 0.0
    %1705 = vmatprep.subr.mxu0 0.0
    %1706 = vmatpush1.xpose.msra.mxu0 0.0
    %1707 = vmatprep.subr.mxu0 0.0
    %1708 = vmatpush1.xpose.msra.mxu0 0.0
    %1709 = vmatprep.subr.mxu0 0.0
    %1710 = vmatpush1.xpose.msra.mxu0 0.0
    %1711 = vmatprep.subr.mxu0 0.0
    %1712 = vmatpush1.xpose.msra.mxu0 0.0
    %1713 = vmatprep.subr.mxu0 0.0
    %1714 = vmatpush1.xpose.msra.mxu0 0.0
    %1715 = vmatprep.subr.mxu0 0.0
    %1716 = vmatpush1.xpose.msra.mxu0 0.0
    %1717 = vmatprep.subr.mxu0 0.0
    %1718 = vmatpush1.xpose.msra.mxu0 0.0
    %1719 = vmatprep.subr.mxu0 0.0
    %1720 = vmatpush1.xpose.msra.mxu0 0.0
    %1721 = vmatprep.subr.mxu0 0.0
    %1722 = vmatpush1.xpose.msra.mxu0 0.0
    %1723 = vmatprep.subr.mxu0 0.0
    %1724 = vmatpush1.xpose.msra.mxu0 0.0
    %1725 = vmatprep.subr.mxu0 0.0
    %1726 = vmatpush1.xpose.msra.mxu0 0.0
    %1727 = vmatprep.subr.mxu0 0.0
    %1728 = vmatpush1.xpose.msra.mxu0 0.0
    %1729 = vmatprep.subr.mxu0 0.0
    %1730 = vmatpush1.xpose.msra.mxu0 0.0
    %1731 = vmatprep.subr.mxu0 0.0
    %1732 = vmatpush1.xpose.msra.mxu0 0.0
    %1733 = vmatprep.subr.mxu0 0.0
    %1734 = vmatpush1.xpose.msra.mxu0 0.0
    %1735 = vmatprep.subr.mxu0 0.0
    %1736 = vmatpush1.xpose.msra.mxu0 0.0
    %1737 = vmatprep.subr.mxu0 0.0
    %1738 = vmatpush1.xpose.msra.mxu0 0.0
    %1739 = vmatprep.subr.mxu0 0.0
    %1740 = vmatpush1.xpose.msra.mxu0 0.0
    %1741 = vmatprep.subr.mxu0 0.0
    %1742 = vmatpush1.xpose.msra.mxu0 0.0
    %1743 = vmatprep.subr.mxu0 0.0
    %1744 = vmatpush1.xpose.msra.mxu0 0.0
    %1745 = vmatprep.subr.mxu0 0.0
    %1746 = vmatpush1.xpose.msra.mxu0 0.0
    %1747 = vmatprep.subr.mxu0 0.0
    %1748 = vmatpush1.xpose.msra.mxu0 0.0
    %1749 = vmatprep.subr.mxu0 0.0
    %1750 = vmatpush1.xpose.msra.mxu0 0.0
    %1751 = vmatprep.subr.mxu0 0.0
    %1752 = vmatpush1.xpose.msra.mxu0 0.0
    %1753 = vmatprep.subr.mxu0 0.0
    %1754 = vmatpush1.xpose.msra.mxu0 0.0
    %1755 = vmatprep.subr.mxu0 0.0
    %1756 = vmatpush1.xpose.msra.mxu0 0.0
    %1757 = vmatprep.subr.mxu0 0.0
    %1758 = vmatpush1.xpose.msra.mxu0 0.0
    %1759 = vmatprep.mubr.f32.mxu0 0.0
    %1760 = vmatmul.mubr.f32.gmra.mrb[0].mxu0 %v1679
    %v1761 = vpop.f32.mrb[0].mxu0
    %v1762 = vadd.f32 %v260, %v1761
    %v1763 = vpop.f32.mrb[0].mxu0
    %1764 = vmatprep.mubr.f32.mxu0 0.0
    %1765 = vmatmul.mubr.f32.gmra.mrb[0].mxu0 %v1681
    %v1766 = vpop.f32.mrb[0].mxu0
    %v1767 = vadd.f32 %v261, %v1766
    %v1768 = vpop.f32.mrb[0].mxu0
    %1769 = vmatprep.mubr.f32.mxu0 0.0
    %1770 = vmatmul.mubr.f32.gmra.mrb[0].mxu0 %v1683
    %v1771 = vpop.f32.mrb[0].mxu0
    %v1772 = vadd.f32 %v262, %v1771
    %v1773 = vpop.f32.mrb[0].mxu0
    %1774 = vmatprep.mubr.f32.mxu0 0.0
    %1775 = vmatmul.mubr.f32.gmra.mrb[0].mxu0 %v1685
    %v1776 = vpop.f32.mrb[0].mxu0
    %v1777 = vadd.f32 %v263, %v1776
    %v1778 = vpop.f32.mrb[0].mxu0
    %1779 = vdwg.mxu0
    %v1780 = vsel %vm295, %v1762, -inf
    %1781 = vmax.xlane.f32.xlu0 %v1780
    %v1782 = vpop.xlane.xlu0 %1781
    %v1783 = vsel %vm295, %v1767, -inf
    %1784 = vmax.xlane.f32.xlu0 %v1783
    %v1785 = vpop.xlane.xlu0 %1784
    %v1786 = vsel %vm295, %v1772, -inf
    %1787 = vmax.xlane.f32.xlu0 %v1786
    %v1788 = vpop.xlane.xlu0 %1787
    %v1789 = vsel %vm295, %v1777, -inf
    %1790 = vmax.xlane.f32.xlu0 %v1789
    %v1791 = vpop.xlane.xlu0 %1790
    %v1792 = vsub.f32 %v1762, %v1782
    %v1793 = vsub.f32 %v1767, %v1785
    %v1794 = vsub.f32 %v1772, %v1788
    %v1795 = vsub.f32 %v1777, %v1791
    %v1796 = vmul.f32 %v1792, 1.442695
    %v1797 = vpow.pop %v1796
    %v1798 = vmul.f32 %v1793, 1.442695
    %v1799 = vpow.pop %v1798
    %v1800 = vmul.f32 %v1794, 1.442695
    %v1801 = vpow.pop %v1800
    %v1802 = vmul.f32 %v1795, 1.442695
    %v1803 = vpow.pop %v1802
    %v1804 = vsel %vm295, %v1797, 0.0
    %1805 = vadd.xlane.f32.xlu0 %v1804
    %v1806 = vpop.xlane.xlu0 %1805
    %v1807 = vsel %vm295, %v1799, 0.0
    %1808 = vadd.xlane.f32.xlu0 %v1807
    %v1809 = vpop.xlane.xlu0 %1808
    %v1810 = vsel %vm295, %v1801, 0.0
    %1811 = vadd.xlane.f32.xlu0 %v1810
    %v1812 = vpop.xlane.xlu0 %1811
    %v1813 = vsel %vm295, %v1803, 0.0
    %1814 = vadd.xlane.f32.xlu0 %v1813
    %v1815 = vpop.xlane.xlu0 %1814
    %v1816 = vrcp.pop %v1806
    %v1817 = vrcp.pop %v1809
    %v1818 = vrcp.pop %v1812
    %v1819 = vrcp.pop %v1815
    %v1820 = vmul.f32 %v1797, %v1816
    %v1821 = vmul.f32 %v1799, %v1817
    %v1822 = vmul.f32 %v1801, %v1818
    %v1823 = vmul.f32 %v1803, %v1819
    %1824 = vrot.lane.b32.xlu0 %v1649, 64
    %v1825 = vpop.permute.xlu0 %1824
    %1826 = vrot.lane.b32.xlu0 %v1654, 64
    %v1827 = vpop.permute.xlu0 %1826
    %1828 = vrot.lane.b32.xlu0 %v1659, 64
    %v1829 = vpop.permute.xlu0 %1828
    %1830 = vrot.lane.b32.xlu0 %v1664, 64
    %v1831 = vpop.permute.xlu0 %1830
    %v1837 = vsel %vm295, %v1820, 0
    %v1840 = vsel %vm295, %v1821, 0
    %v1843 = vsel %vm295, %v1822, 0
    %v1846 = vsel %vm295, %v1823, 0
    %1848 = vmatprep.subr.mxu0 0.0
    %1849 = vmatpush1.msra.mxu0 %v1825
    %1850 = vmatprep.subr.mxu0 0.0
    %1851 = vmatpush1.msra.mxu0 %v1827
    %1852 = vmatprep.subr.mxu0 0.0
    %1853 = vmatpush1.msra.mxu0 %v1829
    %1854 = vmatprep.subr.mxu0 0.0
    %1855 = vmatpush1.msra.mxu0 %v1831
    %1856 = vmatprep.subr.mxu0 0.0
    %1857 = vmatpush1.msra.mxu0 0.0
    %1858 = vmatprep.subr.mxu0 0.0
    %1859 = vmatpush1.msra.mxu0 0.0
    %1860 = vmatprep.subr.mxu0 0.0
    %1861 = vmatpush1.msra.mxu0 0.0
    %1862 = vmatprep.subr.mxu0 0.0
    %1863 = vmatpush1.msra.mxu0 0.0
    %1864 = vmatprep.subr.mxu0 0.0
    %1865 = vmatpush1.msra.mxu0 0.0
    %1866 = vmatprep.subr.mxu0 0.0
    %1867 = vmatpush1.msra.mxu0 0.0
    %1868 = vmatprep.subr.mxu0 0.0
    %1869 = vmatpush1.msra.mxu0 0.0
    %1870 = vmatprep.subr.mxu0 0.0
    %1871 = vmatpush1.msra.mxu0 0.0
    %1872 = vmatprep.subr.mxu0 0.0
    %1873 = vmatpush1.msra.mxu0 0.0
    %1874 = vmatprep.subr.mxu0 0.0
    %1875 = vmatpush1.msra.mxu0 0.0
    %1876 = vmatprep.subr.mxu0 0.0
    %1877 = vmatpush1.msra.mxu0 0.0
    %1878 = vmatprep.subr.mxu0 0.0
    %1879 = vmatpush1.msra.mxu0 0.0
    %1880 = vmatprep.subr.mxu0 0.0
    %1881 = vmatpush1.msra.mxu0 0.0
    %1882 = vmatprep.subr.mxu0 0.0
    %1883 = vmatpush1.msra.mxu0 0.0
    %1884 = vmatprep.subr.mxu0 0.0
    %1885 = vmatpush1.msra.mxu0 0.0
    %1886 = vmatprep.subr.mxu0 0.0
    %1887 = vmatpush1.msra.mxu0 0.0
    %1888 = vmatprep.subr.mxu0 0.0
    %1889 = vmatpush1.msra.mxu0 0.0
    %1890 = vmatprep.subr.mxu0 0.0
    %1891 = vmatpush1.msra.mxu0 0.0
    %1892 = vmatprep.subr.mxu0 0.0
    %1893 = vmatpush1.msra.mxu0 0.0
    %1894 = vmatprep.subr.mxu0 0.0
    %1895 = vmatpush1.msra.mxu0 0.0
    %1896 = vmatprep.subr.mxu0 0.0
    %1897 = vmatpush1.msra.mxu0 0.0
    %1898 = vmatprep.subr.mxu0 0.0
    %1899 = vmatpush1.msra.mxu0 0.0
    %1900 = vmatprep.subr.mxu0 0.0
    %1901 = vmatpush1.msra.mxu0 0.0
    %1902 = vmatprep.subr.mxu0 0.0
    %1903 = vmatpush1.msra.mxu0 0.0
    %1904 = vmatprep.subr.mxu0 0.0
    %1905 = vmatpush1.msra.mxu0 0.0
    %1906 = vmatprep.subr.mxu0 0.0
    %1907 = vmatpush1.msra.mxu0 0.0
    %1908 = vmatprep.subr.mxu0 0.0
    %1909 = vmatpush1.msra.mxu0 0.0
    %1910 = vmatprep.subr.mxu0 0.0
    %1911 = vmatpush1.msra.mxu0 0.0
    %1912 = vmatprep.mubr.f32.mxu0 0.0
    %1913 = vmatmul.mubr.f32.gmra.mrb[0].mxu0 %v1837
    %v1914 = vpop.f32.mrb[0].mxu0
    %v1915 = vadd.f32 0.0, %v1914
    %v1916 = vpop.f32.mrb[0].mxu0
    %1917 = vmatprep.mubr.f32.mxu0 0.0
    %1918 = vmatmul.mubr.f32.gmra.mrb[0].mxu0 %v1840
    %v1919 = vpop.f32.mrb[0].mxu0
    %v1920 = vadd.f32 0.0, %v1919
    %v1921 = vpop.f32.mrb[0].mxu0
    %1922 = vmatprep.mubr.f32.mxu0 0.0
    %1923 = vmatmul.mubr.f32.gmra.mrb[0].mxu0 %v1843
    %v1924 = vpop.f32.mrb[0].mxu0
    %v1925 = vadd.f32 0.0, %v1924
    %v1926 = vpop.f32.mrb[0].mxu0
    %1927 = vmatprep.mubr.f32.mxu0 0.0
    %1928 = vmatmul.mubr.f32.gmra.mrb[0].mxu0 %v1846
    %v1929 = vpop.f32.mrb[0].mxu0
    %v1930 = vadd.f32 0.0, %v1929
    %v1931 = vpop.f32.mrb[0].mxu0
    %1932 = vdwg.mxu0
    %1933 = vrot.lane.b32.xlu0 %v1649, 112
    %v1934 = vpop.permute.xlu0 %1933
    %1935 = vrot.lane.b32.xlu0 %v1654, 112
    %v1936 = vpop.permute.xlu0 %1935
    %1937 = vrot.lane.b32.xlu0 %v1659, 112
    %v1938 = vpop.permute.xlu0 %1937
    %1939 = vrot.lane.b32.xlu0 %v1664, 112
    %v1940 = vpop.permute.xlu0 %1939
    %1941 = vrot.lane.b32.xlu0 %v1649, 80
    %v1942 = vpop.permute.xlu0 %1941
    %1943 = vrot.lane.b32.xlu0 %v1654, 80
    %v1944 = vpop.permute.xlu0 %1943
    %1945 = vrot.lane.b32.xlu0 %v1659, 80
    %v1946 = vpop.permute.xlu0 %1945
    %1947 = vrot.lane.b32.xlu0 %v1664, 80
    %v1948 = vpop.permute.xlu0 %1947
    %v1949 = vsel %vm488, %v1934, 0
    %v1951 = vsel %vm488, %v1936, 0
    %v1953 = vsel %vm488, %v1938, 0
    %v1955 = vsel %vm488, %v1940, 0
    %v1957 = vsel %vm488, %v1942, 0
    %v1959 = vsel %vm488, %v1944, 0
    %v1961 = vsel %vm488, %v1946, 0
    %v1963 = vsel %vm488, %v1948, 0
    %1965 = vmatprep.subr.mxu0 0.0
    %1966 = vmatpush1.xpose.msra.mxu0 %v1957
    %1967 = vmatprep.subr.mxu0 0.0
    %1968 = vmatpush1.xpose.msra.mxu0 %v1959
    %1969 = vmatprep.subr.mxu0 0.0
    %1970 = vmatpush1.xpose.msra.mxu0 %v1961
    %1971 = vmatprep.subr.mxu0 0.0
    %1972 = vmatpush1.xpose.msra.mxu0 %v1963
    %1973 = vmatprep.subr.mxu0 0.0
    %1974 = vmatpush1.xpose.msra.mxu0 0.0
    %1975 = vmatprep.subr.mxu0 0.0
    %1976 = vmatpush1.xpose.msra.mxu0 0.0
    %1977 = vmatprep.subr.mxu0 0.0
    %1978 = vmatpush1.xpose.msra.mxu0 0.0
    %1979 = vmatprep.subr.mxu0 0.0
    %1980 = vmatpush1.xpose.msra.mxu0 0.0
    %1981 = vmatprep.subr.mxu0 0.0
    %1982 = vmatpush1.xpose.msra.mxu0 0.0
    %1983 = vmatprep.subr.mxu0 0.0
    %1984 = vmatpush1.xpose.msra.mxu0 0.0
    %1985 = vmatprep.subr.mxu0 0.0
    %1986 = vmatpush1.xpose.msra.mxu0 0.0
    %1987 = vmatprep.subr.mxu0 0.0
    %1988 = vmatpush1.xpose.msra.mxu0 0.0
    %1989 = vmatprep.subr.mxu0 0.0
    %1990 = vmatpush1.xpose.msra.mxu0 0.0
    %1991 = vmatprep.subr.mxu0 0.0
    %1992 = vmatpush1.xpose.msra.mxu0 0.0
    %1993 = vmatprep.subr.mxu0 0.0
    %1994 = vmatpush1.xpose.msra.mxu0 0.0
    %1995 = vmatprep.subr.mxu0 0.0
    %1996 = vmatpush1.xpose.msra.mxu0 0.0
    %1997 = vmatprep.subr.mxu0 0.0
    %1998 = vmatpush1.xpose.msra.mxu0 0.0
    %1999 = vmatprep.subr.mxu0 0.0
    %2000 = vmatpush1.xpose.msra.mxu0 0.0
    %2001 = vmatprep.subr.mxu0 0.0
    %2002 = vmatpush1.xpose.msra.mxu0 0.0
    %2003 = vmatprep.subr.mxu0 0.0
    %2004 = vmatpush1.xpose.msra.mxu0 0.0
    %2005 = vmatprep.subr.mxu0 0.0
    %2006 = vmatpush1.xpose.msra.mxu0 0.0
    %2007 = vmatprep.subr.mxu0 0.0
    %2008 = vmatpush1.xpose.msra.mxu0 0.0
    %2009 = vmatprep.subr.mxu0 0.0
    %2010 = vmatpush1.xpose.msra.mxu0 0.0
    %2011 = vmatprep.subr.mxu0 0.0
    %2012 = vmatpush1.xpose.msra.mxu0 0.0
    %2013 = vmatprep.subr.mxu0 0.0
    %2014 = vmatpush1.xpose.msra.mxu0 0.0
    %2015 = vmatprep.subr.mxu0 0.0
    %2016 = vmatpush1.xpose.msra.mxu0 0.0
    %2017 = vmatprep.subr.mxu0 0.0
    %2018 = vmatpush1.xpose.msra.mxu0 0.0
    %2019 = vmatprep.subr.mxu0 0.0
    %2020 = vmatpush1.xpose.msra.mxu0 0.0
    %2021 = vmatprep.subr.mxu0 0.0
    %2022 = vmatpush1.xpose.msra.mxu0 0.0
    %2023 = vmatprep.subr.mxu0 0.0
    %2024 = vmatpush1.xpose.msra.mxu0 0.0
    %2025 = vmatprep.subr.mxu0 0.0
    %2026 = vmatpush1.xpose.msra.mxu0 0.0
    %2027 = vmatprep.subr.mxu0 0.0
    %2028 = vmatpush1.xpose.msra.mxu0 0.0
    %2029 = vmatprep.mubr.f32.mxu0 0.0
    %2030 = vmatmul.mubr.f32.gmra.mrb[0].mxu0 %v1949
    %v2031 = vpop.f32.mrb[0].mxu0
    %v2032 = vadd.f32 %v260, %v2031
    %v2033 = vpop.f32.mrb[0].mxu0
    %2034 = vmatprep.mubr.f32.mxu0 0.0
    %2035 = vmatmul.mubr.f32.gmra.mrb[0].mxu0 %v1951
    %v2036 = vpop.f32.mrb[0].mxu0
    %v2037 = vadd.f32 %v261, %v2036
    %v2038 = vpop.f32.mrb[0].mxu0
    %2039 = vmatprep.mubr.f32.mxu0 0.0
    %2040 = vmatmul.mubr.f32.gmra.mrb[0].mxu0 %v1953
    %v2041 = vpop.f32.mrb[0].mxu0
    %v2042 = vadd.f32 %v262, %v2041
    %v2043 = vpop.f32.mrb[0].mxu0
    %2044 = vmatprep.mubr.f32.mxu0 0.0
    %2045 = vmatmul.mubr.f32.gmra.mrb[0].mxu0 %v1955
    %v2046 = vpop.f32.mrb[0].mxu0
    %v2047 = vadd.f32 %v263, %v2046
    %v2048 = vpop.f32.mrb[0].mxu0
    %2049 = vdwg.mxu0
    %v2050 = vsel %vm295, %v2032, -inf
    %2051 = vmax.xlane.f32.xlu0 %v2050
    %v2052 = vpop.xlane.xlu0 %2051
    %v2053 = vsel %vm295, %v2037, -inf
    %2054 = vmax.xlane.f32.xlu0 %v2053
    %v2055 = vpop.xlane.xlu0 %2054
    %v2056 = vsel %vm295, %v2042, -inf
    %2057 = vmax.xlane.f32.xlu0 %v2056
    %v2058 = vpop.xlane.xlu0 %2057
    %v2059 = vsel %vm295, %v2047, -inf
    %2060 = vmax.xlane.f32.xlu0 %v2059
    %v2061 = vpop.xlane.xlu0 %2060
    %v2062 = vsub.f32 %v2032, %v2052
    %v2063 = vsub.f32 %v2037, %v2055
    %v2064 = vsub.f32 %v2042, %v2058
    %v2065 = vsub.f32 %v2047, %v2061
    %v2066 = vmul.f32 %v2062, 1.442695
    %v2067 = vpow.pop %v2066
    %v2068 = vmul.f32 %v2063, 1.442695
    %v2069 = vpow.pop %v2068
    %v2070 = vmul.f32 %v2064, 1.442695
    %v2071 = vpow.pop %v2070
    %v2072 = vmul.f32 %v2065, 1.442695
    %v2073 = vpow.pop %v2072
    %v2074 = vsel %vm295, %v2067, 0.0
    %2075 = vadd.xlane.f32.xlu0 %v2074
    %v2076 = vpop.xlane.xlu0 %2075
    %v2077 = vsel %vm295, %v2069, 0.0
    %2078 = vadd.xlane.f32.xlu0 %v2077
    %v2079 = vpop.xlane.xlu0 %2078
    %v2080 = vsel %vm295, %v2071, 0.0
    %2081 = vadd.xlane.f32.xlu0 %v2080
    %v2082 = vpop.xlane.xlu0 %2081
    %v2083 = vsel %vm295, %v2073, 0.0
    %2084 = vadd.xlane.f32.xlu0 %v2083
    %v2085 = vpop.xlane.xlu0 %2084
    %v2086 = vrcp.pop %v2076
    %v2087 = vrcp.pop %v2079
    %v2088 = vrcp.pop %v2082
    %v2089 = vrcp.pop %v2085
    %v2090 = vmul.f32 %v2067, %v2086
    %v2091 = vmul.f32 %v2069, %v2087
    %v2092 = vmul.f32 %v2071, %v2088
    %v2093 = vmul.f32 %v2073, %v2089
    %2094 = vrot.lane.b32.xlu0 %v1649, 48
    %v2095 = vpop.permute.xlu0 %2094
    %2096 = vrot.lane.b32.xlu0 %v1654, 48
    %v2097 = vpop.permute.xlu0 %2096
    %2098 = vrot.lane.b32.xlu0 %v1659, 48
    %v2099 = vpop.permute.xlu0 %2098
    %2100 = vrot.lane.b32.xlu0 %v1664, 48
    %v2101 = vpop.permute.xlu0 %2100
    %v2107 = vsel %vm295, %v2090, 0
    %v2110 = vsel %vm295, %v2091, 0
    %v2113 = vsel %vm295, %v2092, 0
    %v2116 = vsel %vm295, %v2093, 0
    %2118 = vmatprep.subr.mxu0 0.0
    %2119 = vmatpush1.msra.mxu0 %v2095
    %2120 = vmatprep.subr.mxu0 0.0
    %2121 = vmatpush1.msra.mxu0 %v2097
    %2122 = vmatprep.subr.mxu0 0.0
    %2123 = vmatpush1.msra.mxu0 %v2099
    %2124 = vmatprep.subr.mxu0 0.0
    %2125 = vmatpush1.msra.mxu0 %v2101
    %2126 = vmatprep.subr.mxu0 0.0
    %2127 = vmatpush1.msra.mxu0 0.0
    %2128 = vmatprep.subr.mxu0 0.0
    %2129 = vmatpush1.msra.mxu0 0.0
    %2130 = vmatprep.subr.mxu0 0.0
    %2131 = vmatpush1.msra.mxu0 0.0
    %2132 = vmatprep.subr.mxu0 0.0
    %2133 = vmatpush1.msra.mxu0 0.0
    %2134 = vmatprep.subr.mxu0 0.0
    %2135 = vmatpush1.msra.mxu0 0.0
    %2136 = vmatprep.subr.mxu0 0.0
    %2137 = vmatpush1.msra.mxu0 0.0
    %2138 = vmatprep.subr.mxu0 0.0
    %2139 = vmatpush1.msra.mxu0 0.0
    %2140 = vmatprep.subr.mxu0 0.0
    %2141 = vmatpush1.msra.mxu0 0.0
    %2142 = vmatprep.subr.mxu0 0.0
    %2143 = vmatpush1.msra.mxu0 0.0
    %2144 = vmatprep.subr.mxu0 0.0
    %2145 = vmatpush1.msra.mxu0 0.0
    %2146 = vmatprep.subr.mxu0 0.0
    %2147 = vmatpush1.msra.mxu0 0.0
    %2148 = vmatprep.subr.mxu0 0.0
    %2149 = vmatpush1.msra.mxu0 0.0
    %2150 = vmatprep.subr.mxu0 0.0
    %2151 = vmatpush1.msra.mxu0 0.0
    %2152 = vmatprep.subr.mxu0 0.0
    %2153 = vmatpush1.msra.mxu0 0.0
    %2154 = vmatprep.subr.mxu0 0.0
    %2155 = vmatpush1.msra.mxu0 0.0
    %2156 = vmatprep.subr.mxu0 0.0
    %2157 = vmatpush1.msra.mxu0 0.0
    %2158 = vmatprep.subr.mxu0 0.0
    %2159 = vmatpush1.msra.mxu0 0.0
    %2160 = vmatprep.subr.mxu0 0.0
    %2161 = vmatpush1.msra.mxu0 0.0
    %2162 = vmatprep.subr.mxu0 0.0
    %2163 = vmatpush1.msra.mxu0 0.0
    %2164 = vmatprep.subr.mxu0 0.0
    %2165 = vmatpush1.msra.mxu0 0.0
    %2166 = vmatprep.subr.mxu0 0.0
    %2167 = vmatpush1.msra.mxu0 0.0
    %2168 = vmatprep.subr.mxu0 0.0
    %2169 = vmatpush1.msra.mxu0 0.0
    %2170 = vmatprep.subr.mxu0 0.0
    %2171 = vmatpush1.msra.mxu0 0.0
    %2172 = vmatprep.subr.mxu0 0.0
    %2173 = vmatpush1.msra.mxu0 0.0
    %2174 = vmatprep.subr.mxu0 0.0
    %2175 = vmatpush1.msra.mxu0 0.0
    %2176 = vmatprep.subr.mxu0 0.0
    %2177 = vmatpush1.msra.mxu0 0.0
    %2178 = vmatprep.subr.mxu0 0.0
    %2179 = vmatpush1.msra.mxu0 0.0
    %2180 = vmatprep.subr.mxu0 0.0
    %2181 = vmatpush1.msra.mxu0 0.0
    %2182 = vmatprep.mubr.f32.mxu0 0.0
    %2183 = vmatmul.mubr.f32.gmra.mrb[0].mxu0 %v2107
    %v2184 = vpop.f32.mrb[0].mxu0
    %v2185 = vadd.f32 0.0, %v2184
    %v2186 = vpop.f32.mrb[0].mxu0
    %2187 = vmatprep.mubr.f32.mxu0 0.0
    %2188 = vmatmul.mubr.f32.gmra.mrb[0].mxu0 %v2110
    %v2189 = vpop.f32.mrb[0].mxu0
    %v2190 = vadd.f32 0.0, %v2189
    %v2191 = vpop.f32.mrb[0].mxu0
    %2192 = vmatprep.mubr.f32.mxu0 0.0
    %2193 = vmatmul.mubr.f32.gmra.mrb[0].mxu0 %v2113
    %v2194 = vpop.f32.mrb[0].mxu0
    %v2195 = vadd.f32 0.0, %v2194
    %v2196 = vpop.f32.mrb[0].mxu0
    %2197 = vmatprep.mubr.f32.mxu0 0.0
    %2198 = vmatmul.mubr.f32.gmra.mrb[0].mxu0 %v2116
    %v2199 = vpop.f32.mrb[0].mxu0
    %v2200 = vadd.f32 0.0, %v2199
    %v2201 = vpop.f32.mrb[0].mxu0
    %2202 = vdwg.mxu0
    %2207 = vrot.lane.b32.xlu0 %v2185, 16
    %v2208 = vpop.permute.xlu0 %2207
    %2209 = vrot.lane.b32.xlu0 %v2190, 16
    %v2210 = vpop.permute.xlu0 %2209
    %2211 = vrot.lane.b32.xlu0 %v2195, 16
    %v2212 = vpop.permute.xlu0 %2211
    %2213 = vrot.lane.b32.xlu0 %v2200, 16
    %v2214 = vpop.permute.xlu0 %2213
    %v2219 = vsel %vm488, %v1915, %v2208
    %v2220 = vsel %vm488, %v1920, %v2210
    %v2221 = vsel %vm488, %v1925, %v2212
    %v2222 = vsel %vm488, %v1930, %v2214
    %v2224 = vsel %vm295, %v2219, 0
    %v2227 = vsel %vm295, %v2220, 0
    %v2230 = vsel %vm295, %v2221, 0
    %v2233 = vsel %vm295, %v2222, 0
    %2235 = vmatprep.subr.mxu0 0.0
    %2236 = vmatpush1.msra.mxu0 %v1460
    %2237 = vmatprep.subr.mxu0 0.0
    %2238 = vmatpush1.msra.mxu0 %v1461
    %2239 = vmatprep.subr.mxu0 0.0
    %2240 = vmatpush1.msra.mxu0 %v1462
    %2241 = vmatprep.subr.mxu0 0.0
    %2242 = vmatpush1.msra.mxu0 %v1463
    %2243 = vmatprep.subr.mxu0 0.0
    %2244 = vmatpush1.msra.mxu0 0.0
    %2245 = vmatprep.subr.mxu0 0.0
    %2246 = vmatpush1.msra.mxu0 0.0
    %2247 = vmatprep.subr.mxu0 0.0
    %2248 = vmatpush1.msra.mxu0 0.0
    %2249 = vmatprep.subr.mxu0 0.0
    %2250 = vmatpush1.msra.mxu0 0.0
    %2251 = vmatprep.subr.mxu0 0.0
    %2252 = vmatpush1.msra.mxu0 0.0
    %2253 = vmatprep.subr.mxu0 0.0
    %2254 = vmatpush1.msra.mxu0 0.0
    %2255 = vmatprep.subr.mxu0 0.0
    %2256 = vmatpush1.msra.mxu0 0.0
    %2257 = vmatprep.subr.mxu0 0.0
    %2258 = vmatpush1.msra.mxu0 0.0
    %2259 = vmatprep.subr.mxu0 0.0
    %2260 = vmatpush1.msra.mxu0 0.0
    %2261 = vmatprep.subr.mxu0 0.0
    %2262 = vmatpush1.msra.mxu0 0.0
    %2263 = vmatprep.subr.mxu0 0.0
    %2264 = vmatpush1.msra.mxu0 0.0
    %2265 = vmatprep.subr.mxu0 0.0
    %2266 = vmatpush1.msra.mxu0 0.0
    %2267 = vmatprep.subr.mxu0 0.0
    %2268 = vmatpush1.msra.mxu0 0.0
    %2269 = vmatprep.subr.mxu0 0.0
    %2270 = vmatpush1.msra.mxu0 0.0
    %2271 = vmatprep.subr.mxu0 0.0
    %2272 = vmatpush1.msra.mxu0 0.0
    %2273 = vmatprep.subr.mxu0 0.0
    %2274 = vmatpush1.msra.mxu0 0.0
    %2275 = vmatprep.subr.mxu0 0.0
    %2276 = vmatpush1.msra.mxu0 0.0
    %2277 = vmatprep.subr.mxu0 0.0
    %2278 = vmatpush1.msra.mxu0 0.0
    %2279 = vmatprep.subr.mxu0 0.0
    %2280 = vmatpush1.msra.mxu0 0.0
    %2281 = vmatprep.subr.mxu0 0.0
    %2282 = vmatpush1.msra.mxu0 0.0
    %2283 = vmatprep.subr.mxu0 0.0
    %2284 = vmatpush1.msra.mxu0 0.0
    %2285 = vmatprep.subr.mxu0 0.0
    %2286 = vmatpush1.msra.mxu0 0.0
    %2287 = vmatprep.subr.mxu0 0.0
    %2288 = vmatpush1.msra.mxu0 0.0
    %2289 = vmatprep.subr.mxu0 0.0
    %2290 = vmatpush1.msra.mxu0 0.0
    %2291 = vmatprep.subr.mxu0 0.0
    %2292 = vmatpush1.msra.mxu0 0.0
    %2293 = vmatprep.subr.mxu0 0.0
    %2294 = vmatpush1.msra.mxu0 0.0
    %2295 = vmatprep.subr.mxu0 0.0
    %2296 = vmatpush1.msra.mxu0 0.0
    %2297 = vmatprep.subr.mxu0 0.0
    %2298 = vmatpush1.msra.mxu0 0.0
    %2299 = vmatprep.mubr.f32.mxu0 0.0
    %2300 = vmatmul.mubr.f32.gmra.mrb[0].mxu0 %v2224
    %v2301 = vpop.f32.mrb[0].mxu0
    %v2302 = vadd.f32 0.0, %v2301
    %v2303 = vpop.f32.mrb[0].mxu0
    %2304 = vmatprep.mubr.f32.mxu0 0.0
    %2305 = vmatmul.mubr.f32.gmra.mrb[0].mxu0 %v2227
    %v2306 = vpop.f32.mrb[0].mxu0
    %v2307 = vadd.f32 0.0, %v2306
    %v2308 = vpop.f32.mrb[0].mxu0
    %2309 = vmatprep.mubr.f32.mxu0 0.0
    %2310 = vmatmul.mubr.f32.gmra.mrb[0].mxu0 %v2230
    %v2311 = vpop.f32.mrb[0].mxu0
    %v2312 = vadd.f32 0.0, %v2311
    %v2313 = vpop.f32.mrb[0].mxu0
    %2314 = vmatprep.mubr.f32.mxu0 0.0
    %2315 = vmatmul.mubr.f32.gmra.mrb[0].mxu0 %v2233
    %v2316 = vpop.f32.mrb[0].mxu0
    %v2317 = vadd.f32 0.0, %v2316
    %v2318 = vpop.f32.mrb[0].mxu0
    %2319 = vdwg.mxu0
    %v2320 = vadd.f32 %v1446, %v2302
    %v2321 = vadd.f32 %v1447, %v2307
    %v2322 = vadd.f32 %v1448, %v2312
    %v2323 = vadd.f32 %v1449, %v2317
    %v2324 = vlaneseq
    %v2325 = vshrl.u32 %v2324, 7
    %v2326 = vsub.s32 2, %v2325
    %v2327 = vrot.slane %v1451, %v2326
    %v2328 = vadd.f32 %v2320, %v2327
    %v2329 = vadd.f32 %v2321, %v2327
    %v2330 = vadd.f32 %v2322, %v2327
    %v2331 = vadd.f32 %v2323, %v2327
    %v2332 = vsel %vm295, %v2328, 0.0
    %2333 = vadd.xlane.f32.xlu0 %v2332
    %v2334 = vpop.xlane.xlu0 %2333
    %v2335 = vsel %vm295, %v2329, 0.0
    %2336 = vadd.xlane.f32.xlu0 %v2335
    %v2337 = vpop.xlane.xlu0 %2336
    %v2338 = vsel %vm295, %v2330, 0.0
    %2339 = vadd.xlane.f32.xlu0 %v2338
    %v2340 = vpop.xlane.xlu0 %2339
    %v2341 = vsel %vm295, %v2331, 0.0
    %2342 = vadd.xlane.f32.xlu0 %v2341
    %v2343 = vpop.xlane.xlu0 %2342
    %v2344 = vmul.f32 %v2334, %v308
    %v2345 = vmul.f32 %v2337, %v308
    %v2346 = vmul.f32 %v2340, %v308
    %v2347 = vmul.f32 %v2343, %v308
    %v2348 = vmul.f32 %v2328, %v2328
    %v2349 = vmul.f32 %v2329, %v2329
    %v2350 = vmul.f32 %v2330, %v2330
    %v2351 = vmul.f32 %v2331, %v2331
    %v2352 = vsel %vm295, %v2348, 0.0
    %2353 = vadd.xlane.f32.xlu0 %v2352
    %v2354 = vpop.xlane.xlu0 %2353
    %v2355 = vsel %vm295, %v2349, 0.0
    %2356 = vadd.xlane.f32.xlu0 %v2355
    %v2357 = vpop.xlane.xlu0 %2356
    %v2358 = vsel %vm295, %v2350, 0.0
    %2359 = vadd.xlane.f32.xlu0 %v2358
    %v2360 = vpop.xlane.xlu0 %2359
    %v2361 = vsel %vm295, %v2351, 0.0
    %2362 = vadd.xlane.f32.xlu0 %v2361
    %v2363 = vpop.xlane.xlu0 %2362
    %v2364 = vmul.f32 %v2354, %v308
    %v2365 = vmul.f32 %v2357, %v308
    %v2366 = vmul.f32 %v2360, %v308
    %v2367 = vmul.f32 %v2363, %v308
    %v2368 = vmul.f32 %v2344, %v2344
    %v2369 = vmul.f32 %v2345, %v2345
    %v2370 = vmul.f32 %v2346, %v2346
    %v2371 = vmul.f32 %v2347, %v2347
    %v2372 = vsub.f32 %v2364, %v2368
    %v2373 = vsub.f32 %v2365, %v2369
    %v2374 = vsub.f32 %v2366, %v2370
    %v2375 = vsub.f32 %v2367, %v2371
    %v2376 = vsub.f32 %v2328, %v2344
    %v2377 = vsub.f32 %v2329, %v2345
    %v2378 = vsub.f32 %v2330, %v2346
    %v2379 = vsub.f32 %v2331, %v2347
    %v2380 = vadd.f32 %v2372, 1e-05
    %v2381 = vadd.f32 %v2373, 1e-05
    %v2382 = vadd.f32 %v2374, 1e-05
    %v2383 = vadd.f32 %v2375, 1e-05
    %v2384 = vrsqrt.pop %v2380
    %v2385 = vrsqrt.pop %v2381
    %v2386 = vrsqrt.pop %v2382
    %v2387 = vrsqrt.pop %v2383
    %v2388 = vmul.f32 %v2376, %v2384
    %v2389 = vmul.f32 %v2377, %v2385
    %v2390 = vmul.f32 %v2378, %v2386
    %v2391 = vmul.f32 %v2379, %v2387
    %v2392 = vlaneseq
    %v2393 = vshrl.u32 %v2392, 7
    %v2394 = vsub.s32 3, %v2393
    %v2395 = vrot.slane %v1451, %v2394
    %v2396 = vmul.f32 %v2388, %v2395
    %v2397 = vmul.f32 %v2389, %v2395
    %v2398 = vmul.f32 %v2390, %v2395
    %v2399 = vmul.f32 %v2391, %v2395
    %v2400 = vlaneseq
    %v2401 = vshrl.u32 %v2400, 7
    %v2402 = vsub.s32 4, %v2401
    %v2403 = vrot.slane %v1451, %v2402
    %v2404 = vadd.f32 %v2396, %v2403
    %v2405 = vadd.f32 %v2397, %v2403
    %v2406 = vadd.f32 %v2398, %v2403
    %v2407 = vadd.f32 %v2399, %v2403
    %v2409 = vlaneseq
    %v2410 = vshrl.u32 %v2409, 7
    %v2411 = vsub.s32 0, %v2410
    %v2412 = vrot.slane %v1470, %v2411
    %v2415 = vsel %vm295, %v2404, 0
    %v2418 = vsel %vm295, %v2405, 0
    %v2421 = vsel %vm295, %v2406, 0
    %v2424 = vsel %vm295, %v2407, 0
    %2426 = vmatprep.subr.mxu0 0.0
    %2427 = vmatpush1.msra.mxu0 %v1465
    %2428 = vmatprep.subr.mxu0 0.0
    %2429 = vmatpush1.msra.mxu0 %v1466
    %2430 = vmatprep.subr.mxu0 0.0
    %2431 = vmatpush1.msra.mxu0 %v1467
    %2432 = vmatprep.subr.mxu0 0.0
    %2433 = vmatpush1.msra.mxu0 %v1468
    %2434 = vmatprep.subr.mxu0 0.0
    %2435 = vmatpush1.msra.mxu0 0.0
    %2436 = vmatprep.subr.mxu0 0.0
    %2437 = vmatpush1.msra.mxu0 0.0
    %2438 = vmatprep.subr.mxu0 0.0
    %2439 = vmatpush1.msra.mxu0 0.0
    %2440 = vmatprep.subr.mxu0 0.0
    %2441 = vmatpush1.msra.mxu0 0.0
    %2442 = vmatprep.subr.mxu0 0.0
    %2443 = vmatpush1.msra.mxu0 0.0
    %2444 = vmatprep.subr.mxu0 0.0
    %2445 = vmatpush1.msra.mxu0 0.0
    %2446 = vmatprep.subr.mxu0 0.0
    %2447 = vmatpush1.msra.mxu0 0.0
    %2448 = vmatprep.subr.mxu0 0.0
    %2449 = vmatpush1.msra.mxu0 0.0
    %2450 = vmatprep.subr.mxu0 0.0
    %2451 = vmatpush1.msra.mxu0 0.0
    %2452 = vmatprep.subr.mxu0 0.0
    %2453 = vmatpush1.msra.mxu0 0.0
    %2454 = vmatprep.subr.mxu0 0.0
    %2455 = vmatpush1.msra.mxu0 0.0
    %2456 = vmatprep.subr.mxu0 0.0
    %2457 = vmatpush1.msra.mxu0 0.0
    %2458 = vmatprep.subr.mxu0 0.0
    %2459 = vmatpush1.msra.mxu0 0.0
    %2460 = vmatprep.subr.mxu0 0.0
    %2461 = vmatpush1.msra.mxu0 0.0
    %2462 = vmatprep.subr.mxu0 0.0
    %2463 = vmatpush1.msra.mxu0 0.0
    %2464 = vmatprep.subr.mxu0 0.0
    %2465 = vmatpush1.msra.mxu0 0.0
    %2466 = vmatprep.subr.mxu0 0.0
    %2467 = vmatpush1.msra.mxu0 0.0
    %2468 = vmatprep.subr.mxu0 0.0
    %2469 = vmatpush1.msra.mxu0 0.0
    %2470 = vmatprep.subr.mxu0 0.0
    %2471 = vmatpush1.msra.mxu0 0.0
    %2472 = vmatprep.subr.mxu0 0.0
    %2473 = vmatpush1.msra.mxu0 0.0
    %2474 = vmatprep.subr.mxu0 0.0
    %2475 = vmatpush1.msra.mxu0 0.0
    %2476 = vmatprep.subr.mxu0 0.0
    %2477 = vmatpush1.msra.mxu0 0.0
    %2478 = vmatprep.subr.mxu0 0.0
    %2479 = vmatpush1.msra.mxu0 0.0
    %2480 = vmatprep.subr.mxu0 0.0
    %2481 = vmatpush1.msra.mxu0 0.0
    %2482 = vmatprep.subr.mxu0 0.0
    %2483 = vmatpush1.msra.mxu0 0.0
    %2484 = vmatprep.subr.mxu0 0.0
    %2485 = vmatpush1.msra.mxu0 0.0
    %2486 = vmatprep.subr.mxu0 0.0
    %2487 = vmatpush1.msra.mxu0 0.0
    %2488 = vmatprep.subr.mxu0 0.0
    %2489 = vmatpush1.msra.mxu0 0.0
    %2490 = vmatprep.mubr.f32.mxu0 0.0
    %2491 = vmatmul.mubr.f32.gmra.mrb[0].mxu0 %v2415
    %v2492 = vpop.f32.mrb[0].mxu0
    %v2493 = vadd.f32 %v2412, %v2492
    %v2494 = vpop.f32.mrb[0].mxu0
    %2495 = vmatprep.mubr.f32.mxu0 0.0
    %2496 = vmatmul.mubr.f32.gmra.mrb[0].mxu0 %v2418
    %v2497 = vpop.f32.mrb[0].mxu0
    %v2498 = vadd.f32 %v2412, %v2497
    %v2499 = vpop.f32.mrb[0].mxu0
    %2500 = vmatprep.mubr.f32.mxu0 0.0
    %2501 = vmatmul.mubr.f32.gmra.mrb[0].mxu0 %v2421
    %v2502 = vpop.f32.mrb[0].mxu0
    %v2503 = vadd.f32 %v2412, %v2502
    %v2504 = vpop.f32.mrb[0].mxu0
    %2505 = vmatprep.mubr.f32.mxu0 0.0
    %2506 = vmatmul.mubr.f32.gmra.mrb[0].mxu0 %v2424
    %v2507 = vpop.f32.mrb[0].mxu0
    %v2508 = vadd.f32 %v2412, %v2507
    %v2509 = vpop.f32.mrb[0].mxu0
    %2510 = vdwg.mxu0
    %v2511 = vmul.f32 %v2493, 1.702
    %v2512 = vmul.f32 %v2498, 1.702
    %v2513 = vmul.f32 %v2503, 1.702
    %v2514 = vmul.f32 %v2508, 1.702
    %v2515 = vxor.u32 %v2511, 2147483648
    %v2516 = vxor.u32 %v2512, 2147483648
    %v2517 = vxor.u32 %v2513, 2147483648
    %v2518 = vxor.u32 %v2514, 2147483648
    %v2519 = vmul.f32 %v2515, 1.442695
    %v2520 = vpow.pop %v2519
    %v2521 = vmul.f32 %v2516, 1.442695
    %v2522 = vpow.pop %v2521
    %v2523 = vmul.f32 %v2517, 1.442695
    %v2524 = vpow.pop %v2523
    %v2525 = vmul.f32 %v2518, 1.442695
    %v2526 = vpow.pop %v2525
    %v2527 = vadd.f32 %v2520, 1.0
    %v2528 = vadd.f32 %v2522, 1.0
    %v2529 = vadd.f32 %v2524, 1.0
    %v2530 = vadd.f32 %v2526, 1.0
    %v2531 = vrcp.pop %v2527
    %v2532 = vmul.f32 1.0, %v2531
    %v2533 = vrcp.pop %v2528
    %v2534 = vmul.f32 1.0, %v2533
    %v2535 = vrcp.pop %v2529
    %v2536 = vmul.f32 1.0, %v2535
    %v2537 = vrcp.pop %v2530
    %v2538 = vmul.f32 1.0, %v2537
    %v2539 = vmul.f32 %v2493, %v2532
    %v2540 = vmul.f32 %v2498, %v2534
    %v2541 = vmul.f32 %v2503, %v2536
    %v2542 = vmul.f32 %v2508, %v2538
    %2543 = vmatprep.subr.mxu0 0.0
    %2544 = vmatpush1.msra.mxu0 %v1472
    %2545 = vmatprep.subr.mxu0 0.0
    %2546 = vmatpush1.msra.mxu0 %v1473
    %2547 = vmatprep.subr.mxu0 0.0
    %2548 = vmatpush1.msra.mxu0 %v1474
    %2549 = vmatprep.subr.mxu0 0.0
    %2550 = vmatpush1.msra.mxu0 %v1475
    %2551 = vmatprep.subr.mxu0 0.0
    %2552 = vmatpush1.msra.mxu0 %v1476
    %2553 = vmatprep.subr.mxu0 0.0
    %2554 = vmatpush1.msra.mxu0 %v1477
    %2555 = vmatprep.subr.mxu0 0.0
    %2556 = vmatpush1.msra.mxu0 %v1478
    %2557 = vmatprep.subr.mxu0 0.0
    %2558 = vmatpush1.msra.mxu0 %v1479
    %2559 = vmatprep.subr.mxu0 0.0
    %2560 = vmatpush1.msra.mxu0 %v1480
    %2561 = vmatprep.subr.mxu0 0.0
    %2562 = vmatpush1.msra.mxu0 %v1481
    %2563 = vmatprep.subr.mxu0 0.0
    %2564 = vmatpush1.msra.mxu0 %v1482
    %2565 = vmatprep.subr.mxu0 0.0
    %2566 = vmatpush1.msra.mxu0 %v1483
    %2567 = vmatprep.subr.mxu0 0.0
    %2568 = vmatpush1.msra.mxu0 %v1484
    %2569 = vmatprep.subr.mxu0 0.0
    %2570 = vmatpush1.msra.mxu0 %v1485
    %2571 = vmatprep.subr.mxu0 0.0
    %2572 = vmatpush1.msra.mxu0 %v1486
    %2573 = vmatprep.subr.mxu0 0.0
    %2574 = vmatpush1.msra.mxu0 %v1487
    %2575 = vmatprep.subr.mxu0 0.0
    %2576 = vmatpush1.msra.mxu0 0.0
    %2577 = vmatprep.subr.mxu0 0.0
    %2578 = vmatpush1.msra.mxu0 0.0
    %2579 = vmatprep.subr.mxu0 0.0
    %2580 = vmatpush1.msra.mxu0 0.0
    %2581 = vmatprep.subr.mxu0 0.0
    %2582 = vmatpush1.msra.mxu0 0.0
    %2583 = vmatprep.subr.mxu0 0.0
    %2584 = vmatpush1.msra.mxu0 0.0
    %2585 = vmatprep.subr.mxu0 0.0
    %2586 = vmatpush1.msra.mxu0 0.0
    %2587 = vmatprep.subr.mxu0 0.0
    %2588 = vmatpush1.msra.mxu0 0.0
    %2589 = vmatprep.subr.mxu0 0.0
    %2590 = vmatpush1.msra.mxu0 0.0
    %2591 = vmatprep.subr.mxu0 0.0
    %2592 = vmatpush1.msra.mxu0 0.0
    %2593 = vmatprep.subr.mxu0 0.0
    %2594 = vmatpush1.msra.mxu0 0.0
    %2595 = vmatprep.subr.mxu0 0.0
    %2596 = vmatpush1.msra.mxu0 0.0
    %2597 = vmatprep.subr.mxu0 0.0
    %2598 = vmatpush1.msra.mxu0 0.0
    %2599 = vmatprep.subr.mxu0 0.0
    %2600 = vmatpush1.msra.mxu0 0.0
    %2601 = vmatprep.subr.mxu0 0.0
    %2602 = vmatpush1.msra.mxu0 0.0
    %2603 = vmatprep.subr.mxu0 0.0
    %2604 = vmatpush1.msra.mxu0 0.0
    %2605 = vmatprep.subr.mxu0 0.0
    %2606 = vmatpush1.msra.mxu0 0.0
    %2607 = vmatprep.mubr.f32.mxu0 0.0
    %2608 = vmatmul.mubr.f32.gmra.mrb[0].mxu0 %v2539
    %v2609 = vpop.f32.mrb[0].mxu0
    %v2610 = vadd.f32 0.0, %v2609
    %v2611 = vpop.f32.mrb[0].mxu0
    %2612 = vmatprep.mubr.f32.mxu0 0.0
    %2613 = vmatmul.mubr.f32.gmra.mrb[0].mxu0 %v2540
    %v2614 = vpop.f32.mrb[0].mxu0
    %v2615 = vadd.f32 0.0, %v2614
    %v2616 = vpop.f32.mrb[0].mxu0
    %2617 = vmatprep.mubr.f32.mxu0 0.0
    %2618 = vmatmul.mubr.f32.gmra.mrb[0].mxu0 %v2541
    %v2619 = vpop.f32.mrb[0].mxu0
    %v2620 = vadd.f32 0.0, %v2619
    %v2621 = vpop.f32.mrb[0].mxu0
    %2622 = vmatprep.mubr.f32.mxu0 0.0
    %2623 = vmatmul.mubr.f32.gmra.mrb[0].mxu0 %v2542
    %v2624 = vpop.f32.mrb[0].mxu0
    %v2625 = vadd.f32 0.0, %v2624
    %v2626 = vpop.f32.mrb[0].mxu0
    %2627 = vdwg.mxu0
    %v2628 = vadd.f32 %v2328, %v2610
    %v2629 = vadd.f32 %v2329, %v2615
    %v2630 = vadd.f32 %v2330, %v2620
    %v2631 = vadd.f32 %v2331, %v2625
    %v2632 = vlaneseq
    %v2633 = vshrl.u32 %v2632, 7
    %v2634 = vsub.s32 5, %v2633
    %v2635 = vrot.slane %v1451, %v2634
    %v2636 = vadd.f32 %v2628, %v2635
    %v2637 = vadd.f32 %v2629, %v2635
    %v2638 = vadd.f32 %v2630, %v2635
    %v2639 = vadd.f32 %v2631, %v2635
    %v2640 = vlaneseq
    %v2641 = vshrl.u32 %v2640, 7
    %v2642 = vlaneseq
    %v2643 = vand.u32 %v2642, 127
    %v2644 = vmul.u32 %v2641, 8
    %v2645 = vld [vmem:[%s7] sm:$0xf]
    %2646 = vset.pattern.permute.xlu0 0
    %2647 = vperm.xlu0 %2646, %v2645
    %v2648 = vpop.permute.xlu0 %2647
    %v2649 = vadd.s32 %v2644, %v2648
    %vm2650 = vcmp.eq.s32.totalorder %v2643, %v2649
    %v2651 = vsel %vm2650, 1, 0
    %v2652 = vcvt.s32.f32 %v2651
    %v2654 = vsel %vm295, %v2652, 0
    %2656 = vmatprep.subr.mxu0 0.0
    %2657 = vmatpush1.msra.mxu0 %v2636
    %2658 = vmatprep.subr.mxu0 0.0
    %2659 = vmatpush1.msra.mxu0 %v2637
    %2660 = vmatprep.subr.mxu0 0.0
    %2661 = vmatpush1.msra.mxu0 %v2638
    %2662 = vmatprep.subr.mxu0 0.0
    %2663 = vmatpush1.msra.mxu0 %v2639
    %2664 = vmatprep.subr.mxu0 0.0
    %2665 = vmatpush1.msra.mxu0 0.0
    %2666 = vmatprep.subr.mxu0 0.0
    %2667 = vmatpush1.msra.mxu0 0.0
    %2668 = vmatprep.subr.mxu0 0.0
    %2669 = vmatpush1.msra.mxu0 0.0
    %2670 = vmatprep.subr.mxu0 0.0
    %2671 = vmatpush1.msra.mxu0 0.0
    %2672 = vmatprep.subr.mxu0 0.0
    %2673 = vmatpush1.msra.mxu0 0.0
    %2674 = vmatprep.subr.mxu0 0.0
    %2675 = vmatpush1.msra.mxu0 0.0
    %2676 = vmatprep.subr.mxu0 0.0
    %2677 = vmatpush1.msra.mxu0 0.0
    %2678 = vmatprep.subr.mxu0 0.0
    %2679 = vmatpush1.msra.mxu0 0.0
    %2680 = vmatprep.subr.mxu0 0.0
    %2681 = vmatpush1.msra.mxu0 0.0
    %2682 = vmatprep.subr.mxu0 0.0
    %2683 = vmatpush1.msra.mxu0 0.0
    %2684 = vmatprep.subr.mxu0 0.0
    %2685 = vmatpush1.msra.mxu0 0.0
    %2686 = vmatprep.subr.mxu0 0.0
    %2687 = vmatpush1.msra.mxu0 0.0
    %2688 = vmatprep.subr.mxu0 0.0
    %2689 = vmatpush1.msra.mxu0 0.0
    %2690 = vmatprep.subr.mxu0 0.0
    %2691 = vmatpush1.msra.mxu0 0.0
    %2692 = vmatprep.subr.mxu0 0.0
    %2693 = vmatpush1.msra.mxu0 0.0
    %2694 = vmatprep.subr.mxu0 0.0
    %2695 = vmatpush1.msra.mxu0 0.0
    %2696 = vmatprep.subr.mxu0 0.0
    %2697 = vmatpush1.msra.mxu0 0.0
    %2698 = vmatprep.subr.mxu0 0.0
    %2699 = vmatpush1.msra.mxu0 0.0
    %2700 = vmatprep.subr.mxu0 0.0
    %2701 = vmatpush1.msra.mxu0 0.0
    %2702 = vmatprep.subr.mxu0 0.0
    %2703 = vmatpush1.msra.mxu0 0.0
    %2704 = vmatprep.subr.mxu0 0.0
    %2705 = vmatpush1.msra.mxu0 0.0
    %2706 = vmatprep.subr.mxu0 0.0
    %2707 = vmatpush1.msra.mxu0 0.0
    %2708 = vmatprep.subr.mxu0 0.0
    %2709 = vmatpush1.msra.mxu0 0.0
    %2710 = vmatprep.subr.mxu0 0.0
    %2711 = vmatpush1.msra.mxu0 0.0
    %2712 = vmatprep.subr.mxu0 0.0
    %2713 = vmatpush1.msra.mxu0 0.0
    %2714 = vmatprep.subr.mxu0 0.0
    %2715 = vmatpush1.msra.mxu0 0.0
    %2716 = vmatprep.subr.mxu0 0.0
    %2717 = vmatpush1.msra.mxu0 0.0
    %2718 = vmatprep.subr.mxu0 0.0
    %2719 = vmatpush1.msra.mxu0 0.0
    %2720 = vmatprep.mubr.f32.mxu0 0.0
    %2721 = vmatmul.mubr.f32.gmra.mrb[0].mxu0 %v2654
    %v2722 = vpop.f32.mrb[0].mxu0
    %v2723 = vadd.f32 0.0, %v2722
    %v2724 = vpop.f32.mrb[0].mxu0
    %2725 = vdwg.mxu0
    %v2726 = vld [vmem:[%s25] sm:$0x1]
    %v2727 = vld [vmem:[%s27] sm:$0x1]
    %vm2728 = vcmask 257024
    %v2729 = vsel %vm2728, %v2723, 0.0
    %2730 = vadd.xlane.f32.xlu0 %v2729
    %v2731 = vpop.xlane.xlu0 %2730
    %v2732 = vmul.f32 %v2731, %v308
    %v2733 = vmul.f32 %v2723, %v2723
    %v2734 = vsel %vm2728, %v2733, 0.0
    %2735 = vadd.xlane.f32.xlu0 %v2734
    %v2736 = vpop.xlane.xlu0 %2735
    %v2737 = vmul.f32 %v2736, %v308
    %v2738 = vmul.f32 %v2732, %v2732
    %v2739 = vsub.f32 %v2737, %v2738
    %v2740 = vsub.f32 %v2723, %v2732
    %v2741 = vadd.f32 %v2739, 1e-05
    %v2742 = vrsqrt.pop %v2741
    %v2743 = vmul.f32 %v2740, %v2742
    %v2745 = vlaneseq
    %v2746 = vshrl.u32 %v2745, 7
    %v2747 = vsub.s32 0, %v2746
    %v2748 = vrot.slane %v2726, %v2747
    %v2750 = vmul.f32 %v2743, %v2748
    %v2752 = vlaneseq
    %v2753 = vshrl.u32 %v2752, 7
    %v2754 = vsub.s32 0, %v2753
    %v2755 = vrot.slane %v2727, %v2754
    %v2757 = vadd.f32 %v2750, %v2755
    %v2758 = vld [vmem:[%s29] sm:$0xff]
    %v2759 = vld [vmem:[%s29 + $0x8] sm:$0xff]
    %v2760 = vld [vmem:[%s29 + $0x10] sm:$0xff]
    %v2761 = vld [vmem:[%s29 + $0x18] sm:$0xff]
    %v2763 = vsel %vm295, %v2757, 0
    %2765 = vmatprep.subr.mxu0 0.0
    %2766 = vmatpush1.msra.mxu0 %v2758
    %2767 = vmatprep.subr.mxu0 0.0
    %2768 = vmatpush1.msra.mxu0 %v2759
    %2769 = vmatprep.subr.mxu0 0.0
    %2770 = vmatpush1.msra.mxu0 %v2760
    %2771 = vmatprep.subr.mxu0 0.0
    %2772 = vmatpush1.msra.mxu0 %v2761
    %2773 = vmatprep.subr.mxu0 0.0
    %2774 = vmatpush1.msra.mxu0 0.0
    %2775 = vmatprep.subr.mxu0 0.0
    %2776 = vmatpush1.msra.mxu0 0.0
    %2777 = vmatprep.subr.mxu0 0.0
    %2778 = vmatpush1.msra.mxu0 0.0
    %2779 = vmatprep.subr.mxu0 0.0
    %2780 = vmatpush1.msra.mxu0 0.0
    %2781 = vmatprep.subr.mxu0 0.0
    %2782 = vmatpush1.msra.mxu0 0.0
    %2783 = vmatprep.subr.mxu0 0.0
    %2784 = vmatpush1.msra.mxu0 0.0
    %2785 = vmatprep.subr.mxu0 0.0
    %2786 = vmatpush1.msra.mxu0 0.0
    %2787 = vmatprep.subr.mxu0 0.0
    %2788 = vmatpush1.msra.mxu0 0.0
    %2789 = vmatprep.subr.mxu0 0.0
    %2790 = vmatpush1.msra.mxu0 0.0
    %2791 = vmatprep.subr.mxu0 0.0
    %2792 = vmatpush1.msra.mxu0 0.0
    %2793 = vmatprep.subr.mxu0 0.0
    %2794 = vmatpush1.msra.mxu0 0.0
    %2795 = vmatprep.subr.mxu0 0.0
    %2796 = vmatpush1.msra.mxu0 0.0
    %2797 = vmatprep.subr.mxu0 0.0
    %2798 = vmatpush1.msra.mxu0 0.0
    %2799 = vmatprep.subr.mxu0 0.0
    %2800 = vmatpush1.msra.mxu0 0.0
    %2801 = vmatprep.subr.mxu0 0.0
    %2802 = vmatpush1.msra.mxu0 0.0
    %2803 = vmatprep.subr.mxu0 0.0
    %2804 = vmatpush1.msra.mxu0 0.0
    %2805 = vmatprep.subr.mxu0 0.0
    %2806 = vmatpush1.msra.mxu0 0.0
    %2807 = vmatprep.subr.mxu0 0.0
    %2808 = vmatpush1.msra.mxu0 0.0
    %2809 = vmatprep.subr.mxu0 0.0
    %2810 = vmatpush1.msra.mxu0 0.0
    %2811 = vmatprep.subr.mxu0 0.0
    %2812 = vmatpush1.msra.mxu0 0.0
    %2813 = vmatprep.subr.mxu0 0.0
    %2814 = vmatpush1.msra.mxu0 0.0
    %2815 = vmatprep.subr.mxu0 0.0
    %2816 = vmatpush1.msra.mxu0 0.0
    %2817 = vmatprep.subr.mxu0 0.0
    %2818 = vmatpush1.msra.mxu0 0.0
    %2819 = vmatprep.subr.mxu0 0.0
    %2820 = vmatpush1.msra.mxu0 0.0
    %2821 = vmatprep.subr.mxu0 0.0
    %2822 = vmatpush1.msra.mxu0 0.0
    %2823 = vmatprep.subr.mxu0 0.0
    %2824 = vmatpush1.msra.mxu0 0.0
    %2825 = vmatprep.subr.mxu0 0.0
    %2826 = vmatpush1.msra.mxu0 0.0
    %2827 = vmatprep.subr.mxu0 0.0
    %2828 = vmatpush1.msra.mxu0 0.0
    %2829 = vmatprep.mubr.f32.mxu0 0.0
    %2830 = vmatmul.mubr.f32.gmra.mrb[0].mxu0 %v2763
    %v2831 = vpop.f32.mrb[0].mxu0
    %v2832 = vadd.f32 0.0, %v2831
    %v2833 = vpop.f32.mrb[0].mxu0
    %2834 = vdwg.mxu0
    %v2835 = vld [vmem:[%s31] sm:$0xff]
    %v2836 = vld [vmem:[%s31 + $0x8] sm:$0xff]
    %v2837 = vld [vmem:[%s33] sm:$0xff]
    %v2838 = vld [vmem:[%s33 + $0x8] sm:$0xff]
    %v2839 = vld [vmem:[%s33 + $0x10] sm:$0xff]
    %v2840 = vld [vmem:[%s33 + $0x18] sm:$0xff]
    %v2841 = vld [vmem:[%s33 + $0x20] sm:$0xff]
    %v2842 = vld [vmem:[%s33 + $0x28] sm:$0xff]
    %v2843 = vld [vmem:[%s33 + $0x30] sm:$0xff]
    %v2844 = vld [vmem:[%s33 + $0x38] sm:$0xff]
    %v2845 = vld [vmem:[%s33 + $0x40] sm:$0xff]
    %v2846 = vld [vmem:[%s33 + $0x48] sm:$0xff]
    %v2847 = vld [vmem:[%s33 + $0x50] sm:$0xff]
    %v2848 = vld [vmem:[%s33 + $0x58] sm:$0xff]
    %v2849 = vld [vmem:[%s33 + $0x60] sm:$0xff]
    %v2850 = vld [vmem:[%s33 + $0x68] sm:$0xff]
    %v2851 = vld [vmem:[%s33 + $0x70] sm:$0xff]
    %v2852 = vld [vmem:[%s33 + $0x78] sm:$0xff]
    %v2853 = vld [vmem:[%s33 + $0x80] sm:$0xff]
    %v2854 = vld [vmem:[%s33 + $0x88] sm:$0xff]
    %v2855 = vld [vmem:[%s33 + $0x90] sm:$0xff]
    %v2856 = vld [vmem:[%s33 + $0x98] sm:$0xff]
    %v2857 = vld [vmem:[%s33 + $0xa0] sm:$0xff]
    %v2858 = vld [vmem:[%s33 + $0xa8] sm:$0xff]
    %v2859 = vld [vmem:[%s33 + $0xb0] sm:$0xff]
    %v2860 = vld [vmem:[%s33 + $0xb8] sm:$0xff]
    %vm2861 = vcmask 523264
    %v2863 = vsel %vm2861, %v2836, 0
    %2865 = vmatprep.subr.mxu0 0.0
    %2866 = vmatpush1.msra.mxu0 %v2837
    %2867 = vmatprep.subr.mxu0 0.0
    %2868 = vmatpush1.msra.mxu0 %v2838
    %2869 = vmatprep.subr.mxu0 0.0
    %2870 = vmatpush1.msra.mxu0 %v2839
    %2871 = vmatprep.subr.mxu0 0.0
    %2872 = vmatpush1.msra.mxu0 %v2840
    %2873 = vmatprep.subr.mxu0 0.0
    %2874 = vmatpush1.msra.mxu0 %v2841
    %2875 = vmatprep.subr.mxu0 0.0
    %2876 = vmatpush1.msra.mxu0 %v2842
    %2877 = vmatprep.subr.mxu0 0.0
    %2878 = vmatpush1.msra.mxu0 %v2843
    %2879 = vmatprep.subr.mxu0 0.0
    %2880 = vmatpush1.msra.mxu0 %v2844
    %2881 = vmatprep.subr.mxu0 0.0
    %2882 = vmatpush1.msra.mxu0 %v2845
    %2883 = vmatprep.subr.mxu0 0.0
    %2884 = vmatpush1.msra.mxu0 %v2846
    %2885 = vmatprep.subr.mxu0 0.0
    %2886 = vmatpush1.msra.mxu0 %v2847
    %2887 = vmatprep.subr.mxu0 0.0
    %2888 = vmatpush1.msra.mxu0 %v2848
    %2889 = vmatprep.subr.mxu0 0.0
    %2890 = vmatpush1.msra.mxu0 %v2849
    %2891 = vmatprep.subr.mxu0 0.0
    %2892 = vmatpush1.msra.mxu0 %v2850
    %2893 = vmatprep.subr.mxu0 0.0
    %2894 = vmatpush1.msra.mxu0 %v2851
    %2895 = vmatprep.subr.mxu0 0.0
    %2896 = vmatpush1.msra.mxu0 %v2852
    %2897 = vmatprep.subr.mxu0 0.0
    %2898 = vmatpush1.msra.mxu0 %v2853
    %2899 = vmatprep.subr.mxu0 0.0
    %2900 = vmatpush1.msra.mxu0 %v2854
    %2901 = vmatprep.subr.mxu0 0.0
    %2902 = vmatpush1.msra.mxu0 %v2855
    %2903 = vmatprep.subr.mxu0 0.0
    %2904 = vmatpush1.msra.mxu0 %v2856
    %2905 = vmatprep.subr.mxu0 0.0
    %2906 = vmatpush1.msra.mxu0 %v2857
    %2907 = vmatprep.subr.mxu0 0.0
    %2908 = vmatpush1.msra.mxu0 %v2858
    %2909 = vmatprep.subr.mxu0 0.0
    %2910 = vmatpush1.msra.mxu0 %v2859
    %2911 = vmatprep.subr.mxu0 0.0
    %2912 = vmatpush1.msra.mxu0 %v2860
    %2913 = vmatprep.subr.mxu0 0.0
    %2914 = vmatpush1.msra.mxu0 0.0
    %2915 = vmatprep.subr.mxu0 0.0
    %2916 = vmatpush1.msra.mxu0 0.0
    %2917 = vmatprep.subr.mxu0 0.0
    %2918 = vmatpush1.msra.mxu0 0.0
    %2919 = vmatprep.subr.mxu0 0.0
    %2920 = vmatpush1.msra.mxu0 0.0
    %2921 = vmatprep.subr.mxu0 0.0
    %2922 = vmatpush1.msra.mxu0 0.0
    %2923 = vmatprep.subr.mxu0 0.0
    %2924 = vmatpush1.msra.mxu0 0.0
    %2925 = vmatprep.subr.mxu0 0.0
    %2926 = vmatpush1.msra.mxu0 0.0
    %2927 = vmatprep.subr.mxu0 0.0
    %2928 = vmatpush1.msra.mxu0 0.0
    %2929 = vmatprep.mubr.f32.mxu0 %v2863
    %2930 = vmatmul.mubr.f32.gmra.mrb[0].mxu0 %v2835
    %v2931 = vpop.f32.mrb[0].mxu0
    %v2932 = vadd.f32 0.0, %v2931
    %v2933 = vpop.f32.mrb[0].mxu0
    %2934 = vdwg.mxu0
    %v2935 = vld [vmem:[%s35] sm:$0xff]
    %v2936 = vld [vmem:[%s35 + $0x8] sm:$0x3]
    %v2937 = vld [vmem:[%s37] sm:$0xff]
    %v2938 = vld [vmem:[%s37 + $0x8] sm:$0x3]
    %v2939 = vld [vmem:[%s39] sm:$0x3f]
    %vm2940 = vcmask 48128
    %v2942 = vsel %vm2940, %v2937, 0
    %v2945 = vsel %vm2940, %v2938, 0
    %vm2947 = vcmask 1045504
    %v2949 = vsel %vm2947, %v2939, 0
    %2951 = vmatprep.subr.mxu0 0.0
    %2952 = vmatpush1.msra.mxu0 %v2949
    %2953 = vmatprep.subr.mxu0 0.0
    %2954 = vmatpush1.msra.mxu0 0.0
    %2955 = vmatprep.subr.mxu0 0.0
    %2956 = vmatpush1.msra.mxu0 0.0
    %2957 = vmatprep.subr.mxu0 0.0
    %2958 = vmatpush1.msra.mxu0 0.0
    %2959 = vmatprep.subr.mxu0 0.0
    %2960 = vmatpush1.msra.mxu0 0.0
    %2961 = vmatprep.subr.mxu0 0.0
    %2962 = vmatpush1.msra.mxu0 0.0
    %2963 = vmatprep.subr.mxu0 0.0
    %2964 = vmatpush1.msra.mxu0 0.0
    %2965 = vmatprep.subr.mxu0 0.0
    %2966 = vmatpush1.msra.mxu0 0.0
    %2967 = vmatprep.subr.mxu0 0.0
    %2968 = vmatpush1.msra.mxu0 0.0
    %2969 = vmatprep.subr.mxu0 0.0
    %2970 = vmatpush1.msra.mxu0 0.0
    %2971 = vmatprep.subr.mxu0 0.0
    %2972 = vmatpush1.msra.mxu0 0.0
    %2973 = vmatprep.subr.mxu0 0.0
    %2974 = vmatpush1.msra.mxu0 0.0
    %2975 = vmatprep.subr.mxu0 0.0
    %2976 = vmatpush1.msra.mxu0 0.0
    %2977 = vmatprep.subr.mxu0 0.0
    %2978 = vmatpush1.msra.mxu0 0.0
    %2979 = vmatprep.subr.mxu0 0.0
    %2980 = vmatpush1.msra.mxu0 0.0
    %2981 = vmatprep.subr.mxu0 0.0
    %2982 = vmatpush1.msra.mxu0 0.0
    %2983 = vmatprep.subr.mxu0 0.0
    %2984 = vmatpush1.msra.mxu0 0.0
    %2985 = vmatprep.subr.mxu0 0.0
    %2986 = vmatpush1.msra.mxu0 0.0
    %2987 = vmatprep.subr.mxu0 0.0
    %2988 = vmatpush1.msra.mxu0 0.0
    %2989 = vmatprep.subr.mxu0 0.0
    %2990 = vmatpush1.msra.mxu0 0.0
    %2991 = vmatprep.subr.mxu0 0.0
    %2992 = vmatpush1.msra.mxu0 0.0
    %2993 = vmatprep.subr.mxu0 0.0
    %2994 = vmatpush1.msra.mxu0 0.0
    %2995 = vmatprep.subr.mxu0 0.0
    %2996 = vmatpush1.msra.mxu0 0.0
    %2997 = vmatprep.subr.mxu0 0.0
    %2998 = vmatpush1.msra.mxu0 0.0
    %2999 = vmatprep.subr.mxu0 0.0
    %3000 = vmatpush1.msra.mxu0 0.0
    %3001 = vmatprep.subr.mxu0 0.0
    %3002 = vmatpush1.msra.mxu0 0.0
    %3003 = vmatprep.subr.mxu0 0.0
    %3004 = vmatpush1.msra.mxu0 0.0
    %3005 = vmatprep.subr.mxu0 0.0
    %3006 = vmatpush1.msra.mxu0 0.0
    %3007 = vmatprep.subr.mxu0 0.0
    %3008 = vmatpush1.msra.mxu0 0.0
    %3009 = vmatprep.subr.mxu0 0.0
    %3010 = vmatpush1.msra.mxu0 0.0
    %3011 = vmatprep.subr.mxu0 0.0
    %3012 = vmatpush1.msra.mxu0 0.0
    %3013 = vmatprep.subr.mxu0 0.0
    %3014 = vmatpush1.msra.mxu0 0.0
    %3015 = vmatprep.mubr.f32.mxu0 0.0
    %3016 = vmatmul.mubr.f32.gmra.mrb[0].mxu0 %v2942
    %v3017 = vpop.f32.mrb[0].mxu0
    %v3018 = vadd.f32 0.0, %v3017
    %v3019 = vpop.f32.mrb[0].mxu0
    %3020 = vmatprep.mubr.f32.mxu0 0.0
    %3021 = vmatmul.mubr.f32.gmra.mrb[0].mxu0 %v2945
    %v3022 = vpop.f32.mrb[0].mxu0
    %v3023 = vadd.f32 0.0, %v3022
    %v3024 = vpop.f32.mrb[0].mxu0
    %3025 = vdwg.mxu0
    %v3027 = vsel %vm158, %v2935, 0
    %v3030 = vsel %vm158, %v2936, 0
    %3032 = vmatprep.subr.mxu0 0.0
    %3033 = vmatpush1.msra.mxu0 %v2932
    %3034 = vmatprep.subr.mxu0 0.0
    %3035 = vmatpush1.msra.mxu0 0.0
    %3036 = vmatprep.subr.mxu0 0.0
    %3037 = vmatpush1.msra.mxu0 0.0
    %3038 = vmatprep.subr.mxu0 0.0
    %3039 = vmatpush1.msra.mxu0 0.0
    %3040 = vmatprep.subr.mxu0 0.0
    %3041 = vmatpush1.msra.mxu0 0.0
    %3042 = vmatprep.subr.mxu0 0.0
    %3043 = vmatpush1.msra.mxu0 0.0
    %3044 = vmatprep.subr.mxu0 0.0
    %3045 = vmatpush1.msra.mxu0 0.0
    %3046 = vmatprep.subr.mxu0 0.0
    %3047 = vmatpush1.msra.mxu0 0.0
    %3048 = vmatprep.subr.mxu0 0.0
    %3049 = vmatpush1.msra.mxu0 0.0
    %3050 = vmatprep.subr.mxu0 0.0
    %3051 = vmatpush1.msra.mxu0 0.0
    %3052 = vmatprep.subr.mxu0 0.0
    %3053 = vmatpush1.msra.mxu0 0.0
    %3054 = vmatprep.subr.mxu0 0.0
    %3055 = vmatpush1.msra.mxu0 0.0
    %3056 = vmatprep.subr.mxu0 0.0
    %3057 = vmatpush1.msra.mxu0 0.0
    %3058 = vmatprep.subr.mxu0 0.0
    %3059 = vmatpush1.msra.mxu0 0.0
    %3060 = vmatprep.subr.mxu0 0.0
    %3061 = vmatpush1.msra.mxu0 0.0
    %3062 = vmatprep.subr.mxu0 0.0
    %3063 = vmatpush1.msra.mxu0 0.0
    %3064 = vmatprep.subr.mxu0 0.0
    %3065 = vmatpush1.msra.mxu0 0.0
    %3066 = vmatprep.subr.mxu0 0.0
    %3067 = vmatpush1.msra.mxu0 0.0
    %3068 = vmatprep.subr.mxu0 0.0
    %3069 = vmatpush1.msra.mxu0 0.0
    %3070 = vmatprep.subr.mxu0 0.0
    %3071 = vmatpush1.msra.mxu0 0.0
    %3072 = vmatprep.subr.mxu0 0.0
    %3073 = vmatpush1.msra.mxu0 0.0
    %3074 = vmatprep.subr.mxu0 0.0
    %3075 = vmatpush1.msra.mxu0 0.0
    %3076 = vmatprep.subr.mxu0 0.0
    %3077 = vmatpush1.msra.mxu0 0.0
    %3078 = vmatprep.subr.mxu0 0.0
    %3079 = vmatpush1.msra.mxu0 0.0
    %3080 = vmatprep.subr.mxu0 0.0
    %3081 = vmatpush1.msra.mxu0 0.0
    %3082 = vmatprep.subr.mxu0 0.0
    %3083 = vmatpush1.msra.mxu0 0.0
    %3084 = vmatprep.subr.mxu0 0.0
    %3085 = vmatpush1.msra.mxu0 0.0
    %3086 = vmatprep.subr.mxu0 0.0
    %3087 = vmatpush1.msra.mxu0 0.0
    %3088 = vmatprep.subr.mxu0 0.0
    %3089 = vmatpush1.msra.mxu0 0.0
    %3090 = vmatprep.subr.mxu0 0.0
    %3091 = vmatpush1.msra.mxu0 0.0
    %3092 = vmatprep.subr.mxu0 0.0
    %3093 = vmatpush1.msra.mxu0 0.0
    %3094 = vmatprep.subr.mxu0 0.0
    %3095 = vmatpush1.msra.mxu0 0.0
    %3096 = vmatprep.mubr.f32.mxu0 0.0
    %3097 = vmatmul.mubr.f32.gmra.mrb[0].mxu0 %v3027
    %v3098 = vpop.f32.mrb[0].mxu0
    %v3099 = vadd.f32 %v3018, %v3098
    %v3100 = vpop.f32.mrb[0].mxu0
    %3101 = vmatprep.mubr.f32.mxu0 0.0
    %3102 = vmatmul.mubr.f32.gmra.mrb[0].mxu0 %v3030
    %v3103 = vpop.f32.mrb[0].mxu0
    %v3104 = vadd.f32 %v3023, %v3103
    %v3105 = vpop.f32.mrb[0].mxu0
    %3106 = vdwg.mxu0
    %v3107 = vld [vmem:[%s43] sm:$0x1]
    %v3108 = vld [vmem:[%s45] sm:$0x1]
    %v3109 = vsel %vm295, %v3099, 0.0
    %3110 = vadd.xlane.f32.xlu0 %v3109
    %v3111 = vpop.xlane.xlu0 %3110
    %vm3112 = vcmask 254976
    %v3113 = vsel %vm3112, %v3104, 0.0
    %3114 = vadd.xlane.f32.xlu0 %v3113
    %v3115 = vpop.xlane.xlu0 %3114
    %v3116 = vmul.f32 %v3111, %v308
    %v3117 = vmul.f32 %v3115, %v308
    %v3118 = vmul.f32 %v3099, %v3099
    %v3119 = vmul.f32 %v3104, %v3104
    %v3120 = vsel %vm295, %v3118, 0.0
    %3121 = vadd.xlane.f32.xlu0 %v3120
    %v3122 = vpop.xlane.xlu0 %3121
    %v3123 = vsel %vm3112, %v3119, 0.0
    %3124 = vadd.xlane.f32.xlu0 %v3123
    %v3125 = vpop.xlane.xlu0 %3124
    %v3126 = vmul.f32 %v3122, %v308
    %v3127 = vmul.f32 %v3125, %v308
    %v3128 = vmul.f32 %v3116, %v3116
    %v3129 = vmul.f32 %v3117, %v3117
    %v3130 = vsub.f32 %v3126, %v3128
    %v3131 = vsub.f32 %v3127, %v3129
    %v3132 = vsub.f32 %v3099, %v3116
    %v3133 = vsub.f32 %v3104, %v3117
    %v3134 = vadd.f32 %v3130, 1e-05
    %v3135 = vadd.f32 %v3131, 1e-05
    %v3136 = vrsqrt.pop %v3134
    %v3137 = vrsqrt.pop %v3135
    %v3138 = vmul.f32 %v3132, %v3136
    %v3139 = vmul.f32 %v3133, %v3137
    %v3141 = vlaneseq
    %v3142 = vshrl.u32 %v3141, 7
    %v3143 = vsub.s32 0, %v3142
    %v3144 = vrot.slane %v3107, %v3143
    %v3146 = vmul.f32 %v3138, %v3144
    %v3147 = vmul.f32 %v3139, %v3144
    %v3149 = vlaneseq
    %v3150 = vshrl.u32 %v3149, 7
    %v3151 = vsub.s32 0, %v3150
    %v3152 = vrot.slane %v3108, %v3151
    %v3154 = vadd.f32 %v3146, %v3152
    %v3155 = vadd.f32 %v3147, %v3152
    %v3156 = vld [vmem:[%s41] sm:$0xff]
    %v3157 = vld [vmem:[%s41 + $0x8] sm:$0x3]
    %v3158 = vld [vmem:[%s47] sm:$0x3f]
    %v3159 = vld [vmem:[%s49] sm:$0xff]
    %v3160 = vld [vmem:[%s49 + $0x8] sm:$0xff]
    %v3161 = vld [vmem:[%s49 + $0x10] sm:$0xff]
    %v3162 = vld [vmem:[%s49 + $0x18] sm:$0xff]
    %v3163 = vld [vmem:[%s51] sm:$0x1]
    %v3164 = vld [vmem:[%s53] sm:$0xff]
    %v3165 = vld [vmem:[%s53 + $0x8] sm:$0xff]
    %v3166 = vld [vmem:[%s53 + $0x10] sm:$0xff]
    %v3167 = vld [vmem:[%s53 + $0x18] sm:$0xff]
    %v3168 = vld [vmem:[%s55] sm:$0xff]
    %v3169 = vld [vmem:[%s55 + $0x8] sm:$0xff]
    %v3170 = vld [vmem:[%s55 + $0x10] sm:$0xff]
    %v3171 = vld [vmem:[%s55 + $0x18] sm:$0xff]
    %v3172 = vld [vmem:[%s57] sm:$0x1]
    %v3173 = vld [vmem:[%s59] sm:$0xff]
    %v3174 = vld [vmem:[%s59 + $0x8] sm:$0xff]
    %v3175 = vld [vmem:[%s59 + $0x10] sm:$0xff]
    %v3176 = vld [vmem:[%s59 + $0x18] sm:$0xff]
    %v3177 = vld [vmem:[%s59 + $0x20] sm:$0xff]
    %v3178 = vld [vmem:[%s59 + $0x28] sm:$0xff]
    %v3179 = vld [vmem:[%s59 + $0x30] sm:$0xff]
    %v3180 = vld [vmem:[%s59 + $0x38] sm:$0xff]
    %v3181 = vld [vmem:[%s59 + $0x40] sm:$0xff]
    %v3182 = vld [vmem:[%s59 + $0x48] sm:$0xff]
    %v3183 = vld [vmem:[%s59 + $0x50] sm:$0xff]
    %v3184 = vld [vmem:[%s59 + $0x58] sm:$0xff]
    %v3185 = vld [vmem:[%s59 + $0x60] sm:$0xff]
    %v3186 = vld [vmem:[%s59 + $0x68] sm:$0xff]
    %v3187 = vld [vmem:[%s59 + $0x70] sm:$0xff]
    %v3188 = vld [vmem:[%s59 + $0x78] sm:$0xff]
    %v3189 = vsel %vm295, %v3154, 0.0
    %3190 = vadd.xlane.f32.xlu0 %v3189
    %v3191 = vpop.xlane.xlu0 %3190
    %v3192 = vsel %vm3112, %v3155, 0.0
    %3193 = vadd.xlane.f32.xlu0 %v3192
    %v3194 = vpop.xlane.xlu0 %3193
    %v3195 = vmul.f32 %v3191, %v308
    %v3196 = vmul.f32 %v3194, %v308
    %v3197 = vmul.f32 %v3154, %v3154
    %v3198 = vmul.f32 %v3155, %v3155
    %v3199 = vsel %vm295, %v3197, 0.0
    %3200 = vadd.xlane.f32.xlu0 %v3199
    %v3201 = vpop.xlane.xlu0 %3200
    %v3202 = vsel %vm3112, %v3198, 0.0
    %3203 = vadd.xlane.f32.xlu0 %v3202
    %v3204 = vpop.xlane.xlu0 %3203
    %v3205 = vmul.f32 %v3201, %v308
    %v3206 = vmul.f32 %v3204, %v308
    %v3207 = vmul.f32 %v3195, %v3195
    %v3208 = vmul.f32 %v3196, %v3196
    %v3209 = vsub.f32 %v3205, %v3207
    %v3210 = vsub.f32 %v3206, %v3208
    %v3211 = vsub.f32 %v3154, %v3195
    %v3212 = vsub.f32 %v3155, %v3196
    %v3213 = vadd.f32 %v3209, 1e-05
    %v3214 = vadd.f32 %v3210, 1e-05
    %v3215 = vrsqrt.pop %v3213
    %v3216 = vrsqrt.pop %v3214
    %v3217 = vmul.f32 %v3211, %v3215
    %v3218 = vmul.f32 %v3212, %v3216
    %v3219 = vlaneseq
    %v3220 = vshrl.u32 %v3219, 7
    %v3221 = vsub.s32 0, %v3220
    %v3222 = vrot.slane %v3158, %v3221
    %v3223 = vmul.f32 %v3217, %v3222
    %v3224 = vmul.f32 %v3218, %v3222
    %v3225 = vlaneseq
    %v3226 = vshrl.u32 %v3225, 7
    %v3227 = vsub.s32 1, %v3226
    %v3228 = vrot.slane %v3158, %v3227
    %v3229 = vadd.f32 %v3223, %v3228
    %v3230 = vadd.f32 %v3224, %v3228
    %v3232 = vlaneseq
    %v3233 = vshrl.u32 %v3232, 7
    %v3234 = vsub.s32 0, %v3233
    %v3235 = vrot.slane %v3163, %v3234
    %v3238 = vsel %vm295, %v3229, 0
    %v3241 = vsel %vm295, %v3230, 0
    %3243 = vmatprep.subr.mxu0 0.0
    %3244 = vmatpush1.msra.mxu0 %v3159
    %3245 = vmatprep.subr.mxu0 0.0
    %3246 = vmatpush1.msra.mxu0 %v3160
    %3247 = vmatprep.subr.mxu0 0.0
    %3248 = vmatpush1.msra.mxu0 %v3161
    %3249 = vmatprep.subr.mxu0 0.0
    %3250 = vmatpush1.msra.mxu0 %v3162
    %3251 = vmatprep.subr.mxu0 0.0
    %3252 = vmatpush1.msra.mxu0 0.0
    %3253 = vmatprep.subr.mxu0 0.0
    %3254 = vmatpush1.msra.mxu0 0.0
    %3255 = vmatprep.subr.mxu0 0.0
    %3256 = vmatpush1.msra.mxu0 0.0
    %3257 = vmatprep.subr.mxu0 0.0
    %3258 = vmatpush1.msra.mxu0 0.0
    %3259 = vmatprep.subr.mxu0 0.0
    %3260 = vmatpush1.msra.mxu0 0.0
    %3261 = vmatprep.subr.mxu0 0.0
    %3262 = vmatpush1.msra.mxu0 0.0
    %3263 = vmatprep.subr.mxu0 0.0
    %3264 = vmatpush1.msra.mxu0 0.0
    %3265 = vmatprep.subr.mxu0 0.0
    %3266 = vmatpush1.msra.mxu0 0.0
    %3267 = vmatprep.subr.mxu0 0.0
    %3268 = vmatpush1.msra.mxu0 0.0
    %3269 = vmatprep.subr.mxu0 0.0
    %3270 = vmatpush1.msra.mxu0 0.0
    %3271 = vmatprep.subr.mxu0 0.0
    %3272 = vmatpush1.msra.mxu0 0.0
    %3273 = vmatprep.subr.mxu0 0.0
    %3274 = vmatpush1.msra.mxu0 0.0
    %3275 = vmatprep.subr.mxu0 0.0
    %3276 = vmatpush1.msra.mxu0 0.0
    %3277 = vmatprep.subr.mxu0 0.0
    %3278 = vmatpush1.msra.mxu0 0.0
    %3279 = vmatprep.subr.mxu0 0.0
    %3280 = vmatpush1.msra.mxu0 0.0
    %3281 = vmatprep.subr.mxu0 0.0
    %3282 = vmatpush1.msra.mxu0 0.0
    %3283 = vmatprep.subr.mxu0 0.0
    %3284 = vmatpush1.msra.mxu0 0.0
    %3285 = vmatprep.subr.mxu0 0.0
    %3286 = vmatpush1.msra.mxu0 0.0
    %3287 = vmatprep.subr.mxu0 0.0
    %3288 = vmatpush1.msra.mxu0 0.0
    %3289 = vmatprep.subr.mxu0 0.0
    %3290 = vmatpush1.msra.mxu0 0.0
    %3291 = vmatprep.subr.mxu0 0.0
    %3292 = vmatpush1.msra.mxu0 0.0
    %3293 = vmatprep.subr.mxu0 0.0
    %3294 = vmatpush1.msra.mxu0 0.0
    %3295 = vmatprep.subr.mxu0 0.0
    %3296 = vmatpush1.msra.mxu0 0.0
    %3297 = vmatprep.subr.mxu0 0.0
    %3298 = vmatpush1.msra.mxu0 0.0
    %3299 = vmatprep.subr.mxu0 0.0
    %3300 = vmatpush1.msra.mxu0 0.0
    %3301 = vmatprep.subr.mxu0 0.0
    %3302 = vmatpush1.msra.mxu0 0.0
    %3303 = vmatprep.subr.mxu0 0.0
    %3304 = vmatpush1.msra.mxu0 0.0
    %3305 = vmatprep.subr.mxu0 0.0
    %3306 = vmatpush1.msra.mxu0 0.0
    %3307 = vmatprep.mubr.f32.mxu0 0.0
    %3308 = vmatmul.mubr.f32.gmra.mrb[0].mxu0 %v3238
    %v3309 = vpop.f32.mrb[0].mxu0
    %v3310 = vadd.f32 %v3235, %v3309
    %v3311 = vpop.f32.mrb[0].mxu0
    %3312 = vmatprep.mubr.f32.mxu0 0.0
    %3313 = vmatmul.mubr.f32.gmra.mrb[0].mxu0 %v3241
    %v3314 = vpop.f32.mrb[0].mxu0
    %v3315 = vadd.f32 %v3235, %v3314
    %v3316 = vpop.f32.mrb[0].mxu0
    %3317 = vdwg.mxu0
    %3320 = vrot.lane.b32.xlu0 %v3310, 96
    %v3321 = vpop.permute.xlu0 %3320
    %3322 = vrot.lane.b32.xlu0 %v3315, 96
    %v3323 = vpop.permute.xlu0 %3322
    %v3324 = vsel %vm488, %v3310, 0
    %v3326 = vsel %vm488, %v3315, 0
    %v3328 = vsel %vm488, %v3321, 0
    %v3330 = vsel %vm488, %v3323, 0
    %3332 = vmatprep.subr.mxu0 0.0
    %3333 = vmatpush1.xpose.msra.mxu0 %v3328
    %3334 = vmatprep.subr.mxu0 0.0
    %3335 = vmatpush1.xpose.msra.mxu0 %v3330
    %3336 = vmatprep.subr.mxu0 0.0
    %3337 = vmatpush1.xpose.msra.mxu0 0.0
    %3338 = vmatprep.subr.mxu0 0.0
    %3339 = vmatpush1.xpose.msra.mxu0 0.0
    %3340 = vmatprep.subr.mxu0 0.0
    %3341 = vmatpush1.xpose.msra.mxu0 0.0
    %3342 = vmatprep.subr.mxu0 0.0
    %3343 = vmatpush1.xpose.msra.mxu0 0.0
    %3344 = vmatprep.subr.mxu0 0.0
    %3345 = vmatpush1.xpose.msra.mxu0 0.0
    %3346 = vmatprep.subr.mxu0 0.0
    %3347 = vmatpush1.xpose.msra.mxu0 0.0
    %3348 = vmatprep.subr.mxu0 0.0
    %3349 = vmatpush1.xpose.msra.mxu0 0.0
    %3350 = vmatprep.subr.mxu0 0.0
    %3351 = vmatpush1.xpose.msra.mxu0 0.0
    %3352 = vmatprep.subr.mxu0 0.0
    %3353 = vmatpush1.xpose.msra.mxu0 0.0
    %3354 = vmatprep.subr.mxu0 0.0
    %3355 = vmatpush1.xpose.msra.mxu0 0.0
    %3356 = vmatprep.subr.mxu0 0.0
    %3357 = vmatpush1.xpose.msra.mxu0 0.0
    %3358 = vmatprep.subr.mxu0 0.0
    %3359 = vmatpush1.xpose.msra.mxu0 0.0
    %3360 = vmatprep.subr.mxu0 0.0
    %3361 = vmatpush1.xpose.msra.mxu0 0.0
    %3362 = vmatprep.subr.mxu0 0.0
    %3363 = vmatpush1.xpose.msra.mxu0 0.0
    %3364 = vmatprep.subr.mxu0 0.0
    %3365 = vmatpush1.xpose.msra.mxu0 0.0
    %3366 = vmatprep.subr.mxu0 0.0
    %3367 = vmatpush1.xpose.msra.mxu0 0.0
    %3368 = vmatprep.subr.mxu0 0.0
    %3369 = vmatpush1.xpose.msra.mxu0 0.0
    %3370 = vmatprep.subr.mxu0 0.0
    %3371 = vmatpush1.xpose.msra.mxu0 0.0
    %3372 = vmatprep.subr.mxu0 0.0
    %3373 = vmatpush1.xpose.msra.mxu0 0.0
    %3374 = vmatprep.subr.mxu0 0.0
    %3375 = vmatpush1.xpose.msra.mxu0 0.0
    %3376 = vmatprep.subr.mxu0 0.0
    %3377 = vmatpush1.xpose.msra.mxu0 0.0
    %3378 = vmatprep.subr.mxu0 0.0
    %3379 = vmatpush1.xpose.msra.mxu0 0.0
    %3380 = vmatprep.subr.mxu0 0.0
    %3381 = vmatpush1.xpose.msra.mxu0 0.0
    %3382 = vmatprep.subr.mxu0 0.0
    %3383 = vmatpush1.xpose.msra.mxu0 0.0
    %3384 = vmatprep.subr.mxu0 0.0
    %3385 = vmatpush1.xpose.msra.mxu0 0.0
    %3386 = vmatprep.subr.mxu0 0.0
    %3387 = vmatpush1.xpose.msra.mxu0 0.0
    %3388 = vmatprep.subr.mxu0 0.0
    %3389 = vmatpush1.xpose.msra.mxu0 0.0
    %3390 = vmatprep.subr.mxu0 0.0
    %3391 = vmatpush1.xpose.msra.mxu0 0.0
    %3392 = vmatprep.subr.mxu0 0.0
    %3393 = vmatpush1.xpose.msra.mxu0 0.0
    %3394 = vmatprep.subr.mxu0 0.0
    %3395 = vmatpush1.xpose.msra.mxu0 0.0
    %3396 = vmatprep.mubr.f32.mxu0 0.0
    %3397 = vmatmul.mubr.f32.gmra.mrb[0].mxu0 %v3324
    %v3398 = vpop.f32.mrb[0].mxu0
    %v3399 = vadd.f32 %v3156, %v3398
    %v3400 = vpop.f32.mrb[0].mxu0
    %3401 = vmatprep.mubr.f32.mxu0 0.0
    %3402 = vmatmul.mubr.f32.gmra.mrb[0].mxu0 %v3326
    %v3403 = vpop.f32.mrb[0].mxu0
    %v3404 = vadd.f32 %v3157, %v3403
    %v3405 = vpop.f32.mrb[0].mxu0
    %3406 = vdwg.mxu0
    %vm3407 = vcmask 80896
    %v3408 = vsel %vm3407, %v3399, -inf
    %3409 = vmax.xlane.f32.xlu0 %v3408
    %v3410 = vpop.xlane.xlu0 %3409
    %vm3411 = vcmask 74752
    %v3412 = vsel %vm3411, %v3404, -inf
    %3413 = vmax.xlane.f32.xlu0 %v3412
    %v3414 = vpop.xlane.xlu0 %3413
    %v3415 = vsub.f32 %v3399, %v3410
    %v3416 = vsub.f32 %v3404, %v3414
    %v3417 = vmul.f32 %v3415, 1.442695
    %v3418 = vpow.pop %v3417
    %v3419 = vmul.f32 %v3416, 1.442695
    %v3420 = vpow.pop %v3419
    %v3421 = vsel %vm3407, %v3418, 0.0
    %3422 = vadd.xlane.f32.xlu0 %v3421
    %v3423 = vpop.xlane.xlu0 %3422
    %v3424 = vsel %vm3411, %v3420, 0.0
    %3425 = vadd.xlane.f32.xlu0 %v3424
    %v3426 = vpop.xlane.xlu0 %3425
    %v3427 = vrcp.pop %v3423
    %v3428 = vrcp.pop %v3426
    %v3429 = vmul.f32 %v3418, %v3427
    %v3430 = vmul.f32 %v3420, %v3428
    %3431 = vrot.lane.b32.xlu0 %v3310, 64
    %v3432 = vpop.permute.xlu0 %3431
    %3433 = vrot.lane.b32.xlu0 %v3315, 64
    %v3434 = vpop.permute.xlu0 %3433
    %v3437 = vsel %vm3407, %v3429, 0
    %v3440 = vsel %vm3407, %v3430, 0
    %vm3442 = vcmask 1041408
    %v3443 = vsel %vm3442, %v3434, 0
    %3445 = vmatprep.subr.mxu0 0.0
    %3446 = vmatpush1.msra.mxu0 %v3432
    %3447 = vmatprep.subr.mxu0 0.0
    %3448 = vmatpush1.msra.mxu0 %v3443
    %3449 = vmatprep.subr.mxu0 0.0
    %3450 = vmatpush1.msra.mxu0 0.0
    %3451 = vmatprep.subr.mxu0 0.0
    %3452 = vmatpush1.msra.mxu0 0.0
    %3453 = vmatprep.subr.mxu0 0.0
    %3454 = vmatpush1.msra.mxu0 0.0
    %3455 = vmatprep.subr.mxu0 0.0
    %3456 = vmatpush1.msra.mxu0 0.0
    %3457 = vmatprep.subr.mxu0 0.0
    %3458 = vmatpush1.msra.mxu0 0.0
    %3459 = vmatprep.subr.mxu0 0.0
    %3460 = vmatpush1.msra.mxu0 0.0
    %3461 = vmatprep.subr.mxu0 0.0
    %3462 = vmatpush1.msra.mxu0 0.0
    %3463 = vmatprep.subr.mxu0 0.0
    %3464 = vmatpush1.msra.mxu0 0.0
    %3465 = vmatprep.subr.mxu0 0.0
    %3466 = vmatpush1.msra.mxu0 0.0
    %3467 = vmatprep.subr.mxu0 0.0
    %3468 = vmatpush1.msra.mxu0 0.0
    %3469 = vmatprep.subr.mxu0 0.0
    %3470 = vmatpush1.msra.mxu0 0.0
    %3471 = vmatprep.subr.mxu0 0.0
    %3472 = vmatpush1.msra.mxu0 0.0
    %3473 = vmatprep.subr.mxu0 0.0
    %3474 = vmatpush1.msra.mxu0 0.0
    %3475 = vmatprep.subr.mxu0 0.0
    %3476 = vmatpush1.msra.mxu0 0.0
    %3477 = vmatprep.subr.mxu0 0.0
    %3478 = vmatpush1.msra.mxu0 0.0
    %3479 = vmatprep.subr.mxu0 0.0
    %3480 = vmatpush1.msra.mxu0 0.0
    %3481 = vmatprep.subr.mxu0 0.0
    %3482 = vmatpush1.msra.mxu0 0.0
    %3483 = vmatprep.subr.mxu0 0.0
    %3484 = vmatpush1.msra.mxu0 0.0
    %3485 = vmatprep.subr.mxu0 0.0
    %3486 = vmatpush1.msra.mxu0 0.0
    %3487 = vmatprep.subr.mxu0 0.0
    %3488 = vmatpush1.msra.mxu0 0.0
    %3489 = vmatprep.subr.mxu0 0.0
    %3490 = vmatpush1.msra.mxu0 0.0
    %3491 = vmatprep.subr.mxu0 0.0
    %3492 = vmatpush1.msra.mxu0 0.0
    %3493 = vmatprep.subr.mxu0 0.0
    %3494 = vmatpush1.msra.mxu0 0.0
    %3495 = vmatprep.subr.mxu0 0.0
    %3496 = vmatpush1.msra.mxu0 0.0
    %3497 = vmatprep.subr.mxu0 0.0
    %3498 = vmatpush1.msra.mxu0 0.0
    %3499 = vmatprep.subr.mxu0 0.0
    %3500 = vmatpush1.msra.mxu0 0.0
    %3501 = vmatprep.subr.mxu0 0.0
    %3502 = vmatpush1.msra.mxu0 0.0
    %3503 = vmatprep.subr.mxu0 0.0
    %3504 = vmatpush1.msra.mxu0 0.0
    %3505 = vmatprep.subr.mxu0 0.0
    %3506 = vmatpush1.msra.mxu0 0.0
    %3507 = vmatprep.subr.mxu0 0.0
    %3508 = vmatpush1.msra.mxu0 0.0
    %3509 = vmatprep.mubr.f32.mxu0 0.0
    %3510 = vmatmul.mubr.f32.gmra.mrb[0].mxu0 %v3437
    %v3511 = vpop.f32.mrb[0].mxu0
    %v3512 = vadd.f32 0.0, %v3511
    %v3513 = vpop.f32.mrb[0].mxu0
    %3514 = vmatprep.mubr.f32.mxu0 0.0
    %3515 = vmatmul.mubr.f32.gmra.mrb[0].mxu0 %v3440
    %v3516 = vpop.f32.mrb[0].mxu0
    %v3517 = vadd.f32 0.0, %v3516
    %v3518 = vpop.f32.mrb[0].mxu0
    %3519 = vdwg.mxu0
    %3520 = vrot.lane.b32.xlu0 %v3310, 112
    %v3521 = vpop.permute.xlu0 %3520
    %3522 = vrot.lane.b32.xlu0 %v3315, 112
    %v3523 = vpop.permute.xlu0 %3522
    %3524 = vrot.lane.b32.xlu0 %v3310, 80
    %v3525 = vpop.permute.xlu0 %3524
    %3526 = vrot.lane.b32.xlu0 %v3315, 80
    %v3527 = vpop.permute.xlu0 %3526
    %v3528 = vsel %vm488, %v3521, 0
    %v3530 = vsel %vm488, %v3523, 0
    %v3532 = vsel %vm488, %v3525, 0
    %v3534 = vsel %vm488, %v3527, 0
    %3536 = vmatprep.subr.mxu0 0.0
    %3537 = vmatpush1.xpose.msra.mxu0 %v3532
    %3538 = vmatprep.subr.mxu0 0.0
    %3539 = vmatpush1.xpose.msra.mxu0 %v3534
    %3540 = vmatprep.subr.mxu0 0.0
    %3541 = vmatpush1.xpose.msra.mxu0 0.0
    %3542 = vmatprep.subr.mxu0 0.0
    %3543 = vmatpush1.xpose.msra.mxu0 0.0
    %3544 = vmatprep.subr.mxu0 0.0
    %3545 = vmatpush1.xpose.msra.mxu0 0.0
    %3546 = vmatprep.subr.mxu0 0.0
    %3547 = vmatpush1.xpose.msra.mxu0 0.0
    %3548 = vmatprep.subr.mxu0 0.0
    %3549 = vmatpush1.xpose.msra.mxu0 0.0
    %3550 = vmatprep.subr.mxu0 0.0
    %3551 = vmatpush1.xpose.msra.mxu0 0.0
    %3552 = vmatprep.subr.mxu0 0.0
    %3553 = vmatpush1.xpose.msra.mxu0 0.0
    %3554 = vmatprep.subr.mxu0 0.0
    %3555 = vmatpush1.xpose.msra.mxu0 0.0
    %3556 = vmatprep.subr.mxu0 0.0
    %3557 = vmatpush1.xpose.msra.mxu0 0.0
    %3558 = vmatprep.subr.mxu0 0.0
    %3559 = vmatpush1.xpose.msra.mxu0 0.0
    %3560 = vmatprep.subr.mxu0 0.0
    %3561 = vmatpush1.xpose.msra.mxu0 0.0
    %3562 = vmatprep.subr.mxu0 0.0
    %3563 = vmatpush1.xpose.msra.mxu0 0.0
    %3564 = vmatprep.subr.mxu0 0.0
    %3565 = vmatpush1.xpose.msra.mxu0 0.0
    %3566 = vmatprep.subr.mxu0 0.0
    %3567 = vmatpush1.xpose.msra.mxu0 0.0
    %3568 = vmatprep.subr.mxu0 0.0
    %3569 = vmatpush1.xpose.msra.mxu0 0.0
    %3570 = vmatprep.subr.mxu0 0.0
    %3571 = vmatpush1.xpose.msra.mxu0 0.0
    %3572 = vmatprep.subr.mxu0 0.0
    %3573 = vmatpush1.xpose.msra.mxu0 0.0
    %3574 = vmatprep.subr.mxu0 0.0
    %3575 = vmatpush1.xpose.msra.mxu0 0.0
    %3576 = vmatprep.subr.mxu0 0.0
    %3577 = vmatpush1.xpose.msra.mxu0 0.0
    %3578 = vmatprep.subr.mxu0 0.0
    %3579 = vmatpush1.xpose.msra.mxu0 0.0
    %3580 = vmatprep.subr.mxu0 0.0
    %3581 = vmatpush1.xpose.msra.mxu0 0.0
    %3582 = vmatprep.subr.mxu0 0.0
    %3583 = vmatpush1.xpose.msra.mxu0 0.0
    %3584 = vmatprep.subr.mxu0 0.0
    %3585 = vmatpush1.xpose.msra.mxu0 0.0
    %3586 = vmatprep.subr.mxu0 0.0
    %3587 = vmatpush1.xpose.msra.mxu0 0.0
    %3588 = vmatprep.subr.mxu0 0.0
    %3589 = vmatpush1.xpose.msra.mxu0 0.0
    %3590 = vmatprep.subr.mxu0 0.0
    %3591 = vmatpush1.xpose.msra.mxu0 0.0
    %3592 = vmatprep.subr.mxu0 0.0
    %3593 = vmatpush1.xpose.msra.mxu0 0.0
    %3594 = vmatprep.subr.mxu0 0.0
    %3595 = vmatpush1.xpose.msra.mxu0 0.0
    %3596 = vmatprep.subr.mxu0 0.0
    %3597 = vmatpush1.xpose.msra.mxu0 0.0
    %3598 = vmatprep.subr.mxu0 0.0
    %3599 = vmatpush1.xpose.msra.mxu0 0.0
    %3600 = vmatprep.mubr.f32.mxu0 0.0
    %3601 = vmatmul.mubr.f32.gmra.mrb[0].mxu0 %v3528
    %v3602 = vpop.f32.mrb[0].mxu0
    %v3603 = vadd.f32 %v3156, %v3602
    %v3604 = vpop.f32.mrb[0].mxu0
    %3605 = vmatprep.mubr.f32.mxu0 0.0
    %3606 = vmatmul.mubr.f32.gmra.mrb[0].mxu0 %v3530
    %v3607 = vpop.f32.mrb[0].mxu0
    %v3608 = vadd.f32 %v3157, %v3607
    %v3609 = vpop.f32.mrb[0].mxu0
    %3610 = vdwg.mxu0
    %v3611 = vsel %vm3407, %v3603, -inf
    %3612 = vmax.xlane.f32.xlu0 %v3611
    %v3613 = vpop.xlane.xlu0 %3612
    %v3614 = vsel %vm3411, %v3608, -inf
    %3615 = vmax.xlane.f32.xlu0 %v3614
    %v3616 = vpop.xlane.xlu0 %3615
    %v3617 = vsub.f32 %v3603, %v3613
    %v3618 = vsub.f32 %v3608, %v3616
    %v3619 = vmul.f32 %v3617, 1.442695
    %v3620 = vpow.pop %v3619
    %v3621 = vmul.f32 %v3618, 1.442695
    %v3622 = vpow.pop %v3621
    %v3623 = vsel %vm3407, %v3620, 0.0
    %3624 = vadd.xlane.f32.xlu0 %v3623
    %v3625 = vpop.xlane.xlu0 %3624
    %v3626 = vsel %vm3411, %v3622, 0.0
    %3627 = vadd.xlane.f32.xlu0 %v3626
    %v3628 = vpop.xlane.xlu0 %3627
    %v3629 = vrcp.pop %v3625
    %v3630 = vrcp.pop %v3628
    %v3631 = vmul.f32 %v3620, %v3629
    %v3632 = vmul.f32 %v3622, %v3630
    %3633 = vrot.lane.b32.xlu0 %v3310, 48
    %v3634 = vpop.permute.xlu0 %3633
    %3635 = vrot.lane.b32.xlu0 %v3315, 48
    %v3636 = vpop.permute.xlu0 %3635
    %v3639 = vsel %vm3407, %v3631, 0
    %v3642 = vsel %vm3407, %v3632, 0
    %v3644 = vsel %vm3442, %v3636, 0
    %3646 = vmatprep.subr.mxu0 0.0
    %3647 = vmatpush1.msra.mxu0 %v3634
    %3648 = vmatprep.subr.mxu0 0.0
    %3649 = vmatpush1.msra.mxu0 %v3644
    %3650 = vmatprep.subr.mxu0 0.0
    %3651 = vmatpush1.msra.mxu0 0.0
    %3652 = vmatprep.subr.mxu0 0.0
    %3653 = vmatpush1.msra.mxu0 0.0
    %3654 = vmatprep.subr.mxu0 0.0
    %3655 = vmatpush1.msra.mxu0 0.0
    %3656 = vmatprep.subr.mxu0 0.0
    %3657 = vmatpush1.msra.mxu0 0.0
    %3658 = vmatprep.subr.mxu0 0.0
    %3659 = vmatpush1.msra.mxu0 0.0
    %3660 = vmatprep.subr.mxu0 0.0
    %3661 = vmatpush1.msra.mxu0 0.0
    %3662 = vmatprep.subr.mxu0 0.0
    %3663 = vmatpush1.msra.mxu0 0.0
    %3664 = vmatprep.subr.mxu0 0.0
    %3665 = vmatpush1.msra.mxu0 0.0
    %3666 = vmatprep.subr.mxu0 0.0
    %3667 = vmatpush1.msra.mxu0 0.0
    %3668 = vmatprep.subr.mxu0 0.0
    %3669 = vmatpush1.msra.mxu0 0.0
    %3670 = vmatprep.subr.mxu0 0.0
    %3671 = vmatpush1.msra.mxu0 0.0
    %3672 = vmatprep.subr.mxu0 0.0
    %3673 = vmatpush1.msra.mxu0 0.0
    %3674 = vmatprep.subr.mxu0 0.0
    %3675 = vmatpush1.msra.mxu0 0.0
    %3676 = vmatprep.subr.mxu0 0.0
    %3677 = vmatpush1.msra.mxu0 0.0
    %3678 = vmatprep.subr.mxu0 0.0
    %3679 = vmatpush1.msra.mxu0 0.0
    %3680 = vmatprep.subr.mxu0 0.0
    %3681 = vmatpush1.msra.mxu0 0.0
    %3682 = vmatprep.subr.mxu0 0.0
    %3683 = vmatpush1.msra.mxu0 0.0
    %3684 = vmatprep.subr.mxu0 0.0
    %3685 = vmatpush1.msra.mxu0 0.0
    %3686 = vmatprep.subr.mxu0 0.0
    %3687 = vmatpush1.msra.mxu0 0.0
    %3688 = vmatprep.subr.mxu0 0.0
    %3689 = vmatpush1.msra.mxu0 0.0
    %3690 = vmatprep.subr.mxu0 0.0
    %3691 = vmatpush1.msra.mxu0 0.0
    %3692 = vmatprep.subr.mxu0 0.0
    %3693 = vmatpush1.msra.mxu0 0.0
    %3694 = vmatprep.subr.mxu0 0.0
    %3695 = vmatpush1.msra.mxu0 0.0
    %3696 = vmatprep.subr.mxu0 0.0
    %3697 = vmatpush1.msra.mxu0 0.0
    %3698 = vmatprep.subr.mxu0 0.0
    %3699 = vmatpush1.msra.mxu0 0.0
    %3700 = vmatprep.subr.mxu0 0.0
    %3701 = vmatpush1.msra.mxu0 0.0
    %3702 = vmatprep.subr.mxu0 0.0
    %3703 = vmatpush1.msra.mxu0 0.0
    %3704 = vmatprep.subr.mxu0 0.0
    %3705 = vmatpush1.msra.mxu0 0.0
    %3706 = vmatprep.subr.mxu0 0.0
    %3707 = vmatpush1.msra.mxu0 0.0
    %3708 = vmatprep.subr.mxu0 0.0
    %3709 = vmatpush1.msra.mxu0 0.0
    %3710 = vmatprep.mubr.f32.mxu0 0.0
    %3711 = vmatmul.mubr.f32.gmra.mrb[0].mxu0 %v3639
    %v3712 = vpop.f32.mrb[0].mxu0
    %v3713 = vadd.f32 0.0, %v3712
    %v3714 = vpop.f32.mrb[0].mxu0
    %3715 = vmatprep.mubr.f32.mxu0 0.0
    %3716 = vmatmul.mubr.f32.gmra.mrb[0].mxu0 %v3642
    %v3717 = vpop.f32.mrb[0].mxu0
    %v3718 = vadd.f32 0.0, %v3717
    %v3719 = vpop.f32.mrb[0].mxu0
    %3720 = vdwg.mxu0
    %3723 = vrot.lane.b32.xlu0 %v3713, 16
    %v3724 = vpop.permute.xlu0 %3723
    %3725 = vrot.lane.b32.xlu0 %v3718, 16
    %v3726 = vpop.permute.xlu0 %3725
    %v3729 = vsel %vm488, %v3512, %v3724
    %v3730 = vsel %vm488, %v3517, %v3726
    %v3732 = vsel %vm295, %v3729, 0
    %v3735 = vsel %vm295, %v3730, 0
    %3737 = vmatprep.subr.mxu0 0.0
    %3738 = vmatpush1.msra.mxu0 %v3164
    %3739 = vmatprep.subr.mxu0 0.0
    %3740 = vmatpush1.msra.mxu0 %v3165
    %3741 = vmatprep.subr.mxu0 0.0
    %3742 = vmatpush1.msra.mxu0 %v3166
    %3743 = vmatprep.subr.mxu0 0.0
    %3744 = vmatpush1.msra.mxu0 %v3167
    %3745 = vmatprep.subr.mxu0 0.0
    %3746 = vmatpush1.msra.mxu0 0.0
    %3747 = vmatprep.subr.mxu0 0.0
    %3748 = vmatpush1.msra.mxu0 0.0
    %3749 = vmatprep.subr.mxu0 0.0
    %3750 = vmatpush1.msra.mxu0 0.0
    %3751 = vmatprep.subr.mxu0 0.0
    %3752 = vmatpush1.msra.mxu0 0.0
    %3753 = vmatprep.subr.mxu0 0.0
    %3754 = vmatpush1.msra.mxu0 0.0
    %3755 = vmatprep.subr.mxu0 0.0
    %3756 = vmatpush1.msra.mxu0 0.0
    %3757 = vmatprep.subr.mxu0 0.0
    %3758 = vmatpush1.msra.mxu0 0.0
    %3759 = vmatprep.subr.mxu0 0.0
    %3760 = vmatpush1.msra.mxu0 0.0
    %3761 = vmatprep.subr.mxu0 0.0
    %3762 = vmatpush1.msra.mxu0 0.0
    %3763 = vmatprep.subr.mxu0 0.0
    %3764 = vmatpush1.msra.mxu0 0.0
    %3765 = vmatprep.subr.mxu0 0.0
    %3766 = vmatpush1.msra.mxu0 0.0
    %3767 = vmatprep.subr.mxu0 0.0
    %3768 = vmatpush1.msra.mxu0 0.0
    %3769 = vmatprep.subr.mxu0 0.0
    %3770 = vmatpush1.msra.mxu0 0.0
    %3771 = vmatprep.subr.mxu0 0.0
    %3772 = vmatpush1.msra.mxu0 0.0
    %3773 = vmatprep.subr.mxu0 0.0
    %3774 = vmatpush1.msra.mxu0 0.0
    %3775 = vmatprep.subr.mxu0 0.0
    %3776 = vmatpush1.msra.mxu0 0.0
    %3777 = vmatprep.subr.mxu0 0.0
    %3778 = vmatpush1.msra.mxu0 0.0
    %3779 = vmatprep.subr.mxu0 0.0
    %3780 = vmatpush1.msra.mxu0 0.0
    %3781 = vmatprep.subr.mxu0 0.0
    %3782 = vmatpush1.msra.mxu0 0.0
    %3783 = vmatprep.subr.mxu0 0.0
    %3784 = vmatpush1.msra.mxu0 0.0
    %3785 = vmatprep.subr.mxu0 0.0
    %3786 = vmatpush1.msra.mxu0 0.0
    %3787 = vmatprep.subr.mxu0 0.0
    %3788 = vmatpush1.msra.mxu0 0.0
    %3789 = vmatprep.subr.mxu0 0.0
    %3790 = vmatpush1.msra.mxu0 0.0
    %3791 = vmatprep.subr.mxu0 0.0
    %3792 = vmatpush1.msra.mxu0 0.0
    %3793 = vmatprep.subr.mxu0 0.0
    %3794 = vmatpush1.msra.mxu0 0.0
    %3795 = vmatprep.subr.mxu0 0.0
    %3796 = vmatpush1.msra.mxu0 0.0
    %3797 = vmatprep.subr.mxu0 0.0
    %3798 = vmatpush1.msra.mxu0 0.0
    %3799 = vmatprep.subr.mxu0 0.0
    %3800 = vmatpush1.msra.mxu0 0.0
    %3801 = vmatprep.mubr.f32.mxu0 0.0
    %3802 = vmatmul.mubr.f32.gmra.mrb[0].mxu0 %v3732
    %v3803 = vpop.f32.mrb[0].mxu0
    %v3804 = vadd.f32 0.0, %v3803
    %v3805 = vpop.f32.mrb[0].mxu0
    %3806 = vmatprep.mubr.f32.mxu0 0.0
    %3807 = vmatmul.mubr.f32.gmra.mrb[0].mxu0 %v3735
    %v3808 = vpop.f32.mrb[0].mxu0
    %v3809 = vadd.f32 0.0, %v3808
    %v3810 = vpop.f32.mrb[0].mxu0
    %3811 = vdwg.mxu0
    %v3812 = vadd.f32 %v3154, %v3804
    %v3813 = vadd.f32 %v3155, %v3809
    %v3814 = vlaneseq
    %v3815 = vshrl.u32 %v3814, 7
    %v3816 = vsub.s32 2, %v3815
    %v3817 = vrot.slane %v3158, %v3816
    %v3818 = vadd.f32 %v3812, %v3817
    %v3819 = vadd.f32 %v3813, %v3817
    %v3820 = vsel %vm295, %v3818, 0.0
    %3821 = vadd.xlane.f32.xlu0 %v3820
    %v3822 = vpop.xlane.xlu0 %3821
    %v3823 = vsel %vm3112, %v3819, 0.0
    %3824 = vadd.xlane.f32.xlu0 %v3823
    %v3825 = vpop.xlane.xlu0 %3824
    %v3826 = vmul.f32 %v3822, %v308
    %v3827 = vmul.f32 %v3825, %v308
    %v3828 = vmul.f32 %v3818, %v3818
    %v3829 = vmul.f32 %v3819, %v3819
    %v3830 = vsel %vm295, %v3828, 0.0
    %3831 = vadd.xlane.f32.xlu0 %v3830
    %v3832 = vpop.xlane.xlu0 %3831
    %v3833 = vsel %vm3112, %v3829, 0.0
    %3834 = vadd.xlane.f32.xlu0 %v3833
    %v3835 = vpop.xlane.xlu0 %3834
    %v3836 = vmul.f32 %v3832, %v308
    %v3837 = vmul.f32 %v3835, %v308
    %v3838 = vmul.f32 %v3826, %v3826
    %v3839 = vmul.f32 %v3827, %v3827
    %v3840 = vsub.f32 %v3836, %v3838
    %v3841 = vsub.f32 %v3837, %v3839
    %v3842 = vsub.f32 %v3818, %v3826
    %v3843 = vsub.f32 %v3819, %v3827
    %v3844 = vadd.f32 %v3840, 1e-05
    %v3845 = vadd.f32 %v3841, 1e-05
    %v3846 = vrsqrt.pop %v3844
    %v3847 = vrsqrt.pop %v3845
    %v3848 = vmul.f32 %v3842, %v3846
    %v3849 = vmul.f32 %v3843, %v3847
    %v3850 = vlaneseq
    %v3851 = vshrl.u32 %v3850, 7
    %v3852 = vsub.s32 3, %v3851
    %v3853 = vrot.slane %v3158, %v3852
    %v3854 = vmul.f32 %v3848, %v3853
    %v3855 = vmul.f32 %v3849, %v3853
    %v3856 = vlaneseq
    %v3857 = vshrl.u32 %v3856, 7
    %v3858 = vsub.s32 4, %v3857
    %v3859 = vrot.slane %v3158, %v3858
    %v3860 = vadd.f32 %v3854, %v3859
    %v3861 = vadd.f32 %v3855, %v3859
    %v3863 = vlaneseq
    %v3864 = vshrl.u32 %v3863, 7
    %v3865 = vsub.s32 0, %v3864
    %v3866 = vrot.slane %v3172, %v3865
    %v3869 = vsel %vm295, %v3860, 0
    %v3872 = vsel %vm295, %v3861, 0
    %3874 = vmatprep.subr.mxu0 0.0
    %3875 = vmatpush1.msra.mxu0 %v3168
    %3876 = vmatprep.subr.mxu0 0.0
    %3877 = vmatpush1.msra.mxu0 %v3169
    %3878 = vmatprep.subr.mxu0 0.0
    %3879 = vmatpush1.msra.mxu0 %v3170
    %3880 = vmatprep.subr.mxu0 0.0
    %3881 = vmatpush1.msra.mxu0 %v3171
    %3882 = vmatprep.subr.mxu0 0.0
    %3883 = vmatpush1.msra.mxu0 0.0
    %3884 = vmatprep.subr.mxu0 0.0
    %3885 = vmatpush1.msra.mxu0 0.0
    %3886 = vmatprep.subr.mxu0 0.0
    %3887 = vmatpush1.msra.mxu0 0.0
    %3888 = vmatprep.subr.mxu0 0.0
    %3889 = vmatpush1.msra.mxu0 0.0
    %3890 = vmatprep.subr.mxu0 0.0
    %3891 = vmatpush1.msra.mxu0 0.0
    %3892 = vmatprep.subr.mxu0 0.0
    %3893 = vmatpush1.msra.mxu0 0.0
    %3894 = vmatprep.subr.mxu0 0.0
    %3895 = vmatpush1.msra.mxu0 0.0
    %3896 = vmatprep.subr.mxu0 0.0
    %3897 = vmatpush1.msra.mxu0 0.0
    %3898 = vmatprep.subr.mxu0 0.0
    %3899 = vmatpush1.msra.mxu0 0.0
    %3900 = vmatprep.subr.mxu0 0.0
    %3901 = vmatpush1.msra.mxu0 0.0
    %3902 = vmatprep.subr.mxu0 0.0
    %3903 = vmatpush1.msra.mxu0 0.0
    %3904 = vmatprep.subr.mxu0 0.0
    %3905 = vmatpush1.msra.mxu0 0.0
    %3906 = vmatprep.subr.mxu0 0.0
    %3907 = vmatpush1.msra.mxu0 0.0
    %3908 = vmatprep.subr.mxu0 0.0
    %3909 = vmatpush1.msra.mxu0 0.0
    %3910 = vmatprep.subr.mxu0 0.0
    %3911 = vmatpush1.msra.mxu0 0.0
    %3912 = vmatprep.subr.mxu0 0.0
    %3913 = vmatpush1.msra.mxu0 0.0
    %3914 = vmatprep.subr.mxu0 0.0
    %3915 = vmatpush1.msra.mxu0 0.0
    %3916 = vmatprep.subr.mxu0 0.0
    %3917 = vmatpush1.msra.mxu0 0.0
    %3918 = vmatprep.subr.mxu0 0.0
    %3919 = vmatpush1.msra.mxu0 0.0
    %3920 = vmatprep.subr.mxu0 0.0
    %3921 = vmatpush1.msra.mxu0 0.0
    %3922 = vmatprep.subr.mxu0 0.0
    %3923 = vmatpush1.msra.mxu0 0.0
    %3924 = vmatprep.subr.mxu0 0.0
    %3925 = vmatpush1.msra.mxu0 0.0
    %3926 = vmatprep.subr.mxu0 0.0
    %3927 = vmatpush1.msra.mxu0 0.0
    %3928 = vmatprep.subr.mxu0 0.0
    %3929 = vmatpush1.msra.mxu0 0.0
    %3930 = vmatprep.subr.mxu0 0.0
    %3931 = vmatpush1.msra.mxu0 0.0
    %3932 = vmatprep.subr.mxu0 0.0
    %3933 = vmatpush1.msra.mxu0 0.0
    %3934 = vmatprep.subr.mxu0 0.0
    %3935 = vmatpush1.msra.mxu0 0.0
    %3936 = vmatprep.subr.mxu0 0.0
    %3937 = vmatpush1.msra.mxu0 0.0
    %3938 = vmatprep.mubr.f32.mxu0 0.0
    %3939 = vmatmul.mubr.f32.gmra.mrb[0].mxu0 %v3869
    %v3940 = vpop.f32.mrb[0].mxu0
    %v3941 = vadd.f32 %v3866, %v3940
    %v3942 = vpop.f32.mrb[0].mxu0
    %3943 = vmatprep.mubr.f32.mxu0 0.0
    %3944 = vmatmul.mubr.f32.gmra.mrb[0].mxu0 %v3872
    %v3945 = vpop.f32.mrb[0].mxu0
    %v3946 = vadd.f32 %v3866, %v3945
    %v3947 = vpop.f32.mrb[0].mxu0
    %3948 = vdwg.mxu0
    %v3949 = vmul.f32 %v3941, 1.702
    %v3950 = vmul.f32 %v3946, 1.702
    %v3951 = vxor.u32 %v3949, 2147483648
    %v3952 = vxor.u32 %v3950, 2147483648
    %v3953 = vmul.f32 %v3951, 1.442695
    %v3954 = vpow.pop %v3953
    %v3955 = vmul.f32 %v3952, 1.442695
    %v3956 = vpow.pop %v3955
    %v3957 = vadd.f32 %v3954, 1.0
    %v3958 = vadd.f32 %v3956, 1.0
    %v3959 = vrcp.pop %v3957
    %v3960 = vmul.f32 1.0, %v3959
    %v3961 = vrcp.pop %v3958
    %v3962 = vmul.f32 1.0, %v3961
    %v3963 = vmul.f32 %v3941, %v3960
    %v3964 = vmul.f32 %v3946, %v3962
    %3965 = vmatprep.subr.mxu0 0.0
    %3966 = vmatpush1.msra.mxu0 %v3173
    %3967 = vmatprep.subr.mxu0 0.0
    %3968 = vmatpush1.msra.mxu0 %v3174
    %3969 = vmatprep.subr.mxu0 0.0
    %3970 = vmatpush1.msra.mxu0 %v3175
    %3971 = vmatprep.subr.mxu0 0.0
    %3972 = vmatpush1.msra.mxu0 %v3176
    %3973 = vmatprep.subr.mxu0 0.0
    %3974 = vmatpush1.msra.mxu0 %v3177
    %3975 = vmatprep.subr.mxu0 0.0
    %3976 = vmatpush1.msra.mxu0 %v3178
    %3977 = vmatprep.subr.mxu0 0.0
    %3978 = vmatpush1.msra.mxu0 %v3179
    %3979 = vmatprep.subr.mxu0 0.0
    %3980 = vmatpush1.msra.mxu0 %v3180
    %3981 = vmatprep.subr.mxu0 0.0
    %3982 = vmatpush1.msra.mxu0 %v3181
    %3983 = vmatprep.subr.mxu0 0.0
    %3984 = vmatpush1.msra.mxu0 %v3182
    %3985 = vmatprep.subr.mxu0 0.0
    %3986 = vmatpush1.msra.mxu0 %v3183
    %3987 = vmatprep.subr.mxu0 0.0
    %3988 = vmatpush1.msra.mxu0 %v3184
    %3989 = vmatprep.subr.mxu0 0.0
    %3990 = vmatpush1.msra.mxu0 %v3185
    %3991 = vmatprep.subr.mxu0 0.0
    %3992 = vmatpush1.msra.mxu0 %v3186
    %3993 = vmatprep.subr.mxu0 0.0
    %3994 = vmatpush1.msra.mxu0 %v3187
    %3995 = vmatprep.subr.mxu0 0.0
    %3996 = vmatpush1.msra.mxu0 %v3188
    %3997 = vmatprep.subr.mxu0 0.0
    %3998 = vmatpush1.msra.mxu0 0.0
    %3999 = vmatprep.subr.mxu0 0.0
    %4000 = vmatpush1.msra.mxu0 0.0
    %4001 = vmatprep.subr.mxu0 0.0
    %4002 = vmatpush1.msra.mxu0 0.0
    %4003 = vmatprep.subr.mxu0 0.0
    %4004 = vmatpush1.msra.mxu0 0.0
    %4005 = vmatprep.subr.mxu0 0.0
    %4006 = vmatpush1.msra.mxu0 0.0
    %4007 = vmatprep.subr.mxu0 0.0
    %4008 = vmatpush1.msra.mxu0 0.0
    %4009 = vmatprep.subr.mxu0 0.0
    %4010 = vmatpush1.msra.mxu0 0.0
    %4011 = vmatprep.subr.mxu0 0.0
    %4012 = vmatpush1.msra.mxu0 0.0
    %4013 = vmatprep.subr.mxu0 0.0
    %4014 = vmatpush1.msra.mxu0 0.0
    %4015 = vmatprep.subr.mxu0 0.0
    %4016 = vmatpush1.msra.mxu0 0.0
    %4017 = vmatprep.subr.mxu0 0.0
    %4018 = vmatpush1.msra.mxu0 0.0
    %4019 = vmatprep.subr.mxu0 0.0
    %4020 = vmatpush1.msra.mxu0 0.0
    %4021 = vmatprep.subr.mxu0 0.0
    %4022 = vmatpush1.msra.mxu0 0.0
    %4023 = vmatprep.subr.mxu0 0.0
    %4024 = vmatpush1.msra.mxu0 0.0
    %4025 = vmatprep.subr.mxu0 0.0
    %4026 = vmatpush1.msra.mxu0 0.0
    %4027 = vmatprep.subr.mxu0 0.0
    %4028 = vmatpush1.msra.mxu0 0.0
    %4029 = vmatprep.mubr.f32.mxu0 0.0
    %4030 = vmatmul.mubr.f32.gmra.mrb[0].mxu0 %v3963
    %v4031 = vpop.f32.mrb[0].mxu0
    %v4032 = vadd.f32 0.0, %v4031
    %v4033 = vpop.f32.mrb[0].mxu0
    %4034 = vmatprep.mubr.f32.mxu0 0.0
    %4035 = vmatmul.mubr.f32.gmra.mrb[0].mxu0 %v3964
    %v4036 = vpop.f32.mrb[0].mxu0
    %v4037 = vadd.f32 0.0, %v4036
    %v4038 = vpop.f32.mrb[0].mxu0
    %4039 = vdwg.mxu0
    %v4040 = vadd.f32 %v3818, %v4032
    %v4041 = vadd.f32 %v3819, %v4037
    %v4042 = vlaneseq
    %v4043 = vshrl.u32 %v4042, 7
    %v4044 = vsub.s32 5, %v4043
    %v4045 = vrot.slane %v3158, %v4044
    %v4046 = vadd.f32 %v4040, %v4045
    %v4047 = vadd.f32 %v4041, %v4045
    %s4048 = scalar_lea.vmem %s47, 8
    %v4049 = vld [vmem:[%s4048] sm:$0x3f]
    %s4050 = scalar_lea.vmem %s49, 32
    %v4051 = vld [vmem:[%s4050] sm:$0xff]
    %v4052 = vld [vmem:[%s4050 + $0x8] sm:$0xff]
    %v4053 = vld [vmem:[%s4050 + $0x10] sm:$0xff]
    %v4054 = vld [vmem:[%s4050 + $0x18] sm:$0xff]
    %s4055 = scalar_lea.vmem %s51, 1
    %v4056 = vld [vmem:[%s4055] sm:$0x1]
    %s4057 = scalar_lea.vmem %s53, 32
    %v4058 = vld [vmem:[%s4057] sm:$0xff]
    %v4059 = vld [vmem:[%s4057 + $0x8] sm:$0xff]
    %v4060 = vld [vmem:[%s4057 + $0x10] sm:$0xff]
    %v4061 = vld [vmem:[%s4057 + $0x18] sm:$0xff]
    %s4062 = scalar_lea.vmem %s55, 32
    %v4063 = vld [vmem:[%s4062] sm:$0xff]
    %v4064 = vld [vmem:[%s4062 + $0x8] sm:$0xff]
    %v4065 = vld [vmem:[%s4062 + $0x10] sm:$0xff]
    %v4066 = vld [vmem:[%s4062 + $0x18] sm:$0xff]
    %s4067 = scalar_lea.vmem %s57, 1
    %v4068 = vld [vmem:[%s4067] sm:$0x1]
    %s4069 = scalar_lea.vmem %s59, 128
    %v4070 = vld [vmem:[%s4069] sm:$0xff]
    %v4071 = vld [vmem:[%s4069 + $0x8] sm:$0xff]
    %v4072 = vld [vmem:[%s4069 + $0x10] sm:$0xff]
    %v4073 = vld [vmem:[%s4069 + $0x18] sm:$0xff]
    %v4074 = vld [vmem:[%s4069 + $0x20] sm:$0xff]
    %v4075 = vld [vmem:[%s4069 + $0x28] sm:$0xff]
    %v4076 = vld [vmem:[%s4069 + $0x30] sm:$0xff]
    %v4077 = vld [vmem:[%s4069 + $0x38] sm:$0xff]
    %v4078 = vld [vmem:[%s4069 + $0x40] sm:$0xff]
    %v4079 = vld [vmem:[%s4069 + $0x48] sm:$0xff]
    %v4080 = vld [vmem:[%s4069 + $0x50] sm:$0xff]
    %v4081 = vld [vmem:[%s4069 + $0x58] sm:$0xff]
    %v4082 = vld [vmem:[%s4069 + $0x60] sm:$0xff]
    %v4083 = vld [vmem:[%s4069 + $0x68] sm:$0xff]
    %v4084 = vld [vmem:[%s4069 + $0x70] sm:$0xff]
    %v4085 = vld [vmem:[%s4069 + $0x78] sm:$0xff]
    %v4086 = vsel %vm295, %v4046, 0.0
    %4087 = vadd.xlane.f32.xlu0 %v4086
    %v4088 = vpop.xlane.xlu0 %4087
    %v4089 = vsel %vm3112, %v4047, 0.0
    %4090 = vadd.xlane.f32.xlu0 %v4089
    %v4091 = vpop.xlane.xlu0 %4090
    %v4092 = vmul.f32 %v4088, %v308
    %v4093 = vmul.f32 %v4091, %v308
    %v4094 = vmul.f32 %v4046, %v4046
    %v4095 = vmul.f32 %v4047, %v4047
    %v4096 = vsel %vm295, %v4094, 0.0
    %4097 = vadd.xlane.f32.xlu0 %v4096
    %v4098 = vpop.xlane.xlu0 %4097
    %v4099 = vsel %vm3112, %v4095, 0.0
    %4100 = vadd.xlane.f32.xlu0 %v4099
    %v4101 = vpop.xlane.xlu0 %4100
    %v4102 = vmul.f32 %v4098, %v308
    %v4103 = vmul.f32 %v4101, %v308
    %v4104 = vmul.f32 %v4092, %v4092
    %v4105 = vmul.f32 %v4093, %v4093
    %v4106 = vsub.f32 %v4102, %v4104
    %v4107 = vsub.f32 %v4103, %v4105
    %v4108 = vsub.f32 %v4046, %v4092
    %v4109 = vsub.f32 %v4047, %v4093
    %v4110 = vadd.f32 %v4106, 1e-05
    %v4111 = vadd.f32 %v4107, 1e-05
    %v4112 = vrsqrt.pop %v4110
    %v4113 = vrsqrt.pop %v4111
    %v4114 = vmul.f32 %v4108, %v4112
    %v4115 = vmul.f32 %v4109, %v4113
    %v4116 = vlaneseq
    %v4117 = vshrl.u32 %v4116, 7
    %v4118 = vsub.s32 0, %v4117
    %v4119 = vrot.slane %v4049, %v4118
    %v4120 = vmul.f32 %v4114, %v4119
    %v4121 = vmul.f32 %v4115, %v4119
    %v4122 = vlaneseq
    %v4123 = vshrl.u32 %v4122, 7
    %v4124 = vsub.s32 1, %v4123
    %v4125 = vrot.slane %v4049, %v4124
    %v4126 = vadd.f32 %v4120, %v4125
    %v4127 = vadd.f32 %v4121, %v4125
    %v4129 = vlaneseq
    %v4130 = vshrl.u32 %v4129, 7
    %v4131 = vsub.s32 0, %v4130
    %v4132 = vrot.slane %v4056, %v4131
    %v4135 = vsel %vm295, %v4126, 0
    %v4138 = vsel %vm295, %v4127, 0
    %4140 = vmatprep.subr.mxu0 0.0
    %4141 = vmatpush1.msra.mxu0 %v4051
    %4142 = vmatprep.subr.mxu0 0.0
    %4143 = vmatpush1.msra.mxu0 %v4052
    %4144 = vmatprep.subr.mxu0 0.0
    %4145 = vmatpush1.msra.mxu0 %v4053
    %4146 = vmatprep.subr.mxu0 0.0
    %4147 = vmatpush1.msra.mxu0 %v4054
    %4148 = vmatprep.subr.mxu0 0.0
    %4149 = vmatpush1.msra.mxu0 0.0
    %4150 = vmatprep.subr.mxu0 0.0
    %4151 = vmatpush1.msra.mxu0 0.0
    %4152 = vmatprep.subr.mxu0 0.0
    %4153 = vmatpush1.msra.mxu0 0.0
    %4154 = vmatprep.subr.mxu0 0.0
    %4155 = vmatpush1.msra.mxu0 0.0
    %4156 = vmatprep.subr.mxu0 0.0
    %4157 = vmatpush1.msra.mxu0 0.0
    %4158 = vmatprep.subr.mxu0 0.0
    %4159 = vmatpush1.msra.mxu0 0.0
    %4160 = vmatprep.subr.mxu0 0.0
    %4161 = vmatpush1.msra.mxu0 0.0
    %4162 = vmatprep.subr.mxu0 0.0
    %4163 = vmatpush1.msra.mxu0 0.0
    %4164 = vmatprep.subr.mxu0 0.0
    %4165 = vmatpush1.msra.mxu0 0.0
    %4166 = vmatprep.subr.mxu0 0.0
    %4167 = vmatpush1.msra.mxu0 0.0
    %4168 = vmatprep.subr.mxu0 0.0
    %4169 = vmatpush1.msra.mxu0 0.0
    %4170 = vmatprep.subr.mxu0 0.0
    %4171 = vmatpush1.msra.mxu0 0.0
    %4172 = vmatprep.subr.mxu0 0.0
    %4173 = vmatpush1.msra.mxu0 0.0
    %4174 = vmatprep.subr.mxu0 0.0
    %4175 = vmatpush1.msra.mxu0 0.0
    %4176 = vmatprep.subr.mxu0 0.0
    %4177 = vmatpush1.msra.mxu0 0.0
    %4178 = vmatprep.subr.mxu0 0.0
    %4179 = vmatpush1.msra.mxu0 0.0
    %4180 = vmatprep.subr.mxu0 0.0
    %4181 = vmatpush1.msra.mxu0 0.0
    %4182 = vmatprep.subr.mxu0 0.0
    %4183 = vmatpush1.msra.mxu0 0.0
    %4184 = vmatprep.subr.mxu0 0.0
    %4185 = vmatpush1.msra.mxu0 0.0
    %4186 = vmatprep.subr.mxu0 0.0
    %4187 = vmatpush1.msra.mxu0 0.0
    %4188 = vmatprep.subr.mxu0 0.0
    %4189 = vmatpush1.msra.mxu0 0.0
    %4190 = vmatprep.subr.mxu0 0.0
    %4191 = vmatpush1.msra.mxu0 0.0
    %4192 = vmatprep.subr.mxu0 0.0
    %4193 = vmatpush1.msra.mxu0 0.0
    %4194 = vmatprep.subr.mxu0 0.0
    %4195 = vmatpush1.msra.mxu0 0.0
    %4196 = vmatprep.subr.mxu0 0.0
    %4197 = vmatpush1.msra.mxu0 0.0
    %4198 = vmatprep.subr.mxu0 0.0
    %4199 = vmatpush1.msra.mxu0 0.0
    %4200 = vmatprep.subr.mxu0 0.0
    %4201 = vmatpush1.msra.mxu0 0.0
    %4202 = vmatprep.subr.mxu0 0.0
    %4203 = vmatpush1.msra.mxu0 0.0
    %4204 = vmatprep.mubr.f32.mxu0 0.0
    %4205 = vmatmul.mubr.f32.gmra.mrb[0].mxu0 %v4135
    %v4206 = vpop.f32.mrb[0].mxu0
    %v4207 = vadd.f32 %v4132, %v4206
    %v4208 = vpop.f32.mrb[0].mxu0
    %4209 = vmatprep.mubr.f32.mxu0 0.0
    %4210 = vmatmul.mubr.f32.gmra.mrb[0].mxu0 %v4138
    %v4211 = vpop.f32.mrb[0].mxu0
    %v4212 = vadd.f32 %v4132, %v4211
    %v4213 = vpop.f32.mrb[0].mxu0
    %4214 = vdwg.mxu0
    %4217 = vrot.lane.b32.xlu0 %v4207, 96
    %v4218 = vpop.permute.xlu0 %4217
    %4219 = vrot.lane.b32.xlu0 %v4212, 96
    %v4220 = vpop.permute.xlu0 %4219
    %v4221 = vsel %vm488, %v4207, 0
    %v4223 = vsel %vm488, %v4212, 0
    %v4225 = vsel %vm488, %v4218, 0
    %v4227 = vsel %vm488, %v4220, 0
    %4229 = vmatprep.subr.mxu0 0.0
    %4230 = vmatpush1.xpose.msra.mxu0 %v4225
    %4231 = vmatprep.subr.mxu0 0.0
    %4232 = vmatpush1.xpose.msra.mxu0 %v4227
    %4233 = vmatprep.subr.mxu0 0.0
    %4234 = vmatpush1.xpose.msra.mxu0 0.0
    %4235 = vmatprep.subr.mxu0 0.0
    %4236 = vmatpush1.xpose.msra.mxu0 0.0
    %4237 = vmatprep.subr.mxu0 0.0
    %4238 = vmatpush1.xpose.msra.mxu0 0.0
    %4239 = vmatprep.subr.mxu0 0.0
    %4240 = vmatpush1.xpose.msra.mxu0 0.0
    %4241 = vmatprep.subr.mxu0 0.0
    %4242 = vmatpush1.xpose.msra.mxu0 0.0
    %4243 = vmatprep.subr.mxu0 0.0
    %4244 = vmatpush1.xpose.msra.mxu0 0.0
    %4245 = vmatprep.subr.mxu0 0.0
    %4246 = vmatpush1.xpose.msra.mxu0 0.0
    %4247 = vmatprep.subr.mxu0 0.0
    %4248 = vmatpush1.xpose.msra.mxu0 0.0
    %4249 = vmatprep.subr.mxu0 0.0
    %4250 = vmatpush1.xpose.msra.mxu0 0.0
    %4251 = vmatprep.subr.mxu0 0.0
    %4252 = vmatpush1.xpose.msra.mxu0 0.0
    %4253 = vmatprep.subr.mxu0 0.0
    %4254 = vmatpush1.xpose.msra.mxu0 0.0
    %4255 = vmatprep.subr.mxu0 0.0
    %4256 = vmatpush1.xpose.msra.mxu0 0.0
    %4257 = vmatprep.subr.mxu0 0.0
    %4258 = vmatpush1.xpose.msra.mxu0 0.0
    %4259 = vmatprep.subr.mxu0 0.0
    %4260 = vmatpush1.xpose.msra.mxu0 0.0
    %4261 = vmatprep.subr.mxu0 0.0
    %4262 = vmatpush1.xpose.msra.mxu0 0.0
    %4263 = vmatprep.subr.mxu0 0.0
    %4264 = vmatpush1.xpose.msra.mxu0 0.0
    %4265 = vmatprep.subr.mxu0 0.0
    %4266 = vmatpush1.xpose.msra.mxu0 0.0
    %4267 = vmatprep.subr.mxu0 0.0
    %4268 = vmatpush1.xpose.msra.mxu0 0.0
    %4269 = vmatprep.subr.mxu0 0.0
    %4270 = vmatpush1.xpose.msra.mxu0 0.0
    %4271 = vmatprep.subr.mxu0 0.0
    %4272 = vmatpush1.xpose.msra.mxu0 0.0
    %4273 = vmatprep.subr.mxu0 0.0
    %4274 = vmatpush1.xpose.msra.mxu0 0.0
    %4275 = vmatprep.subr.mxu0 0.0
    %4276 = vmatpush1.xpose.msra.mxu0 0.0
    %4277 = vmatprep.subr.mxu0 0.0
    %4278 = vmatpush1.xpose.msra.mxu0 0.0
    %4279 = vmatprep.subr.mxu0 0.0
    %4280 = vmatpush1.xpose.msra.mxu0 0.0
    %4281 = vmatprep.subr.mxu0 0.0
    %4282 = vmatpush1.xpose.msra.mxu0 0.0
    %4283 = vmatprep.subr.mxu0 0.0
    %4284 = vmatpush1.xpose.msra.mxu0 0.0
    %4285 = vmatprep.subr.mxu0 0.0
    %4286 = vmatpush1.xpose.msra.mxu0 0.0
    %4287 = vmatprep.subr.mxu0 0.0
    %4288 = vmatpush1.xpose.msra.mxu0 0.0
    %4289 = vmatprep.subr.mxu0 0.0
    %4290 = vmatpush1.xpose.msra.mxu0 0.0
    %4291 = vmatprep.subr.mxu0 0.0
    %4292 = vmatpush1.xpose.msra.mxu0 0.0
    %4293 = vmatprep.mubr.f32.mxu0 0.0
    %4294 = vmatmul.mubr.f32.gmra.mrb[0].mxu0 %v4221
    %v4295 = vpop.f32.mrb[0].mxu0
    %v4296 = vadd.f32 %v3156, %v4295
    %v4297 = vpop.f32.mrb[0].mxu0
    %4298 = vmatprep.mubr.f32.mxu0 0.0
    %4299 = vmatmul.mubr.f32.gmra.mrb[0].mxu0 %v4223
    %v4300 = vpop.f32.mrb[0].mxu0
    %v4301 = vadd.f32 %v3157, %v4300
    %v4302 = vpop.f32.mrb[0].mxu0
    %4303 = vdwg.mxu0
    %v4304 = vsel %vm3407, %v4296, -inf
    %4305 = vmax.xlane.f32.xlu0 %v4304
    %v4306 = vpop.xlane.xlu0 %4305
    %v4307 = vsel %vm3411, %v4301, -inf
    %4308 = vmax.xlane.f32.xlu0 %v4307
    %v4309 = vpop.xlane.xlu0 %4308
    %v4310 = vsub.f32 %v4296, %v4306
    %v4311 = vsub.f32 %v4301, %v4309
    %v4312 = vmul.f32 %v4310, 1.442695
    %v4313 = vpow.pop %v4312
    %v4314 = vmul.f32 %v4311, 1.442695
    %v4315 = vpow.pop %v4314
    %v4316 = vsel %vm3407, %v4313, 0.0
    %4317 = vadd.xlane.f32.xlu0 %v4316
    %v4318 = vpop.xlane.xlu0 %4317
    %v4319 = vsel %vm3411, %v4315, 0.0
    %4320 = vadd.xlane.f32.xlu0 %v4319
    %v4321 = vpop.xlane.xlu0 %4320
    %v4322 = vrcp.pop %v4318
    %v4323 = vrcp.pop %v4321
    %v4324 = vmul.f32 %v4313, %v4322
    %v4325 = vmul.f32 %v4315, %v4323
    %4326 = vrot.lane.b32.xlu0 %v4207, 64
    %v4327 = vpop.permute.xlu0 %4326
    %4328 = vrot.lane.b32.xlu0 %v4212, 64
    %v4329 = vpop.permute.xlu0 %4328
    %v4332 = vsel %vm3407, %v4324, 0
    %v4335 = vsel %vm3407, %v4325, 0
    %v4337 = vsel %vm3442, %v4329, 0
    %4339 = vmatprep.subr.mxu0 0.0
    %4340 = vmatpush1.msra.mxu0 %v4327
    %4341 = vmatprep.subr.mxu0 0.0
    %4342 = vmatpush1.msra.mxu0 %v4337
    %4343 = vmatprep.subr.mxu0 0.0
    %4344 = vmatpush1.msra.mxu0 0.0
    %4345 = vmatprep.subr.mxu0 0.0
    %4346 = vmatpush1.msra.mxu0 0.0
    %4347 = vmatprep.subr.mxu0 0.0
    %4348 = vmatpush1.msra.mxu0 0.0
    %4349 = vmatprep.subr.mxu0 0.0
    %4350 = vmatpush1.msra.mxu0 0.0
    %4351 = vmatprep.subr.mxu0 0.0
    %4352 = vmatpush1.msra.mxu0 0.0
    %4353 = vmatprep.subr.mxu0 0.0
    %4354 = vmatpush1.msra.mxu0 0.0
    %4355 = vmatprep.subr.mxu0 0.0
    %4356 = vmatpush1.msra.mxu0 0.0
    %4357 = vmatprep.subr.mxu0 0.0
    %4358 = vmatpush1.msra.mxu0 0.0
    %4359 = vmatprep.subr.mxu0 0.0
    %4360 = vmatpush1.msra.mxu0 0.0
    %4361 = vmatprep.subr.mxu0 0.0
    %4362 = vmatpush1.msra.mxu0 0.0
    %4363 = vmatprep.subr.mxu0 0.0
    %4364 = vmatpush1.msra.mxu0 0.0
    %4365 = vmatprep.subr.mxu0 0.0
    %4366 = vmatpush1.msra.mxu0 0.0
    %4367 = vmatprep.subr.mxu0 0.0
    %4368 = vmatpush1.msra.mxu0 0.0
    %4369 = vmatprep.subr.mxu0 0.0
    %4370 = vmatpush1.msra.mxu0 0.0
    %4371 = vmatprep.subr.mxu0 0.0
    %4372 = vmatpush1.msra.mxu0 0.0
    %4373 = vmatprep.subr.mxu0 0.0
    %4374 = vmatpush1.msra.mxu0 0.0
    %4375 = vmatprep.subr.mxu0 0.0
    %4376 = vmatpush1.msra.mxu0 0.0
    %4377 = vmatprep.subr.mxu0 0.0
    %4378 = vmatpush1.msra.mxu0 0.0
    %4379 = vmatprep.subr.mxu0 0.0
    %4380 = vmatpush1.msra.mxu0 0.0
    %4381 = vmatprep.subr.mxu0 0.0
    %4382 = vmatpush1.msra.mxu0 0.0
    %4383 = vmatprep.subr.mxu0 0.0
    %4384 = vmatpush1.msra.mxu0 0.0
    %4385 = vmatprep.subr.mxu0 0.0
    %4386 = vmatpush1.msra.mxu0 0.0
    %4387 = vmatprep.subr.mxu0 0.0
    %4388 = vmatpush1.msra.mxu0 0.0
    %4389 = vmatprep.subr.mxu0 0.0
    %4390 = vmatpush1.msra.mxu0 0.0
    %4391 = vmatprep.subr.mxu0 0.0
    %4392 = vmatpush1.msra.mxu0 0.0
    %4393 = vmatprep.subr.mxu0 0.0
    %4394 = vmatpush1.msra.mxu0 0.0
    %4395 = vmatprep.subr.mxu0 0.0
    %4396 = vmatpush1.msra.mxu0 0.0
    %4397 = vmatprep.subr.mxu0 0.0
    %4398 = vmatpush1.msra.mxu0 0.0
    %4399 = vmatprep.subr.mxu0 0.0
    %4400 = vmatpush1.msra.mxu0 0.0
    %4401 = vmatprep.subr.mxu0 0.0
    %4402 = vmatpush1.msra.mxu0 0.0
    %4403 = vmatprep.mubr.f32.mxu0 0.0
    %4404 = vmatmul.mubr.f32.gmra.mrb[0].mxu0 %v4332
    %v4405 = vpop.f32.mrb[0].mxu0
    %v4406 = vadd.f32 0.0, %v4405
    %v4407 = vpop.f32.mrb[0].mxu0
    %4408 = vmatprep.mubr.f32.mxu0 0.0
    %4409 = vmatmul.mubr.f32.gmra.mrb[0].mxu0 %v4335
    %v4410 = vpop.f32.mrb[0].mxu0
    %v4411 = vadd.f32 0.0, %v4410
    %v4412 = vpop.f32.mrb[0].mxu0
    %4413 = vdwg.mxu0
    %4414 = vrot.lane.b32.xlu0 %v4207, 112
    %v4415 = vpop.permute.xlu0 %4414
    %4416 = vrot.lane.b32.xlu0 %v4212, 112
    %v4417 = vpop.permute.xlu0 %4416
    %4418 = vrot.lane.b32.xlu0 %v4207, 80
    %v4419 = vpop.permute.xlu0 %4418
    %4420 = vrot.lane.b32.xlu0 %v4212, 80
    %v4421 = vpop.permute.xlu0 %4420
    %v4422 = vsel %vm488, %v4415, 0
    %v4424 = vsel %vm488, %v4417, 0
    %v4426 = vsel %vm488, %v4419, 0
    %v4428 = vsel %vm488, %v4421, 0
    %4430 = vmatprep.subr.mxu0 0.0
    %4431 = vmatpush1.xpose.msra.mxu0 %v4426
    %4432 = vmatprep.subr.mxu0 0.0
    %4433 = vmatpush1.xpose.msra.mxu0 %v4428
    %4434 = vmatprep.subr.mxu0 0.0
    %4435 = vmatpush1.xpose.msra.mxu0 0.0
    %4436 = vmatprep.subr.mxu0 0.0
    %4437 = vmatpush1.xpose.msra.mxu0 0.0
    %4438 = vmatprep.subr.mxu0 0.0
    %4439 = vmatpush1.xpose.msra.mxu0 0.0
    %4440 = vmatprep.subr.mxu0 0.0
    %4441 = vmatpush1.xpose.msra.mxu0 0.0
    %4442 = vmatprep.subr.mxu0 0.0
    %4443 = vmatpush1.xpose.msra.mxu0 0.0
    %4444 = vmatprep.subr.mxu0 0.0
    %4445 = vmatpush1.xpose.msra.mxu0 0.0
    %4446 = vmatprep.subr.mxu0 0.0
    %4447 = vmatpush1.xpose.msra.mxu0 0.0
    %4448 = vmatprep.subr.mxu0 0.0
    %4449 = vmatpush1.xpose.msra.mxu0 0.0
    %4450 = vmatprep.subr.mxu0 0.0
    %4451 = vmatpush1.xpose.msra.mxu0 0.0
    %4452 = vmatprep.subr.mxu0 0.0
    %4453 = vmatpush1.xpose.msra.mxu0 0.0
    %4454 = vmatprep.subr.mxu0 0.0
    %4455 = vmatpush1.xpose.msra.mxu0 0.0
    %4456 = vmatprep.subr.mxu0 0.0
    %4457 = vmatpush1.xpose.msra.mxu0 0.0
    %4458 = vmatprep.subr.mxu0 0.0
    %4459 = vmatpush1.xpose.msra.mxu0 0.0
    %4460 = vmatprep.subr.mxu0 0.0
    %4461 = vmatpush1.xpose.msra.mxu0 0.0
    %4462 = vmatprep.subr.mxu0 0.0
    %4463 = vmatpush1.xpose.msra.mxu0 0.0
    %4464 = vmatprep.subr.mxu0 0.0
    %4465 = vmatpush1.xpose.msra.mxu0 0.0
    %4466 = vmatprep.subr.mxu0 0.0
    %4467 = vmatpush1.xpose.msra.mxu0 0.0
    %4468 = vmatprep.subr.mxu0 0.0
    %4469 = vmatpush1.xpose.msra.mxu0 0.0
    %4470 = vmatprep.subr.mxu0 0.0
    %4471 = vmatpush1.xpose.msra.mxu0 0.0
    %4472 = vmatprep.subr.mxu0 0.0
    %4473 = vmatpush1.xpose.msra.mxu0 0.0
    %4474 = vmatprep.subr.mxu0 0.0
    %4475 = vmatpush1.xpose.msra.mxu0 0.0
    %4476 = vmatprep.subr.mxu0 0.0
    %4477 = vmatpush1.xpose.msra.mxu0 0.0
    %4478 = vmatprep.subr.mxu0 0.0
    %4479 = vmatpush1.xpose.msra.mxu0 0.0
    %4480 = vmatprep.subr.mxu0 0.0
    %4481 = vmatpush1.xpose.msra.mxu0 0.0
    %4482 = vmatprep.subr.mxu0 0.0
    %4483 = vmatpush1.xpose.msra.mxu0 0.0
    %4484 = vmatprep.subr.mxu0 0.0
    %4485 = vmatpush1.xpose.msra.mxu0 0.0
    %4486 = vmatprep.subr.mxu0 0.0
    %4487 = vmatpush1.xpose.msra.mxu0 0.0
    %4488 = vmatprep.subr.mxu0 0.0
    %4489 = vmatpush1.xpose.msra.mxu0 0.0
    %4490 = vmatprep.subr.mxu0 0.0
    %4491 = vmatpush1.xpose.msra.mxu0 0.0
    %4492 = vmatprep.subr.mxu0 0.0
    %4493 = vmatpush1.xpose.msra.mxu0 0.0
    %4494 = vmatprep.mubr.f32.mxu0 0.0
    %4495 = vmatmul.mubr.f32.gmra.mrb[0].mxu0 %v4422
    %v4496 = vpop.f32.mrb[0].mxu0
    %v4497 = vadd.f32 %v3156, %v4496
    %v4498 = vpop.f32.mrb[0].mxu0
    %4499 = vmatprep.mubr.f32.mxu0 0.0
    %4500 = vmatmul.mubr.f32.gmra.mrb[0].mxu0 %v4424
    %v4501 = vpop.f32.mrb[0].mxu0
    %v4502 = vadd.f32 %v3157, %v4501
    %v4503 = vpop.f32.mrb[0].mxu0
    %4504 = vdwg.mxu0
    %v4505 = vsel %vm3407, %v4497, -inf
    %4506 = vmax.xlane.f32.xlu0 %v4505
    %v4507 = vpop.xlane.xlu0 %4506
    %v4508 = vsel %vm3411, %v4502, -inf
    %4509 = vmax.xlane.f32.xlu0 %v4508
    %v4510 = vpop.xlane.xlu0 %4509
    %v4511 = vsub.f32 %v4497, %v4507
    %v4512 = vsub.f32 %v4502, %v4510
    %v4513 = vmul.f32 %v4511, 1.442695
    %v4514 = vpow.pop %v4513
    %v4515 = vmul.f32 %v4512, 1.442695
    %v4516 = vpow.pop %v4515
    %v4517 = vsel %vm3407, %v4514, 0.0
    %4518 = vadd.xlane.f32.xlu0 %v4517
    %v4519 = vpop.xlane.xlu0 %4518
    %v4520 = vsel %vm3411, %v4516, 0.0
    %4521 = vadd.xlane.f32.xlu0 %v4520
    %v4522 = vpop.xlane.xlu0 %4521
    %v4523 = vrcp.pop %v4519
    %v4524 = vrcp.pop %v4522
    %v4525 = vmul.f32 %v4514, %v4523
    %v4526 = vmul.f32 %v4516, %v4524
    %4527 = vrot.lane.b32.xlu0 %v4207, 48
    %v4528 = vpop.permute.xlu0 %4527
    %4529 = vrot.lane.b32.xlu0 %v4212, 48
    %v4530 = vpop.permute.xlu0 %4529
    %v4533 = vsel %vm3407, %v4525, 0
    %v4536 = vsel %vm3407, %v4526, 0
    %v4538 = vsel %vm3442, %v4530, 0
    %4540 = vmatprep.subr.mxu0 0.0
    %4541 = vmatpush1.msra.mxu0 %v4528
    %4542 = vmatprep.subr.mxu0 0.0
    %4543 = vmatpush1.msra.mxu0 %v4538
    %4544 = vmatprep.subr.mxu0 0.0
    %4545 = vmatpush1.msra.mxu0 0.0
    %4546 = vmatprep.subr.mxu0 0.0
    %4547 = vmatpush1.msra.mxu0 0.0
    %4548 = vmatprep.subr.mxu0 0.0
    %4549 = vmatpush1.msra.mxu0 0.0
    %4550 = vmatprep.subr.mxu0 0.0
    %4551 = vmatpush1.msra.mxu0 0.0
    %4552 = vmatprep.subr.mxu0 0.0
    %4553 = vmatpush1.msra.mxu0 0.0
    %4554 = vmatprep.subr.mxu0 0.0
    %4555 = vmatpush1.msra.mxu0 0.0
    %4556 = vmatprep.subr.mxu0 0.0
    %4557 = vmatpush1.msra.mxu0 0.0
    %4558 = vmatprep.subr.mxu0 0.0
    %4559 = vmatpush1.msra.mxu0 0.0
    %4560 = vmatprep.subr.mxu0 0.0
    %4561 = vmatpush1.msra.mxu0 0.0
    %4562 = vmatprep.subr.mxu0 0.0
    %4563 = vmatpush1.msra.mxu0 0.0
    %4564 = vmatprep.subr.mxu0 0.0
    %4565 = vmatpush1.msra.mxu0 0.0
    %4566 = vmatprep.subr.mxu0 0.0
    %4567 = vmatpush1.msra.mxu0 0.0
    %4568 = vmatprep.subr.mxu0 0.0
    %4569 = vmatpush1.msra.mxu0 0.0
    %4570 = vmatprep.subr.mxu0 0.0
    %4571 = vmatpush1.msra.mxu0 0.0
    %4572 = vmatprep.subr.mxu0 0.0
    %4573 = vmatpush1.msra.mxu0 0.0
    %4574 = vmatprep.subr.mxu0 0.0
    %4575 = vmatpush1.msra.mxu0 0.0
    %4576 = vmatprep.subr.mxu0 0.0
    %4577 = vmatpush1.msra.mxu0 0.0
    %4578 = vmatprep.subr.mxu0 0.0
    %4579 = vmatpush1.msra.mxu0 0.0
    %4580 = vmatprep.subr.mxu0 0.0
    %4581 = vmatpush1.msra.mxu0 0.0
    %4582 = vmatprep.subr.mxu0 0.0
    %4583 = vmatpush1.msra.mxu0 0.0
    %4584 = vmatprep.subr.mxu0 0.0
    %4585 = vmatpush1.msra.mxu0 0.0
    %4586 = vmatprep.subr.mxu0 0.0
    %4587 = vmatpush1.msra.mxu0 0.0
    %4588 = vmatprep.subr.mxu0 0.0
    %4589 = vmatpush1.msra.mxu0 0.0
    %4590 = vmatprep.subr.mxu0 0.0
    %4591 = vmatpush1.msra.mxu0 0.0
    %4592 = vmatprep.subr.mxu0 0.0
    %4593 = vmatpush1.msra.mxu0 0.0
    %4594 = vmatprep.subr.mxu0 0.0
    %4595 = vmatpush1.msra.mxu0 0.0
    %4596 = vmatprep.subr.mxu0 0.0
    %4597 = vmatpush1.msra.mxu0 0.0
    %4598 = vmatprep.subr.mxu0 0.0
    %4599 = vmatpush1.msra.mxu0 0.0
    %4600 = vmatprep.subr.mxu0 0.0
    %4601 = vmatpush1.msra.mxu0 0.0
    %4602 = vmatprep.subr.mxu0 0.0
    %4603 = vmatpush1.msra.mxu0 0.0
    %4604 = vmatprep.mubr.f32.mxu0 0.0
    %4605 = vmatmul.mubr.f32.gmra.mrb[0].mxu0 %v4533
    %v4606 = vpop.f32.mrb[0].mxu0
    %v4607 = vadd.f32 0.0, %v4606
    %v4608 = vpop.f32.mrb[0].mxu0
    %4609 = vmatprep.mubr.f32.mxu0 0.0
    %4610 = vmatmul.mubr.f32.gmra.mrb[0].mxu0 %v4536
    %v4611 = vpop.f32.mrb[0].mxu0
    %v4612 = vadd.f32 0.0, %v4611
    %v4613 = vpop.f32.mrb[0].mxu0
    %4614 = vdwg.mxu0
    %4617 = vrot.lane.b32.xlu0 %v4607, 16
    %v4618 = vpop.permute.xlu0 %4617
    %4619 = vrot.lane.b32.xlu0 %v4612, 16
    %v4620 = vpop.permute.xlu0 %4619
    %v4623 = vsel %vm488, %v4406, %v4618
    %v4624 = vsel %vm488, %v4411, %v4620
    %v4626 = vsel %vm295, %v4623, 0
    %v4629 = vsel %vm295, %v4624, 0
    %4631 = vmatprep.subr.mxu0 0.0
    %4632 = vmatpush1.msra.mxu0 %v4058
    %4633 = vmatprep.subr.mxu0 0.0
    %4634 = vmatpush1.msra.mxu0 %v4059
    %4635 = vmatprep.subr.mxu0 0.0
    %4636 = vmatpush1.msra.mxu0 %v4060
    %4637 = vmatprep.subr.mxu0 0.0
    %4638 = vmatpush1.msra.mxu0 %v4061
    %4639 = vmatprep.subr.mxu0 0.0
    %4640 = vmatpush1.msra.mxu0 0.0
    %4641 = vmatprep.subr.mxu0 0.0
    %4642 = vmatpush1.msra.mxu0 0.0
    %4643 = vmatprep.subr.mxu0 0.0
    %4644 = vmatpush1.msra.mxu0 0.0
    %4645 = vmatprep.subr.mxu0 0.0
    %4646 = vmatpush1.msra.mxu0 0.0
    %4647 = vmatprep.subr.mxu0 0.0
    %4648 = vmatpush1.msra.mxu0 0.0
    %4649 = vmatprep.subr.mxu0 0.0
    %4650 = vmatpush1.msra.mxu0 0.0
    %4651 = vmatprep.subr.mxu0 0.0
    %4652 = vmatpush1.msra.mxu0 0.0
    %4653 = vmatprep.subr.mxu0 0.0
    %4654 = vmatpush1.msra.mxu0 0.0
    %4655 = vmatprep.subr.mxu0 0.0
    %4656 = vmatpush1.msra.mxu0 0.0
    %4657 = vmatprep.subr.mxu0 0.0
    %4658 = vmatpush1.msra.mxu0 0.0
    %4659 = vmatprep.subr.mxu0 0.0
    %4660 = vmatpush1.msra.mxu0 0.0
    %4661 = vmatprep.subr.mxu0 0.0
    %4662 = vmatpush1.msra.mxu0 0.0
    %4663 = vmatprep.subr.mxu0 0.0
    %4664 = vmatpush1.msra.mxu0 0.0
    %4665 = vmatprep.subr.mxu0 0.0
    %4666 = vmatpush1.msra.mxu0 0.0
    %4667 = vmatprep.subr.mxu0 0.0
    %4668 = vmatpush1.msra.mxu0 0.0
    %4669 = vmatprep.subr.mxu0 0.0
    %4670 = vmatpush1.msra.mxu0 0.0
    %4671 = vmatprep.subr.mxu0 0.0
    %4672 = vmatpush1.msra.mxu0 0.0
    %4673 = vmatprep.subr.mxu0 0.0
    %4674 = vmatpush1.msra.mxu0 0.0
    %4675 = vmatprep.subr.mxu0 0.0
    %4676 = vmatpush1.msra.mxu0 0.0
    %4677 = vmatprep.subr.mxu0 0.0
    %4678 = vmatpush1.msra.mxu0 0.0
    %4679 = vmatprep.subr.mxu0 0.0
    %4680 = vmatpush1.msra.mxu0 0.0
    %4681 = vmatprep.subr.mxu0 0.0
    %4682 = vmatpush1.msra.mxu0 0.0
    %4683 = vmatprep.subr.mxu0 0.0
    %4684 = vmatpush1.msra.mxu0 0.0
    %4685 = vmatprep.subr.mxu0 0.0
    %4686 = vmatpush1.msra.mxu0 0.0
    %4687 = vmatprep.subr.mxu0 0.0
    %4688 = vmatpush1.msra.mxu0 0.0
    %4689 = vmatprep.subr.mxu0 0.0
    %4690 = vmatpush1.msra.mxu0 0.0
    %4691 = vmatprep.subr.mxu0 0.0
    %4692 = vmatpush1.msra.mxu0 0.0
    %4693 = vmatprep.subr.mxu0 0.0
    %4694 = vmatpush1.msra.mxu0 0.0
    %4695 = vmatprep.mubr.f32.mxu0 0.0
    %4696 = vmatmul.mubr.f32.gmra.mrb[0].mxu0 %v4626
    %v4697 = vpop.f32.mrb[0].mxu0
    %v4698 = vadd.f32 0.0, %v4697
    %v4699 = vpop.f32.mrb[0].mxu0
    %4700 = vmatprep.mubr.f32.mxu0 0.0
    %4701 = vmatmul.mubr.f32.gmra.mrb[0].mxu0 %v4629
    %v4702 = vpop.f32.mrb[0].mxu0
    %v4703 = vadd.f32 0.0, %v4702
    %v4704 = vpop.f32.mrb[0].mxu0
    %4705 = vdwg.mxu0
    %v4706 = vadd.f32 %v4046, %v4698
    %v4707 = vadd.f32 %v4047, %v4703
    %v4708 = vlaneseq
    %v4709 = vshrl.u32 %v4708, 7
    %v4710 = vsub.s32 2, %v4709
    %v4711 = vrot.slane %v4049, %v4710
    %v4712 = vadd.f32 %v4706, %v4711
    %v4713 = vadd.f32 %v4707, %v4711
    %v4714 = vsel %vm295, %v4712, 0.0
    %4715 = vadd.xlane.f32.xlu0 %v4714
    %v4716 = vpop.xlane.xlu0 %4715
    %v4717 = vsel %vm3112, %v4713, 0.0
    %4718 = vadd.xlane.f32.xlu0 %v4717
    %v4719 = vpop.xlane.xlu0 %4718
    %v4720 = vmul.f32 %v4716, %v308
    %v4721 = vmul.f32 %v4719, %v308
    %v4722 = vmul.f32 %v4712, %v4712
    %v4723 = vmul.f32 %v4713, %v4713
    %v4724 = vsel %vm295, %v4722, 0.0
    %4725 = vadd.xlane.f32.xlu0 %v4724
    %v4726 = vpop.xlane.xlu0 %4725
    %v4727 = vsel %vm3112, %v4723, 0.0
    %4728 = vadd.xlane.f32.xlu0 %v4727
    %v4729 = vpop.xlane.xlu0 %4728
    %v4730 = vmul.f32 %v4726, %v308
    %v4731 = vmul.f32 %v4729, %v308
    %v4732 = vmul.f32 %v4720, %v4720
    %v4733 = vmul.f32 %v4721, %v4721
    %v4734 = vsub.f32 %v4730, %v4732
    %v4735 = vsub.f32 %v4731, %v4733
    %v4736 = vsub.f32 %v4712, %v4720
    %v4737 = vsub.f32 %v4713, %v4721
    %v4738 = vadd.f32 %v4734, 1e-05
    %v4739 = vadd.f32 %v4735, 1e-05
    %v4740 = vrsqrt.pop %v4738
    %v4741 = vrsqrt.pop %v4739
    %v4742 = vmul.f32 %v4736, %v4740
    %v4743 = vmul.f32 %v4737, %v4741
    %v4744 = vlaneseq
    %v4745 = vshrl.u32 %v4744, 7
    %v4746 = vsub.s32 3, %v4745
    %v4747 = vrot.slane %v4049, %v4746
    %v4748 = vmul.f32 %v4742, %v4747
    %v4749 = vmul.f32 %v4743, %v4747
    %v4750 = vlaneseq
    %v4751 = vshrl.u32 %v4750, 7
    %v4752 = vsub.s32 4, %v4751
    %v4753 = vrot.slane %v4049, %v4752
    %v4754 = vadd.f32 %v4748, %v4753
    %v4755 = vadd.f32 %v4749, %v4753
    %v4757 = vlaneseq
    %v4758 = vshrl.u32 %v4757, 7
    %v4759 = vsub.s32 0, %v4758
    %v4760 = vrot.slane %v4068, %v4759
    %v4763 = vsel %vm295, %v4754, 0
    %v4766 = vsel %vm295, %v4755, 0
    %4768 = vmatprep.subr.mxu0 0.0
    %4769 = vmatpush1.msra.mxu0 %v4063
    %4770 = vmatprep.subr.mxu0 0.0
    %4771 = vmatpush1.msra.mxu0 %v4064
    %4772 = vmatprep.subr.mxu0 0.0
    %4773 = vmatpush1.msra.mxu0 %v4065
    %4774 = vmatprep.subr.mxu0 0.0
    %4775 = vmatpush1.msra.mxu0 %v4066
    %4776 = vmatprep.subr.mxu0 0.0
    %4777 = vmatpush1.msra.mxu0 0.0
    %4778 = vmatprep.subr.mxu0 0.0
    %4779 = vmatpush1.msra.mxu0 0.0
    %4780 = vmatprep.subr.mxu0 0.0
    %4781 = vmatpush1.msra.mxu0 0.0
    %4782 = vmatprep.subr.mxu0 0.0
    %4783 = vmatpush1.msra.mxu0 0.0
    %4784 = vmatprep.subr.mxu0 0.0
    %4785 = vmatpush1.msra.mxu0 0.0
    %4786 = vmatprep.subr.mxu0 0.0
    %4787 = vmatpush1.msra.mxu0 0.0
    %4788 = vmatprep.subr.mxu0 0.0
    %4789 = vmatpush1.msra.mxu0 0.0
    %4790 = vmatprep.subr.mxu0 0.0
    %4791 = vmatpush1.msra.mxu0 0.0
    %4792 = vmatprep.subr.mxu0 0.0
    %4793 = vmatpush1.msra.mxu0 0.0
    %4794 = vmatprep.subr.mxu0 0.0
    %4795 = vmatpush1.msra.mxu0 0.0
    %4796 = vmatprep.subr.mxu0 0.0
    %4797 = vmatpush1.msra.mxu0 0.0
    %4798 = vmatprep.subr.mxu0 0.0
    %4799 = vmatpush1.msra.mxu0 0.0
    %4800 = vmatprep.subr.mxu0 0.0
    %4801 = vmatpush1.msra.mxu0 0.0
    %4802 = vmatprep.subr.mxu0 0.0
    %4803 = vmatpush1.msra.mxu0 0.0
    %4804 = vmatprep.subr.mxu0 0.0
    %4805 = vmatpush1.msra.mxu0 0.0
    %4806 = vmatprep.subr.mxu0 0.0
    %4807 = vmatpush1.msra.mxu0 0.0
    %4808 = vmatprep.subr.mxu0 0.0
    %4809 = vmatpush1.msra.mxu0 0.0
    %4810 = vmatprep.subr.mxu0 0.0
    %4811 = vmatpush1.msra.mxu0 0.0
    %4812 = vmatprep.subr.mxu0 0.0
    %4813 = vmatpush1.msra.mxu0 0.0
    %4814 = vmatprep.subr.mxu0 0.0
    %4815 = vmatpush1.msra.mxu0 0.0
    %4816 = vmatprep.subr.mxu0 0.0
    %4817 = vmatpush1.msra.mxu0 0.0
    %4818 = vmatprep.subr.mxu0 0.0
    %4819 = vmatpush1.msra.mxu0 0.0
    %4820 = vmatprep.subr.mxu0 0.0
    %4821 = vmatpush1.msra.mxu0 0.0
    %4822 = vmatprep.subr.mxu0 0.0
    %4823 = vmatpush1.msra.mxu0 0.0
    %4824 = vmatprep.subr.mxu0 0.0
    %4825 = vmatpush1.msra.mxu0 0.0
    %4826 = vmatprep.subr.mxu0 0.0
    %4827 = vmatpush1.msra.mxu0 0.0
    %4828 = vmatprep.subr.mxu0 0.0
    %4829 = vmatpush1.msra.mxu0 0.0
    %4830 = vmatprep.subr.mxu0 0.0
    %4831 = vmatpush1.msra.mxu0 0.0
    %4832 = vmatprep.mubr.f32.mxu0 0.0
    %4833 = vmatmul.mubr.f32.gmra.mrb[0].mxu0 %v4763
    %v4834 = vpop.f32.mrb[0].mxu0
    %v4835 = vadd.f32 %v4760, %v4834
    %v4836 = vpop.f32.mrb[0].mxu0
    %4837 = vmatprep.mubr.f32.mxu0 0.0
    %4838 = vmatmul.mubr.f32.gmra.mrb[0].mxu0 %v4766
    %v4839 = vpop.f32.mrb[0].mxu0
    %v4840 = vadd.f32 %v4760, %v4839
    %v4841 = vpop.f32.mrb[0].mxu0
    %4842 = vdwg.mxu0
    %v4843 = vmul.f32 %v4835, 1.702
    %v4844 = vmul.f32 %v4840, 1.702
    %v4845 = vxor.u32 %v4843, 2147483648
    %v4846 = vxor.u32 %v4844, 2147483648
    %v4847 = vmul.f32 %v4845, 1.442695
    %v4848 = vpow.pop %v4847
    %v4849 = vmul.f32 %v4846, 1.442695
    %v4850 = vpow.pop %v4849
    %v4851 = vadd.f32 %v4848, 1.0
    %v4852 = vadd.f32 %v4850, 1.0
    %v4853 = vrcp.pop %v4851
    %v4854 = vmul.f32 1.0, %v4853
    %v4855 = vrcp.pop %v4852
    %v4856 = vmul.f32 1.0, %v4855
    %v4857 = vmul.f32 %v4835, %v4854
    %v4858 = vmul.f32 %v4840, %v4856
    %4859 = vmatprep.subr.mxu0 0.0
    %4860 = vmatpush1.msra.mxu0 %v4070
    %4861 = vmatprep.subr.mxu0 0.0
    %4862 = vmatpush1.msra.mxu0 %v4071
    %4863 = vmatprep.subr.mxu0 0.0
    %4864 = vmatpush1.msra.mxu0 %v4072
    %4865 = vmatprep.subr.mxu0 0.0
    %4866 = vmatpush1.msra.mxu0 %v4073
    %4867 = vmatprep.subr.mxu0 0.0
    %4868 = vmatpush1.msra.mxu0 %v4074
    %4869 = vmatprep.subr.mxu0 0.0
    %4870 = vmatpush1.msra.mxu0 %v4075
    %4871 = vmatprep.subr.mxu0 0.0
    %4872 = vmatpush1.msra.mxu0 %v4076
    %4873 = vmatprep.subr.mxu0 0.0
    %4874 = vmatpush1.msra.mxu0 %v4077
    %4875 = vmatprep.subr.mxu0 0.0
    %4876 = vmatpush1.msra.mxu0 %v4078
    %4877 = vmatprep.subr.mxu0 0.0
    %4878 = vmatpush1.msra.mxu0 %v4079
    %4879 = vmatprep.subr.mxu0 0.0
    %4880 = vmatpush1.msra.mxu0 %v4080
    %4881 = vmatprep.subr.mxu0 0.0
    %4882 = vmatpush1.msra.mxu0 %v4081
    %4883 = vmatprep.subr.mxu0 0.0
    %4884 = vmatpush1.msra.mxu0 %v4082
    %4885 = vmatprep.subr.mxu0 0.0
    %4886 = vmatpush1.msra.mxu0 %v4083
    %4887 = vmatprep.subr.mxu0 0.0
    %4888 = vmatpush1.msra.mxu0 %v4084
    %4889 = vmatprep.subr.mxu0 0.0
    %4890 = vmatpush1.msra.mxu0 %v4085
    %4891 = vmatprep.subr.mxu0 0.0
    %4892 = vmatpush1.msra.mxu0 0.0
    %4893 = vmatprep.subr.mxu0 0.0
    %4894 = vmatpush1.msra.mxu0 0.0
    %4895 = vmatprep.subr.mxu0 0.0
    %4896 = vmatpush1.msra.mxu0 0.0
    %4897 = vmatprep.subr.mxu0 0.0
    %4898 = vmatpush1.msra.mxu0 0.0
    %4899 = vmatprep.subr.mxu0 0.0
    %4900 = vmatpush1.msra.mxu0 0.0
    %4901 = vmatprep.subr.mxu0 0.0
    %4902 = vmatpush1.msra.mxu0 0.0
    %4903 = vmatprep.subr.mxu0 0.0
    %4904 = vmatpush1.msra.mxu0 0.0
    %4905 = vmatprep.subr.mxu0 0.0
    %4906 = vmatpush1.msra.mxu0 0.0
    %4907 = vmatprep.subr.mxu0 0.0
    %4908 = vmatpush1.msra.mxu0 0.0
    %4909 = vmatprep.subr.mxu0 0.0
    %4910 = vmatpush1.msra.mxu0 0.0
    %4911 = vmatprep.subr.mxu0 0.0
    %4912 = vmatpush1.msra.mxu0 0.0
    %4913 = vmatprep.subr.mxu0 0.0
    %4914 = vmatpush1.msra.mxu0 0.0
    %4915 = vmatprep.subr.mxu0 0.0
    %4916 = vmatpush1.msra.mxu0 0.0
    %4917 = vmatprep.subr.mxu0 0.0
    %4918 = vmatpush1.msra.mxu0 0.0
    %4919 = vmatprep.subr.mxu0 0.0
    %4920 = vmatpush1.msra.mxu0 0.0
    %4921 = vmatprep.subr.mxu0 0.0
    %4922 = vmatpush1.msra.mxu0 0.0
    %4923 = vmatprep.mubr.f32.mxu0 0.0
    %4924 = vmatmul.mubr.f32.gmra.mrb[0].mxu0 %v4857
    %v4925 = vpop.f32.mrb[0].mxu0
    %v4926 = vadd.f32 0.0, %v4925
    %v4927 = vpop.f32.mrb[0].mxu0
    %4928 = vmatprep.mubr.f32.mxu0 0.0
    %4929 = vmatmul.mubr.f32.gmra.mrb[0].mxu0 %v4858
    %v4930 = vpop.f32.mrb[0].mxu0
    %v4931 = vadd.f32 0.0, %v4930
    %v4932 = vpop.f32.mrb[0].mxu0
    %4933 = vdwg.mxu0
    %v4934 = vadd.f32 %v4712, %v4926
    %v4935 = vadd.f32 %v4713, %v4931
    %v4936 = vlaneseq
    %v4937 = vshrl.u32 %v4936, 7
    %v4938 = vsub.s32 5, %v4937
    %v4939 = vrot.slane %v4049, %v4938
    %v4940 = vadd.f32 %v4934, %v4939
    %v4941 = vadd.f32 %v4935, %v4939
    %v4942 = vld [vmem:[%s61] sm:$0x3]
    %v4944 = vsel %vm3407, %v4942, 0
    %v4947 = vsel %vm3442, %v4941, 0
    %4949 = vmatprep.subr.mxu0 0.0
    %4950 = vmatpush1.msra.mxu0 %v4940
    %4951 = vmatprep.subr.mxu0 0.0
    %4952 = vmatpush1.msra.mxu0 %v4947
    %4953 = vmatprep.subr.mxu0 0.0
    %4954 = vmatpush1.msra.mxu0 0.0
    %4955 = vmatprep.subr.mxu0 0.0
    %4956 = vmatpush1.msra.mxu0 0.0
    %4957 = vmatprep.subr.mxu0 0.0
    %4958 = vmatpush1.msra.mxu0 0.0
    %4959 = vmatprep.subr.mxu0 0.0
    %4960 = vmatpush1.msra.mxu0 0.0
    %4961 = vmatprep.subr.mxu0 0.0
    %4962 = vmatpush1.msra.mxu0 0.0
    %4963 = vmatprep.subr.mxu0 0.0
    %4964 = vmatpush1.msra.mxu0 0.0
    %4965 = vmatprep.subr.mxu0 0.0
    %4966 = vmatpush1.msra.mxu0 0.0
    %4967 = vmatprep.subr.mxu0 0.0
    %4968 = vmatpush1.msra.mxu0 0.0
    %4969 = vmatprep.subr.mxu0 0.0
    %4970 = vmatpush1.msra.mxu0 0.0
    %4971 = vmatprep.subr.mxu0 0.0
    %4972 = vmatpush1.msra.mxu0 0.0
    %4973 = vmatprep.subr.mxu0 0.0
    %4974 = vmatpush1.msra.mxu0 0.0
    %4975 = vmatprep.subr.mxu0 0.0
    %4976 = vmatpush1.msra.mxu0 0.0
    %4977 = vmatprep.subr.mxu0 0.0
    %4978 = vmatpush1.msra.mxu0 0.0
    %4979 = vmatprep.subr.mxu0 0.0
    %4980 = vmatpush1.msra.mxu0 0.0
    %4981 = vmatprep.subr.mxu0 0.0
    %4982 = vmatpush1.msra.mxu0 0.0
    %4983 = vmatprep.subr.mxu0 0.0
    %4984 = vmatpush1.msra.mxu0 0.0
    %4985 = vmatprep.subr.mxu0 0.0
    %4986 = vmatpush1.msra.mxu0 0.0
    %4987 = vmatprep.subr.mxu0 0.0
    %4988 = vmatpush1.msra.mxu0 0.0
    %4989 = vmatprep.subr.mxu0 0.0
    %4990 = vmatpush1.msra.mxu0 0.0
    %4991 = vmatprep.subr.mxu0 0.0
    %4992 = vmatpush1.msra.mxu0 0.0
    %4993 = vmatprep.subr.mxu0 0.0
    %4994 = vmatpush1.msra.mxu0 0.0
    %4995 = vmatprep.subr.mxu0 0.0
    %4996 = vmatpush1.msra.mxu0 0.0
    %4997 = vmatprep.subr.mxu0 0.0
    %4998 = vmatpush1.msra.mxu0 0.0
    %4999 = vmatprep.subr.mxu0 0.0
    %5000 = vmatpush1.msra.mxu0 0.0
    %5001 = vmatprep.subr.mxu0 0.0
    %5002 = vmatpush1.msra.mxu0 0.0
    %5003 = vmatprep.subr.mxu0 0.0
    %5004 = vmatpush1.msra.mxu0 0.0
    %5005 = vmatprep.subr.mxu0 0.0
    %5006 = vmatpush1.msra.mxu0 0.0
    %5007 = vmatprep.subr.mxu0 0.0
    %5008 = vmatpush1.msra.mxu0 0.0
    %5009 = vmatprep.subr.mxu0 0.0
    %5010 = vmatpush1.msra.mxu0 0.0
    %5011 = vmatprep.subr.mxu0 0.0
    %5012 = vmatpush1.msra.mxu0 0.0
    %5013 = vmatprep.mubr.f32.mxu0 0.0
    %5014 = vmatmul.mubr.f32.gmra.mrb[0].mxu0 %v4944
    %v5015 = vpop.f32.mrb[0].mxu0
    %v5016 = vadd.f32 0.0, %v5015
    %v5017 = vpop.f32.mrb[0].mxu0
    %5018 = vdwg.mxu0
    %v5019 = vld [vmem:[%s63] sm:$0x1]
    %v5020 = vld [vmem:[%s65] sm:$0x1]
    %v5021 = vsel %vm3112, %v5016, 0.0
    %5022 = vadd.xlane.f32.xlu0 %v5021
    %v5023 = vpop.xlane.xlu0 %5022
    %v5024 = vmul.f32 %v5023, %v308
    %v5025 = vmul.f32 %v5016, %v5016
    %v5026 = vsel %vm3112, %v5025, 0.0
    %5027 = vadd.xlane.f32.xlu0 %v5026
    %v5028 = vpop.xlane.xlu0 %5027
    %v5029 = vmul.f32 %v5028, %v308
    %v5030 = vmul.f32 %v5024, %v5024
    %v5031 = vsub.f32 %v5029, %v5030
    %v5032 = vsub.f32 %v5016, %v5024
    %v5033 = vadd.f32 %v5031, 1e-05
    %v5034 = vrsqrt.pop %v5033
    %v5035 = vmul.f32 %v5032, %v5034
    %v5037 = vlaneseq
    %v5038 = vshrl.u32 %v5037, 7
    %v5039 = vsub.s32 0, %v5038
    %v5040 = vrot.slane %v5019, %v5039
    %v5042 = vmul.f32 %v5035, %v5040
    %v5044 = vlaneseq
    %v5045 = vshrl.u32 %v5044, 7
    %v5046 = vsub.s32 0, %v5045
    %v5047 = vrot.slane %v5020, %v5046
    %v5049 = vadd.f32 %v5042, %v5047
    %v5050 = vld [vmem:[%s67] sm:$0xff]
    %v5051 = vld [vmem:[%s67 + $0x8] sm:$0xff]
    %v5052 = vld [vmem:[%s67 + $0x10] sm:$0xff]
    %v5053 = vld [vmem:[%s67 + $0x18] sm:$0xff]
    %v5055 = vsel %vm295, %v5049, 0
    %5057 = vmatprep.subr.mxu0 0.0
    %5058 = vmatpush1.msra.mxu0 %v5050
    %5059 = vmatprep.subr.mxu0 0.0
    %5060 = vmatpush1.msra.mxu0 %v5051
    %5061 = vmatprep.subr.mxu0 0.0
    %5062 = vmatpush1.msra.mxu0 %v5052
    %5063 = vmatprep.subr.mxu0 0.0
    %5064 = vmatpush1.msra.mxu0 %v5053
    %5065 = vmatprep.subr.mxu0 0.0
    %5066 = vmatpush1.msra.mxu0 0.0
    %5067 = vmatprep.subr.mxu0 0.0
    %5068 = vmatpush1.msra.mxu0 0.0
    %5069 = vmatprep.subr.mxu0 0.0
    %5070 = vmatpush1.msra.mxu0 0.0
    %5071 = vmatprep.subr.mxu0 0.0
    %5072 = vmatpush1.msra.mxu0 0.0
    %5073 = vmatprep.subr.mxu0 0.0
    %5074 = vmatpush1.msra.mxu0 0.0
    %5075 = vmatprep.subr.mxu0 0.0
    %5076 = vmatpush1.msra.mxu0 0.0
    %5077 = vmatprep.subr.mxu0 0.0
    %5078 = vmatpush1.msra.mxu0 0.0
    %5079 = vmatprep.subr.mxu0 0.0
    %5080 = vmatpush1.msra.mxu0 0.0
    %5081 = vmatprep.subr.mxu0 0.0
    %5082 = vmatpush1.msra.mxu0 0.0
    %5083 = vmatprep.subr.mxu0 0.0
    %5084 = vmatpush1.msra.mxu0 0.0
    %5085 = vmatprep.subr.mxu0 0.0
    %5086 = vmatpush1.msra.mxu0 0.0
    %5087 = vmatprep.subr.mxu0 0.0
    %5088 = vmatpush1.msra.mxu0 0.0
    %5089 = vmatprep.subr.mxu0 0.0
    %5090 = vmatpush1.msra.mxu0 0.0
    %5091 = vmatprep.subr.mxu0 0.0
    %5092 = vmatpush1.msra.mxu0 0.0
    %5093 = vmatprep.subr.mxu0 0.0
    %5094 = vmatpush1.msra.mxu0 0.0
    %5095 = vmatprep.subr.mxu0 0.0
    %5096 = vmatpush1.msra.mxu0 0.0
    %5097 = vmatprep.subr.mxu0 0.0
    %5098 = vmatpush1.msra.mxu0 0.0
    %5099 = vmatprep.subr.mxu0 0.0
    %5100 = vmatpush1.msra.mxu0 0.0
    %5101 = vmatprep.subr.mxu0 0.0
    %5102 = vmatpush1.msra.mxu0 0.0
    %5103 = vmatprep.subr.mxu0 0.0
    %5104 = vmatpush1.msra.mxu0 0.0
    %5105 = vmatprep.subr.mxu0 0.0
    %5106 = vmatpush1.msra.mxu0 0.0
    %5107 = vmatprep.subr.mxu0 0.0
    %5108 = vmatpush1.msra.mxu0 0.0
    %5109 = vmatprep.subr.mxu0 0.0
    %5110 = vmatpush1.msra.mxu0 0.0
    %5111 = vmatprep.subr.mxu0 0.0
    %5112 = vmatpush1.msra.mxu0 0.0
    %5113 = vmatprep.subr.mxu0 0.0
    %5114 = vmatpush1.msra.mxu0 0.0
    %5115 = vmatprep.subr.mxu0 0.0
    %5116 = vmatpush1.msra.mxu0 0.0
    %5117 = vmatprep.subr.mxu0 0.0
    %5118 = vmatpush1.msra.mxu0 0.0
    %5119 = vmatprep.subr.mxu0 0.0
    %5120 = vmatpush1.msra.mxu0 0.0
    %5121 = vmatprep.mubr.f32.mxu0 0.0
    %5122 = vmatmul.mubr.f32.gmra.mrb[0].mxu0 %v5055
    %v5123 = vpop.f32.mrb[0].mxu0
    %v5124 = vadd.f32 0.0, %v5123
    %v5125 = vpop.f32.mrb[0].mxu0
    %5126 = vdwg.mxu0
    %v5127 = vmul.f32 %v5124, %v5124
    %v5128 = vsel %vm3112, %v5127, 0.0
    %5129 = vadd.xlane.f32.xlu0 %v5128
    %v5130 = vpop.xlane.xlu0 %5129
    %v5131 = vrsqrt.pop %v5130
    %v5132 = vmul.f32 %v5124, %v5131
    %v5133 = vmul.f32 %v2832, %v2832
    %v5134 = vsel %vm2728, %v5133, 0.0
    %5135 = vadd.xlane.f32.xlu0 %v5134
    %v5136 = vpop.xlane.xlu0 %5135
    %v5137 = vrsqrt.pop %v5136
    %v5138 = vmul.f32 %v2832, %v5137
    %v5140 = vsel %vm295, %v5132, 0
    %v5143 = vsel %vm295, %v5138, 0
    %5145 = vmatprep.subr.mxu0 0.0
    %5146 = vmatpush1.xpose.msra.mxu0 %v5143
    %5147 = vmatprep.subr.mxu0 0.0
    %5148 = vmatpush1.xpose.msra.mxu0 0.0
    %5149 = vmatprep.subr.mxu0 0.0
    %5150 = vmatpush1.xpose.msra.mxu0 0.0
    %5151 = vmatprep.subr.mxu0 0.0
    %5152 = vmatpush1.xpose.msra.mxu0 0.0
    %5153 = vmatprep.subr.mxu0 0.0
    %5154 = vmatpush1.xpose.msra.mxu0 0.0
    %5155 = vmatprep.subr.mxu0 0.0
    %5156 = vmatpush1.xpose.msra.mxu0 0.0
    %5157 = vmatprep.subr.mxu0 0.0
    %5158 = vmatpush1.xpose.msra.mxu0 0.0
    %5159 = vmatprep.subr.mxu0 0.0
    %5160 = vmatpush1.xpose.msra.mxu0 0.0
    %5161 = vmatprep.subr.mxu0 0.0
    %5162 = vmatpush1.xpose.msra.mxu0 0.0
    %5163 = vmatprep.subr.mxu0 0.0
    %5164 = vmatpush1.xpose.msra.mxu0 0.0
    %5165 = vmatprep.subr.mxu0 0.0
    %5166 = vmatpush1.xpose.msra.mxu0 0.0
    %5167 = vmatprep.subr.mxu0 0.0
    %5168 = vmatpush1.xpose.msra.mxu0 0.0
    %5169 = vmatprep.subr.mxu0 0.0
    %5170 = vmatpush1.xpose.msra.mxu0 0.0
    %5171 = vmatprep.subr.mxu0 0.0
    %5172 = vmatpush1.xpose.msra.mxu0 0.0
    %5173 = vmatprep.subr.mxu0 0.0
    %5174 = vmatpush1.xpose.msra.mxu0 0.0
    %5175 = vmatprep.subr.mxu0 0.0
    %5176 = vmatpush1.xpose.msra.mxu0 0.0
    %5177 = vmatprep.subr.mxu0 0.0
    %5178 = vmatpush1.xpose.msra.mxu0 0.0
    %5179 = vmatprep.subr.mxu0 0.0
    %5180 = vmatpush1.xpose.msra.mxu0 0.0
    %5181 = vmatprep.subr.mxu0 0.0
    %5182 = vmatpush1.xpose.msra.mxu0 0.0
    %5183 = vmatprep.subr.mxu0 0.0
    %5184 = vmatpush1.xpose.msra.mxu0 0.0
    %5185 = vmatprep.subr.mxu0 0.0
    %5186 = vmatpush1.xpose.msra.mxu0 0.0
    %5187 = vmatprep.subr.mxu0 0.0
    %5188 = vmatpush1.xpose.msra.mxu0 0.0
    %5189 = vmatprep.subr.mxu0 0.0
    %5190 = vmatpush1.xpose.msra.mxu0 0.0
    %5191 = vmatprep.subr.mxu0 0.0
    %5192 = vmatpush1.xpose.msra.mxu0 0.0
    %5193 = vmatprep.subr.mxu0 0.0
    %5194 = vmatpush1.xpose.msra.mxu0 0.0
    %5195 = vmatprep.subr.mxu0 0.0
    %5196 = vmatpush1.xpose.msra.mxu0 0.0
    %5197 = vmatprep.subr.mxu0 0.0
    %5198 = vmatpush1.xpose.msra.mxu0 0.0
    %5199 = vmatprep.subr.mxu0 0.0
    %5200 = vmatpush1.xpose.msra.mxu0 0.0
    %5201 = vmatprep.subr.mxu0 0.0
    %5202 = vmatpush1.xpose.msra.mxu0 0.0
    %5203 = vmatprep.subr.mxu0 0.0
    %5204 = vmatpush1.xpose.msra.mxu0 0.0
    %5205 = vmatprep.subr.mxu0 0.0
    %5206 = vmatpush1.xpose.msra.mxu0 0.0
    %5207 = vmatprep.subr.mxu0 0.0
    %5208 = vmatpush1.xpose.msra.mxu0 0.0
    %5209 = vmatprep.mubr.f32.mxu0 0.0
    %5210 = vmatmul.mubr.f32.gmra.mrb[0].mxu0 %v5140
    %v5211 = vpop.f32.mrb[0].mxu0
    %v5212 = vadd.f32 0.0, %v5211
    %v5213 = vpop.f32.mrb[0].mxu0
    %5214 = vdwg.mxu0
    %v5215 = vld [vmem:[#allocation2] sm:$0x1]
    %v5216 = vmul.f32 %v5215, 1.442695
    %v5217 = vpow.pop %v5216
    %v5219 = vlaneseq
    %v5220 = vshrl.u32 %v5219, 7
    %v5221 = vsub.s32 0, %v5220
    %v5222 = vrot.slane %v5217, %v5221
    %5223 = vset.pattern.permute.xlu0 0
    %5224 = vperm.xlu0 %5223, %v5222
    %v5225 = vpop.permute.xlu0 %5224
    %v5227 = vmul.f32 %v5225, %v5212
    %vm5228 = vcmask 25600
    %5229 = vst.msk [vmem:[#allocation3] sm:$0x3] %vm5228, %v5227
    // Predicated region
    $region142: #{custom_clip_forward.1} parent=1 // pred_check
      _
    $region143: #{custom_clip_forward.1} parent=1 // pred_check_branch
      %5231 = sbr.rel (0) target = $region145
    $region144: #{custom_clip_forward.1} parent=1 // pred_region
      %s5233 = ssub.s32 32, 32
      %5234 = vsyncadd [#allocation4], %s5233
      %s5236 = sshll.u32 [#allocation3], 4
      %s5237 = int_to_ptr.vmem [resolvable:$true] %s5236
      %5239 = dma.vmem_to_hbm [thread:$0]  %s5237, 32, %s71, [#allocation4]
    $region145: #{custom_clip_forward.1} parent=1 // pred_fallthru
      _
    // Predicated region
    $region146: #{custom_clip_forward.1} parent=1 // pred_check
      _
    $region147: #{custom_clip_forward.1} parent=1 // pred_check_branch
      %5241 = sbr.rel (0) target = $region149
    $region148: #{custom_clip_forward.1} parent=1 // pred_region
      %5242 = dma.done [#allocation4], 32
    $region149: #{custom_clip_forward.1} parent=1 // pred_fallthru
      _
    %5243 = vsyncpa [#allocation4], 1

</llo_original>
